<compile_context>
chip_gen: v7x
topology: tpu7x:2x2x1
jax: 0.10.0
libtpu: 0.0.40
codegen_flags: <defaults>
</compile_context>

<pallas_src>
import numpy as np

import jax
import jax.numpy as jnp
from jax.experimental import pallas as pl
from jax.experimental.pallas import tpu as pltpu


# ------------------------------ fused kernel -------------------------------

def _digit_kernel(x_ref, w1f_ref, b1r_ref, g_ref, w2f_ref, b2r_ref,
                  wfc1_ref, bfc1_ref, wfc2_ref, bfc2_ref, o_ref):
    f32 = jnp.float32
    bf16 = jnp.bfloat16
    b = x_ref.shape[1]                      # batch tile (multiple of 16)

    # ---- conv1: 1->10, 5x5, pad 2 (+bias, ReLU) -----------------------------
    # x_ref is the y-padded, y-major image tile: (32, b, 28), row yp holds
    # original row yp-2 (zeros for yp<2 or yp>=30).  Flatten rows to
    # (32*b, 28) (tile-aligned, free) and lay the 5 y-taps side by side in
    # lanes -> one matmul against the banded weight (140, 10*28).
    xs = x_ref[...].reshape(32 * b, 28).astype(bf16)
    lhs1 = jnp.concatenate(
        [xs[ky * b: ky * b + 28 * b, :] for ky in range(5)], axis=1)  # (28b,140)
    acc1 = jnp.dot(lhs1, w1f_ref[...], preferred_element_type=f32)
    acc1 = jnp.maximum(acc1 + b1r_ref[...], 0.0)          # (28b, 280) rows=(y,b)

    # ---- 2x2 max pool --------------------------------------------------------
    # Row (y) pooling: tile-aligned even/odd row-group max.
    a3 = acc1.reshape(14, 2 * b, 280)
    u = jnp.maximum(a3[:, :b, :], a3[:, b:, :]).reshape(14 * b, 280)
    # Column (x) pooling: 0/1 selection matmuls picking even/odd x per channel.
    u_bf = u.astype(bf16)
    pooled = jnp.maximum(
        jnp.dot(u_bf, g_ref[0], preferred_element_type=f32),
        jnp.dot(u_bf, g_ref[1], preferred_element_type=f32))  # (14b, 140)
    p_bf = pooled.astype(bf16)

    # ---- conv2: 10->20, 3x3, pad 1 (+bias, ReLU) ----------------------------
    # y-taps (y-1, y, y+1) as tile-aligned shifted row-group slices (zeros at
    # the borders), concatenated in lanes -> one (14b,420)x(420,280) matmul.
    zrow = jnp.zeros((b, 140), bf16)
    top = jnp.concatenate([zrow, p_bf[:13 * b, :]], axis=0)   # rows y-1
    bot = jnp.concatenate([p_bf[b:, :], zrow], axis=0)        # rows y+1
    lhs2 = jnp.concatenate([top, p_bf, bot], axis=1)          # (14b, 420)
    acc2 = jnp.dot(lhs2, w2f_ref[...], preferred_element_type=f32)
    acc2 = jnp.maximum(acc2 + b2r_ref[...], 0.0)              # (14b, 280)

    # ---- fc1: 3920 -> 500 (+ReLU), 14 fat (b, 280) x (280, 500) matmuls -----
    a2 = acc2.reshape(14, b, 280).astype(bf16)
    h = jnp.dot(a2[0], wfc1_ref[0], preferred_element_type=f32)
    for y in range(1, 14):
        h = h + jnp.dot(a2[y], wfc1_ref[y], preferred_element_type=f32)
    h = jnp.maximum(h + bfc1_ref[...], 0.0)                   # (b, 500)

    # ---- fc2: 500 -> 10 + log_softmax(dim=1) --------------------------------
    z = jnp.dot(h.astype(bf16), wfc2_ref[...], preferred_element_type=f32)
    z = z + bfc2_ref[...]
    m = jnp.max(z, axis=-1, keepdims=True)
    s = z - m
    lse = jnp.log(jnp.sum(jnp.exp(s), axis=-1, keepdims=True))
    o_ref[...] = s - lse                                      # (b, 10)


def _round_up(x, m):
    return (x + m - 1) // m * m


def digit_forward(pp, x, btile=None):
    """x: (N, 1, 28, 28) f32 -> (N, 10) log-probabilities.

    btile = images per grid step (rounded up to a multiple of 16; default
    min(128, N rounded up)).  The batch is zero-padded to a multiple of btile.
    """
    n = x.shape[0]
    if btile is None:
        btile = min(128, _round_up(max(n, 1), 16))
    btile = max(16, _round_up(btile, 16))
    n_pad = _round_up(n, btile)

    xs = x.reshape(n, 28, 28).astype(jnp.float32)
    # pad batch to n_pad and image rows by 2 top/bottom (conv1 padding)
    xs = jnp.pad(xs, ((0, n_pad - n), (2, 2), (0, 0)))
    # y-major layout: (32, n_pad, 28); row yp, image b, col x
    xpt = jnp.transpose(xs, (1, 0, 2))

    out = pl.pallas_call(
        _digit_kernel,
        out_shape=jax.ShapeDtypeStruct((n_pad, 10), jnp.float32),
        grid=(n_pad // btile,),
        in_specs=[
            pl.BlockSpec((32, btile, 28), lambda i: (0, i, 0)),  # padded images
            pl.BlockSpec((140, 280), lambda i: (0, 0)),          # conv1 banded W
            pl.BlockSpec((1, 280), lambda i: (0, 0)),            # conv1 bias (rep)
            pl.BlockSpec((2, 280, 140), lambda i: (0, 0, 0)),    # pool col select
            pl.BlockSpec((420, 280), lambda i: (0, 0)),          # conv2 banded W
            pl.BlockSpec((1, 280), lambda i: (0, 0)),            # conv2 bias (rep)
            pl.BlockSpec((14, 280, 500), lambda i: (0, 0, 0)),   # fc1 W (bf16)
            pl.BlockSpec((1, 500), lambda i: (0, 0)),            # fc1 bias
            pl.BlockSpec((500, 10), lambda i: (0, 0)),           # fc2 W (bf16)
            pl.BlockSpec((1, 10), lambda i: (0, 0)),             # fc2 bias
        ],
        out_specs=pl.BlockSpec((btile, 10), lambda i: (i, 0)),
        compiler_params=pltpu.CompilerParams(
            dimension_semantics=("parallel",),
            vmem_limit_bytes=40 * 1024 * 1024),
    )(xpt, pp["w1f"], pp["b1r"], pp["g"], pp["w2f"], pp["b2r"],
      pp["wfc1"], pp["bfc1"], pp["wfc2"], pp["bfc2"])
    return out[:n]


# ------------------ one-time parameter repack (outside jit) -----------------

def prepare_params(params):
    """Repack PyTorch-layout weights into the banded / selection matrices the
    fused kernel consumes (run once, outside jit).  Matmul weights -> bf16."""
    w1 = np.asarray(params["w1"], np.float32)        # (10, 1, 5, 5)
    b1 = np.asarray(params["b1"], np.float32)
    w2 = np.asarray(params["w2"], np.float32)        # (20, 10, 3, 3)
    b2 = np.asarray(params["b2"], np.float32)
    fc1_w = np.asarray(params["fc1_w"], np.float32)  # (500, 3920)
    fc1_b = np.asarray(params["fc1_b"], np.float32)
    fc2_w = np.asarray(params["fc2_w"], np.float32)  # (10, 500)
    fc2_b = np.asarray(params["fc2_b"], np.float32)

    # conv1 banded: W1F[ky*28 + xp, co*28 + x] = w1[co, 0, ky, xp - x + 2]
    w1b = np.zeros((5, 28, 10, 28), np.float32)
    for ky in range(5):
        for kx in range(5):
            for x in range(28):
                xp = x + kx - 2
                if 0 <= xp < 28:
                    w1b[ky, xp, :, x] = w1[:, 0, ky, kx]
    w1f = w1b.reshape(5 * 28, 10 * 28)
    b1r = np.repeat(b1, 28).reshape(1, 280)

    # 2x2 max-pool column-selection matrices (even / odd x within a channel)
    g = np.zeros((2, 280, 140), np.float32)
    for c in range(10):
        for i in range(14):
            g[0, c * 28 + 2 * i, c * 14 + i] = 1.0
            g[1, c * 28 + 2 * i + 1, c * 14 + i] = 1.0

    # conv2 banded: W2F[ky*140 + ci*14 + xp, co*14 + x] = w2[co, ci, ky, xp-x+1]
    w2b = np.zeros((3, 10, 14, 20, 14), np.float32)
    for ky in range(3):
        for kx in range(3):
            for x in range(14):
                xp = x + kx - 1
                if 0 <= xp < 14:
                    w2b[ky, :, xp, :, x] = w2[:, :, ky, kx].T
    w2f = w2b.reshape(3 * 140, 20 * 14)
    b2r = np.repeat(b2, 14).reshape(1, 280)

    # fc1 weights regrouped to the kernel's (y, co*14 + x) activation layout
    wfc1 = (fc1_w.reshape(500, 20, 14, 14)
            .transpose(2, 1, 3, 0)
            .reshape(14, 280, 500))

    return {
        "w1f": jnp.asarray(w1f, jnp.bfloat16),
        "b1r": jnp.asarray(b1r),
        "g": jnp.asarray(g, jnp.bfloat16),
        "w2f": jnp.asarray(w2f, jnp.bfloat16),
        "b2r": jnp.asarray(b2r),
        "wfc1": jnp.asarray(wfc1, jnp.bfloat16),
        "bfc1": jnp.asarray(fc1_b.reshape(1, 500)),
        "wfc2": jnp.asarray(np.ascontiguousarray(fc2_w.T), jnp.bfloat16),
        "bfc2": jnp.asarray(fc2_b.reshape(1, 10)),
    }


# ------------------------- deterministic parameters -------------------------

def init_params(key):
    ks = jax.random.split(key, 8)

    def u(k, shape, fan_in):
        bound = 1.0 / jnp.sqrt(jnp.float32(fan_in))
        return jax.random.uniform(k, shape, jnp.float32, -bound, bound)

    return {
        "w1": u(ks[0], (10, 1, 5, 5), 1 * 5 * 5),
        "b1": u(ks[1], (10,), 1 * 5 * 5),
        "w2": u(ks[2], (20, 10, 3, 3), 10 * 3 * 3),
        "b2": u(ks[3], (20,), 10 * 3 * 3),
        "fc1_w": u(ks[4], (500, 20 * 14 * 14), 20 * 14 * 14),
        "fc1_b": u(ks[5], (500,), 20 * 14 * 14),
        "fc2_w": u(ks[6], (10, 500), 500),
        "fc2_b": u(ks[7], (10,), 500),
    }


# ----------------------------- pure-JAX reference ---------------------------

def digit_reference(params, x):
    h = jax.lax.conv_general_dilated(
        x, params["w1"], window_strides=(1, 1), padding=((2, 2), (2, 2)),
        dimension_numbers=("NCHW", "OIHW", "NCHW"))
    h = jax.nn.relu(h + params["b1"][None, :, None, None])
    h = jax.lax.reduce_window(h, -jnp.inf, jax.lax.max,
                              (1, 1, 2, 2), (1, 1, 2, 2), "VALID")
    h = jax.lax.conv_general_dilated(
        h, params["w2"], window_strides=(1, 1), padding=((1, 1), (1, 1)),
        dimension_numbers=("NCHW", "OIHW", "NCHW"))
    h = jax.nn.relu(h + params["b2"][None, :, None, None])
    h = h.reshape(x.shape[0], -1)
    h = jax.nn.relu(h @ params["fc1_w"].T + params["fc1_b"])
    z = h @ params["fc2_w"].T + params["fc2_b"]
    return jax.nn.log_softmax(z, axis=-1)


if __name__ == "__main__":
    key = jax.random.PRNGKey(0)
    pkey, xkey, xkey2 = jax.random.split(key, 3)
    params = init_params(pkey)
    pp = prepare_params(params)

    fwd = jax.jit(digit_forward, static_argnames=("btile",))

    # Small demo batch (MNIST-shaped input; single grid step, btile -> 16).
    x = jax.random.normal(xkey, (2, 1, 28, 28), jnp.float32)
    out = jax.block_until_ready(fwd(pp, x))
    ref = digit_reference(params, x)
    assert out.shape == (2, 10)
    assert bool(jnp.all(jnp.isfinite(out)))
    # log_softmax rows must exp-sum to 1
    assert bool(jnp.allclose(jnp.sum(jnp.exp(out), axis=1), 1.0, atol=1e-4))
    # bf16 weights + bf16 MXU operands (same as default f32 MXU precision)
    # -> loose tolerance vs. the f32 reference
    assert bool(jnp.allclose(out, ref, atol=1e-1, rtol=0.0)), (
        float(jnp.max(jnp.abs(out - ref))))

    # Multi-grid-step + batch-padding path (40 images, btile=16 -> 3 steps).
    x2 = jax.random.normal(xkey2, (40, 1, 28, 28), jnp.float32)
    out2 = jax.block_until_ready(fwd(pp, x2, btile=16))
    ref2 = digit_reference(params, x2)
    assert out2.shape == (40, 10)
    assert bool(jnp.all(jnp.isfinite(out2)))
    assert bool(jnp.allclose(out2, ref2, atol=1e-1, rtol=0.0)), (
        float(jnp.max(jnp.abs(out2 - ref2))))

    print("KERNEL_OK")
</pallas_src>

<mosaic_0001>
module attributes {stable_mosaic.version = 11 : i64} {
  func.func @_digit_kernel(%arg0: i32, %arg1: memref<32x16x28xf32, #tpu.memory_space<vmem>>, %arg2: memref<140x280xbf16, #tpu.memory_space<vmem>>, %arg3: memref<1x280xf32, #tpu.memory_space<vmem>>, %arg4: memref<2x280x140xbf16, #tpu.memory_space<vmem>>, %arg5: memref<420x280xbf16, #tpu.memory_space<vmem>>, %arg6: memref<1x280xf32, #tpu.memory_space<vmem>>, %arg7: memref<14x280x500xbf16, #tpu.memory_space<vmem>>, %arg8: memref<1x500xf32, #tpu.memory_space<vmem>>, %arg9: memref<500x10xbf16, #tpu.memory_space<vmem>>, %arg10: memref<1x10xf32, #tpu.memory_space<vmem>>, %arg11: memref<16x10xf32, #tpu.memory_space<vmem>>) attributes {dimension_semantics = [#tpu.dimension_semantics<parallel>], iteration_bounds = array<i64: 1>, scalar_prefetch = 0 : i64, scratch_operands = 0 : i64, tpu.core_type = #tpu.core_type<tc>, window_params = [{transform_indices = @transform_0, window_bounds = array<i64: 32, 16, 28>}, {pipeline_mode = #tpu.pipeline_mode<synchronous>, transform_indices = @transform_1, window_bounds = array<i64: 140, 280>}, {pipeline_mode = #tpu.pipeline_mode<synchronous>, transform_indices = @transform_2, window_bounds = array<i64: 1, 280>}, {pipeline_mode = #tpu.pipeline_mode<synchronous>, transform_indices = @transform_3, window_bounds = array<i64: 2, 280, 140>}, {pipeline_mode = #tpu.pipeline_mode<synchronous>, transform_indices = @transform_4, window_bounds = array<i64: 420, 280>}, {pipeline_mode = #tpu.pipeline_mode<synchronous>, transform_indices = @transform_5, window_bounds = array<i64: 1, 280>}, {pipeline_mode = #tpu.pipeline_mode<synchronous>, transform_indices = @transform_6, window_bounds = array<i64: 14, 280, 500>}, {pipeline_mode = #tpu.pipeline_mode<synchronous>, transform_indices = @transform_7, window_bounds = array<i64: 1, 500>}, {pipeline_mode = #tpu.pipeline_mode<synchronous>, transform_indices = @transform_8, window_bounds = array<i64: 500, 10>}, {pipeline_mode = #tpu.pipeline_mode<synchronous>, transform_indices = @transform_9, window_bounds = array<i64: 1, 10>}, {transform_indices = @transform_10, window_bounds = array<i64: 16, 10>}]} {
    %c0 = arith.constant 0 : index
    %c0_0 = arith.constant 0 : index
    %c0_1 = arith.constant 0 : index
    %0 = vector.load %arg1[%c0, %c0_0, %c0_1] : memref<32x16x28xf32, #tpu.memory_space<vmem>>, vector<32x16x28xf32>
    %1 = vector.shape_cast %0 : vector<32x16x28xf32> to vector<512x28xf32>
    %2 = arith.truncf %1 : vector<512x28xf32> to vector<512x28xbf16>
    %3 = vector.extract_strided_slice %2 {offsets = [0, 0], sizes = [448, 28], strides = [1, 1]} : vector<512x28xbf16> to vector<448x28xbf16>
    %4 = vector.extract_strided_slice %2 {offsets = [16, 0], sizes = [448, 28], strides = [1, 1]} : vector<512x28xbf16> to vector<448x28xbf16>
    %5 = vector.extract_strided_slice %2 {offsets = [32, 0], sizes = [448, 28], strides = [1, 1]} : vector<512x28xbf16> to vector<448x28xbf16>
    %6 = vector.extract_strided_slice %2 {offsets = [48, 0], sizes = [448, 28], strides = [1, 1]} : vector<512x28xbf16> to vector<448x28xbf16>
    %7 = vector.extract_strided_slice %2 {offsets = [64, 0], sizes = [448, 28], strides = [1, 1]} : vector<512x28xbf16> to vector<448x28xbf16>
    %8 = tpu.concatenate %3, %4, %5, %6, %7 in 1 : vector<448x28xbf16>, vector<448x28xbf16>, vector<448x28xbf16>, vector<448x28xbf16>, vector<448x28xbf16> -> vector<448x140xbf16>
    %c0_2 = arith.constant 0 : index
    %c0_3 = arith.constant 0 : index
    %9 = vector.load %arg2[%c0_2, %c0_3] : memref<140x280xbf16, #tpu.memory_space<vmem>>, vector<140x280xbf16>
    %cst = arith.constant dense<0.000000e+00> : vector<448x280xf32>
    %10 = tpu.matmul %8, %9, %cst {dimension_numbers = #tpu.dot_dimension_numbers<[1], [0], [0], [1], [0, 0, 1, 1], [], []>} : vector<448x140xbf16>, vector<140x280xbf16>, vector<448x280xf32> -> vector<448x280xf32>
    %c0_4 = arith.constant 0 : index
    %c0_5 = arith.constant 0 : index
    %11 = vector.load %arg3[%c0_4, %c0_5] : memref<1x280xf32, #tpu.memory_space<vmem>>, vector<1x280xf32>
    %12 = vector.broadcast %11 : vector<1x280xf32> to vector<448x280xf32>
    %13 = arith.addf %10, %12 : vector<448x280xf32>
    %cst_6 = arith.constant 0.000000e+00 : f32
    %14 = vector.broadcast %cst_6 : f32 to vector<448x280xf32>
    %15 = arith.maximumf %13, %14 : vector<448x280xf32>
    %16 = vector.shape_cast %15 : vector<448x280xf32> to vector<14x32x280xf32>
    %17 = vector.extract_strided_slice %16 {offsets = [0, 0, 0], sizes = [14, 16, 280], strides = [1, 1, 1]} : vector<14x32x280xf32> to vector<14x16x280xf32>
    %18 = vector.extract_strided_slice %16 {offsets = [0, 16, 0], sizes = [14, 16, 280], strides = [1, 1, 1]} : vector<14x32x280xf32> to vector<14x16x280xf32>
    %19 = arith.maximumf %17, %18 : vector<14x16x280xf32>
    %20 = vector.shape_cast %19 : vector<14x16x280xf32> to vector<224x280xf32>
    %21 = arith.truncf %20 : vector<224x280xf32> to vector<224x280xbf16>
    %c0_7 = arith.constant 0 : index
    %c0_8 = arith.constant 0 : index
    %c0_9 = arith.constant 0 : index
    %22 = vector.load %arg4[%c0_7, %c0_8, %c0_9] : memref<2x280x140xbf16, #tpu.memory_space<vmem>>, vector<1x280x140xbf16>
    %23 = vector.shape_cast %22 : vector<1x280x140xbf16> to vector<280x140xbf16>
    %cst_10 = arith.constant dense<0.000000e+00> : vector<224x140xf32>
    %24 = tpu.matmul %21, %23, %cst_10 {dimension_numbers = #tpu.dot_dimension_numbers<[1], [0], [0], [1], [0, 0, 1, 1], [], []>} : vector<224x280xbf16>, vector<280x140xbf16>, vector<224x140xf32> -> vector<224x140xf32>
    %c1 = arith.constant 1 : index
    %c0_11 = arith.constant 0 : index
    %c0_12 = arith.constant 0 : index
    %25 = vector.load %arg4[%c1, %c0_11, %c0_12] : memref<2x280x140xbf16, #tpu.memory_space<vmem>>, vector<1x280x140xbf16>
    %26 = vector.shape_cast %25 : vector<1x280x140xbf16> to vector<280x140xbf16>
    %cst_13 = arith.constant dense<0.000000e+00> : vector<224x140xf32>
    %27 = tpu.matmul %21, %26, %cst_13 {dimension_numbers = #tpu.dot_dimension_numbers<[1], [0], [0], [1], [0, 0, 1, 1], [], []>} : vector<224x280xbf16>, vector<280x140xbf16>, vector<224x140xf32> -> vector<224x140xf32>
    %28 = arith.maximumf %24, %27 : vector<224x140xf32>
    %29 = arith.truncf %28 : vector<224x140xf32> to vector<224x140xbf16>
    %cst_14 = arith.constant 0.000000e+00 : bf16
    %30 = vector.broadcast %cst_14 : bf16 to vector<16x140xbf16>
    %31 = vector.extract_strided_slice %29 {offsets = [0, 0], sizes = [208, 140], strides = [1, 1]} : vector<224x140xbf16> to vector<208x140xbf16>
    %32 = tpu.concatenate %30, %31 in 0 : vector<16x140xbf16>, vector<208x140xbf16> -> vector<224x140xbf16>
    %33 = vector.extract_strided_slice %29 {offsets = [16, 0], sizes = [208, 140], strides = [1, 1]} : vector<224x140xbf16> to vector<208x140xbf16>
    %34 = tpu.concatenate %33, %30 in 0 : vector<208x140xbf16>, vector<16x140xbf16> -> vector<224x140xbf16>
    %35 = tpu.concatenate %32, %29, %34 in 1 : vector<224x140xbf16>, vector<224x140xbf16>, vector<224x140xbf16> -> vector<224x420xbf16>
    %c0_15 = arith.constant 0 : index
    %c0_16 = arith.constant 0 : index
    %36 = vector.load %arg5[%c0_15, %c0_16] : memref<420x280xbf16, #tpu.memory_space<vmem>>, vector<420x280xbf16>
    %cst_17 = arith.constant dense<0.000000e+00> : vector<224x280xf32>
    %37 = tpu.matmul %35, %36, %cst_17 {dimension_numbers = #tpu.dot_dimension_numbers<[1], [0], [0], [1], [0, 0, 1, 1], [], []>} : vector<224x420xbf16>, vector<420x280xbf16>, vector<224x280xf32> -> vector<224x280xf32>
    %c0_18 = arith.constant 0 : index
    %c0_19 = arith.constant 0 : index
    %38 = vector.load %arg6[%c0_18, %c0_19] : memref<1x280xf32, #tpu.memory_space<vmem>>, vector<1x280xf32>
    %39 = vector.broadcast %38 : vector<1x280xf32> to vector<224x280xf32>
    %40 = arith.addf %37, %39 : vector<224x280xf32>
    %cst_20 = arith.constant 0.000000e+00 : f32
    %41 = vector.broadcast %cst_20 : f32 to vector<224x280xf32>
    %42 = arith.maximumf %40, %41 : vector<224x280xf32>
    %43 = vector.shape_cast %42 : vector<224x280xf32> to vector<14x16x280xf32>
    %44 = arith.truncf %43 : vector<14x16x280xf32> to vector<14x16x280xbf16>
    %45 = vector.extract_strided_slice %44 {offsets = [0, 0, 0], sizes = [1, 16, 280], strides = [1, 1, 1]} : vector<14x16x280xbf16> to vector<1x16x280xbf16>
    %46 = vector.shape_cast %45 : vector<1x16x280xbf16> to vector<16x280xbf16>
    %c0_21 = arith.constant 0 : index
    %c0_22 = arith.constant 0 : index
    %c0_23 = arith.constant 0 : index
    %47 = vector.load %arg7[%c0_21, %c0_22, %c0_23] : memref<14x280x500xbf16, #tpu.memory_space<vmem>>, vector<1x280x500xbf16>
    %48 = vector.shape_cast %47 : vector<1x280x500xbf16> to vector<280x500xbf16>
    %cst_24 = arith.constant dense<0.000000e+00> : vector<16x500xf32>
    %49 = tpu.matmul %46, %48, %cst_24 {dimension_numbers = #tpu.dot_dimension_numbers<[1], [0], [0], [1], [0, 0, 1, 1], [], []>} : vector<16x280xbf16>, vector<280x500xbf16>, vector<16x500xf32> -> vector<16x500xf32>
    %50 = vector.extract_strided_slice %44 {offsets = [1, 0, 0], sizes = [1, 16, 280], strides = [1, 1, 1]} : vector<14x16x280xbf16> to vector<1x16x280xbf16>
    %51 = vector.shape_cast %50 : vector<1x16x280xbf16> to vector<16x280xbf16>
    %c1_25 = arith.constant 1 : index
    %c0_26 = arith.constant 0 : index
    %c0_27 = arith.constant 0 : index
    %52 = vector.load %arg7[%c1_25, %c0_26, %c0_27] : memref<14x280x500xbf16, #tpu.memory_space<vmem>>, vector<1x280x500xbf16>
    %53 = vector.shape_cast %52 : vector<1x280x500xbf16> to vector<280x500xbf16>
    %cst_28 = arith.constant dense<0.000000e+00> : vector<16x500xf32>
    %54 = tpu.matmul %51, %53, %cst_28 {dimension_numbers = #tpu.dot_dimension_numbers<[1], [0], [0], [1], [0, 0, 1, 1], [], []>} : vector<16x280xbf16>, vector<280x500xbf16>, vector<16x500xf32> -> vector<16x500xf32>
    %55 = arith.addf %49, %54 : vector<16x500xf32>
    %56 = vector.extract_strided_slice %44 {offsets = [2, 0, 0], sizes = [1, 16, 280], strides = [1, 1, 1]} : vector<14x16x280xbf16> to vector<1x16x280xbf16>
    %57 = vector.shape_cast %56 : vector<1x16x280xbf16> to vector<16x280xbf16>
    %c2 = arith.constant 2 : index
    %c0_29 = arith.constant 0 : index
    %c0_30 = arith.constant 0 : index
    %58 = vector.load %arg7[%c2, %c0_29, %c0_30] : memref<14x280x500xbf16, #tpu.memory_space<vmem>>, vector<1x280x500xbf16>
    %59 = vector.shape_cast %58 : vector<1x280x500xbf16> to vector<280x500xbf16>
    %cst_31 = arith.constant dense<0.000000e+00> : vector<16x500xf32>
    %60 = tpu.matmul %57, %59, %cst_31 {dimension_numbers = #tpu.dot_dimension_numbers<[1], [0], [0], [1], [0, 0, 1, 1], [], []>} : vector<16x280xbf16>, vector<280x500xbf16>, vector<16x500xf32> -> vector<16x500xf32>
    %61 = arith.addf %55, %60 : vector<16x500xf32>
    %62 = vector.extract_strided_slice %44 {offsets = [3, 0, 0], sizes = [1, 16, 280], strides = [1, 1, 1]} : vector<14x16x280xbf16> to vector<1x16x280xbf16>
    %63 = vector.shape_cast %62 : vector<1x16x280xbf16> to vector<16x280xbf16>
    %c3 = arith.constant 3 : index
    %c0_32 = arith.constant 0 : index
    %c0_33 = arith.constant 0 : index
    %64 = vector.load %arg7[%c3, %c0_32, %c0_33] : memref<14x280x500xbf16, #tpu.memory_space<vmem>>, vector<1x280x500xbf16>
    %65 = vector.shape_cast %64 : vector<1x280x500xbf16> to vector<280x500xbf16>
    %cst_34 = arith.constant dense<0.000000e+00> : vector<16x500xf32>
    %66 = tpu.matmul %63, %65, %cst_34 {dimension_numbers = #tpu.dot_dimension_numbers<[1], [0], [0], [1], [0, 0, 1, 1], [], []>} : vector<16x280xbf16>, vector<280x500xbf16>, vector<16x500xf32> -> vector<16x500xf32>
    %67 = arith.addf %61, %66 : vector<16x500xf32>
    %68 = vector.extract_strided_slice %44 {offsets = [4, 0, 0], sizes = [1, 16, 280], strides = [1, 1, 1]} : vector<14x16x280xbf16> to vector<1x16x280xbf16>
    %69 = vector.shape_cast %68 : vector<1x16x280xbf16> to vector<16x280xbf16>
    %c4 = arith.constant 4 : index
    %c0_35 = arith.constant 0 : index
    %c0_36 = arith.constant 0 : index
    %70 = vector.load %arg7[%c4, %c0_35, %c0_36] : memref<14x280x500xbf16, #tpu.memory_space<vmem>>, vector<1x280x500xbf16>
    %71 = vector.shape_cast %70 : vector<1x280x500xbf16> to vector<280x500xbf16>
    %cst_37 = arith.constant dense<0.000000e+00> : vector<16x500xf32>
    %72 = tpu.matmul %69, %71, %cst_37 {dimension_numbers = #tpu.dot_dimension_numbers<[1], [0], [0], [1], [0, 0, 1, 1], [], []>} : vector<16x280xbf16>, vector<280x500xbf16>, vector<16x500xf32> -> vector<16x500xf32>
    %73 = arith.addf %67, %72 : vector<16x500xf32>
    %74 = vector.extract_strided_slice %44 {offsets = [5, 0, 0], sizes = [1, 16, 280], strides = [1, 1, 1]} : vector<14x16x280xbf16> to vector<1x16x280xbf16>
    %75 = vector.shape_cast %74 : vector<1x16x280xbf16> to vector<16x280xbf16>
    %c5 = arith.constant 5 : index
    %c0_38 = arith.constant 0 : index
    %c0_39 = arith.constant 0 : index
    %76 = vector.load %arg7[%c5, %c0_38, %c0_39] : memref<14x280x500xbf16, #tpu.memory_space<vmem>>, vector<1x280x500xbf16>
    %77 = vector.shape_cast %76 : vector<1x280x500xbf16> to vector<280x500xbf16>
    %cst_40 = arith.constant dense<0.000000e+00> : vector<16x500xf32>
    %78 = tpu.matmul %75, %77, %cst_40 {dimension_numbers = #tpu.dot_dimension_numbers<[1], [0], [0], [1], [0, 0, 1, 1], [], []>} : vector<16x280xbf16>, vector<280x500xbf16>, vector<16x500xf32> -> vector<16x500xf32>
    %79 = arith.addf %73, %78 : vector<16x500xf32>
    %80 = vector.extract_strided_slice %44 {offsets = [6, 0, 0], sizes = [1, 16, 280], strides = [1, 1, 1]} : vector<14x16x280xbf16> to vector<1x16x280xbf16>
    %81 = vector.shape_cast %80 : vector<1x16x280xbf16> to vector<16x280xbf16>
    %c6 = arith.constant 6 : index
    %c0_41 = arith.constant 0 : index
    %c0_42 = arith.constant 0 : index
    %82 = vector.load %arg7[%c6, %c0_41, %c0_42] : memref<14x280x500xbf16, #tpu.memory_space<vmem>>, vector<1x280x500xbf16>
    %83 = vector.shape_cast %82 : vector<1x280x500xbf16> to vector<280x500xbf16>
    %cst_43 = arith.constant dense<0.000000e+00> : vector<16x500xf32>
    %84 = tpu.matmul %81, %83, %cst_43 {dimension_numbers = #tpu.dot_dimension_numbers<[1], [0], [0], [1], [0, 0, 1, 1], [], []>} : vector<16x280xbf16>, vector<280x500xbf16>, vector<16x500xf32> -> vector<16x500xf32>
    %85 = arith.addf %79, %84 : vector<16x500xf32>
    %86 = vector.extract_strided_slice %44 {offsets = [7, 0, 0], sizes = [1, 16, 280], strides = [1, 1, 1]} : vector<14x16x280xbf16> to vector<1x16x280xbf16>
    %87 = vector.shape_cast %86 : vector<1x16x280xbf16> to vector<16x280xbf16>
    %c7 = arith.constant 7 : index
    %c0_44 = arith.constant 0 : index
    %c0_45 = arith.constant 0 : index
    %88 = vector.load %arg7[%c7, %c0_44, %c0_45] : memref<14x280x500xbf16, #tpu.memory_space<vmem>>, vector<1x280x500xbf16>
    %89 = vector.shape_cast %88 : vector<1x280x500xbf16> to vector<280x500xbf16>
    %cst_46 = arith.constant dense<0.000000e+00> : vector<16x500xf32>
    %90 = tpu.matmul %87, %89, %cst_46 {dimension_numbers = #tpu.dot_dimension_numbers<[1], [0], [0], [1], [0, 0, 1, 1], [], []>} : vector<16x280xbf16>, vector<280x500xbf16>, vector<16x500xf32> -> vector<16x500xf32>
    %91 = arith.addf %85, %90 : vector<16x500xf32>
    %92 = vector.extract_strided_slice %44 {offsets = [8, 0, 0], sizes = [1, 16, 280], strides = [1, 1, 1]} : vector<14x16x280xbf16> to vector<1x16x280xbf16>
    %93 = vector.shape_cast %92 : vector<1x16x280xbf16> to vector<16x280xbf16>
    %c8 = arith.constant 8 : index
    %c0_47 = arith.constant 0 : index
    %c0_48 = arith.constant 0 : index
    %94 = vector.load %arg7[%c8, %c0_47, %c0_48] : memref<14x280x500xbf16, #tpu.memory_space<vmem>>, vector<1x280x500xbf16>
    %95 = vector.shape_cast %94 : vector<1x280x500xbf16> to vector<280x500xbf16>
    %cst_49 = arith.constant dense<0.000000e+00> : vector<16x500xf32>
    %96 = tpu.matmul %93, %95, %cst_49 {dimension_numbers = #tpu.dot_dimension_numbers<[1], [0], [0], [1], [0, 0, 1, 1], [], []>} : vector<16x280xbf16>, vector<280x500xbf16>, vector<16x500xf32> -> vector<16x500xf32>
    %97 = arith.addf %91, %96 : vector<16x500xf32>
    %98 = vector.extract_strided_slice %44 {offsets = [9, 0, 0], sizes = [1, 16, 280], strides = [1, 1, 1]} : vector<14x16x280xbf16> to vector<1x16x280xbf16>
    %99 = vector.shape_cast %98 : vector<1x16x280xbf16> to vector<16x280xbf16>
    %c9 = arith.constant 9 : index
    %c0_50 = arith.constant 0 : index
    %c0_51 = arith.constant 0 : index
    %100 = vector.load %arg7[%c9, %c0_50, %c0_51] : memref<14x280x500xbf16, #tpu.memory_space<vmem>>, vector<1x280x500xbf16>
    %101 = vector.shape_cast %100 : vector<1x280x500xbf16> to vector<280x500xbf16>
    %cst_52 = arith.constant dense<0.000000e+00> : vector<16x500xf32>
    %102 = tpu.matmul %99, %101, %cst_52 {dimension_numbers = #tpu.dot_dimension_numbers<[1], [0], [0], [1], [0, 0, 1, 1], [], []>} : vector<16x280xbf16>, vector<280x500xbf16>, vector<16x500xf32> -> vector<16x500xf32>
    %103 = arith.addf %97, %102 : vector<16x500xf32>
    %104 = vector.extract_strided_slice %44 {offsets = [10, 0, 0], sizes = [1, 16, 280], strides = [1, 1, 1]} : vector<14x16x280xbf16> to vector<1x16x280xbf16>
    %105 = vector.shape_cast %104 : vector<1x16x280xbf16> to vector<16x280xbf16>
    %c10 = arith.constant 10 : index
    %c0_53 = arith.constant 0 : index
    %c0_54 = arith.constant 0 : index
    %106 = vector.load %arg7[%c10, %c0_53, %c0_54] : memref<14x280x500xbf16, #tpu.memory_space<vmem>>, vector<1x280x500xbf16>
    %107 = vector.shape_cast %106 : vector<1x280x500xbf16> to vector<280x500xbf16>
    %cst_55 = arith.constant dense<0.000000e+00> : vector<16x500xf32>
    %108 = tpu.matmul %105, %107, %cst_55 {dimension_numbers = #tpu.dot_dimension_numbers<[1], [0], [0], [1], [0, 0, 1, 1], [], []>} : vector<16x280xbf16>, vector<280x500xbf16>, vector<16x500xf32> -> vector<16x500xf32>
    %109 = arith.addf %103, %108 : vector<16x500xf32>
    %110 = vector.extract_strided_slice %44 {offsets = [11, 0, 0], sizes = [1, 16, 280], strides = [1, 1, 1]} : vector<14x16x280xbf16> to vector<1x16x280xbf16>
    %111 = vector.shape_cast %110 : vector<1x16x280xbf16> to vector<16x280xbf16>
    %c11 = arith.constant 11 : index
    %c0_56 = arith.constant 0 : index
    %c0_57 = arith.constant 0 : index
    %112 = vector.load %arg7[%c11, %c0_56, %c0_57] : memref<14x280x500xbf16, #tpu.memory_space<vmem>>, vector<1x280x500xbf16>
    %113 = vector.shape_cast %112 : vector<1x280x500xbf16> to vector<280x500xbf16>
    %cst_58 = arith.constant dense<0.000000e+00> : vector<16x500xf32>
    %114 = tpu.matmul %111, %113, %cst_58 {dimension_numbers = #tpu.dot_dimension_numbers<[1], [0], [0], [1], [0, 0, 1, 1], [], []>} : vector<16x280xbf16>, vector<280x500xbf16>, vector<16x500xf32> -> vector<16x500xf32>
    %115 = arith.addf %109, %114 : vector<16x500xf32>
    %116 = vector.extract_strided_slice %44 {offsets = [12, 0, 0], sizes = [1, 16, 280], strides = [1, 1, 1]} : vector<14x16x280xbf16> to vector<1x16x280xbf16>
    %117 = vector.shape_cast %116 : vector<1x16x280xbf16> to vector<16x280xbf16>
    %c12 = arith.constant 12 : index
    %c0_59 = arith.constant 0 : index
    %c0_60 = arith.constant 0 : index
    %118 = vector.load %arg7[%c12, %c0_59, %c0_60] : memref<14x280x500xbf16, #tpu.memory_space<vmem>>, vector<1x280x500xbf16>
    %119 = vector.shape_cast %118 : vector<1x280x500xbf16> to vector<280x500xbf16>
    %cst_61 = arith.constant dense<0.000000e+00> : vector<16x500xf32>
    %120 = tpu.matmul %117, %119, %cst_61 {dimension_numbers = #tpu.dot_dimension_numbers<[1], [0], [0], [1], [0, 0, 1, 1], [], []>} : vector<16x280xbf16>, vector<280x500xbf16>, vector<16x500xf32> -> vector<16x500xf32>
    %121 = arith.addf %115, %120 : vector<16x500xf32>
    %122 = vector.extract_strided_slice %44 {offsets = [13, 0, 0], sizes = [1, 16, 280], strides = [1, 1, 1]} : vector<14x16x280xbf16> to vector<1x16x280xbf16>
    %123 = vector.shape_cast %122 : vector<1x16x280xbf16> to vector<16x280xbf16>
    %c13 = arith.constant 13 : index
    %c0_62 = arith.constant 0 : index
    %c0_63 = arith.constant 0 : index
    %124 = vector.load %arg7[%c13, %c0_62, %c0_63] : memref<14x280x500xbf16, #tpu.memory_space<vmem>>, vector<1x280x500xbf16>
    %125 = vector.shape_cast %124 : vector<1x280x500xbf16> to vector<280x500xbf16>
    %cst_64 = arith.constant dense<0.000000e+00> : vector<16x500xf32>
    %126 = tpu.matmul %123, %125, %cst_64 {dimension_numbers = #tpu.dot_dimension_numbers<[1], [0], [0], [1], [0, 0, 1, 1], [], []>} : vector<16x280xbf16>, vector<280x500xbf16>, vector<16x500xf32> -> vector<16x500xf32>
    %127 = arith.addf %121, %126 : vector<16x500xf32>
    %c0_65 = arith.constant 0 : index
    %c0_66 = arith.constant 0 : index
    %128 = vector.load %arg8[%c0_65, %c0_66] : memref<1x500xf32, #tpu.memory_space<vmem>>, vector<1x500xf32>
    %129 = vector.broadcast %128 : vector<1x500xf32> to vector<16x500xf32>
    %130 = arith.addf %127, %129 : vector<16x500xf32>
    %cst_67 = arith.constant 0.000000e+00 : f32
    %131 = vector.broadcast %cst_67 : f32 to vector<16x500xf32>
    %132 = arith.maximumf %130, %131 : vector<16x500xf32>
    %133 = arith.truncf %132 : vector<16x500xf32> to vector<16x500xbf16>
    %c0_68 = arith.constant 0 : index
    %c0_69 = arith.constant 0 : index
    %134 = vector.load %arg9[%c0_68, %c0_69] : memref<500x10xbf16, #tpu.memory_space<vmem>>, vector<500x10xbf16>
    %cst_70 = arith.constant dense<0.000000e+00> : vector<16x10xf32>
    %135 = tpu.matmul %133, %134, %cst_70 {dimension_numbers = #tpu.dot_dimension_numbers<[1], [0], [0], [1], [0, 0, 1, 1], [], []>} : vector<16x500xbf16>, vector<500x10xbf16>, vector<16x10xf32> -> vector<16x10xf32>
    %c0_71 = arith.constant 0 : index
    %c0_72 = arith.constant 0 : index
    %136 = vector.load %arg10[%c0_71, %c0_72] : memref<1x10xf32, #tpu.memory_space<vmem>>, vector<1x10xf32>
    %137 = vector.broadcast %136 : vector<1x10xf32> to vector<16x10xf32>
    %138 = arith.addf %135, %137 : vector<16x10xf32>
    %cst_73 = arith.constant dense<0xFF800000> : vector<16xf32>
    %139 = vector.multi_reduction <maximumf>, %138, %cst_73 [1] : vector<16x10xf32> to vector<16xf32>
    %140 = vector.shape_cast %139 : vector<16xf32> to vector<16x1xf32>
    %141 = vector.broadcast %140 : vector<16x1xf32> to vector<16x10xf32>
    %142 = arith.subf %138, %141 : vector<16x10xf32>
    %143 = math.exp %142 : vector<16x10xf32>
    %cst_74 = arith.constant dense<0.000000e+00> : vector<16xf32>
    %144 = vector.multi_reduction <add>, %143, %cst_74 [1] : vector<16x10xf32> to vector<16xf32>
    %145 = vector.shape_cast %144 : vector<16xf32> to vector<16x1xf32>
    %146 = math.log %145 : vector<16x1xf32>
    %147 = vector.broadcast %146 : vector<16x1xf32> to vector<16x10xf32>
    %148 = arith.subf %142, %147 : vector<16x10xf32>
    %c0_75 = arith.constant 0 : index
    %c0_76 = arith.constant 0 : index
    %149 = vector.load %arg11[%c0_75, %c0_76] : memref<16x10xf32, #tpu.memory_space<vmem>>, vector<16x10xf32>
    tpu.vector_store %arg11[%c0_75, %c0_76], %148 {strides = array<i32>} : memref<16x10xf32, #tpu.memory_space<vmem>>, vector<16x10xf32>,
    return
  }
  func.func @transform_0(%arg0: i32) -> (i32, i32, i32) {
    %c0_i32 = arith.constant 0 : i32
    %c0_i32_0 = arith.constant 0 : i32
    %c0_i32_1 = arith.constant 0 : i32
    return %c0_i32, %arg0, %c0_i32_0 : i32, i32, i32
  }
  func.func @transform_1(%arg0: i32) -> (i32, i32) {
    %c0_i32 = arith.constant 0 : i32
    %c0_i32_0 = arith.constant 0 : i32
    %c0_i32_1 = arith.constant 0 : i32
    return %c0_i32, %c0_i32_0 : i32, i32
  }
  func.func @transform_2(%arg0: i32) -> (i32, i32) {
    %c0_i32 = arith.constant 0 : i32
    %c0_i32_0 = arith.constant 0 : i32
    %c0_i32_1 = arith.constant 0 : i32
    return %c0_i32, %c0_i32_0 : i32, i32
  }
  func.func @transform_3(%arg0: i32) -> (i32, i32, i32) {
    %c0_i32 = arith.constant 0 : i32
    %c0_i32_0 = arith.constant 0 : i32
    %c0_i32_1 = arith.constant 0 : i32
    %c0_i32_2 = arith.constant 0 : i32
    return %c0_i32, %c0_i32_0, %c0_i32_1 : i32, i32, i32
  }
  func.func @transform_4(%arg0: i32) -> (i32, i32) {
    %c0_i32 = arith.constant 0 : i32
    %c0_i32_0 = arith.constant 0 : i32
    %c0_i32_1 = arith.constant 0 : i32
    return %c0_i32, %c0_i32_0 : i32, i32
  }
  func.func @transform_5(%arg0: i32) -> (i32, i32) {
    %c0_i32 = arith.constant 0 : i32
    %c0_i32_0 = arith.constant 0 : i32
    %c0_i32_1 = arith.constant 0 : i32
    return %c0_i32, %c0_i32_0 : i32, i32
  }
  func.func @transform_6(%arg0: i32) -> (i32, i32, i32) {
    %c0_i32 = arith.constant 0 : i32
    %c0_i32_0 = arith.constant 0 : i32
    %c0_i32_1 = arith.constant 0 : i32
    %c0_i32_2 = arith.constant 0 : i32
    return %c0_i32, %c0_i32_0, %c0_i32_1 : i32, i32, i32
  }
  func.func @transform_7(%arg0: i32) -> (i32, i32) {
    %c0_i32 = arith.constant 0 : i32
    %c0_i32_0 = arith.constant 0 : i32
    %c0_i32_1 = arith.constant 0 : i32
    return %c0_i32, %c0_i32_0 : i32, i32
  }
  func.func @transform_8(%arg0: i32) -> (i32, i32) {
    %c0_i32 = arith.constant 0 : i32
    %c0_i32_0 = arith.constant 0 : i32
    %c0_i32_1 = arith.constant 0 : i32
    return %c0_i32, %c0_i32_0 : i32, i32
  }
  func.func @transform_9(%arg0: i32) -> (i32, i32) {
    %c0_i32 = arith.constant 0 : i32
    %c0_i32_0 = arith.constant 0 : i32
    %c0_i32_1 = arith.constant 0 : i32
    return %c0_i32, %c0_i32_0 : i32, i32
  }
  func.func @transform_10(%arg0: i32) -> (i32, i32) {
    %c0_i32 = arith.constant 0 : i32
    %c0_i32_0 = arith.constant 0 : i32
    return %arg0, %c0_i32 : i32, i32
  }
}

</mosaic_0001>

<llo_original>
// kernel: digit_forward.1
$region0: #{digit_forward.1}
  #allocation0 [shape = 'u32[]', space=smem, size = 0x4, offset = 0x4, fixed_abs, tag = 'smem constant byte address 0x4 - core index']
  #allocation1 [shape = 'u32[144,128]{1,0:T(1,128)}', space=vmem, size = 0x12000, scoped, tag = 'internal scratch']
  %s0 = inlined_call_operand.vmem [shape: f32[32,16,28], index: 0, kind: input, shape index: {}]
  %s1 = inlined_call_operand.hbm [shape: bf16[140,280], index: 1, kind: input, shape index: {}]
  %s2 = inlined_call_operand.hbm [shape: f32[1,280], index: 2, kind: input, shape index: {}]
  %s3 = inlined_call_operand.vmem [shape: bf16[2,280,140], index: 3, kind: input, shape index: {}]
  %s4 = inlined_call_operand.vmem [shape: bf16[420,280], index: 4, kind: input, shape index: {}]
  %s5 = inlined_call_operand.hbm [shape: f32[1,280], index: 5, kind: input, shape index: {}]
  %s6 = inlined_call_operand.hbm [shape: bf16[14,280,500], index: 6, kind: input, shape index: {}]
  %s7 = inlined_call_operand.hbm [shape: f32[1,500], index: 7, kind: input, shape index: {}]
  %s8 = inlined_call_operand.vmem [shape: bf16[500,10], index: 8, kind: input, shape index: {}]
  %s9 = inlined_call_operand.hbm [shape: f32[1,10], index: 9, kind: input, shape index: {}]
  %s10 = inlined_call_operand.vmem [shape: f32[16,10], index: 10, kind: output, shape index: {}]
  %s11 = sld [smem:[#allocation0]]
  $region74: #{digit_forward.1} parent=0
    _
  %s13 = ssub.s32 1, %s11
  %s14 = scalar_select 0, %s13, %s11
  $region1: #{digit_forward.1} parent=0
    #allocation2 [shape = 'u8[110592]{0}', space=vmem, size = 0x1b000, scoped, tag = 'input window, operand 1, single buffered']
    #allocation3 [shape = 's32[1]{0}', space=sflag, size = 0x4, scoped, tag = 'scoped memory for digit_forward.1']
    #allocation4 [shape = 'u8[1536]{0}', space=vmem, size = 0x800, scoped, tag = 'input window, operand 2, single buffered']
    #allocation5 [shape = 's32[1]{0}', space=sflag, size = 0x4, scoped, tag = 'scoped memory for digit_forward.1']
    #allocation6 [shape = 'u8[1536]{0}', space=vmem, size = 0x800, scoped, tag = 'input window, operand 5, single buffered']
    #allocation7 [shape = 'u8[4014080]{0}', space=vmem, size = 0x3d4000, scoped, tag = 'input window, operand 6, single buffered']
    #allocation8 [shape = 's32[1]{0}', space=sflag, size = 0x4, scoped, tag = 'scoped memory for digit_forward.1']
    #allocation9 [shape = 'u8[2048]{0}', space=vmem, size = 0x800, scoped, tag = 'input window, operand 7, single buffered']
    #allocation10 [shape = 'u8[512]{0}', space=vmem, size = 0x400, scoped, tag = 'input window, operand 9, single buffered']
    #allocation11 [shape = 's32[1]{0}', space=sflag, size = 0x4, scoped, tag = 'scoped memory for digit_forward.1']
    %15 = vsyncpa [#allocation3], 0
    %16 = vsyncpa [#allocation5], 0
    %17 = vsyncpa [#allocation8], 0
    %18 = vsyncpa [#allocation11], 0
    // Predicated region
    $region2: #{digit_forward.1} parent=1 // pred_check
      _
    $region3: #{digit_forward.1} parent=1 // pred_check_branch
      %20 = sbr.rel (0) target = $region5
    $region4: #{digit_forward.1} parent=1 // pred_region
      _
    $region5: #{digit_forward.1} parent=1 // pred_fallthru
      _
    // Predicated region
    $region6: #{digit_forward.1} parent=1 // pred_check
      _
    $region7: #{digit_forward.1} parent=1 // pred_check_branch
      %22 = sbr.rel (0) target = $region9
    $region8: #{digit_forward.1} parent=1 // pred_region
      %s24 = ssub.s32 3456, 3456
      %25 = vsyncadd [#allocation3], %s24
      %s26 = sshll.u32 [#allocation2], 4
      %s27 = int_to_ptr.vmem [resolvable:$true] %s26
      %32 = dma.hbm_to_vmem [thread:$0]  %s1, 3456, %s27, [#allocation3], 192, 192, 12
    $region9: #{digit_forward.1} parent=1 // pred_fallthru
      _
    // Predicated region
    $region10: #{digit_forward.1} parent=1 // pred_check
      _
    $region11: #{digit_forward.1} parent=1 // pred_check_branch
      %34 = sbr.rel (0) target = $region13
    $region12: #{digit_forward.1} parent=1 // pred_region
      %s36 = ssub.s32 48, 48
      %37 = vsyncadd [#allocation5], %s36
      %s39 = sshll.u32 [#allocation4], 4
      %s40 = int_to_ptr.vmem [resolvable:$true] %s39
      %42 = dma.hbm_to_vmem [thread:$0]  %s2, 48, %s40, [#allocation5]
    $region13: #{digit_forward.1} parent=1 // pred_fallthru
      _
    // Predicated region
    $region14: #{digit_forward.1} parent=1 // pred_check
      _
    $region15: #{digit_forward.1} parent=1 // pred_check_branch
      %44 = sbr.rel (0) target = $region17
    $region16: #{digit_forward.1} parent=1 // pred_region
      _
    $region17: #{digit_forward.1} parent=1 // pred_fallthru
      _
    // Predicated region
    $region18: #{digit_forward.1} parent=1 // pred_check
      _
    $region19: #{digit_forward.1} parent=1 // pred_check_branch
      %46 = sbr.rel (0) target = $region21
    $region20: #{digit_forward.1} parent=1 // pred_region
      _
    $region21: #{digit_forward.1} parent=1 // pred_fallthru
      _
    // Predicated region
    $region22: #{digit_forward.1} parent=1 // pred_check
      _
    $region23: #{digit_forward.1} parent=1 // pred_check_branch
      %48 = sbr.rel (0) target = $region25
    $region24: #{digit_forward.1} parent=1 // pred_region
      %s50 = ssub.s32 48, 48
      %51 = vsyncadd [#allocation5], %s50
      %s53 = sshll.u32 [#allocation6], 4
      %s54 = int_to_ptr.vmem [resolvable:$true] %s53
      %56 = dma.hbm_to_vmem [thread:$0]  %s5, 48, %s54, [#allocation5]
    $region25: #{digit_forward.1} parent=1 // pred_fallthru
      _
    // Predicated region
    $region26: #{digit_forward.1} parent=1 // pred_check
      _
    $region27: #{digit_forward.1} parent=1 // pred_check_branch
      %58 = sbr.rel (0) target = $region29
    $region28: #{digit_forward.1} parent=1 // pred_region
      %s60 = ssub.s32 125440, 125440
      %61 = vsyncadd [#allocation8], %s60
      %s62 = sshll.u32 [#allocation7], 4
      %s63 = int_to_ptr.vmem [resolvable:$true] %s62
      %68 = dma.hbm_to_vmem [thread:$0]  %s6, 125440, %s63, [#allocation8], 256, 256, 16
    $region29: #{digit_forward.1} parent=1 // pred_fallthru
      _
    // Predicated region
    $region30: #{digit_forward.1} parent=1 // pred_check
      _
    $region31: #{digit_forward.1} parent=1 // pred_check_branch
      %70 = sbr.rel (0) target = $region33
    $region32: #{digit_forward.1} parent=1 // pred_region
      %s72 = ssub.s32 64, 64
      %73 = vsyncadd [#allocation8], %s72
      %s75 = sshll.u32 [#allocation9], 4
      %s76 = int_to_ptr.vmem [resolvable:$true] %s75
      %78 = dma.hbm_to_vmem [thread:$0]  %s7, 64, %s76, [#allocation8]
    $region33: #{digit_forward.1} parent=1 // pred_fallthru
      _
    // Predicated region
    $region34: #{digit_forward.1} parent=1 // pred_check
      _
    $region35: #{digit_forward.1} parent=1 // pred_check_branch
      %80 = sbr.rel (0) target = $region37
    $region36: #{digit_forward.1} parent=1 // pred_region
      _
    $region37: #{digit_forward.1} parent=1 // pred_fallthru
      _
    // Predicated region
    $region38: #{digit_forward.1} parent=1 // pred_check
      _
    $region39: #{digit_forward.1} parent=1 // pred_check_branch
      %82 = sbr.rel (0) target = $region41
    $region40: #{digit_forward.1} parent=1 // pred_region
      %s84 = ssub.s32 16, 16
      %85 = vsyncadd [#allocation11], %s84
      %s87 = sshll.u32 [#allocation10], 4
      %s88 = int_to_ptr.vmem [resolvable:$true] %s87
      %90 = dma.hbm_to_vmem [thread:$0]  %s9, 16, %s88, [#allocation11]
    $region41: #{digit_forward.1} parent=1 // pred_fallthru
      _
    // Predicated region
    $region42: #{digit_forward.1} parent=1 // pred_check
      _
    $region43: #{digit_forward.1} parent=1 // pred_check_branch
      %92 = sbr.rel (0) target = $region45
    $region44: #{digit_forward.1} parent=1 // pred_region
      %93 = dma.done [#allocation3], 3456
    $region45: #{digit_forward.1} parent=1 // pred_fallthru
      _
    // Predicated region
    $region46: #{digit_forward.1} parent=1 // pred_check
      _
    $region47: #{digit_forward.1} parent=1 // pred_check_branch
      %95 = sbr.rel (0) target = $region49
    $region48: #{digit_forward.1} parent=1 // pred_region
      %96 = dma.done [#allocation5], 48
    $region49: #{digit_forward.1} parent=1 // pred_fallthru
      _
    // Predicated region
    $region50: #{digit_forward.1} parent=1 // pred_check
      _
    $region51: #{digit_forward.1} parent=1 // pred_check_branch
      %98 = sbr.rel (0) target = $region53
    $region52: #{digit_forward.1} parent=1 // pred_region
      %99 = dma.done [#allocation5], 48
    $region53: #{digit_forward.1} parent=1 // pred_fallthru
      _
    // Predicated region
    $region54: #{digit_forward.1} parent=1 // pred_check
      _
    $region55: #{digit_forward.1} parent=1 // pred_check_branch
      %101 = sbr.rel (0) target = $region57
    $region56: #{digit_forward.1} parent=1 // pred_region
      %102 = dma.done [#allocation8], 125440
    $region57: #{digit_forward.1} parent=1 // pred_fallthru
      _
    // Predicated region
    $region58: #{digit_forward.1} parent=1 // pred_check
      _
    $region59: #{digit_forward.1} parent=1 // pred_check_branch
      %104 = sbr.rel (0) target = $region61
    $region60: #{digit_forward.1} parent=1 // pred_region
      %105 = dma.done [#allocation8], 64
    $region61: #{digit_forward.1} parent=1 // pred_fallthru
      _
    // Predicated region
    $region62: #{digit_forward.1} parent=1 // pred_check
      _
    $region63: #{digit_forward.1} parent=1 // pred_check_branch
      %107 = sbr.rel (0) target = $region65
    $region64: #{digit_forward.1} parent=1 // pred_region
      %108 = dma.done [#allocation11], 16
    $region65: #{digit_forward.1} parent=1 // pred_fallthru
      _
    %v110 = vld [vmem:[%s0] sm:$0xff]
    %v111 = vld [vmem:[%s0 + $0x8] sm:$0xff]
    %v112 = vld [vmem:[%s0 + $0x10] sm:$0xff]
    %v113 = vld [vmem:[%s0 + $0x18] sm:$0xff]
    %v114 = vld [vmem:[%s0 + $0x20] sm:$0xff]
    %v115 = vld [vmem:[%s0 + $0x28] sm:$0xff]
    %v116 = vld [vmem:[%s0 + $0x30] sm:$0xff]
    %v117 = vld [vmem:[%s0 + $0x38] sm:$0xff]
    %v118 = vld [vmem:[%s0 + $0x40] sm:$0xff]
    %v119 = vld [vmem:[%s0 + $0x48] sm:$0xff]
    %v120 = vld [vmem:[%s0 + $0x50] sm:$0xff]
    %v121 = vld [vmem:[%s0 + $0x58] sm:$0xff]
    %v122 = vld [vmem:[%s0 + $0x60] sm:$0xff]
    %v123 = vld [vmem:[%s0 + $0x68] sm:$0xff]
    %v124 = vld [vmem:[%s0 + $0x70] sm:$0xff]
    %v125 = vld [vmem:[%s0 + $0x78] sm:$0xff]
    %v126 = vld [vmem:[%s0 + $0x80] sm:$0xff]
    %v127 = vld [vmem:[%s0 + $0x88] sm:$0xff]
    %v128 = vld [vmem:[%s0 + $0x90] sm:$0xff]
    %v129 = vld [vmem:[%s0 + $0x98] sm:$0xff]
    %v130 = vld [vmem:[%s0 + $0xa0] sm:$0xff]
    %v131 = vld [vmem:[%s0 + $0xa8] sm:$0xff]
    %v132 = vld [vmem:[%s0 + $0xb0] sm:$0xff]
    %v133 = vld [vmem:[%s0 + $0xb8] sm:$0xff]
    %v134 = vld [vmem:[%s0 + $0xc0] sm:$0xff]
    %v135 = vld [vmem:[%s0 + $0xc8] sm:$0xff]
    %v136 = vld [vmem:[%s0 + $0xd0] sm:$0xff]
    %v137 = vld [vmem:[%s0 + $0xd8] sm:$0xff]
    %v138 = vld [vmem:[%s0 + $0xe0] sm:$0xff]
    %v139 = vld [vmem:[%s0 + $0xe8] sm:$0xff]
    %v140 = vld [vmem:[%s0 + $0xf0] sm:$0xff]
    %v141 = vld [vmem:[%s0 + $0xf8] sm:$0xff]
    %v142 = vld [vmem:[%s0 + $0x100] sm:$0xff]
    %v143 = vld [vmem:[%s0 + $0x108] sm:$0xff]
    %v144 = vld [vmem:[%s0 + $0x110] sm:$0xff]
    %v145 = vld [vmem:[%s0 + $0x118] sm:$0xff]
    %v146 = vld [vmem:[%s0 + $0x120] sm:$0xff]
    %v147 = vld [vmem:[%s0 + $0x128] sm:$0xff]
    %v148 = vld [vmem:[%s0 + $0x130] sm:$0xff]
    %v149 = vld [vmem:[%s0 + $0x138] sm:$0xff]
    %v150 = vld [vmem:[%s0 + $0x140] sm:$0xff]
    %v151 = vld [vmem:[%s0 + $0x148] sm:$0xff]
    %v152 = vld [vmem:[%s0 + $0x150] sm:$0xff]
    %v153 = vld [vmem:[%s0 + $0x158] sm:$0xff]
    %v154 = vld [vmem:[%s0 + $0x160] sm:$0xff]
    %v155 = vld [vmem:[%s0 + $0x168] sm:$0xff]
    %v156 = vld [vmem:[%s0 + $0x170] sm:$0xff]
    %v157 = vld [vmem:[%s0 + $0x178] sm:$0xff]
    %v158 = vld [vmem:[%s0 + $0x180] sm:$0xff]
    %v159 = vld [vmem:[%s0 + $0x188] sm:$0xff]
    %v160 = vld [vmem:[%s0 + $0x190] sm:$0xff]
    %v161 = vld [vmem:[%s0 + $0x198] sm:$0xff]
    %v162 = vld [vmem:[%s0 + $0x1a0] sm:$0xff]
    %v163 = vld [vmem:[%s0 + $0x1a8] sm:$0xff]
    %v164 = vld [vmem:[%s0 + $0x1b0] sm:$0xff]
    %v165 = vld [vmem:[%s0 + $0x1b8] sm:$0xff]
    %v166 = vld [vmem:[%s0 + $0x1c0] sm:$0xff]
    %v167 = vld [vmem:[%s0 + $0x1c8] sm:$0xff]
    %v168 = vld [vmem:[%s0 + $0x1d0] sm:$0xff]
    %v169 = vld [vmem:[%s0 + $0x1d8] sm:$0xff]
    %v170 = vld [vmem:[%s0 + $0x1e0] sm:$0xff]
    %v171 = vld [vmem:[%s0 + $0x1e8] sm:$0xff]
    %v172 = vld [vmem:[%s0 + $0x1f0] sm:$0xff]
    %v173 = vld [vmem:[%s0 + $0x1f8] sm:$0xff]
    %v174 = vpack.c.bf16 %v111, %v110
    %v175 = vpack.c.bf16 %v113, %v112
    %v176 = vpack.c.bf16 %v115, %v114
    %v177 = vpack.c.bf16 %v117, %v116
    %v178 = vpack.c.bf16 %v119, %v118
    %v179 = vpack.c.bf16 %v121, %v120
    %v180 = vpack.c.bf16 %v123, %v122
    %v181 = vpack.c.bf16 %v125, %v124
    %v182 = vpack.c.bf16 %v127, %v126
    %v183 = vpack.c.bf16 %v129, %v128
    %v184 = vpack.c.bf16 %v131, %v130
    %v185 = vpack.c.bf16 %v133, %v132
    %v186 = vpack.c.bf16 %v135, %v134
    %v187 = vpack.c.bf16 %v137, %v136
    %v188 = vpack.c.bf16 %v139, %v138
    %v189 = vpack.c.bf16 %v141, %v140
    %v190 = vpack.c.bf16 %v143, %v142
    %v191 = vpack.c.bf16 %v145, %v144
    %v192 = vpack.c.bf16 %v147, %v146
    %v193 = vpack.c.bf16 %v149, %v148
    %v194 = vpack.c.bf16 %v151, %v150
    %v195 = vpack.c.bf16 %v153, %v152
    %v196 = vpack.c.bf16 %v155, %v154
    %v197 = vpack.c.bf16 %v157, %v156
    %v198 = vpack.c.bf16 %v159, %v158
    %v199 = vpack.c.bf16 %v161, %v160
    %v200 = vpack.c.bf16 %v163, %v162
    %v201 = vpack.c.bf16 %v165, %v164
    %v202 = vpack.c.bf16 %v167, %v166
    %v203 = vpack.c.bf16 %v169, %v168
    %v204 = vpack.c.bf16 %v171, %v170
    %v205 = vpack.c.bf16 %v173, %v172
    %234 = vrot.lane.b32.xlu0 %v175, 28
    %v235 = vpop.permute.xlu0 %234
    %236 = vrot.lane.b32.xlu0 %v176, 28
    %v237 = vpop.permute.xlu0 %236
    %238 = vrot.lane.b32.xlu0 %v177, 28
    %v239 = vpop.permute.xlu0 %238
    %240 = vrot.lane.b32.xlu0 %v178, 28
    %v241 = vpop.permute.xlu0 %240
    %242 = vrot.lane.b32.xlu0 %v179, 28
    %v243 = vpop.permute.xlu0 %242
    %244 = vrot.lane.b32.xlu0 %v180, 28
    %v245 = vpop.permute.xlu0 %244
    %246 = vrot.lane.b32.xlu0 %v181, 28
    %v247 = vpop.permute.xlu0 %246
    %248 = vrot.lane.b32.xlu0 %v182, 28
    %v249 = vpop.permute.xlu0 %248
    %250 = vrot.lane.b32.xlu0 %v183, 28
    %v251 = vpop.permute.xlu0 %250
    %252 = vrot.lane.b32.xlu0 %v184, 28
    %v253 = vpop.permute.xlu0 %252
    %254 = vrot.lane.b32.xlu0 %v185, 28
    %v255 = vpop.permute.xlu0 %254
    %256 = vrot.lane.b32.xlu0 %v186, 28
    %v257 = vpop.permute.xlu0 %256
    %258 = vrot.lane.b32.xlu0 %v187, 28
    %v259 = vpop.permute.xlu0 %258
    %260 = vrot.lane.b32.xlu0 %v188, 28
    %v261 = vpop.permute.xlu0 %260
    %262 = vrot.lane.b32.xlu0 %v189, 28
    %v263 = vpop.permute.xlu0 %262
    %264 = vrot.lane.b32.xlu0 %v190, 28
    %v265 = vpop.permute.xlu0 %264
    %266 = vrot.lane.b32.xlu0 %v191, 28
    %v267 = vpop.permute.xlu0 %266
    %268 = vrot.lane.b32.xlu0 %v192, 28
    %v269 = vpop.permute.xlu0 %268
    %270 = vrot.lane.b32.xlu0 %v193, 28
    %v271 = vpop.permute.xlu0 %270
    %272 = vrot.lane.b32.xlu0 %v194, 28
    %v273 = vpop.permute.xlu0 %272
    %274 = vrot.lane.b32.xlu0 %v195, 28
    %v275 = vpop.permute.xlu0 %274
    %276 = vrot.lane.b32.xlu0 %v196, 28
    %v277 = vpop.permute.xlu0 %276
    %278 = vrot.lane.b32.xlu0 %v197, 28
    %v279 = vpop.permute.xlu0 %278
    %280 = vrot.lane.b32.xlu0 %v198, 28
    %v281 = vpop.permute.xlu0 %280
    %282 = vrot.lane.b32.xlu0 %v199, 28
    %v283 = vpop.permute.xlu0 %282
    %284 = vrot.lane.b32.xlu0 %v200, 28
    %v285 = vpop.permute.xlu0 %284
    %286 = vrot.lane.b32.xlu0 %v201, 28
    %v287 = vpop.permute.xlu0 %286
    %288 = vrot.lane.b32.xlu0 %v202, 28
    %v289 = vpop.permute.xlu0 %288
    %291 = vrot.lane.b32.xlu0 %v176, 56
    %v292 = vpop.permute.xlu0 %291
    %293 = vrot.lane.b32.xlu0 %v177, 56
    %v294 = vpop.permute.xlu0 %293
    %295 = vrot.lane.b32.xlu0 %v178, 56
    %v296 = vpop.permute.xlu0 %295
    %297 = vrot.lane.b32.xlu0 %v179, 56
    %v298 = vpop.permute.xlu0 %297
    %299 = vrot.lane.b32.xlu0 %v180, 56
    %v300 = vpop.permute.xlu0 %299
    %301 = vrot.lane.b32.xlu0 %v181, 56
    %v302 = vpop.permute.xlu0 %301
    %303 = vrot.lane.b32.xlu0 %v182, 56
    %v304 = vpop.permute.xlu0 %303
    %305 = vrot.lane.b32.xlu0 %v183, 56
    %v306 = vpop.permute.xlu0 %305
    %307 = vrot.lane.b32.xlu0 %v184, 56
    %v308 = vpop.permute.xlu0 %307
    %309 = vrot.lane.b32.xlu0 %v185, 56
    %v310 = vpop.permute.xlu0 %309
    %311 = vrot.lane.b32.xlu0 %v186, 56
    %v312 = vpop.permute.xlu0 %311
    %313 = vrot.lane.b32.xlu0 %v187, 56
    %v314 = vpop.permute.xlu0 %313
    %315 = vrot.lane.b32.xlu0 %v188, 56
    %v316 = vpop.permute.xlu0 %315
    %317 = vrot.lane.b32.xlu0 %v189, 56
    %v318 = vpop.permute.xlu0 %317
    %319 = vrot.lane.b32.xlu0 %v190, 56
    %v320 = vpop.permute.xlu0 %319
    %321 = vrot.lane.b32.xlu0 %v191, 56
    %v322 = vpop.permute.xlu0 %321
    %323 = vrot.lane.b32.xlu0 %v192, 56
    %v324 = vpop.permute.xlu0 %323
    %325 = vrot.lane.b32.xlu0 %v193, 56
    %v326 = vpop.permute.xlu0 %325
    %327 = vrot.lane.b32.xlu0 %v194, 56
    %v328 = vpop.permute.xlu0 %327
    %329 = vrot.lane.b32.xlu0 %v195, 56
    %v330 = vpop.permute.xlu0 %329
    %331 = vrot.lane.b32.xlu0 %v196, 56
    %v332 = vpop.permute.xlu0 %331
    %333 = vrot.lane.b32.xlu0 %v197, 56
    %v334 = vpop.permute.xlu0 %333
    %335 = vrot.lane.b32.xlu0 %v198, 56
    %v336 = vpop.permute.xlu0 %335
    %337 = vrot.lane.b32.xlu0 %v199, 56
    %v338 = vpop.permute.xlu0 %337
    %339 = vrot.lane.b32.xlu0 %v200, 56
    %v340 = vpop.permute.xlu0 %339
    %341 = vrot.lane.b32.xlu0 %v201, 56
    %v342 = vpop.permute.xlu0 %341
    %343 = vrot.lane.b32.xlu0 %v202, 56
    %v344 = vpop.permute.xlu0 %343
    %345 = vrot.lane.b32.xlu0 %v203, 56
    %v346 = vpop.permute.xlu0 %345
    %348 = vrot.lane.b32.xlu0 %v177, 84
    %v349 = vpop.permute.xlu0 %348
    %350 = vrot.lane.b32.xlu0 %v178, 84
    %v351 = vpop.permute.xlu0 %350
    %352 = vrot.lane.b32.xlu0 %v179, 84
    %v353 = vpop.permute.xlu0 %352
    %354 = vrot.lane.b32.xlu0 %v180, 84
    %v355 = vpop.permute.xlu0 %354
    %356 = vrot.lane.b32.xlu0 %v181, 84
    %v357 = vpop.permute.xlu0 %356
    %358 = vrot.lane.b32.xlu0 %v182, 84
    %v359 = vpop.permute.xlu0 %358
    %360 = vrot.lane.b32.xlu0 %v183, 84
    %v361 = vpop.permute.xlu0 %360
    %362 = vrot.lane.b32.xlu0 %v184, 84
    %v363 = vpop.permute.xlu0 %362
    %364 = vrot.lane.b32.xlu0 %v185, 84
    %v365 = vpop.permute.xlu0 %364
    %366 = vrot.lane.b32.xlu0 %v186, 84
    %v367 = vpop.permute.xlu0 %366
    %368 = vrot.lane.b32.xlu0 %v187, 84
    %v369 = vpop.permute.xlu0 %368
    %370 = vrot.lane.b32.xlu0 %v188, 84
    %v371 = vpop.permute.xlu0 %370
    %372 = vrot.lane.b32.xlu0 %v189, 84
    %v373 = vpop.permute.xlu0 %372
    %374 = vrot.lane.b32.xlu0 %v190, 84
    %v375 = vpop.permute.xlu0 %374
    %376 = vrot.lane.b32.xlu0 %v191, 84
    %v377 = vpop.permute.xlu0 %376
    %378 = vrot.lane.b32.xlu0 %v192, 84
    %v379 = vpop.permute.xlu0 %378
    %380 = vrot.lane.b32.xlu0 %v193, 84
    %v381 = vpop.permute.xlu0 %380
    %382 = vrot.lane.b32.xlu0 %v194, 84
    %v383 = vpop.permute.xlu0 %382
    %384 = vrot.lane.b32.xlu0 %v195, 84
    %v385 = vpop.permute.xlu0 %384
    %386 = vrot.lane.b32.xlu0 %v196, 84
    %v387 = vpop.permute.xlu0 %386
    %388 = vrot.lane.b32.xlu0 %v197, 84
    %v389 = vpop.permute.xlu0 %388
    %390 = vrot.lane.b32.xlu0 %v198, 84
    %v391 = vpop.permute.xlu0 %390
    %392 = vrot.lane.b32.xlu0 %v199, 84
    %v393 = vpop.permute.xlu0 %392
    %394 = vrot.lane.b32.xlu0 %v200, 84
    %v395 = vpop.permute.xlu0 %394
    %396 = vrot.lane.b32.xlu0 %v201, 84
    %v397 = vpop.permute.xlu0 %396
    %398 = vrot.lane.b32.xlu0 %v202, 84
    %v399 = vpop.permute.xlu0 %398
    %400 = vrot.lane.b32.xlu0 %v203, 84
    %v401 = vpop.permute.xlu0 %400
    %402 = vrot.lane.b32.xlu0 %v204, 84
    %v403 = vpop.permute.xlu0 %402
    %405 = vrot.lane.b32.xlu0 %v178, 112
    %v406 = vpop.permute.xlu0 %405
    %407 = vrot.lane.b32.xlu0 %v179, 112
    %v408 = vpop.permute.xlu0 %407
    %409 = vrot.lane.b32.xlu0 %v180, 112
    %v410 = vpop.permute.xlu0 %409
    %411 = vrot.lane.b32.xlu0 %v181, 112
    %v412 = vpop.permute.xlu0 %411
    %413 = vrot.lane.b32.xlu0 %v182, 112
    %v414 = vpop.permute.xlu0 %413
    %415 = vrot.lane.b32.xlu0 %v183, 112
    %v416 = vpop.permute.xlu0 %415
    %417 = vrot.lane.b32.xlu0 %v184, 112
    %v418 = vpop.permute.xlu0 %417
    %419 = vrot.lane.b32.xlu0 %v185, 112
    %v420 = vpop.permute.xlu0 %419
    %421 = vrot.lane.b32.xlu0 %v186, 112
    %v422 = vpop.permute.xlu0 %421
    %423 = vrot.lane.b32.xlu0 %v187, 112
    %v424 = vpop.permute.xlu0 %423
    %425 = vrot.lane.b32.xlu0 %v188, 112
    %v426 = vpop.permute.xlu0 %425
    %427 = vrot.lane.b32.xlu0 %v189, 112
    %v428 = vpop.permute.xlu0 %427
    %429 = vrot.lane.b32.xlu0 %v190, 112
    %v430 = vpop.permute.xlu0 %429
    %431 = vrot.lane.b32.xlu0 %v191, 112
    %v432 = vpop.permute.xlu0 %431
    %433 = vrot.lane.b32.xlu0 %v192, 112
    %v434 = vpop.permute.xlu0 %433
    %435 = vrot.lane.b32.xlu0 %v193, 112
    %v436 = vpop.permute.xlu0 %435
    %437 = vrot.lane.b32.xlu0 %v194, 112
    %v438 = vpop.permute.xlu0 %437
    %439 = vrot.lane.b32.xlu0 %v195, 112
    %v440 = vpop.permute.xlu0 %439
    %441 = vrot.lane.b32.xlu0 %v196, 112
    %v442 = vpop.permute.xlu0 %441
    %443 = vrot.lane.b32.xlu0 %v197, 112
    %v444 = vpop.permute.xlu0 %443
    %445 = vrot.lane.b32.xlu0 %v198, 112
    %v446 = vpop.permute.xlu0 %445
    %447 = vrot.lane.b32.xlu0 %v199, 112
    %v448 = vpop.permute.xlu0 %447
    %449 = vrot.lane.b32.xlu0 %v200, 112
    %v450 = vpop.permute.xlu0 %449
    %451 = vrot.lane.b32.xlu0 %v201, 112
    %v452 = vpop.permute.xlu0 %451
    %453 = vrot.lane.b32.xlu0 %v202, 112
    %v454 = vpop.permute.xlu0 %453
    %455 = vrot.lane.b32.xlu0 %v203, 112
    %v456 = vpop.permute.xlu0 %455
    %457 = vrot.lane.b32.xlu0 %v204, 112
    %v458 = vpop.permute.xlu0 %457
    %459 = vrot.lane.b32.xlu0 %v205, 112
    %v460 = vpop.permute.xlu0 %459
    %vm461 = vcmask 228352
    %v464 = vsel %vm461, %v174, %v235
    %v467 = vsel %vm461, %v175, %v237
    %v470 = vsel %vm461, %v176, %v239
    %v473 = vsel %vm461, %v177, %v241
    %v476 = vsel %vm461, %v178, %v243
    %v479 = vsel %vm461, %v179, %v245
    %v482 = vsel %vm461, %v180, %v247
    %v485 = vsel %vm461, %v181, %v249
    %v488 = vsel %vm461, %v182, %v251
    %v491 = vsel %vm461, %v183, %v253
    %v494 = vsel %vm461, %v184, %v255
    %v497 = vsel %vm461, %v185, %v257
    %v500 = vsel %vm461, %v186, %v259
    %v503 = vsel %vm461, %v187, %v261
    %v506 = vsel %vm461, %v188, %v263
    %v509 = vsel %vm461, %v189, %v265
    %v512 = vsel %vm461, %v190, %v267
    %v515 = vsel %vm461, %v191, %v269
    %v518 = vsel %vm461, %v192, %v271
    %v521 = vsel %vm461, %v193, %v273
    %v524 = vsel %vm461, %v194, %v275
    %v527 = vsel %vm461, %v195, %v277
    %v530 = vsel %vm461, %v196, %v279
    %v533 = vsel %vm461, %v197, %v281
    %v536 = vsel %vm461, %v198, %v283
    %v539 = vsel %vm461, %v199, %v285
    %v542 = vsel %vm461, %v200, %v287
    %v545 = vsel %vm461, %v201, %v289
    %vm546 = vcmask 457728
    %v548 = vsel %vm546, %v464, %v292
    %v550 = vsel %vm546, %v467, %v294
    %v552 = vsel %vm546, %v470, %v296
    %v554 = vsel %vm546, %v473, %v298
    %v556 = vsel %vm546, %v476, %v300
    %v558 = vsel %vm546, %v479, %v302
    %v560 = vsel %vm546, %v482, %v304
    %v562 = vsel %vm546, %v485, %v306
    %v564 = vsel %vm546, %v488, %v308
    %v566 = vsel %vm546, %v491, %v310
    %v568 = vsel %vm546, %v494, %v312
    %v570 = vsel %vm546, %v497, %v314
    %v572 = vsel %vm546, %v500, %v316
    %v574 = vsel %vm546, %v503, %v318
    %v576 = vsel %vm546, %v506, %v320
    %v578 = vsel %vm546, %v509, %v322
    %v580 = vsel %vm546, %v512, %v324
    %v582 = vsel %vm546, %v515, %v326
    %v584 = vsel %vm546, %v518, %v328
    %v586 = vsel %vm546, %v521, %v330
    %v588 = vsel %vm546, %v524, %v332
    %v590 = vsel %vm546, %v527, %v334
    %v592 = vsel %vm546, %v530, %v336
    %v594 = vsel %vm546, %v533, %v338
    %v596 = vsel %vm546, %v536, %v340
    %v598 = vsel %vm546, %v539, %v342
    %v600 = vsel %vm546, %v542, %v344
    %v602 = vsel %vm546, %v545, %v346
    %vm603 = vcmask 687104
    %v605 = vsel %vm603, %v548, %v349
    %v607 = vsel %vm603, %v550, %v351
    %v609 = vsel %vm603, %v552, %v353
    %v611 = vsel %vm603, %v554, %v355
    %v613 = vsel %vm603, %v556, %v357
    %v615 = vsel %vm603, %v558, %v359
    %v617 = vsel %vm603, %v560, %v361
    %v619 = vsel %vm603, %v562, %v363
    %v621 = vsel %vm603, %v564, %v365
    %v623 = vsel %vm603, %v566, %v367
    %v625 = vsel %vm603, %v568, %v369
    %v627 = vsel %vm603, %v570, %v371
    %v629 = vsel %vm603, %v572, %v373
    %v631 = vsel %vm603, %v574, %v375
    %v633 = vsel %vm603, %v576, %v377
    %v635 = vsel %vm603, %v578, %v379
    %v637 = vsel %vm603, %v580, %v381
    %v639 = vsel %vm603, %v582, %v383
    %v641 = vsel %vm603, %v584, %v385
    %v643 = vsel %vm603, %v586, %v387
    %v645 = vsel %vm603, %v588, %v389
    %v647 = vsel %vm603, %v590, %v391
    %v649 = vsel %vm603, %v592, %v393
    %v651 = vsel %vm603, %v594, %v395
    %v653 = vsel %vm603, %v596, %v397
    %v655 = vsel %vm603, %v598, %v399
    %v657 = vsel %vm603, %v600, %v401
    %v659 = vsel %vm603, %v602, %v403
    %vm660 = vcmask 916480
    %v662 = vsel %vm660, %v605, %v406
    %v665 = vsel %vm660, %v607, %v408
    %v668 = vsel %vm660, %v609, %v410
    %v671 = vsel %vm660, %v611, %v412
    %v674 = vsel %vm660, %v613, %v414
    %v677 = vsel %vm660, %v615, %v416
    %v680 = vsel %vm660, %v617, %v418
    %v683 = vsel %vm660, %v619, %v420
    %v686 = vsel %vm660, %v621, %v422
    %v689 = vsel %vm660, %v623, %v424
    %v692 = vsel %vm660, %v625, %v426
    %v695 = vsel %vm660, %v627, %v428
    %v698 = vsel %vm660, %v629, %v430
    %v701 = vsel %vm660, %v631, %v432
    %v704 = vsel %vm660, %v633, %v434
    %v707 = vsel %vm660, %v635, %v436
    %v710 = vsel %vm660, %v637, %v438
    %v713 = vsel %vm660, %v639, %v440
    %v716 = vsel %vm660, %v641, %v442
    %v719 = vsel %vm660, %v643, %v444
    %v722 = vsel %vm660, %v645, %v446
    %v725 = vsel %vm660, %v647, %v448
    %v728 = vsel %vm660, %v649, %v450
    %v731 = vsel %vm660, %v651, %v452
    %v734 = vsel %vm660, %v653, %v454
    %v737 = vsel %vm660, %v655, %v456
    %v740 = vsel %vm660, %v657, %v458
    %v743 = vsel %vm660, %v659, %v460
    %v745 = vld [vmem:[#allocation2] sm:$0xff]
    %v746 = vld [vmem:[#allocation2 + $0x8] sm:$0xf]
    %v747 = vld [vmem:[#allocation2 + $0xc] sm:$0xff]
    %v748 = vld [vmem:[#allocation2 + $0x14] sm:$0xf]
    %v749 = vld [vmem:[#allocation2 + $0x18] sm:$0xff]
    %v750 = vld [vmem:[#allocation2 + $0x20] sm:$0xf]
    %v751 = vld [vmem:[#allocation2 + $0x24] sm:$0xff]
    %v752 = vld [vmem:[#allocation2 + $0x2c] sm:$0xf]
    %v753 = vld [vmem:[#allocation2 + $0x30] sm:$0xff]
    %v754 = vld [vmem:[#allocation2 + $0x38] sm:$0xf]
    %v755 = vld [vmem:[#allocation2 + $0x3c] sm:$0xff]
    %v756 = vld [vmem:[#allocation2 + $0x44] sm:$0xf]
    %v757 = vld [vmem:[#allocation2 + $0x48] sm:$0xff]
    %v758 = vld [vmem:[#allocation2 + $0x50] sm:$0xf]
    %v759 = vld [vmem:[#allocation2 + $0x54] sm:$0xff]
    %v760 = vld [vmem:[#allocation2 + $0x5c] sm:$0xf]
    %v761 = vld [vmem:[#allocation2 + $0x60] sm:$0xff]
    %v762 = vld [vmem:[#allocation2 + $0x68] sm:$0xf]
    %v763 = vld [vmem:[#allocation2 + $0x6c] sm:$0xff]
    %v764 = vld [vmem:[#allocation2 + $0x74] sm:$0xf]
    %v765 = vld [vmem:[#allocation2 + $0x78] sm:$0xff]
    %v766 = vld [vmem:[#allocation2 + $0x80] sm:$0xf]
    %v767 = vld [vmem:[#allocation2 + $0x84] sm:$0xff]
    %v768 = vld [vmem:[#allocation2 + $0x8c] sm:$0xf]
    %v769 = vld [vmem:[#allocation2 + $0x90] sm:$0xff]
    %v770 = vld [vmem:[#allocation2 + $0x98] sm:$0xf]
    %v771 = vld [vmem:[#allocation2 + $0x9c] sm:$0xff]
    %v772 = vld [vmem:[#allocation2 + $0xa4] sm:$0xf]
    %v773 = vld [vmem:[#allocation2 + $0xa8] sm:$0xff]
    %v774 = vld [vmem:[#allocation2 + $0xb0] sm:$0xf]
    %v775 = vld [vmem:[#allocation2 + $0xb4] sm:$0xff]
    %v776 = vld [vmem:[#allocation2 + $0xbc] sm:$0xf]
    %v777 = vld [vmem:[#allocation2 + $0xc0] sm:$0xff]
    %v778 = vld [vmem:[#allocation2 + $0xc8] sm:$0xf]
    %v779 = vld [vmem:[#allocation2 + $0xcc] sm:$0x33]
    %v780 = vld [vmem:[#allocation2 + $0xd4] sm:$0x3]
    %v781 = vld [vmem:[#allocation4] sm:$0x7]
    %v783 = vlaneseq
    %v784 = vshrl.u32 %v783, 7
    %v785 = vsub.s32 0, %v784
    %v786 = vrot.slane %v781, %v785
    %v787 = vlaneseq
    %v788 = vshrl.u32 %v787, 7
    %v789 = vsub.s32 1, %v788
    %v790 = vrot.slane %v781, %v789
    %v791 = vlaneseq
    %v792 = vshrl.u32 %v791, 7
    %v793 = vsub.s32 2, %v792
    %v794 = vrot.slane %v781, %v793
    %v834 = vunpack.c.l.b16 %v745
    %v835 = vunpack.c.h.b16 %v745
    %v836 = vunpack.c.l.b16 %v746
    %v837 = vunpack.c.l.b16 %v747
    %v838 = vunpack.c.h.b16 %v747
    %v839 = vunpack.c.l.b16 %v748
    %v840 = vunpack.c.l.b16 %v749
    %v841 = vunpack.c.h.b16 %v749
    %v842 = vunpack.c.l.b16 %v750
    %v843 = vunpack.c.l.b16 %v751
    %v844 = vunpack.c.h.b16 %v751
    %v845 = vunpack.c.l.b16 %v752
    %v846 = vunpack.c.l.b16 %v753
    %v847 = vunpack.c.h.b16 %v753
    %v848 = vunpack.c.l.b16 %v754
    %v849 = vunpack.c.l.b16 %v755
    %v850 = vunpack.c.h.b16 %v755
    %v851 = vunpack.c.l.b16 %v756
    %v852 = vunpack.c.l.b16 %v757
    %v853 = vunpack.c.h.b16 %v757
    %v854 = vunpack.c.l.b16 %v758
    %v855 = vunpack.c.l.b16 %v759
    %v856 = vunpack.c.h.b16 %v759
    %v857 = vunpack.c.l.b16 %v760
    %v858 = vunpack.c.l.b16 %v761
    %v859 = vunpack.c.h.b16 %v761
    %v860 = vunpack.c.l.b16 %v762
    %v861 = vunpack.c.l.b16 %v763
    %v862 = vunpack.c.h.b16 %v763
    %v863 = vunpack.c.l.b16 %v764
    %v864 = vunpack.c.l.b16 %v765
    %v865 = vunpack.c.h.b16 %v765
    %v866 = vunpack.c.l.b16 %v766
    %v867 = vunpack.c.l.b16 %v767
    %v868 = vunpack.c.h.b16 %v767
    %v869 = vunpack.c.l.b16 %v768
    %v870 = vunpack.c.l.b16 %v769
    %v871 = vunpack.c.h.b16 %v769
    %v872 = vunpack.c.l.b16 %v770
    %v873 = vunpack.c.l.b16 %v771
    %v874 = vunpack.c.h.b16 %v771
    %v875 = vunpack.c.l.b16 %v772
    %v876 = vunpack.c.l.b16 %v773
    %v877 = vunpack.c.h.b16 %v773
    %v878 = vunpack.c.l.b16 %v774
    %v879 = vunpack.c.l.b16 %v775
    %v880 = vunpack.c.h.b16 %v775
    %v881 = vunpack.c.l.b16 %v776
    %v882 = vunpack.c.l.b16 %v777
    %v883 = vunpack.c.h.b16 %v777
    %v884 = vunpack.c.l.b16 %v778
    %v885 = vunpack.c.l.b16 %v779
    %v886 = vunpack.c.h.b16 %v779
    %v887 = vunpack.c.l.b16 %v780
    %v888 = vpack.c.b16 %v837, %v834
    %v889 = vpack.c.b16 %v838, %v835
    %v890 = vpack.c.b16 %v839, %v836
    %v891 = vpack.c.b16 %v843, %v840
    %v892 = vpack.c.b16 %v844, %v841
    %v893 = vpack.c.b16 %v845, %v842
    %v894 = vpack.c.b16 %v849, %v846
    %v895 = vpack.c.b16 %v850, %v847
    %v896 = vpack.c.b16 %v851, %v848
    %v897 = vpack.c.b16 %v855, %v852
    %v898 = vpack.c.b16 %v856, %v853
    %v899 = vpack.c.b16 %v857, %v854
    %v900 = vpack.c.b16 %v861, %v858
    %v901 = vpack.c.b16 %v862, %v859
    %v902 = vpack.c.b16 %v863, %v860
    %v903 = vpack.c.b16 %v867, %v864
    %v904 = vpack.c.b16 %v868, %v865
    %v905 = vpack.c.b16 %v869, %v866
    %v906 = vpack.c.b16 %v873, %v870
    %v907 = vpack.c.b16 %v874, %v871
    %v908 = vpack.c.b16 %v875, %v872
    %v909 = vpack.c.b16 %v879, %v876
    %v910 = vpack.c.b16 %v880, %v877
    %v911 = vpack.c.b16 %v881, %v878
    %v912 = vpack.c.b16 %v885, %v882
    %v913 = vpack.c.b16 %v886, %v883
    %v914 = vpack.c.b16 %v887, %v884
    %vm939 = vcmask 97280
    %v940 = vsel %vm939, %v406, 0
    %v942 = vsel %vm939, %v408, 0
    %v944 = vsel %vm939, %v410, 0
    %v946 = vsel %vm939, %v412, 0
    %v948 = vsel %vm939, %v414, 0
    %v950 = vsel %vm939, %v416, 0
    %v952 = vsel %vm939, %v418, 0
    %v954 = vsel %vm939, %v420, 0
    %v956 = vsel %vm939, %v422, 0
    %v958 = vsel %vm939, %v424, 0
    %v960 = vsel %vm939, %v426, 0
    %v962 = vsel %vm939, %v428, 0
    %v964 = vsel %vm939, %v430, 0
    %v966 = vsel %vm939, %v432, 0
    %v968 = vsel %vm939, %v434, 0
    %v970 = vsel %vm939, %v436, 0
    %v972 = vsel %vm939, %v438, 0
    %v974 = vsel %vm939, %v440, 0
    %v976 = vsel %vm939, %v442, 0
    %v978 = vsel %vm939, %v444, 0
    %v980 = vsel %vm939, %v446, 0
    %v982 = vsel %vm939, %v448, 0
    %v984 = vsel %vm939, %v450, 0
    %v986 = vsel %vm939, %v452, 0
    %v988 = vsel %vm939, %v454, 0
    %v990 = vsel %vm939, %v456, 0
    %v992 = vsel %vm939, %v458, 0
    %v994 = vsel %vm939, %v460, 0
    %vm996 = vcmask 1045504
    %v998 = vsel %vm996, %v912, 0
    %v1001 = vsel %vm996, %v913, 0
    %v1004 = vsel %vm996, %v914, 0
    %1006 = vmatprep.subr.bf16.mxu0 %v889
    %1007 = vmatpush1.bf16.msra.mxu0 %v888
    %1008 = vmatprep.subr.bf16.mxu0 %v892
    %1009 = vmatpush1.bf16.msra.mxu0 %v891
    %1010 = vmatprep.subr.bf16.mxu0 %v895
    %1011 = vmatpush1.bf16.msra.mxu0 %v894
    %1012 = vmatprep.subr.bf16.mxu0 %v898
    %1013 = vmatpush1.bf16.msra.mxu0 %v897
    %1014 = vmatprep.subr.bf16.mxu0 %v901
    %1015 = vmatpush1.bf16.msra.mxu0 %v900
    %1016 = vmatprep.subr.bf16.mxu0 %v904
    %1017 = vmatpush1.bf16.msra.mxu0 %v903
    %1018 = vmatprep.subr.bf16.mxu0 %v907
    %1019 = vmatpush1.bf16.msra.mxu0 %v906
    %1020 = vmatprep.subr.bf16.mxu0 %v910
    %1021 = vmatpush1.bf16.msra.mxu0 %v909
    %1022 = vmatprep.subr.bf16.mxu0 %v1001
    %1023 = vmatpush1.bf16.msra.mxu0 %v998
    %1024 = vmatprep.subr.bf16.mxu0 0
    %1025 = vmatpush1.bf16.msra.mxu0 0
    %1026 = vmatprep.subr.bf16.mxu0 0
    %1027 = vmatpush1.bf16.msra.mxu0 0
    %1028 = vmatprep.subr.bf16.mxu0 0
    %1029 = vmatpush1.bf16.msra.mxu0 0
    %1030 = vmatprep.subr.bf16.mxu0 0
    %1031 = vmatpush1.bf16.msra.mxu0 0
    %1032 = vmatprep.subr.bf16.mxu0 0
    %1033 = vmatpush1.bf16.msra.mxu0 0
    %1034 = vmatprep.subr.bf16.mxu0 0
    %1035 = vmatpush1.bf16.msra.mxu0 0
    %1036 = vmatprep.subr.bf16.mxu0 0
    %1037 = vmatpush1.bf16.msra.mxu0 0
    %1038 = vmatprep.mubr.bf16.mxu0 %v940
    %1039 = vmatmul.mubr.bf16.gmra.mrb[0].mxu0 %v662
    %v1040 = vpop.f32.mrb[0].mxu0
    %v1041 = vadd.f32 %v786, %v1040
    %v1042 = vpop.f32.mrb[0].mxu0
    %v1043 = vadd.f32 %v790, %v1042
    %v1044 = vpop.f32.mrb[0].mxu0
    %v1045 = vadd.f32 %v786, %v1044
    %v1046 = vpop.f32.mrb[0].mxu0
    %v1047 = vadd.f32 %v790, %v1046
    %1048 = vmatprep.mubr.bf16.mxu0 %v942
    %1049 = vmatmul.mubr.bf16.gmra.mrb[0].mxu0 %v665
    %v1050 = vpop.f32.mrb[0].mxu0
    %v1051 = vadd.f32 %v786, %v1050
    %v1052 = vpop.f32.mrb[0].mxu0
    %v1053 = vadd.f32 %v790, %v1052
    %v1054 = vpop.f32.mrb[0].mxu0
    %v1055 = vadd.f32 %v786, %v1054
    %v1056 = vpop.f32.mrb[0].mxu0
    %v1057 = vadd.f32 %v790, %v1056
    %1058 = vmatprep.mubr.bf16.mxu0 %v944
    %1059 = vmatmul.mubr.bf16.gmra.mrb[0].mxu0 %v668
    %v1060 = vpop.f32.mrb[0].mxu0
    %v1061 = vadd.f32 %v786, %v1060
    %v1062 = vpop.f32.mrb[0].mxu0
    %v1063 = vadd.f32 %v790, %v1062
    %v1064 = vpop.f32.mrb[0].mxu0
    %v1065 = vadd.f32 %v786, %v1064
    %v1066 = vpop.f32.mrb[0].mxu0
    %v1067 = vadd.f32 %v790, %v1066
    %1068 = vmatprep.mubr.bf16.mxu0 %v946
    %1069 = vmatmul.mubr.bf16.gmra.mrb[0].mxu0 %v671
    %v1070 = vpop.f32.mrb[0].mxu0
    %v1071 = vadd.f32 %v786, %v1070
    %v1072 = vpop.f32.mrb[0].mxu0
    %v1073 = vadd.f32 %v790, %v1072
    %v1074 = vpop.f32.mrb[0].mxu0
    %v1075 = vadd.f32 %v786, %v1074
    %v1076 = vpop.f32.mrb[0].mxu0
    %v1077 = vadd.f32 %v790, %v1076
    %1078 = vmatprep.mubr.bf16.mxu0 %v948
    %1079 = vmatmul.mubr.bf16.gmra.mrb[0].mxu0 %v674
    %v1080 = vpop.f32.mrb[0].mxu0
    %v1081 = vadd.f32 %v786, %v1080
    %v1082 = vpop.f32.mrb[0].mxu0
    %v1083 = vadd.f32 %v790, %v1082
    %v1084 = vpop.f32.mrb[0].mxu0
    %v1085 = vadd.f32 %v786, %v1084
    %v1086 = vpop.f32.mrb[0].mxu0
    %v1087 = vadd.f32 %v790, %v1086
    %1088 = vmatprep.mubr.bf16.mxu0 %v950
    %1089 = vmatmul.mubr.bf16.gmra.mrb[0].mxu0 %v677
    %v1090 = vpop.f32.mrb[0].mxu0
    %v1091 = vadd.f32 %v786, %v1090
    %v1092 = vpop.f32.mrb[0].mxu0
    %v1093 = vadd.f32 %v790, %v1092
    %v1094 = vpop.f32.mrb[0].mxu0
    %v1095 = vadd.f32 %v786, %v1094
    %v1096 = vpop.f32.mrb[0].mxu0
    %v1097 = vadd.f32 %v790, %v1096
    %1098 = vmatprep.mubr.bf16.mxu0 %v952
    %1099 = vmatmul.mubr.bf16.gmra.mrb[0].mxu0 %v680
    %v1100 = vpop.f32.mrb[0].mxu0
    %v1101 = vadd.f32 %v786, %v1100
    %v1102 = vpop.f32.mrb[0].mxu0
    %v1103 = vadd.f32 %v790, %v1102
    %v1104 = vpop.f32.mrb[0].mxu0
    %v1105 = vadd.f32 %v786, %v1104
    %v1106 = vpop.f32.mrb[0].mxu0
    %v1107 = vadd.f32 %v790, %v1106
    %1108 = vmatprep.mubr.bf16.mxu0 %v954
    %1109 = vmatmul.mubr.bf16.gmra.mrb[0].mxu0 %v683
    %v1110 = vpop.f32.mrb[0].mxu0
    %v1111 = vadd.f32 %v786, %v1110
    %v1112 = vpop.f32.mrb[0].mxu0
    %v1113 = vadd.f32 %v790, %v1112
    %v1114 = vpop.f32.mrb[0].mxu0
    %v1115 = vadd.f32 %v786, %v1114
    %v1116 = vpop.f32.mrb[0].mxu0
    %v1117 = vadd.f32 %v790, %v1116
    %1118 = vmatprep.mubr.bf16.mxu0 %v956
    %1119 = vmatmul.mubr.bf16.gmra.mrb[0].mxu0 %v686
    %v1120 = vpop.f32.mrb[0].mxu0
    %v1121 = vadd.f32 %v786, %v1120
    %v1122 = vpop.f32.mrb[0].mxu0
    %v1123 = vadd.f32 %v790, %v1122
    %v1124 = vpop.f32.mrb[0].mxu0
    %v1125 = vadd.f32 %v786, %v1124
    %v1126 = vpop.f32.mrb[0].mxu0
    %v1127 = vadd.f32 %v790, %v1126
    %1128 = vmatprep.mubr.bf16.mxu0 %v958
    %1129 = vmatmul.mubr.bf16.gmra.mrb[0].mxu0 %v689
    %v1130 = vpop.f32.mrb[0].mxu0
    %v1131 = vadd.f32 %v786, %v1130
    %v1132 = vpop.f32.mrb[0].mxu0
    %v1133 = vadd.f32 %v790, %v1132
    %v1134 = vpop.f32.mrb[0].mxu0
    %v1135 = vadd.f32 %v786, %v1134
    %v1136 = vpop.f32.mrb[0].mxu0
    %v1137 = vadd.f32 %v790, %v1136
    %1138 = vmatprep.mubr.bf16.mxu0 %v960
    %1139 = vmatmul.mubr.bf16.gmra.mrb[0].mxu0 %v692
    %v1140 = vpop.f32.mrb[0].mxu0
    %v1141 = vadd.f32 %v786, %v1140
    %v1142 = vpop.f32.mrb[0].mxu0
    %v1143 = vadd.f32 %v790, %v1142
    %v1144 = vpop.f32.mrb[0].mxu0
    %v1145 = vadd.f32 %v786, %v1144
    %v1146 = vpop.f32.mrb[0].mxu0
    %v1147 = vadd.f32 %v790, %v1146
    %1148 = vmatprep.mubr.bf16.mxu0 %v962
    %1149 = vmatmul.mubr.bf16.gmra.mrb[0].mxu0 %v695
    %v1150 = vpop.f32.mrb[0].mxu0
    %v1151 = vadd.f32 %v786, %v1150
    %v1152 = vpop.f32.mrb[0].mxu0
    %v1153 = vadd.f32 %v790, %v1152
    %v1154 = vpop.f32.mrb[0].mxu0
    %v1155 = vadd.f32 %v786, %v1154
    %v1156 = vpop.f32.mrb[0].mxu0
    %v1157 = vadd.f32 %v790, %v1156
    %1158 = vmatprep.mubr.bf16.mxu0 %v964
    %1159 = vmatmul.mubr.bf16.gmra.mrb[0].mxu0 %v698
    %v1160 = vpop.f32.mrb[0].mxu0
    %v1161 = vadd.f32 %v786, %v1160
    %v1162 = vpop.f32.mrb[0].mxu0
    %v1163 = vadd.f32 %v790, %v1162
    %v1164 = vpop.f32.mrb[0].mxu0
    %v1165 = vadd.f32 %v786, %v1164
    %v1166 = vpop.f32.mrb[0].mxu0
    %v1167 = vadd.f32 %v790, %v1166
    %1168 = vmatprep.mubr.bf16.mxu0 %v966
    %1169 = vmatmul.mubr.bf16.gmra.mrb[0].mxu0 %v701
    %v1170 = vpop.f32.mrb[0].mxu0
    %v1171 = vadd.f32 %v786, %v1170
    %v1172 = vpop.f32.mrb[0].mxu0
    %v1173 = vadd.f32 %v790, %v1172
    %v1174 = vpop.f32.mrb[0].mxu0
    %v1175 = vadd.f32 %v786, %v1174
    %v1176 = vpop.f32.mrb[0].mxu0
    %v1177 = vadd.f32 %v790, %v1176
    %1178 = vmatprep.mubr.bf16.mxu0 %v968
    %1179 = vmatmul.mubr.bf16.gmra.mrb[0].mxu0 %v704
    %v1180 = vpop.f32.mrb[0].mxu0
    %v1181 = vadd.f32 %v786, %v1180
    %v1182 = vpop.f32.mrb[0].mxu0
    %v1183 = vadd.f32 %v790, %v1182
    %v1184 = vpop.f32.mrb[0].mxu0
    %v1185 = vadd.f32 %v786, %v1184
    %v1186 = vpop.f32.mrb[0].mxu0
    %v1187 = vadd.f32 %v790, %v1186
    %1188 = vmatprep.mubr.bf16.mxu0 %v970
    %1189 = vmatmul.mubr.bf16.gmra.mrb[0].mxu0 %v707
    %v1190 = vpop.f32.mrb[0].mxu0
    %v1191 = vadd.f32 %v786, %v1190
    %v1192 = vpop.f32.mrb[0].mxu0
    %v1193 = vadd.f32 %v790, %v1192
    %v1194 = vpop.f32.mrb[0].mxu0
    %v1195 = vadd.f32 %v786, %v1194
    %v1196 = vpop.f32.mrb[0].mxu0
    %v1197 = vadd.f32 %v790, %v1196
    %1198 = vmatprep.mubr.bf16.mxu0 %v972
    %1199 = vmatmul.mubr.bf16.gmra.mrb[0].mxu0 %v710
    %v1200 = vpop.f32.mrb[0].mxu0
    %v1201 = vadd.f32 %v786, %v1200
    %v1202 = vpop.f32.mrb[0].mxu0
    %v1203 = vadd.f32 %v790, %v1202
    %v1204 = vpop.f32.mrb[0].mxu0
    %v1205 = vadd.f32 %v786, %v1204
    %v1206 = vpop.f32.mrb[0].mxu0
    %v1207 = vadd.f32 %v790, %v1206
    %1208 = vmatprep.mubr.bf16.mxu0 %v974
    %1209 = vmatmul.mubr.bf16.gmra.mrb[0].mxu0 %v713
    %v1210 = vpop.f32.mrb[0].mxu0
    %v1211 = vadd.f32 %v786, %v1210
    %v1212 = vpop.f32.mrb[0].mxu0
    %v1213 = vadd.f32 %v790, %v1212
    %v1214 = vpop.f32.mrb[0].mxu0
    %v1215 = vadd.f32 %v786, %v1214
    %v1216 = vpop.f32.mrb[0].mxu0
    %v1217 = vadd.f32 %v790, %v1216
    %1218 = vmatprep.mubr.bf16.mxu0 %v976
    %1219 = vmatmul.mubr.bf16.gmra.mrb[0].mxu0 %v716
    %v1220 = vpop.f32.mrb[0].mxu0
    %v1221 = vadd.f32 %v786, %v1220
    %v1222 = vpop.f32.mrb[0].mxu0
    %v1223 = vadd.f32 %v790, %v1222
    %v1224 = vpop.f32.mrb[0].mxu0
    %v1225 = vadd.f32 %v786, %v1224
    %v1226 = vpop.f32.mrb[0].mxu0
    %v1227 = vadd.f32 %v790, %v1226
    %1228 = vmatprep.mubr.bf16.mxu0 %v978
    %1229 = vmatmul.mubr.bf16.gmra.mrb[0].mxu0 %v719
    %v1230 = vpop.f32.mrb[0].mxu0
    %v1231 = vadd.f32 %v786, %v1230
    %v1232 = vpop.f32.mrb[0].mxu0
    %v1233 = vadd.f32 %v790, %v1232
    %v1234 = vpop.f32.mrb[0].mxu0
    %v1235 = vadd.f32 %v786, %v1234
    %v1236 = vpop.f32.mrb[0].mxu0
    %v1237 = vadd.f32 %v790, %v1236
    %1238 = vmatprep.mubr.bf16.mxu0 %v980
    %1239 = vmatmul.mubr.bf16.gmra.mrb[0].mxu0 %v722
    %v1240 = vpop.f32.mrb[0].mxu0
    %v1241 = vadd.f32 %v786, %v1240
    %v1242 = vpop.f32.mrb[0].mxu0
    %v1243 = vadd.f32 %v790, %v1242
    %v1244 = vpop.f32.mrb[0].mxu0
    %v1245 = vadd.f32 %v786, %v1244
    %v1246 = vpop.f32.mrb[0].mxu0
    %v1247 = vadd.f32 %v790, %v1246
    %1248 = vmatprep.mubr.bf16.mxu0 %v982
    %1249 = vmatmul.mubr.bf16.gmra.mrb[0].mxu0 %v725
    %v1250 = vpop.f32.mrb[0].mxu0
    %v1251 = vadd.f32 %v786, %v1250
    %v1252 = vpop.f32.mrb[0].mxu0
    %v1253 = vadd.f32 %v790, %v1252
    %v1254 = vpop.f32.mrb[0].mxu0
    %v1255 = vadd.f32 %v786, %v1254
    %v1256 = vpop.f32.mrb[0].mxu0
    %v1257 = vadd.f32 %v790, %v1256
    %1258 = vmatprep.mubr.bf16.mxu0 %v984
    %1259 = vmatmul.mubr.bf16.gmra.mrb[0].mxu0 %v728
    %v1260 = vpop.f32.mrb[0].mxu0
    %v1261 = vadd.f32 %v786, %v1260
    %v1262 = vpop.f32.mrb[0].mxu0
    %v1263 = vadd.f32 %v790, %v1262
    %v1264 = vpop.f32.mrb[0].mxu0
    %v1265 = vadd.f32 %v786, %v1264
    %v1266 = vpop.f32.mrb[0].mxu0
    %v1267 = vadd.f32 %v790, %v1266
    %1268 = vmatprep.mubr.bf16.mxu0 %v986
    %1269 = vmatmul.mubr.bf16.gmra.mrb[0].mxu0 %v731
    %v1270 = vpop.f32.mrb[0].mxu0
    %v1271 = vadd.f32 %v786, %v1270
    %v1272 = vpop.f32.mrb[0].mxu0
    %v1273 = vadd.f32 %v790, %v1272
    %v1274 = vpop.f32.mrb[0].mxu0
    %v1275 = vadd.f32 %v786, %v1274
    %v1276 = vpop.f32.mrb[0].mxu0
    %v1277 = vadd.f32 %v790, %v1276
    %1278 = vmatprep.mubr.bf16.mxu0 %v988
    %1279 = vmatmul.mubr.bf16.gmra.mrb[0].mxu0 %v734
    %v1280 = vpop.f32.mrb[0].mxu0
    %v1281 = vadd.f32 %v786, %v1280
    %v1282 = vpop.f32.mrb[0].mxu0
    %v1283 = vadd.f32 %v790, %v1282
    %v1284 = vpop.f32.mrb[0].mxu0
    %v1285 = vadd.f32 %v786, %v1284
    %v1286 = vpop.f32.mrb[0].mxu0
    %v1287 = vadd.f32 %v790, %v1286
    %1288 = vmatprep.mubr.bf16.mxu0 %v990
    %1289 = vmatmul.mubr.bf16.gmra.mrb[0].mxu0 %v737
    %v1290 = vpop.f32.mrb[0].mxu0
    %v1291 = vadd.f32 %v786, %v1290
    %v1292 = vpop.f32.mrb[0].mxu0
    %v1293 = vadd.f32 %v790, %v1292
    %v1294 = vpop.f32.mrb[0].mxu0
    %v1295 = vadd.f32 %v786, %v1294
    %v1296 = vpop.f32.mrb[0].mxu0
    %v1297 = vadd.f32 %v790, %v1296
    %1298 = vmatprep.mubr.bf16.mxu0 %v992
    %1299 = vmatmul.mubr.bf16.gmra.mrb[0].mxu0 %v740
    %v1300 = vpop.f32.mrb[0].mxu0
    %v1301 = vadd.f32 %v786, %v1300
    %v1302 = vpop.f32.mrb[0].mxu0
    %v1303 = vadd.f32 %v790, %v1302
    %v1304 = vpop.f32.mrb[0].mxu0
    %v1305 = vadd.f32 %v786, %v1304
    %v1306 = vpop.f32.mrb[0].mxu0
    %v1307 = vadd.f32 %v790, %v1306
    %1308 = vmatprep.mubr.bf16.mxu0 %v994
    %1309 = vmatmul.mubr.bf16.gmra.mrb[0].mxu0 %v743
    %v1310 = vpop.f32.mrb[0].mxu0
    %v1311 = vadd.f32 %v786, %v1310
    %v1312 = vpop.f32.mrb[0].mxu0
    %v1313 = vadd.f32 %v790, %v1312
    %v1314 = vpop.f32.mrb[0].mxu0
    %v1315 = vadd.f32 %v786, %v1314
    %v1316 = vpop.f32.mrb[0].mxu0
    %v1317 = vadd.f32 %v790, %v1316
    %1318 = vdwg.mxu0
    %1319 = vmatprep.subr.bf16.mxu0 0
    %1320 = vmatpush1.bf16.msra.mxu0 %v890
    %1321 = vmatprep.subr.bf16.mxu0 0
    %1322 = vmatpush1.bf16.msra.mxu0 %v893
    %1323 = vmatprep.subr.bf16.mxu0 0
    %1324 = vmatpush1.bf16.msra.mxu0 %v896
    %1325 = vmatprep.subr.bf16.mxu0 0
    %1326 = vmatpush1.bf16.msra.mxu0 %v899
    %1327 = vmatprep.subr.bf16.mxu0 0
    %1328 = vmatpush1.bf16.msra.mxu0 %v902
    %1329 = vmatprep.subr.bf16.mxu0 0
    %1330 = vmatpush1.bf16.msra.mxu0 %v905
    %1331 = vmatprep.subr.bf16.mxu0 0
    %1332 = vmatpush1.bf16.msra.mxu0 %v908
    %1333 = vmatprep.subr.bf16.mxu0 0
    %1334 = vmatpush1.bf16.msra.mxu0 %v911
    %1335 = vmatprep.subr.bf16.mxu0 0
    %1336 = vmatpush1.bf16.msra.mxu0 %v1004
    %1337 = vmatprep.subr.bf16.mxu0 0
    %1338 = vmatpush1.bf16.msra.mxu0 0
    %1339 = vmatprep.subr.bf16.mxu0 0
    %1340 = vmatpush1.bf16.msra.mxu0 0
    %1341 = vmatprep.subr.bf16.mxu0 0
    %1342 = vmatpush1.bf16.msra.mxu0 0
    %1343 = vmatprep.subr.bf16.mxu0 0
    %1344 = vmatpush1.bf16.msra.mxu0 0
    %1345 = vmatprep.subr.bf16.mxu0 0
    %1346 = vmatpush1.bf16.msra.mxu0 0
    %1347 = vmatprep.subr.bf16.mxu0 0
    %1348 = vmatpush1.bf16.msra.mxu0 0
    %1349 = vmatprep.subr.bf16.mxu0 0
    %1350 = vmatpush1.bf16.msra.mxu0 0
    %1351 = vmatprep.mubr.bf16.mxu0 %v940
    %1352 = vmatmul.mubr.bf16.gmra.mrb[0].mxu0 %v662
    %v1353 = vpop.f32.mrb[0].mxu0
    %v1354 = vadd.f32 %v794, %v1353
    %v1355 = vpop.f32.mrb[0].mxu0
    %v1356 = vpop.f32.mrb[0].mxu0
    %v1357 = vadd.f32 %v794, %v1356
    %v1358 = vpop.f32.mrb[0].mxu0
    %1359 = vmatprep.mubr.bf16.mxu0 %v942
    %1360 = vmatmul.mubr.bf16.gmra.mrb[0].mxu0 %v665
    %v1361 = vpop.f32.mrb[0].mxu0
    %v1362 = vadd.f32 %v794, %v1361
    %v1363 = vpop.f32.mrb[0].mxu0
    %v1364 = vpop.f32.mrb[0].mxu0
    %v1365 = vadd.f32 %v794, %v1364
    %v1366 = vpop.f32.mrb[0].mxu0
    %1367 = vmatprep.mubr.bf16.mxu0 %v944
    %1368 = vmatmul.mubr.bf16.gmra.mrb[0].mxu0 %v668
    %v1369 = vpop.f32.mrb[0].mxu0
    %v1370 = vadd.f32 %v794, %v1369
    %v1371 = vpop.f32.mrb[0].mxu0
    %v1372 = vpop.f32.mrb[0].mxu0
    %v1373 = vadd.f32 %v794, %v1372
    %v1374 = vpop.f32.mrb[0].mxu0
    %1375 = vmatprep.mubr.bf16.mxu0 %v946
    %1376 = vmatmul.mubr.bf16.gmra.mrb[0].mxu0 %v671
    %v1377 = vpop.f32.mrb[0].mxu0
    %v1378 = vadd.f32 %v794, %v1377
    %v1379 = vpop.f32.mrb[0].mxu0
    %v1380 = vpop.f32.mrb[0].mxu0
    %v1381 = vadd.f32 %v794, %v1380
    %v1382 = vpop.f32.mrb[0].mxu0
    %1383 = vmatprep.mubr.bf16.mxu0 %v948
    %1384 = vmatmul.mubr.bf16.gmra.mrb[0].mxu0 %v674
    %v1385 = vpop.f32.mrb[0].mxu0
    %v1386 = vadd.f32 %v794, %v1385
    %v1387 = vpop.f32.mrb[0].mxu0
    %v1388 = vpop.f32.mrb[0].mxu0
    %v1389 = vadd.f32 %v794, %v1388
    %v1390 = vpop.f32.mrb[0].mxu0
    %1391 = vmatprep.mubr.bf16.mxu0 %v950
    %1392 = vmatmul.mubr.bf16.gmra.mrb[0].mxu0 %v677
    %v1393 = vpop.f32.mrb[0].mxu0
    %v1394 = vadd.f32 %v794, %v1393
    %v1395 = vpop.f32.mrb[0].mxu0
    %v1396 = vpop.f32.mrb[0].mxu0
    %v1397 = vadd.f32 %v794, %v1396
    %v1398 = vpop.f32.mrb[0].mxu0
    %1399 = vmatprep.mubr.bf16.mxu0 %v952
    %1400 = vmatmul.mubr.bf16.gmra.mrb[0].mxu0 %v680
    %v1401 = vpop.f32.mrb[0].mxu0
    %v1402 = vadd.f32 %v794, %v1401
    %v1403 = vpop.f32.mrb[0].mxu0
    %v1404 = vpop.f32.mrb[0].mxu0
    %v1405 = vadd.f32 %v794, %v1404
    %v1406 = vpop.f32.mrb[0].mxu0
    %1407 = vmatprep.mubr.bf16.mxu0 %v954
    %1408 = vmatmul.mubr.bf16.gmra.mrb[0].mxu0 %v683
    %v1409 = vpop.f32.mrb[0].mxu0
    %v1410 = vadd.f32 %v794, %v1409
    %v1411 = vpop.f32.mrb[0].mxu0
    %v1412 = vpop.f32.mrb[0].mxu0
    %v1413 = vadd.f32 %v794, %v1412
    %v1414 = vpop.f32.mrb[0].mxu0
    %1415 = vmatprep.mubr.bf16.mxu0 %v956
    %1416 = vmatmul.mubr.bf16.gmra.mrb[0].mxu0 %v686
    %v1417 = vpop.f32.mrb[0].mxu0
    %v1418 = vadd.f32 %v794, %v1417
    %v1419 = vpop.f32.mrb[0].mxu0
    %v1420 = vpop.f32.mrb[0].mxu0
    %v1421 = vadd.f32 %v794, %v1420
    %v1422 = vpop.f32.mrb[0].mxu0
    %1423 = vmatprep.mubr.bf16.mxu0 %v958
    %1424 = vmatmul.mubr.bf16.gmra.mrb[0].mxu0 %v689
    %v1425 = vpop.f32.mrb[0].mxu0
    %v1426 = vadd.f32 %v794, %v1425
    %v1427 = vpop.f32.mrb[0].mxu0
    %v1428 = vpop.f32.mrb[0].mxu0
    %v1429 = vadd.f32 %v794, %v1428
    %v1430 = vpop.f32.mrb[0].mxu0
    %1431 = vmatprep.mubr.bf16.mxu0 %v960
    %1432 = vmatmul.mubr.bf16.gmra.mrb[0].mxu0 %v692
    %v1433 = vpop.f32.mrb[0].mxu0
    %v1434 = vadd.f32 %v794, %v1433
    %v1435 = vpop.f32.mrb[0].mxu0
    %v1436 = vpop.f32.mrb[0].mxu0
    %v1437 = vadd.f32 %v794, %v1436
    %v1438 = vpop.f32.mrb[0].mxu0
    %1439 = vmatprep.mubr.bf16.mxu0 %v962
    %1440 = vmatmul.mubr.bf16.gmra.mrb[0].mxu0 %v695
    %v1441 = vpop.f32.mrb[0].mxu0
    %v1442 = vadd.f32 %v794, %v1441
    %v1443 = vpop.f32.mrb[0].mxu0
    %v1444 = vpop.f32.mrb[0].mxu0
    %v1445 = vadd.f32 %v794, %v1444
    %v1446 = vpop.f32.mrb[0].mxu0
    %1447 = vmatprep.mubr.bf16.mxu0 %v964
    %1448 = vmatmul.mubr.bf16.gmra.mrb[0].mxu0 %v698
    %v1449 = vpop.f32.mrb[0].mxu0
    %v1450 = vadd.f32 %v794, %v1449
    %v1451 = vpop.f32.mrb[0].mxu0
    %v1452 = vpop.f32.mrb[0].mxu0
    %v1453 = vadd.f32 %v794, %v1452
    %v1454 = vpop.f32.mrb[0].mxu0
    %1455 = vmatprep.mubr.bf16.mxu0 %v966
    %1456 = vmatmul.mubr.bf16.gmra.mrb[0].mxu0 %v701
    %v1457 = vpop.f32.mrb[0].mxu0
    %v1458 = vadd.f32 %v794, %v1457
    %v1459 = vpop.f32.mrb[0].mxu0
    %v1460 = vpop.f32.mrb[0].mxu0
    %v1461 = vadd.f32 %v794, %v1460
    %v1462 = vpop.f32.mrb[0].mxu0
    %1463 = vmatprep.mubr.bf16.mxu0 %v968
    %1464 = vmatmul.mubr.bf16.gmra.mrb[0].mxu0 %v704
    %v1465 = vpop.f32.mrb[0].mxu0
    %v1466 = vadd.f32 %v794, %v1465
    %v1467 = vpop.f32.mrb[0].mxu0
    %v1468 = vpop.f32.mrb[0].mxu0
    %v1469 = vadd.f32 %v794, %v1468
    %v1470 = vpop.f32.mrb[0].mxu0
    %1471 = vmatprep.mubr.bf16.mxu0 %v970
    %1472 = vmatmul.mubr.bf16.gmra.mrb[0].mxu0 %v707
    %v1473 = vpop.f32.mrb[0].mxu0
    %v1474 = vadd.f32 %v794, %v1473
    %v1475 = vpop.f32.mrb[0].mxu0
    %v1476 = vpop.f32.mrb[0].mxu0
    %v1477 = vadd.f32 %v794, %v1476
    %v1478 = vpop.f32.mrb[0].mxu0
    %1479 = vmatprep.mubr.bf16.mxu0 %v972
    %1480 = vmatmul.mubr.bf16.gmra.mrb[0].mxu0 %v710
    %v1481 = vpop.f32.mrb[0].mxu0
    %v1482 = vadd.f32 %v794, %v1481
    %v1483 = vpop.f32.mrb[0].mxu0
    %v1484 = vpop.f32.mrb[0].mxu0
    %v1485 = vadd.f32 %v794, %v1484
    %v1486 = vpop.f32.mrb[0].mxu0
    %1487 = vmatprep.mubr.bf16.mxu0 %v974
    %1488 = vmatmul.mubr.bf16.gmra.mrb[0].mxu0 %v713
    %v1489 = vpop.f32.mrb[0].mxu0
    %v1490 = vadd.f32 %v794, %v1489
    %v1491 = vpop.f32.mrb[0].mxu0
    %v1492 = vpop.f32.mrb[0].mxu0
    %v1493 = vadd.f32 %v794, %v1492
    %v1494 = vpop.f32.mrb[0].mxu0
    %1495 = vmatprep.mubr.bf16.mxu0 %v976
    %1496 = vmatmul.mubr.bf16.gmra.mrb[0].mxu0 %v716
    %v1497 = vpop.f32.mrb[0].mxu0
    %v1498 = vadd.f32 %v794, %v1497
    %v1499 = vpop.f32.mrb[0].mxu0
    %v1500 = vpop.f32.mrb[0].mxu0
    %v1501 = vadd.f32 %v794, %v1500
    %v1502 = vpop.f32.mrb[0].mxu0
    %1503 = vmatprep.mubr.bf16.mxu0 %v978
    %1504 = vmatmul.mubr.bf16.gmra.mrb[0].mxu0 %v719
    %v1505 = vpop.f32.mrb[0].mxu0
    %v1506 = vadd.f32 %v794, %v1505
    %v1507 = vpop.f32.mrb[0].mxu0
    %v1508 = vpop.f32.mrb[0].mxu0
    %v1509 = vadd.f32 %v794, %v1508
    %v1510 = vpop.f32.mrb[0].mxu0
    %1511 = vmatprep.mubr.bf16.mxu0 %v980
    %1512 = vmatmul.mubr.bf16.gmra.mrb[0].mxu0 %v722
    %v1513 = vpop.f32.mrb[0].mxu0
    %v1514 = vadd.f32 %v794, %v1513
    %v1515 = vpop.f32.mrb[0].mxu0
    %v1516 = vpop.f32.mrb[0].mxu0
    %v1517 = vadd.f32 %v794, %v1516
    %v1518 = vpop.f32.mrb[0].mxu0
    %1519 = vmatprep.mubr.bf16.mxu0 %v982
    %1520 = vmatmul.mubr.bf16.gmra.mrb[0].mxu0 %v725
    %v1521 = vpop.f32.mrb[0].mxu0
    %v1522 = vadd.f32 %v794, %v1521
    %v1523 = vpop.f32.mrb[0].mxu0
    %v1524 = vpop.f32.mrb[0].mxu0
    %v1525 = vadd.f32 %v794, %v1524
    %v1526 = vpop.f32.mrb[0].mxu0
    %1527 = vmatprep.mubr.bf16.mxu0 %v984
    %1528 = vmatmul.mubr.bf16.gmra.mrb[0].mxu0 %v728
    %v1529 = vpop.f32.mrb[0].mxu0
    %v1530 = vadd.f32 %v794, %v1529
    %v1531 = vpop.f32.mrb[0].mxu0
    %v1532 = vpop.f32.mrb[0].mxu0
    %v1533 = vadd.f32 %v794, %v1532
    %v1534 = vpop.f32.mrb[0].mxu0
    %1535 = vmatprep.mubr.bf16.mxu0 %v986
    %1536 = vmatmul.mubr.bf16.gmra.mrb[0].mxu0 %v731
    %v1537 = vpop.f32.mrb[0].mxu0
    %v1538 = vadd.f32 %v794, %v1537
    %v1539 = vpop.f32.mrb[0].mxu0
    %v1540 = vpop.f32.mrb[0].mxu0
    %v1541 = vadd.f32 %v794, %v1540
    %v1542 = vpop.f32.mrb[0].mxu0
    %1543 = vmatprep.mubr.bf16.mxu0 %v988
    %1544 = vmatmul.mubr.bf16.gmra.mrb[0].mxu0 %v734
    %v1545 = vpop.f32.mrb[0].mxu0
    %v1546 = vadd.f32 %v794, %v1545
    %v1547 = vpop.f32.mrb[0].mxu0
    %v1548 = vpop.f32.mrb[0].mxu0
    %v1549 = vadd.f32 %v794, %v1548
    %v1550 = vpop.f32.mrb[0].mxu0
    %1551 = vmatprep.mubr.bf16.mxu0 %v990
    %1552 = vmatmul.mubr.bf16.gmra.mrb[0].mxu0 %v737
    %v1553 = vpop.f32.mrb[0].mxu0
    %v1554 = vadd.f32 %v794, %v1553
    %v1555 = vpop.f32.mrb[0].mxu0
    %v1556 = vpop.f32.mrb[0].mxu0
    %v1557 = vadd.f32 %v794, %v1556
    %v1558 = vpop.f32.mrb[0].mxu0
    %1559 = vmatprep.mubr.bf16.mxu0 %v992
    %1560 = vmatmul.mubr.bf16.gmra.mrb[0].mxu0 %v740
    %v1561 = vpop.f32.mrb[0].mxu0
    %v1562 = vadd.f32 %v794, %v1561
    %v1563 = vpop.f32.mrb[0].mxu0
    %v1564 = vpop.f32.mrb[0].mxu0
    %v1565 = vadd.f32 %v794, %v1564
    %v1566 = vpop.f32.mrb[0].mxu0
    %1567 = vmatprep.mubr.bf16.mxu0 %v994
    %1568 = vmatmul.mubr.bf16.gmra.mrb[0].mxu0 %v743
    %v1569 = vpop.f32.mrb[0].mxu0
    %v1570 = vadd.f32 %v794, %v1569
    %v1571 = vpop.f32.mrb[0].mxu0
    %v1572 = vpop.f32.mrb[0].mxu0
    %v1573 = vadd.f32 %v794, %v1572
    %v1574 = vpop.f32.mrb[0].mxu0
    %1575 = vdwg.mxu0
    %v1576 = vmax.f32 %v1041, 0.0
    %v1577 = vmax.f32 %v1043, 0.0
    %v1578 = vmax.f32 %v1354, 0.0
    %v1579 = vmax.f32 %v1045, 0.0
    %v1580 = vmax.f32 %v1047, 0.0
    %v1581 = vmax.f32 %v1357, 0.0
    %v1582 = vmax.f32 %v1051, 0.0
    %v1583 = vmax.f32 %v1053, 0.0
    %v1584 = vmax.f32 %v1362, 0.0
    %v1585 = vmax.f32 %v1055, 0.0
    %v1586 = vmax.f32 %v1057, 0.0
    %v1587 = vmax.f32 %v1365, 0.0
    %v1588 = vmax.f32 %v1061, 0.0
    %v1589 = vmax.f32 %v1063, 0.0
    %v1590 = vmax.f32 %v1370, 0.0
    %v1591 = vmax.f32 %v1065, 0.0
    %v1592 = vmax.f32 %v1067, 0.0
    %v1593 = vmax.f32 %v1373, 0.0
    %v1594 = vmax.f32 %v1071, 0.0
    %v1595 = vmax.f32 %v1073, 0.0
    %v1596 = vmax.f32 %v1378, 0.0
    %v1597 = vmax.f32 %v1075, 0.0
    %v1598 = vmax.f32 %v1077, 0.0
    %v1599 = vmax.f32 %v1381, 0.0
    %v1600 = vmax.f32 %v1081, 0.0
    %v1601 = vmax.f32 %v1083, 0.0
    %v1602 = vmax.f32 %v1386, 0.0
    %v1603 = vmax.f32 %v1085, 0.0
    %v1604 = vmax.f32 %v1087, 0.0
    %v1605 = vmax.f32 %v1389, 0.0
    %v1606 = vmax.f32 %v1091, 0.0
    %v1607 = vmax.f32 %v1093, 0.0
    %v1608 = vmax.f32 %v1394, 0.0
    %v1609 = vmax.f32 %v1095, 0.0
    %v1610 = vmax.f32 %v1097, 0.0
    %v1611 = vmax.f32 %v1397, 0.0
    %v1612 = vmax.f32 %v1101, 0.0
    %v1613 = vmax.f32 %v1103, 0.0
    %v1614 = vmax.f32 %v1402, 0.0
    %v1615 = vmax.f32 %v1105, 0.0
    %v1616 = vmax.f32 %v1107, 0.0
    %v1617 = vmax.f32 %v1405, 0.0
    %v1618 = vmax.f32 %v1111, 0.0
    %v1619 = vmax.f32 %v1113, 0.0
    %v1620 = vmax.f32 %v1410, 0.0
    %v1621 = vmax.f32 %v1115, 0.0
    %v1622 = vmax.f32 %v1117, 0.0
    %v1623 = vmax.f32 %v1413, 0.0
    %v1624 = vmax.f32 %v1121, 0.0
    %v1625 = vmax.f32 %v1123, 0.0
    %v1626 = vmax.f32 %v1418, 0.0
    %v1627 = vmax.f32 %v1125, 0.0
    %v1628 = vmax.f32 %v1127, 0.0
    %v1629 = vmax.f32 %v1421, 0.0
    %v1630 = vmax.f32 %v1131, 0.0
    %v1631 = vmax.f32 %v1133, 0.0
    %v1632 = vmax.f32 %v1426, 0.0
    %v1633 = vmax.f32 %v1135, 0.0
    %v1634 = vmax.f32 %v1137, 0.0
    %v1635 = vmax.f32 %v1429, 0.0
    %v1636 = vmax.f32 %v1141, 0.0
    %v1637 = vmax.f32 %v1143, 0.0
    %v1638 = vmax.f32 %v1434, 0.0
    %v1639 = vmax.f32 %v1145, 0.0
    %v1640 = vmax.f32 %v1147, 0.0
    %v1641 = vmax.f32 %v1437, 0.0
    %v1642 = vmax.f32 %v1151, 0.0
    %v1643 = vmax.f32 %v1153, 0.0
    %v1644 = vmax.f32 %v1442, 0.0
    %v1645 = vmax.f32 %v1155, 0.0
    %v1646 = vmax.f32 %v1157, 0.0
    %v1647 = vmax.f32 %v1445, 0.0
    %v1648 = vmax.f32 %v1161, 0.0
    %v1649 = vmax.f32 %v1163, 0.0
    %v1650 = vmax.f32 %v1450, 0.0
    %v1651 = vmax.f32 %v1165, 0.0
    %v1652 = vmax.f32 %v1167, 0.0
    %v1653 = vmax.f32 %v1453, 0.0
    %v1654 = vmax.f32 %v1171, 0.0
    %v1655 = vmax.f32 %v1173, 0.0
    %v1656 = vmax.f32 %v1458, 0.0
    %v1657 = vmax.f32 %v1175, 0.0
    %v1658 = vmax.f32 %v1177, 0.0
    %v1659 = vmax.f32 %v1461, 0.0
    %v1660 = vmax.f32 %v1181, 0.0
    %v1661 = vmax.f32 %v1183, 0.0
    %v1662 = vmax.f32 %v1466, 0.0
    %v1663 = vmax.f32 %v1185, 0.0
    %v1664 = vmax.f32 %v1187, 0.0
    %v1665 = vmax.f32 %v1469, 0.0
    %v1666 = vmax.f32 %v1191, 0.0
    %v1667 = vmax.f32 %v1193, 0.0
    %v1668 = vmax.f32 %v1474, 0.0
    %v1669 = vmax.f32 %v1195, 0.0
    %v1670 = vmax.f32 %v1197, 0.0
    %v1671 = vmax.f32 %v1477, 0.0
    %v1672 = vmax.f32 %v1201, 0.0
    %v1673 = vmax.f32 %v1203, 0.0
    %v1674 = vmax.f32 %v1482, 0.0
    %v1675 = vmax.f32 %v1205, 0.0
    %v1676 = vmax.f32 %v1207, 0.0
    %v1677 = vmax.f32 %v1485, 0.0
    %v1678 = vmax.f32 %v1211, 0.0
    %v1679 = vmax.f32 %v1213, 0.0
    %v1680 = vmax.f32 %v1490, 0.0
    %v1681 = vmax.f32 %v1215, 0.0
    %v1682 = vmax.f32 %v1217, 0.0
    %v1683 = vmax.f32 %v1493, 0.0
    %v1684 = vmax.f32 %v1221, 0.0
    %v1685 = vmax.f32 %v1223, 0.0
    %v1686 = vmax.f32 %v1498, 0.0
    %v1687 = vmax.f32 %v1225, 0.0
    %v1688 = vmax.f32 %v1227, 0.0
    %v1689 = vmax.f32 %v1501, 0.0
    %v1690 = vmax.f32 %v1231, 0.0
    %v1691 = vmax.f32 %v1233, 0.0
    %v1692 = vmax.f32 %v1506, 0.0
    %v1693 = vmax.f32 %v1235, 0.0
    %v1694 = vmax.f32 %v1237, 0.0
    %v1695 = vmax.f32 %v1509, 0.0
    %v1696 = vmax.f32 %v1241, 0.0
    %v1697 = vmax.f32 %v1243, 0.0
    %v1698 = vmax.f32 %v1514, 0.0
    %v1699 = vmax.f32 %v1245, 0.0
    %v1700 = vmax.f32 %v1247, 0.0
    %v1701 = vmax.f32 %v1517, 0.0
    %v1702 = vmax.f32 %v1251, 0.0
    %v1703 = vmax.f32 %v1253, 0.0
    %v1704 = vmax.f32 %v1522, 0.0
    %v1705 = vmax.f32 %v1255, 0.0
    %v1706 = vmax.f32 %v1257, 0.0
    %v1707 = vmax.f32 %v1525, 0.0
    %v1708 = vmax.f32 %v1261, 0.0
    %v1709 = vmax.f32 %v1263, 0.0
    %v1710 = vmax.f32 %v1530, 0.0
    %v1711 = vmax.f32 %v1265, 0.0
    %v1712 = vmax.f32 %v1267, 0.0
    %v1713 = vmax.f32 %v1533, 0.0
    %v1714 = vmax.f32 %v1271, 0.0
    %v1715 = vmax.f32 %v1273, 0.0
    %v1716 = vmax.f32 %v1538, 0.0
    %v1717 = vmax.f32 %v1275, 0.0
    %v1718 = vmax.f32 %v1277, 0.0
    %v1719 = vmax.f32 %v1541, 0.0
    %v1720 = vmax.f32 %v1281, 0.0
    %v1721 = vmax.f32 %v1283, 0.0
    %v1722 = vmax.f32 %v1546, 0.0
    %v1723 = vmax.f32 %v1285, 0.0
    %v1724 = vmax.f32 %v1287, 0.0
    %v1725 = vmax.f32 %v1549, 0.0
    %v1726 = vmax.f32 %v1291, 0.0
    %v1727 = vmax.f32 %v1293, 0.0
    %v1728 = vmax.f32 %v1554, 0.0
    %v1729 = vmax.f32 %v1295, 0.0
    %v1730 = vmax.f32 %v1297, 0.0
    %v1731 = vmax.f32 %v1557, 0.0
    %v1732 = vmax.f32 %v1301, 0.0
    %v1733 = vmax.f32 %v1303, 0.0
    %v1734 = vmax.f32 %v1562, 0.0
    %v1735 = vmax.f32 %v1305, 0.0
    %v1736 = vmax.f32 %v1307, 0.0
    %v1737 = vmax.f32 %v1565, 0.0
    %v1738 = vmax.f32 %v1311, 0.0
    %v1739 = vmax.f32 %v1313, 0.0
    %v1740 = vmax.f32 %v1570, 0.0
    %v1741 = vmax.f32 %v1315, 0.0
    %v1742 = vmax.f32 %v1317, 0.0
    %v1743 = vmax.f32 %v1573, 0.0
    %v1744 = vmax.f32 %v1576, %v1582
    %v1745 = vmax.f32 %v1577, %v1583
    %v1746 = vmax.f32 %v1578, %v1584
    %v1747 = vmax.f32 %v1579, %v1585
    %v1748 = vmax.f32 %v1580, %v1586
    %v1749 = vmax.f32 %v1581, %v1587
    %v1750 = vmax.f32 %v1588, %v1594
    %v1751 = vmax.f32 %v1589, %v1595
    %v1752 = vmax.f32 %v1590, %v1596
    %v1753 = vmax.f32 %v1591, %v1597
    %v1754 = vmax.f32 %v1592, %v1598
    %v1755 = vmax.f32 %v1593, %v1599
    %v1756 = vmax.f32 %v1600, %v1606
    %v1757 = vmax.f32 %v1601, %v1607
    %v1758 = vmax.f32 %v1602, %v1608
    %v1759 = vmax.f32 %v1603, %v1609
    %v1760 = vmax.f32 %v1604, %v1610
    %v1761 = vmax.f32 %v1605, %v1611
    %v1762 = vmax.f32 %v1612, %v1618
    %v1763 = vmax.f32 %v1613, %v1619
    %v1764 = vmax.f32 %v1614, %v1620
    %v1765 = vmax.f32 %v1615, %v1621
    %v1766 = vmax.f32 %v1616, %v1622
    %v1767 = vmax.f32 %v1617, %v1623
    %v1768 = vmax.f32 %v1624, %v1630
    %v1769 = vmax.f32 %v1625, %v1631
    %v1770 = vmax.f32 %v1626, %v1632
    %v1771 = vmax.f32 %v1627, %v1633
    %v1772 = vmax.f32 %v1628, %v1634
    %v1773 = vmax.f32 %v1629, %v1635
    %v1774 = vmax.f32 %v1636, %v1642
    %v1775 = vmax.f32 %v1637, %v1643
    %v1776 = vmax.f32 %v1638, %v1644
    %v1777 = vmax.f32 %v1639, %v1645
    %v1778 = vmax.f32 %v1640, %v1646
    %v1779 = vmax.f32 %v1641, %v1647
    %v1780 = vmax.f32 %v1648, %v1654
    %v1781 = vmax.f32 %v1649, %v1655
    %v1782 = vmax.f32 %v1650, %v1656
    %v1783 = vmax.f32 %v1651, %v1657
    %v1784 = vmax.f32 %v1652, %v1658
    %v1785 = vmax.f32 %v1653, %v1659
    %v1786 = vmax.f32 %v1660, %v1666
    %v1787 = vmax.f32 %v1661, %v1667
    %v1788 = vmax.f32 %v1662, %v1668
    %v1789 = vmax.f32 %v1663, %v1669
    %v1790 = vmax.f32 %v1664, %v1670
    %v1791 = vmax.f32 %v1665, %v1671
    %v1792 = vmax.f32 %v1672, %v1678
    %v1793 = vmax.f32 %v1673, %v1679
    %v1794 = vmax.f32 %v1674, %v1680
    %v1795 = vmax.f32 %v1675, %v1681
    %v1796 = vmax.f32 %v1676, %v1682
    %v1797 = vmax.f32 %v1677, %v1683
    %v1798 = vmax.f32 %v1684, %v1690
    %v1799 = vmax.f32 %v1685, %v1691
    %v1800 = vmax.f32 %v1686, %v1692
    %v1801 = vmax.f32 %v1687, %v1693
    %v1802 = vmax.f32 %v1688, %v1694
    %v1803 = vmax.f32 %v1689, %v1695
    %v1804 = vmax.f32 %v1696, %v1702
    %v1805 = vmax.f32 %v1697, %v1703
    %v1806 = vmax.f32 %v1698, %v1704
    %v1807 = vmax.f32 %v1699, %v1705
    %v1808 = vmax.f32 %v1700, %v1706
    %v1809 = vmax.f32 %v1701, %v1707
    %v1810 = vmax.f32 %v1708, %v1714
    %v1811 = vmax.f32 %v1709, %v1715
    %v1812 = vmax.f32 %v1710, %v1716
    %v1813 = vmax.f32 %v1711, %v1717
    %v1814 = vmax.f32 %v1712, %v1718
    %v1815 = vmax.f32 %v1713, %v1719
    %v1816 = vmax.f32 %v1720, %v1726
    %v1817 = vmax.f32 %v1721, %v1727
    %v1818 = vmax.f32 %v1722, %v1728
    %v1819 = vmax.f32 %v1723, %v1729
    %v1820 = vmax.f32 %v1724, %v1730
    %v1821 = vmax.f32 %v1725, %v1731
    %v1822 = vmax.f32 %v1732, %v1738
    %v1823 = vmax.f32 %v1733, %v1739
    %v1824 = vmax.f32 %v1734, %v1740
    %v1825 = vmax.f32 %v1735, %v1741
    %v1826 = vmax.f32 %v1736, %v1742
    %v1827 = vmax.f32 %v1737, %v1743
    %v1828 = vpack.c.bf16 %v1747, %v1744
    %v1829 = vpack.c.bf16 %v1748, %v1745
    %v1830 = vpack.c.bf16 %v1749, %v1746
    %v1831 = vpack.c.bf16 %v1753, %v1750
    %v1832 = vpack.c.bf16 %v1754, %v1751
    %v1833 = vpack.c.bf16 %v1755, %v1752
    %v1834 = vpack.c.bf16 %v1759, %v1756
    %v1835 = vpack.c.bf16 %v1760, %v1757
    %v1836 = vpack.c.bf16 %v1761, %v1758
    %v1837 = vpack.c.bf16 %v1765, %v1762
    %v1838 = vpack.c.bf16 %v1766, %v1763
    %v1839 = vpack.c.bf16 %v1767, %v1764
    %v1840 = vpack.c.bf16 %v1771, %v1768
    %v1841 = vpack.c.bf16 %v1772, %v1769
    %v1842 = vpack.c.bf16 %v1773, %v1770
    %v1843 = vpack.c.bf16 %v1777, %v1774
    %v1844 = vpack.c.bf16 %v1778, %v1775
    %v1845 = vpack.c.bf16 %v1779, %v1776
    %v1846 = vpack.c.bf16 %v1783, %v1780
    %v1847 = vpack.c.bf16 %v1784, %v1781
    %v1848 = vpack.c.bf16 %v1785, %v1782
    %v1849 = vpack.c.bf16 %v1789, %v1786
    %v1850 = vpack.c.bf16 %v1790, %v1787
    %v1851 = vpack.c.bf16 %v1791, %v1788
    %v1852 = vpack.c.bf16 %v1795, %v1792
    %v1853 = vpack.c.bf16 %v1796, %v1793
    %v1854 = vpack.c.bf16 %v1797, %v1794
    %v1855 = vpack.c.bf16 %v1801, %v1798
    %v1856 = vpack.c.bf16 %v1802, %v1799
    %v1857 = vpack.c.bf16 %v1803, %v1800
    %v1858 = vpack.c.bf16 %v1807, %v1804
    %v1859 = vpack.c.bf16 %v1808, %v1805
    %v1860 = vpack.c.bf16 %v1809, %v1806
    %v1861 = vpack.c.bf16 %v1813, %v1810
    %v1862 = vpack.c.bf16 %v1814, %v1811
    %v1863 = vpack.c.bf16 %v1815, %v1812
    %v1864 = vpack.c.bf16 %v1819, %v1816
    %v1865 = vpack.c.bf16 %v1820, %v1817
    %v1866 = vpack.c.bf16 %v1821, %v1818
    %v1867 = vpack.c.bf16 %v1825, %v1822
    %v1868 = vpack.c.bf16 %v1826, %v1823
    %v1869 = vpack.c.bf16 %v1827, %v1824
    %v1870 = vld [vmem:[%s3] sm:$0xff]
    %v1871 = vld [vmem:[%s3 + $0x8] sm:$0xff]
    %v1872 = vld [vmem:[%s3 + $0x10] sm:$0xff]
    %v1873 = vld [vmem:[%s3 + $0x18] sm:$0xff]
    %v1874 = vld [vmem:[%s3 + $0x20] sm:$0xff]
    %v1875 = vld [vmem:[%s3 + $0x28] sm:$0xff]
    %v1876 = vld [vmem:[%s3 + $0x30] sm:$0xff]
    %v1877 = vld [vmem:[%s3 + $0x38] sm:$0xff]
    %v1878 = vld [vmem:[%s3 + $0x40] sm:$0xff]
    %v1879 = vld [vmem:[%s3 + $0x48] sm:$0xff]
    %v1880 = vld [vmem:[%s3 + $0x50] sm:$0xff]
    %v1881 = vld [vmem:[%s3 + $0x58] sm:$0xff]
    %v1882 = vld [vmem:[%s3 + $0x60] sm:$0xff]
    %v1883 = vld [vmem:[%s3 + $0x68] sm:$0xff]
    %v1884 = vld [vmem:[%s3 + $0x70] sm:$0xff]
    %v1885 = vld [vmem:[%s3 + $0x78] sm:$0xff]
    %v1886 = vld [vmem:[%s3 + $0x80] sm:$0xff]
    %v1887 = vld [vmem:[%s3 + $0x88] sm:$0xff]
    %v1888 = vld [vmem:[%s3 + $0x90] sm:$0xff]
    %v1889 = vld [vmem:[%s3 + $0x98] sm:$0xff]
    %v1890 = vld [vmem:[%s3 + $0xa0] sm:$0xff]
    %v1891 = vld [vmem:[%s3 + $0xa8] sm:$0xff]
    %v1892 = vld [vmem:[%s3 + $0xb0] sm:$0xff]
    %v1893 = vld [vmem:[%s3 + $0xb8] sm:$0xff]
    %v1894 = vld [vmem:[%s3 + $0xc0] sm:$0xff]
    %v1895 = vld [vmem:[%s3 + $0xc8] sm:$0xff]
    %v1896 = vld [vmem:[%s3 + $0xd0] sm:$0xff]
    %v1897 = vld [vmem:[%s3 + $0xd8] sm:$0xff]
    %v1898 = vld [vmem:[%s3 + $0xe0] sm:$0xff]
    %v1899 = vld [vmem:[%s3 + $0xe8] sm:$0xff]
    %v1900 = vld [vmem:[%s3 + $0xf0] sm:$0xff]
    %v1901 = vld [vmem:[%s3 + $0xf8] sm:$0xff]
    %v1902 = vld [vmem:[%s3 + $0x100] sm:$0xff]
    %v1903 = vld [vmem:[%s3 + $0x108] sm:$0xff]
    %v1904 = vld [vmem:[%s3 + $0x110] sm:$0xff]
    %v1940 = vunpack.c.l.b16 %v1870
    %v1941 = vunpack.c.h.b16 %v1870
    %v1942 = vunpack.c.l.b16 %v1871
    %v1943 = vunpack.c.h.b16 %v1871
    %v1944 = vunpack.c.l.b16 %v1872
    %v1945 = vunpack.c.h.b16 %v1872
    %v1946 = vunpack.c.l.b16 %v1873
    %v1947 = vunpack.c.h.b16 %v1873
    %v1948 = vunpack.c.l.b16 %v1874
    %v1949 = vunpack.c.h.b16 %v1874
    %v1950 = vunpack.c.l.b16 %v1875
    %v1951 = vunpack.c.h.b16 %v1875
    %v1952 = vunpack.c.l.b16 %v1876
    %v1953 = vunpack.c.h.b16 %v1876
    %v1954 = vunpack.c.l.b16 %v1877
    %v1955 = vunpack.c.h.b16 %v1877
    %v1956 = vunpack.c.l.b16 %v1878
    %v1957 = vunpack.c.h.b16 %v1878
    %v1958 = vunpack.c.l.b16 %v1879
    %v1959 = vunpack.c.h.b16 %v1879
    %v1960 = vunpack.c.l.b16 %v1880
    %v1961 = vunpack.c.h.b16 %v1880
    %v1962 = vunpack.c.l.b16 %v1881
    %v1963 = vunpack.c.h.b16 %v1881
    %v1964 = vunpack.c.l.b16 %v1882
    %v1965 = vunpack.c.h.b16 %v1882
    %v1966 = vunpack.c.l.b16 %v1883
    %v1967 = vunpack.c.h.b16 %v1883
    %v1968 = vunpack.c.l.b16 %v1884
    %v1969 = vunpack.c.h.b16 %v1884
    %v1970 = vunpack.c.l.b16 %v1885
    %v1971 = vunpack.c.h.b16 %v1885
    %v1972 = vunpack.c.l.b16 %v1886
    %v1973 = vunpack.c.h.b16 %v1886
    %v1974 = vunpack.c.l.b16 %v1887
    %v1975 = vunpack.c.h.b16 %v1887
    %v1976 = vunpack.c.l.b16 %v1888
    %v1977 = vunpack.c.h.b16 %v1888
    %v1978 = vunpack.c.l.b16 %v1889
    %v1979 = vunpack.c.h.b16 %v1889
    %v1980 = vunpack.c.l.b16 %v1890
    %v1981 = vunpack.c.h.b16 %v1890
    %v1982 = vunpack.c.l.b16 %v1891
    %v1983 = vunpack.c.h.b16 %v1891
    %v1984 = vunpack.c.l.b16 %v1892
    %v1985 = vunpack.c.h.b16 %v1892
    %v1986 = vunpack.c.l.b16 %v1893
    %v1987 = vunpack.c.h.b16 %v1893
    %v1988 = vunpack.c.l.b16 %v1894
    %v1989 = vunpack.c.h.b16 %v1894
    %v1990 = vunpack.c.l.b16 %v1895
    %v1991 = vunpack.c.h.b16 %v1895
    %v1992 = vunpack.c.l.b16 %v1896
    %v1993 = vunpack.c.h.b16 %v1896
    %v1994 = vunpack.c.l.b16 %v1897
    %v1995 = vunpack.c.h.b16 %v1897
    %v1996 = vunpack.c.l.b16 %v1898
    %v1997 = vunpack.c.h.b16 %v1898
    %v1998 = vunpack.c.l.b16 %v1899
    %v1999 = vunpack.c.h.b16 %v1899
    %v2000 = vunpack.c.l.b16 %v1900
    %v2001 = vunpack.c.h.b16 %v1900
    %v2002 = vunpack.c.l.b16 %v1901
    %v2003 = vunpack.c.h.b16 %v1901
    %v2004 = vunpack.c.l.b16 %v1902
    %v2005 = vunpack.c.h.b16 %v1902
    %v2006 = vunpack.c.l.b16 %v1903
    %v2007 = vunpack.c.h.b16 %v1903
    %v2008 = vunpack.c.l.b16 %v1904
    %v2009 = vunpack.c.h.b16 %v1904
    %v2010 = vpack.c.b16 %v1942, %v1940
    %v2011 = vpack.c.b16 %v1943, %v1941
    %v2012 = vpack.c.b16 %v1946, %v1944
    %v2013 = vpack.c.b16 %v1947, %v1945
    %v2014 = vpack.c.b16 %v1950, %v1948
    %v2015 = vpack.c.b16 %v1951, %v1949
    %v2016 = vpack.c.b16 %v1954, %v1952
    %v2017 = vpack.c.b16 %v1955, %v1953
    %v2018 = vpack.c.b16 %v1958, %v1956
    %v2019 = vpack.c.b16 %v1959, %v1957
    %v2020 = vpack.c.b16 %v1962, %v1960
    %v2021 = vpack.c.b16 %v1963, %v1961
    %v2022 = vpack.c.b16 %v1966, %v1964
    %v2023 = vpack.c.b16 %v1967, %v1965
    %v2024 = vpack.c.b16 %v1970, %v1968
    %v2025 = vpack.c.b16 %v1971, %v1969
    %v2026 = vpack.c.b16 %v1974, %v1972
    %v2027 = vpack.c.b16 %v1975, %v1973
    %v2028 = vpack.c.b16 %v1978, %v1976
    %v2029 = vpack.c.b16 %v1979, %v1977
    %v2030 = vpack.c.b16 %v1982, %v1980
    %v2031 = vpack.c.b16 %v1983, %v1981
    %v2032 = vpack.c.b16 %v1986, %v1984
    %v2033 = vpack.c.b16 %v1987, %v1985
    %v2034 = vpack.c.b16 %v1990, %v1988
    %v2035 = vpack.c.b16 %v1991, %v1989
    %v2036 = vpack.c.b16 %v1994, %v1992
    %v2037 = vpack.c.b16 %v1995, %v1993
    %v2038 = vpack.c.b16 %v1998, %v1996
    %v2039 = vpack.c.b16 %v1999, %v1997
    %v2040 = vpack.c.b16 %v2002, %v2000
    %v2041 = vpack.c.b16 %v2003, %v2001
    %v2042 = vpack.c.b16 %v2006, %v2004
    %v2043 = vpack.c.b16 %v2007, %v2005
    %v2044 = vpack.c.b16 %v2008, %v2008
    %v2045 = vpack.c.b16 %v2009, %v2009
    %vm2080 = vcmask 195584
    %v2082 = vsel %vm2080, %v1830, 0
    %v2085 = vsel %vm2080, %v1833, 0
    %v2088 = vsel %vm2080, %v1836, 0
    %v2091 = vsel %vm2080, %v1839, 0
    %v2094 = vsel %vm2080, %v1842, 0
    %v2097 = vsel %vm2080, %v1845, 0
    %v2100 = vsel %vm2080, %v1848, 0
    %v2103 = vsel %vm2080, %v1851, 0
    %v2106 = vsel %vm2080, %v1854, 0
    %v2109 = vsel %vm2080, %v1857, 0
    %v2112 = vsel %vm2080, %v1860, 0
    %v2115 = vsel %vm2080, %v1863, 0
    %v2118 = vsel %vm2080, %v1866, 0
    %v2121 = vsel %vm2080, %v1869, 0
    %vm2123 = vcmask 1043456
    %v2125 = vsel %vm2123, %v2044, 0
    %v2128 = vsel %vm2123, %v2045, 0
    %2130 = vmatprep.subr.bf16.mxu0 %v2011
    %2131 = vmatpush1.bf16.msra.mxu0 %v2010
    %2132 = vmatprep.subr.bf16.mxu0 %v2013
    %2133 = vmatpush1.bf16.msra.mxu0 %v2012
    %2134 = vmatprep.subr.bf16.mxu0 %v2015
    %2135 = vmatpush1.bf16.msra.mxu0 %v2014
    %2136 = vmatprep.subr.bf16.mxu0 %v2017
    %2137 = vmatpush1.bf16.msra.mxu0 %v2016
    %2138 = vmatprep.subr.bf16.mxu0 %v2019
    %2139 = vmatpush1.bf16.msra.mxu0 %v2018
    %2140 = vmatprep.subr.bf16.mxu0 %v2021
    %2141 = vmatpush1.bf16.msra.mxu0 %v2020
    %2142 = vmatprep.subr.bf16.mxu0 %v2023
    %2143 = vmatpush1.bf16.msra.mxu0 %v2022
    %2144 = vmatprep.subr.bf16.mxu0 %v2025
    %2145 = vmatpush1.bf16.msra.mxu0 %v2024
    %2146 = vmatprep.subr.bf16.mxu0 %v2027
    %2147 = vmatpush1.bf16.msra.mxu0 %v2026
    %2148 = vmatprep.subr.bf16.mxu0 %v2029
    %2149 = vmatpush1.bf16.msra.mxu0 %v2028
    %2150 = vmatprep.subr.bf16.mxu0 %v2031
    %2151 = vmatpush1.bf16.msra.mxu0 %v2030
    %2152 = vmatprep.subr.bf16.mxu0 %v2033
    %2153 = vmatpush1.bf16.msra.mxu0 %v2032
    %2154 = vmatprep.subr.bf16.mxu0 %v2035
    %2155 = vmatpush1.bf16.msra.mxu0 %v2034
    %2156 = vmatprep.subr.bf16.mxu0 %v2037
    %2157 = vmatpush1.bf16.msra.mxu0 %v2036
    %2158 = vmatprep.subr.bf16.mxu0 %v2039
    %2159 = vmatpush1.bf16.msra.mxu0 %v2038
    %2160 = vmatprep.subr.bf16.mxu0 %v2041
    %2161 = vmatpush1.bf16.msra.mxu0 %v2040
    %2162 = vmatprep.mubr.bf16.mxu0 %v1829
    %2163 = vmatmul.mubr.bf16.gmra.mrb[0].mxu0 %v1828
    %v2164 = vpop.f32.mrb[0].mxu0
    %v2165 = vadd.f32 0.0, %v2164
    %v2166 = vpop.f32.mrb[0].mxu0
    %v2167 = vadd.f32 0.0, %v2166
    %v2168 = vpop.f32.mrb[0].mxu0
    %v2169 = vadd.f32 0.0, %v2168
    %v2170 = vpop.f32.mrb[0].mxu0
    %v2171 = vadd.f32 0.0, %v2170
    %2172 = vmatprep.mubr.bf16.mxu0 %v1832
    %2173 = vmatmul.mubr.bf16.gmra.mrb[0].mxu0 %v1831
    %v2174 = vpop.f32.mrb[0].mxu0
    %v2175 = vadd.f32 0.0, %v2174
    %v2176 = vpop.f32.mrb[0].mxu0
    %v2177 = vadd.f32 0.0, %v2176
    %v2178 = vpop.f32.mrb[0].mxu0
    %v2179 = vadd.f32 0.0, %v2178
    %v2180 = vpop.f32.mrb[0].mxu0
    %v2181 = vadd.f32 0.0, %v2180
    %2182 = vmatprep.mubr.bf16.mxu0 %v1835
    %2183 = vmatmul.mubr.bf16.gmra.mrb[0].mxu0 %v1834
    %v2184 = vpop.f32.mrb[0].mxu0
    %v2185 = vadd.f32 0.0, %v2184
    %v2186 = vpop.f32.mrb[0].mxu0
    %v2187 = vadd.f32 0.0, %v2186
    %v2188 = vpop.f32.mrb[0].mxu0
    %v2189 = vadd.f32 0.0, %v2188
    %v2190 = vpop.f32.mrb[0].mxu0
    %v2191 = vadd.f32 0.0, %v2190
    %2192 = vmatprep.mubr.bf16.mxu0 %v1838
    %2193 = vmatmul.mubr.bf16.gmra.mrb[0].mxu0 %v1837
    %v2194 = vpop.f32.mrb[0].mxu0
    %v2195 = vadd.f32 0.0, %v2194
    %v2196 = vpop.f32.mrb[0].mxu0
    %v2197 = vadd.f32 0.0, %v2196
    %v2198 = vpop.f32.mrb[0].mxu0
    %v2199 = vadd.f32 0.0, %v2198
    %v2200 = vpop.f32.mrb[0].mxu0
    %v2201 = vadd.f32 0.0, %v2200
    %2202 = vmatprep.mubr.bf16.mxu0 %v1841
    %2203 = vmatmul.mubr.bf16.gmra.mrb[0].mxu0 %v1840
    %v2204 = vpop.f32.mrb[0].mxu0
    %v2205 = vadd.f32 0.0, %v2204
    %v2206 = vpop.f32.mrb[0].mxu0
    %v2207 = vadd.f32 0.0, %v2206
    %v2208 = vpop.f32.mrb[0].mxu0
    %v2209 = vadd.f32 0.0, %v2208
    %v2210 = vpop.f32.mrb[0].mxu0
    %v2211 = vadd.f32 0.0, %v2210
    %2212 = vmatprep.mubr.bf16.mxu0 %v1844
    %2213 = vmatmul.mubr.bf16.gmra.mrb[0].mxu0 %v1843
    %v2214 = vpop.f32.mrb[0].mxu0
    %v2215 = vadd.f32 0.0, %v2214
    %v2216 = vpop.f32.mrb[0].mxu0
    %v2217 = vadd.f32 0.0, %v2216
    %v2218 = vpop.f32.mrb[0].mxu0
    %v2219 = vadd.f32 0.0, %v2218
    %v2220 = vpop.f32.mrb[0].mxu0
    %v2221 = vadd.f32 0.0, %v2220
    %2222 = vmatprep.mubr.bf16.mxu0 %v1847
    %2223 = vmatmul.mubr.bf16.gmra.mrb[0].mxu0 %v1846
    %v2224 = vpop.f32.mrb[0].mxu0
    %v2225 = vadd.f32 0.0, %v2224
    %v2226 = vpop.f32.mrb[0].mxu0
    %v2227 = vadd.f32 0.0, %v2226
    %v2228 = vpop.f32.mrb[0].mxu0
    %v2229 = vadd.f32 0.0, %v2228
    %v2230 = vpop.f32.mrb[0].mxu0
    %v2231 = vadd.f32 0.0, %v2230
    %2232 = vmatprep.mubr.bf16.mxu0 %v1850
    %2233 = vmatmul.mubr.bf16.gmra.mrb[0].mxu0 %v1849
    %v2234 = vpop.f32.mrb[0].mxu0
    %v2235 = vadd.f32 0.0, %v2234
    %v2236 = vpop.f32.mrb[0].mxu0
    %v2237 = vadd.f32 0.0, %v2236
    %v2238 = vpop.f32.mrb[0].mxu0
    %v2239 = vadd.f32 0.0, %v2238
    %v2240 = vpop.f32.mrb[0].mxu0
    %v2241 = vadd.f32 0.0, %v2240
    %2242 = vmatprep.mubr.bf16.mxu0 %v1853
    %2243 = vmatmul.mubr.bf16.gmra.mrb[0].mxu0 %v1852
    %v2244 = vpop.f32.mrb[0].mxu0
    %v2245 = vadd.f32 0.0, %v2244
    %v2246 = vpop.f32.mrb[0].mxu0
    %v2247 = vadd.f32 0.0, %v2246
    %v2248 = vpop.f32.mrb[0].mxu0
    %v2249 = vadd.f32 0.0, %v2248
    %v2250 = vpop.f32.mrb[0].mxu0
    %v2251 = vadd.f32 0.0, %v2250
    %2252 = vmatprep.mubr.bf16.mxu0 %v1856
    %2253 = vmatmul.mubr.bf16.gmra.mrb[0].mxu0 %v1855
    %v2254 = vpop.f32.mrb[0].mxu0
    %v2255 = vadd.f32 0.0, %v2254
    %v2256 = vpop.f32.mrb[0].mxu0
    %v2257 = vadd.f32 0.0, %v2256
    %v2258 = vpop.f32.mrb[0].mxu0
    %v2259 = vadd.f32 0.0, %v2258
    %v2260 = vpop.f32.mrb[0].mxu0
    %v2261 = vadd.f32 0.0, %v2260
    %2262 = vmatprep.mubr.bf16.mxu0 %v1859
    %2263 = vmatmul.mubr.bf16.gmra.mrb[0].mxu0 %v1858
    %v2264 = vpop.f32.mrb[0].mxu0
    %v2265 = vadd.f32 0.0, %v2264
    %v2266 = vpop.f32.mrb[0].mxu0
    %v2267 = vadd.f32 0.0, %v2266
    %v2268 = vpop.f32.mrb[0].mxu0
    %v2269 = vadd.f32 0.0, %v2268
    %v2270 = vpop.f32.mrb[0].mxu0
    %v2271 = vadd.f32 0.0, %v2270
    %2272 = vmatprep.mubr.bf16.mxu0 %v1862
    %2273 = vmatmul.mubr.bf16.gmra.mrb[0].mxu0 %v1861
    %v2274 = vpop.f32.mrb[0].mxu0
    %v2275 = vadd.f32 0.0, %v2274
    %v2276 = vpop.f32.mrb[0].mxu0
    %v2277 = vadd.f32 0.0, %v2276
    %v2278 = vpop.f32.mrb[0].mxu0
    %v2279 = vadd.f32 0.0, %v2278
    %v2280 = vpop.f32.mrb[0].mxu0
    %v2281 = vadd.f32 0.0, %v2280
    %2282 = vmatprep.mubr.bf16.mxu0 %v1865
    %2283 = vmatmul.mubr.bf16.gmra.mrb[0].mxu0 %v1864
    %v2284 = vpop.f32.mrb[0].mxu0
    %v2285 = vadd.f32 0.0, %v2284
    %v2286 = vpop.f32.mrb[0].mxu0
    %v2287 = vadd.f32 0.0, %v2286
    %v2288 = vpop.f32.mrb[0].mxu0
    %v2289 = vadd.f32 0.0, %v2288
    %v2290 = vpop.f32.mrb[0].mxu0
    %v2291 = vadd.f32 0.0, %v2290
    %2292 = vmatprep.mubr.bf16.mxu0 %v1868
    %2293 = vmatmul.mubr.bf16.gmra.mrb[0].mxu0 %v1867
    %v2294 = vpop.f32.mrb[0].mxu0
    %v2295 = vadd.f32 0.0, %v2294
    %v2296 = vpop.f32.mrb[0].mxu0
    %v2297 = vadd.f32 0.0, %v2296
    %v2298 = vpop.f32.mrb[0].mxu0
    %v2299 = vadd.f32 0.0, %v2298
    %v2300 = vpop.f32.mrb[0].mxu0
    %v2301 = vadd.f32 0.0, %v2300
    %2302 = vdwg.mxu0
    %2303 = vmatprep.subr.bf16.mxu0 %v2043
    %2304 = vmatpush1.bf16.msra.mxu0 %v2042
    %2305 = vmatprep.subr.bf16.mxu0 %v2128
    %2306 = vmatpush1.bf16.msra.mxu0 %v2125
    %2307 = vmatprep.subr.bf16.mxu0 0
    %2308 = vmatpush1.bf16.msra.mxu0 0
    %2309 = vmatprep.subr.bf16.mxu0 0
    %2310 = vmatpush1.bf16.msra.mxu0 0
    %2311 = vmatprep.subr.bf16.mxu0 0
    %2312 = vmatpush1.bf16.msra.mxu0 0
    %2313 = vmatprep.subr.bf16.mxu0 0
    %2314 = vmatpush1.bf16.msra.mxu0 0
    %2315 = vmatprep.subr.bf16.mxu0 0
    %2316 = vmatpush1.bf16.msra.mxu0 0
    %2317 = vmatprep.subr.bf16.mxu0 0
    %2318 = vmatpush1.bf16.msra.mxu0 0
    %2319 = vmatprep.subr.bf16.mxu0 0
    %2320 = vmatpush1.bf16.msra.mxu0 0
    %2321 = vmatprep.subr.bf16.mxu0 0
    %2322 = vmatpush1.bf16.msra.mxu0 0
    %2323 = vmatprep.subr.bf16.mxu0 0
    %2324 = vmatpush1.bf16.msra.mxu0 0
    %2325 = vmatprep.subr.bf16.mxu0 0
    %2326 = vmatpush1.bf16.msra.mxu0 0
    %2327 = vmatprep.subr.bf16.mxu0 0
    %2328 = vmatpush1.bf16.msra.mxu0 0
    %2329 = vmatprep.subr.bf16.mxu0 0
    %2330 = vmatpush1.bf16.msra.mxu0 0
    %2331 = vmatprep.subr.bf16.mxu0 0
    %2332 = vmatpush1.bf16.msra.mxu0 0
    %2333 = vmatprep.subr.bf16.mxu0 0
    %2334 = vmatpush1.bf16.msra.mxu0 0
    %2335 = vmatprep.mubr.bf16.mxu0 0
    %2336 = vmatmul.mubr.bf16.gmra.mrb[0].mxu0 %v2082
    %v2337 = vpop.f32.mrb[0].mxu0
    %v2338 = vadd.f32 %v2165, %v2337
    %v2339 = vpop.f32.mrb[0].mxu0
    %v2340 = vadd.f32 %v2167, %v2339
    %v2341 = vpop.f32.mrb[0].mxu0
    %v2342 = vadd.f32 %v2169, %v2341
    %v2343 = vpop.f32.mrb[0].mxu0
    %v2344 = vadd.f32 %v2171, %v2343
    %2345 = vmatprep.mubr.bf16.mxu0 0
    %2346 = vmatmul.mubr.bf16.gmra.mrb[0].mxu0 %v2085
    %v2347 = vpop.f32.mrb[0].mxu0
    %v2348 = vadd.f32 %v2175, %v2347
    %v2349 = vpop.f32.mrb[0].mxu0
    %v2350 = vadd.f32 %v2177, %v2349
    %v2351 = vpop.f32.mrb[0].mxu0
    %v2352 = vadd.f32 %v2179, %v2351
    %v2353 = vpop.f32.mrb[0].mxu0
    %v2354 = vadd.f32 %v2181, %v2353
    %2355 = vmatprep.mubr.bf16.mxu0 0
    %2356 = vmatmul.mubr.bf16.gmra.mrb[0].mxu0 %v2088
    %v2357 = vpop.f32.mrb[0].mxu0
    %v2358 = vadd.f32 %v2185, %v2357
    %v2359 = vpop.f32.mrb[0].mxu0
    %v2360 = vadd.f32 %v2187, %v2359
    %v2361 = vpop.f32.mrb[0].mxu0
    %v2362 = vadd.f32 %v2189, %v2361
    %v2363 = vpop.f32.mrb[0].mxu0
    %v2364 = vadd.f32 %v2191, %v2363
    %2365 = vmatprep.mubr.bf16.mxu0 0
    %2366 = vmatmul.mubr.bf16.gmra.mrb[0].mxu0 %v2091
    %v2367 = vpop.f32.mrb[0].mxu0
    %v2368 = vadd.f32 %v2195, %v2367
    %v2369 = vpop.f32.mrb[0].mxu0
    %v2370 = vadd.f32 %v2197, %v2369
    %v2371 = vpop.f32.mrb[0].mxu0
    %v2372 = vadd.f32 %v2199, %v2371
    %v2373 = vpop.f32.mrb[0].mxu0
    %v2374 = vadd.f32 %v2201, %v2373
    %2375 = vmatprep.mubr.bf16.mxu0 0
    %2376 = vmatmul.mubr.bf16.gmra.mrb[0].mxu0 %v2094
    %v2377 = vpop.f32.mrb[0].mxu0
    %v2378 = vadd.f32 %v2205, %v2377
    %v2379 = vpop.f32.mrb[0].mxu0
    %v2380 = vadd.f32 %v2207, %v2379
    %v2381 = vpop.f32.mrb[0].mxu0
    %v2382 = vadd.f32 %v2209, %v2381
    %v2383 = vpop.f32.mrb[0].mxu0
    %v2384 = vadd.f32 %v2211, %v2383
    %2385 = vmatprep.mubr.bf16.mxu0 0
    %2386 = vmatmul.mubr.bf16.gmra.mrb[0].mxu0 %v2097
    %v2387 = vpop.f32.mrb[0].mxu0
    %v2388 = vadd.f32 %v2215, %v2387
    %v2389 = vpop.f32.mrb[0].mxu0
    %v2390 = vadd.f32 %v2217, %v2389
    %v2391 = vpop.f32.mrb[0].mxu0
    %v2392 = vadd.f32 %v2219, %v2391
    %v2393 = vpop.f32.mrb[0].mxu0
    %v2394 = vadd.f32 %v2221, %v2393
    %2395 = vmatprep.mubr.bf16.mxu0 0
    %2396 = vmatmul.mubr.bf16.gmra.mrb[0].mxu0 %v2100
    %v2397 = vpop.f32.mrb[0].mxu0
    %v2398 = vadd.f32 %v2225, %v2397
    %v2399 = vpop.f32.mrb[0].mxu0
    %v2400 = vadd.f32 %v2227, %v2399
    %v2401 = vpop.f32.mrb[0].mxu0
    %v2402 = vadd.f32 %v2229, %v2401
    %v2403 = vpop.f32.mrb[0].mxu0
    %v2404 = vadd.f32 %v2231, %v2403
    %2405 = vmatprep.mubr.bf16.mxu0 0
    %2406 = vmatmul.mubr.bf16.gmra.mrb[0].mxu0 %v2103
    %v2407 = vpop.f32.mrb[0].mxu0
    %v2408 = vadd.f32 %v2235, %v2407
    %v2409 = vpop.f32.mrb[0].mxu0
    %v2410 = vadd.f32 %v2237, %v2409
    %v2411 = vpop.f32.mrb[0].mxu0
    %v2412 = vadd.f32 %v2239, %v2411
    %v2413 = vpop.f32.mrb[0].mxu0
    %v2414 = vadd.f32 %v2241, %v2413
    %2415 = vmatprep.mubr.bf16.mxu0 0
    %2416 = vmatmul.mubr.bf16.gmra.mrb[0].mxu0 %v2106
    %v2417 = vpop.f32.mrb[0].mxu0
    %v2418 = vadd.f32 %v2245, %v2417
    %v2419 = vpop.f32.mrb[0].mxu0
    %v2420 = vadd.f32 %v2247, %v2419
    %v2421 = vpop.f32.mrb[0].mxu0
    %v2422 = vadd.f32 %v2249, %v2421
    %v2423 = vpop.f32.mrb[0].mxu0
    %v2424 = vadd.f32 %v2251, %v2423
    %2425 = vmatprep.mubr.bf16.mxu0 0
    %2426 = vmatmul.mubr.bf16.gmra.mrb[0].mxu0 %v2109
    %v2427 = vpop.f32.mrb[0].mxu0
    %v2428 = vadd.f32 %v2255, %v2427
    %v2429 = vpop.f32.mrb[0].mxu0
    %v2430 = vadd.f32 %v2257, %v2429
    %v2431 = vpop.f32.mrb[0].mxu0
    %v2432 = vadd.f32 %v2259, %v2431
    %v2433 = vpop.f32.mrb[0].mxu0
    %v2434 = vadd.f32 %v2261, %v2433
    %2435 = vmatprep.mubr.bf16.mxu0 0
    %2436 = vmatmul.mubr.bf16.gmra.mrb[0].mxu0 %v2112
    %v2437 = vpop.f32.mrb[0].mxu0
    %v2438 = vadd.f32 %v2265, %v2437
    %v2439 = vpop.f32.mrb[0].mxu0
    %v2440 = vadd.f32 %v2267, %v2439
    %v2441 = vpop.f32.mrb[0].mxu0
    %v2442 = vadd.f32 %v2269, %v2441
    %v2443 = vpop.f32.mrb[0].mxu0
    %v2444 = vadd.f32 %v2271, %v2443
    %2445 = vmatprep.mubr.bf16.mxu0 0
    %2446 = vmatmul.mubr.bf16.gmra.mrb[0].mxu0 %v2115
    %v2447 = vpop.f32.mrb[0].mxu0
    %v2448 = vadd.f32 %v2275, %v2447
    %v2449 = vpop.f32.mrb[0].mxu0
    %v2450 = vadd.f32 %v2277, %v2449
    %v2451 = vpop.f32.mrb[0].mxu0
    %v2452 = vadd.f32 %v2279, %v2451
    %v2453 = vpop.f32.mrb[0].mxu0
    %v2454 = vadd.f32 %v2281, %v2453
    %2455 = vmatprep.mubr.bf16.mxu0 0
    %2456 = vmatmul.mubr.bf16.gmra.mrb[0].mxu0 %v2118
    %v2457 = vpop.f32.mrb[0].mxu0
    %v2458 = vadd.f32 %v2285, %v2457
    %v2459 = vpop.f32.mrb[0].mxu0
    %v2460 = vadd.f32 %v2287, %v2459
    %v2461 = vpop.f32.mrb[0].mxu0
    %v2462 = vadd.f32 %v2289, %v2461
    %v2463 = vpop.f32.mrb[0].mxu0
    %v2464 = vadd.f32 %v2291, %v2463
    %2465 = vmatprep.mubr.bf16.mxu0 0
    %2466 = vmatmul.mubr.bf16.gmra.mrb[0].mxu0 %v2121
    %v2467 = vpop.f32.mrb[0].mxu0
    %v2468 = vadd.f32 %v2295, %v2467
    %v2469 = vpop.f32.mrb[0].mxu0
    %v2470 = vadd.f32 %v2297, %v2469
    %v2471 = vpop.f32.mrb[0].mxu0
    %v2472 = vadd.f32 %v2299, %v2471
    %v2473 = vpop.f32.mrb[0].mxu0
    %v2474 = vadd.f32 %v2301, %v2473
    %2475 = vdwg.mxu0
    %s2476 = scalar_lea.vmem %s3, 280
    %v2477 = vld [vmem:[%s2476] sm:$0xff]
    %v2478 = vld [vmem:[%s2476 + $0x8] sm:$0xff]
    %v2479 = vld [vmem:[%s2476 + $0x10] sm:$0xff]
    %v2480 = vld [vmem:[%s2476 + $0x18] sm:$0xff]
    %v2481 = vld [vmem:[%s2476 + $0x20] sm:$0xff]
    %v2482 = vld [vmem:[%s2476 + $0x28] sm:$0xff]
    %v2483 = vld [vmem:[%s2476 + $0x30] sm:$0xff]
    %v2484 = vld [vmem:[%s2476 + $0x38] sm:$0xff]
    %v2485 = vld [vmem:[%s2476 + $0x40] sm:$0xff]
    %v2486 = vld [vmem:[%s2476 + $0x48] sm:$0xff]
    %v2487 = vld [vmem:[%s2476 + $0x50] sm:$0xff]
    %v2488 = vld [vmem:[%s2476 + $0x58] sm:$0xff]
    %v2489 = vld [vmem:[%s2476 + $0x60] sm:$0xff]
    %v2490 = vld [vmem:[%s2476 + $0x68] sm:$0xff]
    %v2491 = vld [vmem:[%s2476 + $0x70] sm:$0xff]
    %v2492 = vld [vmem:[%s2476 + $0x78] sm:$0xff]
    %v2493 = vld [vmem:[%s2476 + $0x80] sm:$0xff]
    %v2494 = vld [vmem:[%s2476 + $0x88] sm:$0xff]
    %v2495 = vld [vmem:[%s2476 + $0x90] sm:$0xff]
    %v2496 = vld [vmem:[%s2476 + $0x98] sm:$0xff]
    %v2497 = vld [vmem:[%s2476 + $0xa0] sm:$0xff]
    %v2498 = vld [vmem:[%s2476 + $0xa8] sm:$0xff]
    %v2499 = vld [vmem:[%s2476 + $0xb0] sm:$0xff]
    %v2500 = vld [vmem:[%s2476 + $0xb8] sm:$0xff]
    %v2501 = vld [vmem:[%s2476 + $0xc0] sm:$0xff]
    %v2502 = vld [vmem:[%s2476 + $0xc8] sm:$0xff]
    %v2503 = vld [vmem:[%s2476 + $0xd0] sm:$0xff]
    %v2504 = vld [vmem:[%s2476 + $0xd8] sm:$0xff]
    %v2505 = vld [vmem:[%s2476 + $0xe0] sm:$0xff]
    %v2506 = vld [vmem:[%s2476 + $0xe8] sm:$0xff]
    %v2507 = vld [vmem:[%s2476 + $0xf0] sm:$0xff]
    %v2508 = vld [vmem:[%s2476 + $0xf8] sm:$0xff]
    %v2509 = vld [vmem:[%s2476 + $0x100] sm:$0xff]
    %v2510 = vld [vmem:[%s2476 + $0x108] sm:$0xff]
    %v2511 = vld [vmem:[%s2476 + $0x110] sm:$0xff]
    %v2547 = vunpack.c.l.b16 %v2477
    %v2548 = vunpack.c.h.b16 %v2477
    %v2549 = vunpack.c.l.b16 %v2478
    %v2550 = vunpack.c.h.b16 %v2478
    %v2551 = vunpack.c.l.b16 %v2479
    %v2552 = vunpack.c.h.b16 %v2479
    %v2553 = vunpack.c.l.b16 %v2480
    %v2554 = vunpack.c.h.b16 %v2480
    %v2555 = vunpack.c.l.b16 %v2481
    %v2556 = vunpack.c.h.b16 %v2481
    %v2557 = vunpack.c.l.b16 %v2482
    %v2558 = vunpack.c.h.b16 %v2482
    %v2559 = vunpack.c.l.b16 %v2483
    %v2560 = vunpack.c.h.b16 %v2483
    %v2561 = vunpack.c.l.b16 %v2484
    %v2562 = vunpack.c.h.b16 %v2484
    %v2563 = vunpack.c.l.b16 %v2485
    %v2564 = vunpack.c.h.b16 %v2485
    %v2565 = vunpack.c.l.b16 %v2486
    %v2566 = vunpack.c.h.b16 %v2486
    %v2567 = vunpack.c.l.b16 %v2487
    %v2568 = vunpack.c.h.b16 %v2487
    %v2569 = vunpack.c.l.b16 %v2488
    %v2570 = vunpack.c.h.b16 %v2488
    %v2571 = vunpack.c.l.b16 %v2489
    %v2572 = vunpack.c.h.b16 %v2489
    %v2573 = vunpack.c.l.b16 %v2490
    %v2574 = vunpack.c.h.b16 %v2490
    %v2575 = vunpack.c.l.b16 %v2491
    %v2576 = vunpack.c.h.b16 %v2491
    %v2577 = vunpack.c.l.b16 %v2492
    %v2578 = vunpack.c.h.b16 %v2492
    %v2579 = vunpack.c.l.b16 %v2493
    %v2580 = vunpack.c.h.b16 %v2493
    %v2581 = vunpack.c.l.b16 %v2494
    %v2582 = vunpack.c.h.b16 %v2494
    %v2583 = vunpack.c.l.b16 %v2495
    %v2584 = vunpack.c.h.b16 %v2495
    %v2585 = vunpack.c.l.b16 %v2496
    %v2586 = vunpack.c.h.b16 %v2496
    %v2587 = vunpack.c.l.b16 %v2497
    %v2588 = vunpack.c.h.b16 %v2497
    %v2589 = vunpack.c.l.b16 %v2498
    %v2590 = vunpack.c.h.b16 %v2498
    %v2591 = vunpack.c.l.b16 %v2499
    %v2592 = vunpack.c.h.b16 %v2499
    %v2593 = vunpack.c.l.b16 %v2500
    %v2594 = vunpack.c.h.b16 %v2500
    %v2595 = vunpack.c.l.b16 %v2501
    %v2596 = vunpack.c.h.b16 %v2501
    %v2597 = vunpack.c.l.b16 %v2502
    %v2598 = vunpack.c.h.b16 %v2502
    %v2599 = vunpack.c.l.b16 %v2503
    %v2600 = vunpack.c.h.b16 %v2503
    %v2601 = vunpack.c.l.b16 %v2504
    %v2602 = vunpack.c.h.b16 %v2504
    %v2603 = vunpack.c.l.b16 %v2505
    %v2604 = vunpack.c.h.b16 %v2505
    %v2605 = vunpack.c.l.b16 %v2506
    %v2606 = vunpack.c.h.b16 %v2506
    %v2607 = vunpack.c.l.b16 %v2507
    %v2608 = vunpack.c.h.b16 %v2507
    %v2609 = vunpack.c.l.b16 %v2508
    %v2610 = vunpack.c.h.b16 %v2508
    %v2611 = vunpack.c.l.b16 %v2509
    %v2612 = vunpack.c.h.b16 %v2509
    %v2613 = vunpack.c.l.b16 %v2510
    %v2614 = vunpack.c.h.b16 %v2510
    %v2615 = vunpack.c.l.b16 %v2511
    %v2616 = vunpack.c.h.b16 %v2511
    %v2617 = vpack.c.b16 %v2549, %v2547
    %v2618 = vpack.c.b16 %v2550, %v2548
    %v2619 = vpack.c.b16 %v2553, %v2551
    %v2620 = vpack.c.b16 %v2554, %v2552
    %v2621 = vpack.c.b16 %v2557, %v2555
    %v2622 = vpack.c.b16 %v2558, %v2556
    %v2623 = vpack.c.b16 %v2561, %v2559
    %v2624 = vpack.c.b16 %v2562, %v2560
    %v2625 = vpack.c.b16 %v2565, %v2563
    %v2626 = vpack.c.b16 %v2566, %v2564
    %v2627 = vpack.c.b16 %v2569, %v2567
    %v2628 = vpack.c.b16 %v2570, %v2568
    %v2629 = vpack.c.b16 %v2573, %v2571
    %v2630 = vpack.c.b16 %v2574, %v2572
    %v2631 = vpack.c.b16 %v2577, %v2575
    %v2632 = vpack.c.b16 %v2578, %v2576
    %v2633 = vpack.c.b16 %v2581, %v2579
    %v2634 = vpack.c.b16 %v2582, %v2580
    %v2635 = vpack.c.b16 %v2585, %v2583
    %v2636 = vpack.c.b16 %v2586, %v2584
    %v2637 = vpack.c.b16 %v2589, %v2587
    %v2638 = vpack.c.b16 %v2590, %v2588
    %v2639 = vpack.c.b16 %v2593, %v2591
    %v2640 = vpack.c.b16 %v2594, %v2592
    %v2641 = vpack.c.b16 %v2597, %v2595
    %v2642 = vpack.c.b16 %v2598, %v2596
    %v2643 = vpack.c.b16 %v2601, %v2599
    %v2644 = vpack.c.b16 %v2602, %v2600
    %v2645 = vpack.c.b16 %v2605, %v2603
    %v2646 = vpack.c.b16 %v2606, %v2604
    %v2647 = vpack.c.b16 %v2609, %v2607
    %v2648 = vpack.c.b16 %v2610, %v2608
    %v2649 = vpack.c.b16 %v2613, %v2611
    %v2650 = vpack.c.b16 %v2614, %v2612
    %v2651 = vpack.c.b16 %v2615, %v2615
    %v2652 = vpack.c.b16 %v2616, %v2616
    %v2688 = vsel %vm2123, %v2651, 0
    %v2691 = vsel %vm2123, %v2652, 0
    %2693 = vmatprep.subr.bf16.mxu0 %v2618
    %2694 = vmatpush1.bf16.msra.mxu0 %v2617
    %2695 = vmatprep.subr.bf16.mxu0 %v2620
    %2696 = vmatpush1.bf16.msra.mxu0 %v2619
    %2697 = vmatprep.subr.bf16.mxu0 %v2622
    %2698 = vmatpush1.bf16.msra.mxu0 %v2621
    %2699 = vmatprep.subr.bf16.mxu0 %v2624
    %2700 = vmatpush1.bf16.msra.mxu0 %v2623
    %2701 = vmatprep.subr.bf16.mxu0 %v2626
    %2702 = vmatpush1.bf16.msra.mxu0 %v2625
    %2703 = vmatprep.subr.bf16.mxu0 %v2628
    %2704 = vmatpush1.bf16.msra.mxu0 %v2627
    %2705 = vmatprep.subr.bf16.mxu0 %v2630
    %2706 = vmatpush1.bf16.msra.mxu0 %v2629
    %2707 = vmatprep.subr.bf16.mxu0 %v2632
    %2708 = vmatpush1.bf16.msra.mxu0 %v2631
    %2709 = vmatprep.subr.bf16.mxu0 %v2634
    %2710 = vmatpush1.bf16.msra.mxu0 %v2633
    %2711 = vmatprep.subr.bf16.mxu0 %v2636
    %2712 = vmatpush1.bf16.msra.mxu0 %v2635
    %2713 = vmatprep.subr.bf16.mxu0 %v2638
    %2714 = vmatpush1.bf16.msra.mxu0 %v2637
    %2715 = vmatprep.subr.bf16.mxu0 %v2640
    %2716 = vmatpush1.bf16.msra.mxu0 %v2639
    %2717 = vmatprep.subr.bf16.mxu0 %v2642
    %2718 = vmatpush1.bf16.msra.mxu0 %v2641
    %2719 = vmatprep.subr.bf16.mxu0 %v2644
    %2720 = vmatpush1.bf16.msra.mxu0 %v2643
    %2721 = vmatprep.subr.bf16.mxu0 %v2646
    %2722 = vmatpush1.bf16.msra.mxu0 %v2645
    %2723 = vmatprep.subr.bf16.mxu0 %v2648
    %2724 = vmatpush1.bf16.msra.mxu0 %v2647
    %2725 = vmatprep.mubr.bf16.mxu0 %v1829
    %2726 = vmatmul.mubr.bf16.gmra.mrb[0].mxu0 %v1828
    %v2727 = vpop.f32.mrb[0].mxu0
    %v2728 = vadd.f32 0.0, %v2727
    %v2729 = vpop.f32.mrb[0].mxu0
    %v2730 = vadd.f32 0.0, %v2729
    %v2731 = vpop.f32.mrb[0].mxu0
    %v2732 = vadd.f32 0.0, %v2731
    %v2733 = vpop.f32.mrb[0].mxu0
    %v2734 = vadd.f32 0.0, %v2733
    %2735 = vmatprep.mubr.bf16.mxu0 %v1832
    %2736 = vmatmul.mubr.bf16.gmra.mrb[0].mxu0 %v1831
    %v2737 = vpop.f32.mrb[0].mxu0
    %v2738 = vadd.f32 0.0, %v2737
    %v2739 = vpop.f32.mrb[0].mxu0
    %v2740 = vadd.f32 0.0, %v2739
    %v2741 = vpop.f32.mrb[0].mxu0
    %v2742 = vadd.f32 0.0, %v2741
    %v2743 = vpop.f32.mrb[0].mxu0
    %v2744 = vadd.f32 0.0, %v2743
    %2745 = vmatprep.mubr.bf16.mxu0 %v1835
    %2746 = vmatmul.mubr.bf16.gmra.mrb[0].mxu0 %v1834
    %v2747 = vpop.f32.mrb[0].mxu0
    %v2748 = vadd.f32 0.0, %v2747
    %v2749 = vpop.f32.mrb[0].mxu0
    %v2750 = vadd.f32 0.0, %v2749
    %v2751 = vpop.f32.mrb[0].mxu0
    %v2752 = vadd.f32 0.0, %v2751
    %v2753 = vpop.f32.mrb[0].mxu0
    %v2754 = vadd.f32 0.0, %v2753
    %2755 = vmatprep.mubr.bf16.mxu0 %v1838
    %2756 = vmatmul.mubr.bf16.gmra.mrb[0].mxu0 %v1837
    %v2757 = vpop.f32.mrb[0].mxu0
    %v2758 = vadd.f32 0.0, %v2757
    %v2759 = vpop.f32.mrb[0].mxu0
    %v2760 = vadd.f32 0.0, %v2759
    %v2761 = vpop.f32.mrb[0].mxu0
    %v2762 = vadd.f32 0.0, %v2761
    %v2763 = vpop.f32.mrb[0].mxu0
    %v2764 = vadd.f32 0.0, %v2763
    %2765 = vmatprep.mubr.bf16.mxu0 %v1841
    %2766 = vmatmul.mubr.bf16.gmra.mrb[0].mxu0 %v1840
    %v2767 = vpop.f32.mrb[0].mxu0
    %v2768 = vadd.f32 0.0, %v2767
    %v2769 = vpop.f32.mrb[0].mxu0
    %v2770 = vadd.f32 0.0, %v2769
    %v2771 = vpop.f32.mrb[0].mxu0
    %v2772 = vadd.f32 0.0, %v2771
    %v2773 = vpop.f32.mrb[0].mxu0
    %v2774 = vadd.f32 0.0, %v2773
    %2775 = vmatprep.mubr.bf16.mxu0 %v1844
    %2776 = vmatmul.mubr.bf16.gmra.mrb[0].mxu0 %v1843
    %v2777 = vpop.f32.mrb[0].mxu0
    %v2778 = vadd.f32 0.0, %v2777
    %v2779 = vpop.f32.mrb[0].mxu0
    %v2780 = vadd.f32 0.0, %v2779
    %v2781 = vpop.f32.mrb[0].mxu0
    %v2782 = vadd.f32 0.0, %v2781
    %v2783 = vpop.f32.mrb[0].mxu0
    %v2784 = vadd.f32 0.0, %v2783
    %2785 = vmatprep.mubr.bf16.mxu0 %v1847
    %2786 = vmatmul.mubr.bf16.gmra.mrb[0].mxu0 %v1846
    %v2787 = vpop.f32.mrb[0].mxu0
    %v2788 = vadd.f32 0.0, %v2787
    %v2789 = vpop.f32.mrb[0].mxu0
    %v2790 = vadd.f32 0.0, %v2789
    %v2791 = vpop.f32.mrb[0].mxu0
    %v2792 = vadd.f32 0.0, %v2791
    %v2793 = vpop.f32.mrb[0].mxu0
    %v2794 = vadd.f32 0.0, %v2793
    %2795 = vmatprep.mubr.bf16.mxu0 %v1850
    %2796 = vmatmul.mubr.bf16.gmra.mrb[0].mxu0 %v1849
    %v2797 = vpop.f32.mrb[0].mxu0
    %v2798 = vadd.f32 0.0, %v2797
    %v2799 = vpop.f32.mrb[0].mxu0
    %v2800 = vadd.f32 0.0, %v2799
    %v2801 = vpop.f32.mrb[0].mxu0
    %v2802 = vadd.f32 0.0, %v2801
    %v2803 = vpop.f32.mrb[0].mxu0
    %v2804 = vadd.f32 0.0, %v2803
    %2805 = vmatprep.mubr.bf16.mxu0 %v1853
    %2806 = vmatmul.mubr.bf16.gmra.mrb[0].mxu0 %v1852
    %v2807 = vpop.f32.mrb[0].mxu0
    %v2808 = vadd.f32 0.0, %v2807
    %v2809 = vpop.f32.mrb[0].mxu0
    %v2810 = vadd.f32 0.0, %v2809
    %v2811 = vpop.f32.mrb[0].mxu0
    %v2812 = vadd.f32 0.0, %v2811
    %v2813 = vpop.f32.mrb[0].mxu0
    %v2814 = vadd.f32 0.0, %v2813
    %2815 = vmatprep.mubr.bf16.mxu0 %v1856
    %2816 = vmatmul.mubr.bf16.gmra.mrb[0].mxu0 %v1855
    %v2817 = vpop.f32.mrb[0].mxu0
    %v2818 = vadd.f32 0.0, %v2817
    %v2819 = vpop.f32.mrb[0].mxu0
    %v2820 = vadd.f32 0.0, %v2819
    %v2821 = vpop.f32.mrb[0].mxu0
    %v2822 = vadd.f32 0.0, %v2821
    %v2823 = vpop.f32.mrb[0].mxu0
    %v2824 = vadd.f32 0.0, %v2823
    %2825 = vmatprep.mubr.bf16.mxu0 %v1859
    %2826 = vmatmul.mubr.bf16.gmra.mrb[0].mxu0 %v1858
    %v2827 = vpop.f32.mrb[0].mxu0
    %v2828 = vadd.f32 0.0, %v2827
    %v2829 = vpop.f32.mrb[0].mxu0
    %v2830 = vadd.f32 0.0, %v2829
    %v2831 = vpop.f32.mrb[0].mxu0
    %v2832 = vadd.f32 0.0, %v2831
    %v2833 = vpop.f32.mrb[0].mxu0
    %v2834 = vadd.f32 0.0, %v2833
    %2835 = vmatprep.mubr.bf16.mxu0 %v1862
    %2836 = vmatmul.mubr.bf16.gmra.mrb[0].mxu0 %v1861
    %v2837 = vpop.f32.mrb[0].mxu0
    %v2838 = vadd.f32 0.0, %v2837
    %v2839 = vpop.f32.mrb[0].mxu0
    %v2840 = vadd.f32 0.0, %v2839
    %v2841 = vpop.f32.mrb[0].mxu0
    %v2842 = vadd.f32 0.0, %v2841
    %v2843 = vpop.f32.mrb[0].mxu0
    %v2844 = vadd.f32 0.0, %v2843
    %2845 = vmatprep.mubr.bf16.mxu0 %v1865
    %2846 = vmatmul.mubr.bf16.gmra.mrb[0].mxu0 %v1864
    %v2847 = vpop.f32.mrb[0].mxu0
    %v2848 = vadd.f32 0.0, %v2847
    %v2849 = vpop.f32.mrb[0].mxu0
    %v2850 = vadd.f32 0.0, %v2849
    %v2851 = vpop.f32.mrb[0].mxu0
    %v2852 = vadd.f32 0.0, %v2851
    %v2853 = vpop.f32.mrb[0].mxu0
    %v2854 = vadd.f32 0.0, %v2853
    %2855 = vmatprep.mubr.bf16.mxu0 %v1868
    %2856 = vmatmul.mubr.bf16.gmra.mrb[0].mxu0 %v1867
    %v2857 = vpop.f32.mrb[0].mxu0
    %v2858 = vadd.f32 0.0, %v2857
    %v2859 = vpop.f32.mrb[0].mxu0
    %v2860 = vadd.f32 0.0, %v2859
    %v2861 = vpop.f32.mrb[0].mxu0
    %v2862 = vadd.f32 0.0, %v2861
    %v2863 = vpop.f32.mrb[0].mxu0
    %v2864 = vadd.f32 0.0, %v2863
    %2865 = vdwg.mxu0
    %2866 = vmatprep.subr.bf16.mxu0 %v2650
    %2867 = vmatpush1.bf16.msra.mxu0 %v2649
    %2868 = vmatprep.subr.bf16.mxu0 %v2691
    %2869 = vmatpush1.bf16.msra.mxu0 %v2688
    %2870 = vmatprep.subr.bf16.mxu0 0
    %2871 = vmatpush1.bf16.msra.mxu0 0
    %2872 = vmatprep.subr.bf16.mxu0 0
    %2873 = vmatpush1.bf16.msra.mxu0 0
    %2874 = vmatprep.subr.bf16.mxu0 0
    %2875 = vmatpush1.bf16.msra.mxu0 0
    %2876 = vmatprep.subr.bf16.mxu0 0
    %2877 = vmatpush1.bf16.msra.mxu0 0
    %2878 = vmatprep.subr.bf16.mxu0 0
    %2879 = vmatpush1.bf16.msra.mxu0 0
    %2880 = vmatprep.subr.bf16.mxu0 0
    %2881 = vmatpush1.bf16.msra.mxu0 0
    %2882 = vmatprep.subr.bf16.mxu0 0
    %2883 = vmatpush1.bf16.msra.mxu0 0
    %2884 = vmatprep.subr.bf16.mxu0 0
    %2885 = vmatpush1.bf16.msra.mxu0 0
    %2886 = vmatprep.subr.bf16.mxu0 0
    %2887 = vmatpush1.bf16.msra.mxu0 0
    %2888 = vmatprep.subr.bf16.mxu0 0
    %2889 = vmatpush1.bf16.msra.mxu0 0
    %2890 = vmatprep.subr.bf16.mxu0 0
    %2891 = vmatpush1.bf16.msra.mxu0 0
    %2892 = vmatprep.subr.bf16.mxu0 0
    %2893 = vmatpush1.bf16.msra.mxu0 0
    %2894 = vmatprep.subr.bf16.mxu0 0
    %2895 = vmatpush1.bf16.msra.mxu0 0
    %2896 = vmatprep.subr.bf16.mxu0 0
    %2897 = vmatpush1.bf16.msra.mxu0 0
    %2898 = vmatprep.mubr.bf16.mxu0 0
    %2899 = vmatmul.mubr.bf16.gmra.mrb[0].mxu0 %v2082
    %v2900 = vpop.f32.mrb[0].mxu0
    %v2901 = vadd.f32 %v2728, %v2900
    %v2902 = vpop.f32.mrb[0].mxu0
    %v2903 = vadd.f32 %v2730, %v2902
    %v2904 = vpop.f32.mrb[0].mxu0
    %v2905 = vadd.f32 %v2732, %v2904
    %v2906 = vpop.f32.mrb[0].mxu0
    %v2907 = vadd.f32 %v2734, %v2906
    %2908 = vmatprep.mubr.bf16.mxu0 0
    %2909 = vmatmul.mubr.bf16.gmra.mrb[0].mxu0 %v2085
    %v2910 = vpop.f32.mrb[0].mxu0
    %v2911 = vadd.f32 %v2738, %v2910
    %v2912 = vpop.f32.mrb[0].mxu0
    %v2913 = vadd.f32 %v2740, %v2912
    %v2914 = vpop.f32.mrb[0].mxu0
    %v2915 = vadd.f32 %v2742, %v2914
    %v2916 = vpop.f32.mrb[0].mxu0
    %v2917 = vadd.f32 %v2744, %v2916
    %2918 = vmatprep.mubr.bf16.mxu0 0
    %2919 = vmatmul.mubr.bf16.gmra.mrb[0].mxu0 %v2088
    %v2920 = vpop.f32.mrb[0].mxu0
    %v2921 = vadd.f32 %v2748, %v2920
    %v2922 = vpop.f32.mrb[0].mxu0
    %v2923 = vadd.f32 %v2750, %v2922
    %v2924 = vpop.f32.mrb[0].mxu0
    %v2925 = vadd.f32 %v2752, %v2924
    %v2926 = vpop.f32.mrb[0].mxu0
    %v2927 = vadd.f32 %v2754, %v2926
    %2928 = vmatprep.mubr.bf16.mxu0 0
    %2929 = vmatmul.mubr.bf16.gmra.mrb[0].mxu0 %v2091
    %v2930 = vpop.f32.mrb[0].mxu0
    %v2931 = vadd.f32 %v2758, %v2930
    %v2932 = vpop.f32.mrb[0].mxu0
    %v2933 = vadd.f32 %v2760, %v2932
    %v2934 = vpop.f32.mrb[0].mxu0
    %v2935 = vadd.f32 %v2762, %v2934
    %v2936 = vpop.f32.mrb[0].mxu0
    %v2937 = vadd.f32 %v2764, %v2936
    %2938 = vmatprep.mubr.bf16.mxu0 0
    %2939 = vmatmul.mubr.bf16.gmra.mrb[0].mxu0 %v2094
    %v2940 = vpop.f32.mrb[0].mxu0
    %v2941 = vadd.f32 %v2768, %v2940
    %v2942 = vpop.f32.mrb[0].mxu0
    %v2943 = vadd.f32 %v2770, %v2942
    %v2944 = vpop.f32.mrb[0].mxu0
    %v2945 = vadd.f32 %v2772, %v2944
    %v2946 = vpop.f32.mrb[0].mxu0
    %v2947 = vadd.f32 %v2774, %v2946
    %2948 = vmatprep.mubr.bf16.mxu0 0
    %2949 = vmatmul.mubr.bf16.gmra.mrb[0].mxu0 %v2097
    %v2950 = vpop.f32.mrb[0].mxu0
    %v2951 = vadd.f32 %v2778, %v2950
    %v2952 = vpop.f32.mrb[0].mxu0
    %v2953 = vadd.f32 %v2780, %v2952
    %v2954 = vpop.f32.mrb[0].mxu0
    %v2955 = vadd.f32 %v2782, %v2954
    %v2956 = vpop.f32.mrb[0].mxu0
    %v2957 = vadd.f32 %v2784, %v2956
    %2958 = vmatprep.mubr.bf16.mxu0 0
    %2959 = vmatmul.mubr.bf16.gmra.mrb[0].mxu0 %v2100
    %v2960 = vpop.f32.mrb[0].mxu0
    %v2961 = vadd.f32 %v2788, %v2960
    %v2962 = vpop.f32.mrb[0].mxu0
    %v2963 = vadd.f32 %v2790, %v2962
    %v2964 = vpop.f32.mrb[0].mxu0
    %v2965 = vadd.f32 %v2792, %v2964
    %v2966 = vpop.f32.mrb[0].mxu0
    %v2967 = vadd.f32 %v2794, %v2966
    %2968 = vmatprep.mubr.bf16.mxu0 0
    %2969 = vmatmul.mubr.bf16.gmra.mrb[0].mxu0 %v2103
    %v2970 = vpop.f32.mrb[0].mxu0
    %v2971 = vadd.f32 %v2798, %v2970
    %v2972 = vpop.f32.mrb[0].mxu0
    %v2973 = vadd.f32 %v2800, %v2972
    %v2974 = vpop.f32.mrb[0].mxu0
    %v2975 = vadd.f32 %v2802, %v2974
    %v2976 = vpop.f32.mrb[0].mxu0
    %v2977 = vadd.f32 %v2804, %v2976
    %2978 = vmatprep.mubr.bf16.mxu0 0
    %2979 = vmatmul.mubr.bf16.gmra.mrb[0].mxu0 %v2106
    %v2980 = vpop.f32.mrb[0].mxu0
    %v2981 = vadd.f32 %v2808, %v2980
    %v2982 = vpop.f32.mrb[0].mxu0
    %v2983 = vadd.f32 %v2810, %v2982
    %v2984 = vpop.f32.mrb[0].mxu0
    %v2985 = vadd.f32 %v2812, %v2984
    %v2986 = vpop.f32.mrb[0].mxu0
    %v2987 = vadd.f32 %v2814, %v2986
    %2988 = vmatprep.mubr.bf16.mxu0 0
    %2989 = vmatmul.mubr.bf16.gmra.mrb[0].mxu0 %v2109
    %v2990 = vpop.f32.mrb[0].mxu0
    %v2991 = vadd.f32 %v2818, %v2990
    %v2992 = vpop.f32.mrb[0].mxu0
    %v2993 = vadd.f32 %v2820, %v2992
    %v2994 = vpop.f32.mrb[0].mxu0
    %v2995 = vadd.f32 %v2822, %v2994
    %v2996 = vpop.f32.mrb[0].mxu0
    %v2997 = vadd.f32 %v2824, %v2996
    %2998 = vmatprep.mubr.bf16.mxu0 0
    %2999 = vmatmul.mubr.bf16.gmra.mrb[0].mxu0 %v2112
    %v3000 = vpop.f32.mrb[0].mxu0
    %v3001 = vadd.f32 %v2828, %v3000
    %v3002 = vpop.f32.mrb[0].mxu0
    %v3003 = vadd.f32 %v2830, %v3002
    %v3004 = vpop.f32.mrb[0].mxu0
    %v3005 = vadd.f32 %v2832, %v3004
    %v3006 = vpop.f32.mrb[0].mxu0
    %v3007 = vadd.f32 %v2834, %v3006
    %3008 = vmatprep.mubr.bf16.mxu0 0
    %3009 = vmatmul.mubr.bf16.gmra.mrb[0].mxu0 %v2115
    %v3010 = vpop.f32.mrb[0].mxu0
    %v3011 = vadd.f32 %v2838, %v3010
    %v3012 = vpop.f32.mrb[0].mxu0
    %v3013 = vadd.f32 %v2840, %v3012
    %v3014 = vpop.f32.mrb[0].mxu0
    %v3015 = vadd.f32 %v2842, %v3014
    %v3016 = vpop.f32.mrb[0].mxu0
    %v3017 = vadd.f32 %v2844, %v3016
    %3018 = vmatprep.mubr.bf16.mxu0 0
    %3019 = vmatmul.mubr.bf16.gmra.mrb[0].mxu0 %v2118
    %v3020 = vpop.f32.mrb[0].mxu0
    %v3021 = vadd.f32 %v2848, %v3020
    %v3022 = vpop.f32.mrb[0].mxu0
    %v3023 = vadd.f32 %v2850, %v3022
    %v3024 = vpop.f32.mrb[0].mxu0
    %v3025 = vadd.f32 %v2852, %v3024
    %v3026 = vpop.f32.mrb[0].mxu0
    %v3027 = vadd.f32 %v2854, %v3026
    %3028 = vmatprep.mubr.bf16.mxu0 0
    %3029 = vmatmul.mubr.bf16.gmra.mrb[0].mxu0 %v2121
    %v3030 = vpop.f32.mrb[0].mxu0
    %v3031 = vadd.f32 %v2858, %v3030
    %v3032 = vpop.f32.mrb[0].mxu0
    %v3033 = vadd.f32 %v2860, %v3032
    %v3034 = vpop.f32.mrb[0].mxu0
    %v3035 = vadd.f32 %v2862, %v3034
    %v3036 = vpop.f32.mrb[0].mxu0
    %v3037 = vadd.f32 %v2864, %v3036
    %3038 = vdwg.mxu0
    %v3039 = vmax.f32 %v2338, %v2901
    %v3040 = vmax.f32 %v2340, %v2903
    %v3041 = vmax.f32 %v2342, %v2905
    %v3042 = vmax.f32 %v2344, %v2907
    %v3043 = vmax.f32 %v2348, %v2911
    %v3044 = vmax.f32 %v2350, %v2913
    %v3045 = vmax.f32 %v2352, %v2915
    %v3046 = vmax.f32 %v2354, %v2917
    %v3047 = vmax.f32 %v2358, %v2921
    %v3048 = vmax.f32 %v2360, %v2923
    %v3049 = vmax.f32 %v2362, %v2925
    %v3050 = vmax.f32 %v2364, %v2927
    %v3051 = vmax.f32 %v2368, %v2931
    %v3052 = vmax.f32 %v2370, %v2933
    %v3053 = vmax.f32 %v2372, %v2935
    %v3054 = vmax.f32 %v2374, %v2937
    %v3055 = vmax.f32 %v2378, %v2941
    %v3056 = vmax.f32 %v2380, %v2943
    %v3057 = vmax.f32 %v2382, %v2945
    %v3058 = vmax.f32 %v2384, %v2947
    %v3059 = vmax.f32 %v2388, %v2951
    %v3060 = vmax.f32 %v2390, %v2953
    %v3061 = vmax.f32 %v2392, %v2955
    %v3062 = vmax.f32 %v2394, %v2957
    %v3063 = vmax.f32 %v2398, %v2961
    %v3064 = vmax.f32 %v2400, %v2963
    %v3065 = vmax.f32 %v2402, %v2965
    %v3066 = vmax.f32 %v2404, %v2967
    %v3067 = vmax.f32 %v2408, %v2971
    %v3068 = vmax.f32 %v2410, %v2973
    %v3069 = vmax.f32 %v2412, %v2975
    %v3070 = vmax.f32 %v2414, %v2977
    %v3071 = vmax.f32 %v2418, %v2981
    %v3072 = vmax.f32 %v2420, %v2983
    %v3073 = vmax.f32 %v2422, %v2985
    %v3074 = vmax.f32 %v2424, %v2987
    %v3075 = vmax.f32 %v2428, %v2991
    %v3076 = vmax.f32 %v2430, %v2993
    %v3077 = vmax.f32 %v2432, %v2995
    %v3078 = vmax.f32 %v2434, %v2997
    %v3079 = vmax.f32 %v2438, %v3001
    %v3080 = vmax.f32 %v2440, %v3003
    %v3081 = vmax.f32 %v2442, %v3005
    %v3082 = vmax.f32 %v2444, %v3007
    %v3083 = vmax.f32 %v2448, %v3011
    %v3084 = vmax.f32 %v2450, %v3013
    %v3085 = vmax.f32 %v2452, %v3015
    %v3086 = vmax.f32 %v2454, %v3017
    %v3087 = vmax.f32 %v2458, %v3021
    %v3088 = vmax.f32 %v2460, %v3023
    %v3089 = vmax.f32 %v2462, %v3025
    %v3090 = vmax.f32 %v2464, %v3027
    %v3091 = vmax.f32 %v2468, %v3031
    %v3092 = vmax.f32 %v2470, %v3033
    %v3093 = vmax.f32 %v2472, %v3035
    %v3094 = vmax.f32 %v2474, %v3037
    %v3095 = vpack.c.bf16 %v3041, %v3039
    %v3096 = vpack.c.bf16 %v3042, %v3040
    %v3097 = vpack.c.bf16 %v3045, %v3043
    %v3098 = vpack.c.bf16 %v3046, %v3044
    %v3099 = vpack.c.bf16 %v3049, %v3047
    %v3100 = vpack.c.bf16 %v3050, %v3048
    %v3101 = vpack.c.bf16 %v3053, %v3051
    %v3102 = vpack.c.bf16 %v3054, %v3052
    %v3103 = vpack.c.bf16 %v3057, %v3055
    %v3104 = vpack.c.bf16 %v3058, %v3056
    %v3105 = vpack.c.bf16 %v3061, %v3059
    %v3106 = vpack.c.bf16 %v3062, %v3060
    %v3107 = vpack.c.bf16 %v3065, %v3063
    %v3108 = vpack.c.bf16 %v3066, %v3064
    %v3109 = vpack.c.bf16 %v3069, %v3067
    %v3110 = vpack.c.bf16 %v3070, %v3068
    %v3111 = vpack.c.bf16 %v3073, %v3071
    %v3112 = vpack.c.bf16 %v3074, %v3072
    %v3113 = vpack.c.bf16 %v3077, %v3075
    %v3114 = vpack.c.bf16 %v3078, %v3076
    %v3115 = vpack.c.bf16 %v3081, %v3079
    %v3116 = vpack.c.bf16 %v3082, %v3080
    %v3117 = vpack.c.bf16 %v3085, %v3083
    %v3118 = vpack.c.bf16 %v3086, %v3084
    %v3119 = vpack.c.bf16 %v3089, %v3087
    %v3120 = vpack.c.bf16 %v3090, %v3088
    %v3121 = vpack.c.bf16 %v3093, %v3091
    %v3122 = vpack.c.bf16 %v3094, %v3092
    %3151 = vrot.lane.b32.xlu0 %v3095, 12
    %v3152 = vpop.permute.xlu0 %3151
    %3153 = vrot.lane.b32.xlu0 %v3096, 12
    %v3154 = vpop.permute.xlu0 %3153
    %3155 = vrot.lane.b32.xlu0 %v3097, 12
    %v3156 = vpop.permute.xlu0 %3155
    %3157 = vrot.lane.b32.xlu0 %v3098, 12
    %v3158 = vpop.permute.xlu0 %3157
    %3159 = vrot.lane.b32.xlu0 %v3099, 12
    %v3160 = vpop.permute.xlu0 %3159
    %3161 = vrot.lane.b32.xlu0 %v3100, 12
    %v3162 = vpop.permute.xlu0 %3161
    %3163 = vrot.lane.b32.xlu0 %v3101, 12
    %v3164 = vpop.permute.xlu0 %3163
    %3165 = vrot.lane.b32.xlu0 %v3102, 12
    %v3166 = vpop.permute.xlu0 %3165
    %3167 = vrot.lane.b32.xlu0 %v3103, 12
    %v3168 = vpop.permute.xlu0 %3167
    %3169 = vrot.lane.b32.xlu0 %v3104, 12
    %v3170 = vpop.permute.xlu0 %3169
    %3171 = vrot.lane.b32.xlu0 %v3105, 12
    %v3172 = vpop.permute.xlu0 %3171
    %3173 = vrot.lane.b32.xlu0 %v3106, 12
    %v3174 = vpop.permute.xlu0 %3173
    %3175 = vrot.lane.b32.xlu0 %v3107, 12
    %v3176 = vpop.permute.xlu0 %3175
    %3177 = vrot.lane.b32.xlu0 %v3108, 12
    %v3178 = vpop.permute.xlu0 %3177
    %3179 = vrot.lane.b32.xlu0 %v3109, 12
    %v3180 = vpop.permute.xlu0 %3179
    %3181 = vrot.lane.b32.xlu0 %v3110, 12
    %v3182 = vpop.permute.xlu0 %3181
    %3183 = vrot.lane.b32.xlu0 %v3111, 12
    %v3184 = vpop.permute.xlu0 %3183
    %3185 = vrot.lane.b32.xlu0 %v3112, 12
    %v3186 = vpop.permute.xlu0 %3185
    %3187 = vrot.lane.b32.xlu0 %v3113, 12
    %v3188 = vpop.permute.xlu0 %3187
    %3189 = vrot.lane.b32.xlu0 %v3114, 12
    %v3190 = vpop.permute.xlu0 %3189
    %3191 = vrot.lane.b32.xlu0 %v3115, 12
    %v3192 = vpop.permute.xlu0 %3191
    %3193 = vrot.lane.b32.xlu0 %v3116, 12
    %v3194 = vpop.permute.xlu0 %3193
    %3195 = vrot.lane.b32.xlu0 %v3117, 12
    %v3196 = vpop.permute.xlu0 %3195
    %3197 = vrot.lane.b32.xlu0 %v3118, 12
    %v3198 = vpop.permute.xlu0 %3197
    %3199 = vrot.lane.b32.xlu0 %v3119, 12
    %v3200 = vpop.permute.xlu0 %3199
    %3201 = vrot.lane.b32.xlu0 %v3120, 12
    %v3202 = vpop.permute.xlu0 %3201
    %3203 = vrot.lane.b32.xlu0 %v3121, 12
    %v3204 = vpop.permute.xlu0 %3203
    %3205 = vrot.lane.b32.xlu0 %v3122, 12
    %v3206 = vpop.permute.xlu0 %3205
    %vm3207 = vcmask 97280
    %v3208 = vsel %vm3207, %v3152, %v3154
    %v3209 = vsel %vm3207, %v3156, %v3158
    %v3210 = vsel %vm3207, %v3160, %v3162
    %v3211 = vsel %vm3207, %v3164, %v3166
    %v3212 = vsel %vm3207, %v3168, %v3170
    %v3213 = vsel %vm3207, %v3172, %v3174
    %v3214 = vsel %vm3207, %v3176, %v3178
    %v3215 = vsel %vm3207, %v3180, %v3182
    %v3216 = vsel %vm3207, %v3184, %v3186
    %v3217 = vsel %vm3207, %v3188, %v3190
    %v3218 = vsel %vm3207, %v3192, %v3194
    %v3219 = vsel %vm3207, %v3196, %v3198
    %v3220 = vsel %vm3207, %v3200, %v3202
    %v3221 = vsel %vm3207, %v3204, %v3206
    %3223 = vrot.lane.b32.xlu0 %v3097, 24
    %v3224 = vpop.permute.xlu0 %3223
    %3225 = vrot.lane.b32.xlu0 %v3098, 24
    %v3226 = vpop.permute.xlu0 %3225
    %3227 = vrot.lane.b32.xlu0 %v3099, 24
    %v3228 = vpop.permute.xlu0 %3227
    %3229 = vrot.lane.b32.xlu0 %v3100, 24
    %v3230 = vpop.permute.xlu0 %3229
    %3231 = vrot.lane.b32.xlu0 %v3101, 24
    %v3232 = vpop.permute.xlu0 %3231
    %3233 = vrot.lane.b32.xlu0 %v3102, 24
    %v3234 = vpop.permute.xlu0 %3233
    %3235 = vrot.lane.b32.xlu0 %v3103, 24
    %v3236 = vpop.permute.xlu0 %3235
    %3237 = vrot.lane.b32.xlu0 %v3104, 24
    %v3238 = vpop.permute.xlu0 %3237
    %3239 = vrot.lane.b32.xlu0 %v3105, 24
    %v3240 = vpop.permute.xlu0 %3239
    %3241 = vrot.lane.b32.xlu0 %v3106, 24
    %v3242 = vpop.permute.xlu0 %3241
    %3243 = vrot.lane.b32.xlu0 %v3107, 24
    %v3244 = vpop.permute.xlu0 %3243
    %3245 = vrot.lane.b32.xlu0 %v3108, 24
    %v3246 = vpop.permute.xlu0 %3245
    %3247 = vrot.lane.b32.xlu0 %v3109, 24
    %v3248 = vpop.permute.xlu0 %3247
    %3249 = vrot.lane.b32.xlu0 %v3110, 24
    %v3250 = vpop.permute.xlu0 %3249
    %3251 = vrot.lane.b32.xlu0 %v3111, 24
    %v3252 = vpop.permute.xlu0 %3251
    %3253 = vrot.lane.b32.xlu0 %v3112, 24
    %v3254 = vpop.permute.xlu0 %3253
    %3255 = vrot.lane.b32.xlu0 %v3113, 24
    %v3256 = vpop.permute.xlu0 %3255
    %3257 = vrot.lane.b32.xlu0 %v3114, 24
    %v3258 = vpop.permute.xlu0 %3257
    %3259 = vrot.lane.b32.xlu0 %v3115, 24
    %v3260 = vpop.permute.xlu0 %3259
    %3261 = vrot.lane.b32.xlu0 %v3116, 24
    %v3262 = vpop.permute.xlu0 %3261
    %3263 = vrot.lane.b32.xlu0 %v3117, 24
    %v3264 = vpop.permute.xlu0 %3263
    %3265 = vrot.lane.b32.xlu0 %v3118, 24
    %v3266 = vpop.permute.xlu0 %3265
    %3267 = vrot.lane.b32.xlu0 %v3119, 24
    %v3268 = vpop.permute.xlu0 %3267
    %3269 = vrot.lane.b32.xlu0 %v3120, 24
    %v3270 = vpop.permute.xlu0 %3269
    %3271 = vrot.lane.b32.xlu0 %v3121, 24
    %v3272 = vpop.permute.xlu0 %3271
    %3273 = vrot.lane.b32.xlu0 %v3122, 24
    %v3274 = vpop.permute.xlu0 %3273
    %3275 = vrot.lane.b32.xlu0 0, 24
    %v3276 = vpop.permute.xlu0 %3275
    %vm3277 = vcmask 195584
    %v3278 = vsel %vm3277, %v3224, %v3226
    %v3279 = vsel %vm3277, %v3228, %v3230
    %v3280 = vsel %vm3277, %v3232, %v3234
    %v3281 = vsel %vm3277, %v3236, %v3238
    %v3282 = vsel %vm3277, %v3240, %v3242
    %v3283 = vsel %vm3277, %v3244, %v3246
    %v3284 = vsel %vm3277, %v3248, %v3250
    %v3285 = vsel %vm3277, %v3252, %v3254
    %v3286 = vsel %vm3277, %v3256, %v3258
    %v3287 = vsel %vm3277, %v3260, %v3262
    %v3288 = vsel %vm3277, %v3264, %v3266
    %v3289 = vsel %vm3277, %v3268, %v3270
    %v3290 = vsel %vm3277, %v3272, %v3274
    %v3293 = vsel %vm939, 0, %v3152
    %v3297 = vsel %vm939, %v3096, %v3156
    %v3301 = vsel %vm939, %v3098, %v3160
    %v3305 = vsel %vm939, %v3100, %v3164
    %v3309 = vsel %vm939, %v3102, %v3168
    %v3313 = vsel %vm939, %v3104, %v3172
    %v3317 = vsel %vm939, %v3106, %v3176
    %v3321 = vsel %vm939, %v3108, %v3180
    %v3325 = vsel %vm939, %v3110, %v3184
    %v3329 = vsel %vm939, %v3112, %v3188
    %v3333 = vsel %vm939, %v3114, %v3192
    %v3337 = vsel %vm939, %v3116, %v3196
    %v3341 = vsel %vm939, %v3118, %v3200
    %v3345 = vsel %vm939, %v3120, %v3204
    %v3349 = vsel %vm2080, %v3208, %v3224
    %v3353 = vsel %vm2080, %v3209, %v3228
    %v3357 = vsel %vm2080, %v3210, %v3232
    %v3361 = vsel %vm2080, %v3211, %v3236
    %v3365 = vsel %vm2080, %v3212, %v3240
    %v3369 = vsel %vm2080, %v3213, %v3244
    %v3373 = vsel %vm2080, %v3214, %v3248
    %v3377 = vsel %vm2080, %v3215, %v3252
    %v3381 = vsel %vm2080, %v3216, %v3256
    %v3385 = vsel %vm2080, %v3217, %v3260
    %v3389 = vsel %vm2080, %v3218, %v3264
    %v3393 = vsel %vm2080, %v3219, %v3268
    %v3397 = vsel %vm2080, %v3220, %v3272
    %v3401 = vsel %vm2080, %v3221, %v3276
    %v3403 = vld [vmem:[%s4] sm:$0xff]
    %v3404 = vld [vmem:[%s4 + $0x8] sm:$0xf]
    %v3405 = vld [vmem:[%s4 + $0xc] sm:$0xff]
    %v3406 = vld [vmem:[%s4 + $0x14] sm:$0xf]
    %v3407 = vld [vmem:[%s4 + $0x18] sm:$0xff]
    %v3408 = vld [vmem:[%s4 + $0x20] sm:$0xf]
    %v3409 = vld [vmem:[%s4 + $0x24] sm:$0xff]
    %v3410 = vld [vmem:[%s4 + $0x2c] sm:$0xf]
    %v3411 = vld [vmem:[%s4 + $0x30] sm:$0xff]
    %v3412 = vld [vmem:[%s4 + $0x38] sm:$0xf]
    %v3413 = vld [vmem:[%s4 + $0x3c] sm:$0xff]
    %v3414 = vld [vmem:[%s4 + $0x44] sm:$0xf]
    %v3415 = vld [vmem:[%s4 + $0x48] sm:$0xff]
    %v3416 = vld [vmem:[%s4 + $0x50] sm:$0xf]
    %v3417 = vld [vmem:[%s4 + $0x54] sm:$0xff]
    %v3418 = vld [vmem:[%s4 + $0x5c] sm:$0xf]
    %v3419 = vld [vmem:[%s4 + $0x60] sm:$0xff]
    %v3420 = vld [vmem:[%s4 + $0x68] sm:$0xf]
    %v3421 = vld [vmem:[%s4 + $0x6c] sm:$0xff]
    %v3422 = vld [vmem:[%s4 + $0x74] sm:$0xf]
    %v3423 = vld [vmem:[%s4 + $0x78] sm:$0xff]
    %v3424 = vld [vmem:[%s4 + $0x80] sm:$0xf]
    %v3425 = vld [vmem:[%s4 + $0x84] sm:$0xff]
    %v3426 = vld [vmem:[%s4 + $0x8c] sm:$0xf]
    %v3427 = vld [vmem:[%s4 + $0x90] sm:$0xff]
    %v3428 = vld [vmem:[%s4 + $0x98] sm:$0xf]
    %v3429 = vld [vmem:[%s4 + $0x9c] sm:$0xff]
    %v3430 = vld [vmem:[%s4 + $0xa4] sm:$0xf]
    %v3431 = vld [vmem:[%s4 + $0xa8] sm:$0xff]
    %v3432 = vld [vmem:[%s4 + $0xb0] sm:$0xf]
    %v3433 = vld [vmem:[%s4 + $0xb4] sm:$0xff]
    %v3434 = vld [vmem:[%s4 + $0xbc] sm:$0xf]
    %v3435 = vld [vmem:[%s4 + $0xc0] sm:$0xff]
    %v3436 = vld [vmem:[%s4 + $0xc8] sm:$0xf]
    %v3437 = vld [vmem:[%s4 + $0xcc] sm:$0xff]
    %v3438 = vld [vmem:[%s4 + $0xd4] sm:$0xf]
    %v3439 = vld [vmem:[%s4 + $0xd8] sm:$0xff]
    %v3440 = vld [vmem:[%s4 + $0xe0] sm:$0xf]
    %v3441 = vld [vmem:[%s4 + $0xe4] sm:$0xff]
    %v3442 = vld [vmem:[%s4 + $0xec] sm:$0xf]
    %v3443 = vld [vmem:[%s4 + $0xf0] sm:$0xff]
    %v3444 = vld [vmem:[%s4 + $0xf8] sm:$0xf]
    %v3445 = vld [vmem:[%s4 + $0xfc] sm:$0xff]
    %v3446 = vld [vmem:[%s4 + $0x104] sm:$0xf]
    %v3447 = vld [vmem:[%s4 + $0x108] sm:$0xff]
    %v3448 = vld [vmem:[%s4 + $0x110] sm:$0xf]
    %v3449 = vld [vmem:[%s4 + $0x114] sm:$0xff]
    %v3450 = vld [vmem:[%s4 + $0x11c] sm:$0xf]
    %v3451 = vld [vmem:[%s4 + $0x120] sm:$0xff]
    %v3452 = vld [vmem:[%s4 + $0x128] sm:$0xf]
    %v3453 = vld [vmem:[%s4 + $0x12c] sm:$0xff]
    %v3454 = vld [vmem:[%s4 + $0x134] sm:$0xf]
    %v3455 = vld [vmem:[%s4 + $0x138] sm:$0xff]
    %v3456 = vld [vmem:[%s4 + $0x140] sm:$0xf]
    %v3457 = vld [vmem:[%s4 + $0x144] sm:$0xff]
    %v3458 = vld [vmem:[%s4 + $0x14c] sm:$0xf]
    %v3459 = vld [vmem:[%s4 + $0x150] sm:$0xff]
    %v3460 = vld [vmem:[%s4 + $0x158] sm:$0xf]
    %v3461 = vld [vmem:[%s4 + $0x15c] sm:$0xff]
    %v3462 = vld [vmem:[%s4 + $0x164] sm:$0xf]
    %v3463 = vld [vmem:[%s4 + $0x168] sm:$0xff]
    %v3464 = vld [vmem:[%s4 + $0x170] sm:$0xf]
    %v3465 = vld [vmem:[%s4 + $0x174] sm:$0xff]
    %v3466 = vld [vmem:[%s4 + $0x17c] sm:$0xf]
    %v3467 = vld [vmem:[%s4 + $0x180] sm:$0xff]
    %v3468 = vld [vmem:[%s4 + $0x188] sm:$0xf]
    %v3469 = vld [vmem:[%s4 + $0x18c] sm:$0xff]
    %v3470 = vld [vmem:[%s4 + $0x194] sm:$0xf]
    %v3471 = vld [vmem:[%s4 + $0x198] sm:$0xff]
    %v3472 = vld [vmem:[%s4 + $0x1a0] sm:$0xf]
    %v3473 = vld [vmem:[%s4 + $0x1a4] sm:$0xff]
    %v3474 = vld [vmem:[%s4 + $0x1ac] sm:$0xf]
    %v3475 = vld [vmem:[%s4 + $0x1b0] sm:$0xff]
    %v3476 = vld [vmem:[%s4 + $0x1b8] sm:$0xf]
    %v3477 = vld [vmem:[%s4 + $0x1bc] sm:$0xff]
    %v3478 = vld [vmem:[%s4 + $0x1c4] sm:$0xf]
    %v3479 = vld [vmem:[%s4 + $0x1c8] sm:$0xff]
    %v3480 = vld [vmem:[%s4 + $0x1d0] sm:$0xf]
    %v3481 = vld [vmem:[%s4 + $0x1d4] sm:$0xff]
    %v3482 = vld [vmem:[%s4 + $0x1dc] sm:$0xf]
    %v3483 = vld [vmem:[%s4 + $0x1e0] sm:$0xff]
    %v3484 = vld [vmem:[%s4 + $0x1e8] sm:$0xf]
    %v3485 = vld [vmem:[%s4 + $0x1ec] sm:$0xff]
    %v3486 = vld [vmem:[%s4 + $0x1f4] sm:$0xf]
    %v3487 = vld [vmem:[%s4 + $0x1f8] sm:$0xff]
    %v3488 = vld [vmem:[%s4 + $0x200] sm:$0xf]
    %v3489 = vld [vmem:[%s4 + $0x204] sm:$0xff]
    %v3490 = vld [vmem:[%s4 + $0x20c] sm:$0xf]
    %v3491 = vld [vmem:[%s4 + $0x210] sm:$0xff]
    %v3492 = vld [vmem:[%s4 + $0x218] sm:$0xf]
    %v3493 = vld [vmem:[%s4 + $0x21c] sm:$0xff]
    %v3494 = vld [vmem:[%s4 + $0x224] sm:$0xf]
    %v3495 = vld [vmem:[%s4 + $0x228] sm:$0xff]
    %v3496 = vld [vmem:[%s4 + $0x230] sm:$0xf]
    %v3497 = vld [vmem:[%s4 + $0x234] sm:$0xff]
    %v3498 = vld [vmem:[%s4 + $0x23c] sm:$0xf]
    %v3499 = vld [vmem:[%s4 + $0x240] sm:$0xff]
    %v3500 = vld [vmem:[%s4 + $0x248] sm:$0xf]
    %v3501 = vld [vmem:[%s4 + $0x24c] sm:$0xff]
    %v3502 = vld [vmem:[%s4 + $0x254] sm:$0xf]
    %v3503 = vld [vmem:[%s4 + $0x258] sm:$0xff]
    %v3504 = vld [vmem:[%s4 + $0x260] sm:$0xf]
    %v3505 = vld [vmem:[%s4 + $0x264] sm:$0xff]
    %v3506 = vld [vmem:[%s4 + $0x26c] sm:$0xf]
    %v3507 = vld [vmem:[%s4 + $0x270] sm:$0x33]
    %v3508 = vld [vmem:[%s4 + $0x278] sm:$0x3]
    %v3509 = vld [vmem:[#allocation6] sm:$0x7]
    %v3511 = vlaneseq
    %v3512 = vshrl.u32 %v3511, 7
    %v3513 = vsub.s32 0, %v3512
    %v3514 = vrot.slane %v3509, %v3513
    %v3515 = vlaneseq
    %v3516 = vshrl.u32 %v3515, 7
    %v3517 = vsub.s32 1, %v3516
    %v3518 = vrot.slane %v3509, %v3517
    %v3519 = vlaneseq
    %v3520 = vshrl.u32 %v3519, 7
    %v3521 = vsub.s32 2, %v3520
    %v3522 = vrot.slane %v3509, %v3521
    %v3632 = vunpack.c.l.b16 %v3403
    %v3633 = vunpack.c.h.b16 %v3403
    %v3634 = vunpack.c.l.b16 %v3404
    %v3635 = vunpack.c.l.b16 %v3405
    %v3636 = vunpack.c.h.b16 %v3405
    %v3637 = vunpack.c.l.b16 %v3406
    %v3638 = vunpack.c.l.b16 %v3407
    %v3639 = vunpack.c.h.b16 %v3407
    %v3640 = vunpack.c.l.b16 %v3408
    %v3641 = vunpack.c.l.b16 %v3409
    %v3642 = vunpack.c.h.b16 %v3409
    %v3643 = vunpack.c.l.b16 %v3410
    %v3644 = vunpack.c.l.b16 %v3411
    %v3645 = vunpack.c.h.b16 %v3411
    %v3646 = vunpack.c.l.b16 %v3412
    %v3647 = vunpack.c.l.b16 %v3413
    %v3648 = vunpack.c.h.b16 %v3413
    %v3649 = vunpack.c.l.b16 %v3414
    %v3650 = vunpack.c.l.b16 %v3415
    %v3651 = vunpack.c.h.b16 %v3415
    %v3652 = vunpack.c.l.b16 %v3416
    %v3653 = vunpack.c.l.b16 %v3417
    %v3654 = vunpack.c.h.b16 %v3417
    %v3655 = vunpack.c.l.b16 %v3418
    %v3656 = vunpack.c.l.b16 %v3419
    %v3657 = vunpack.c.h.b16 %v3419
    %v3658 = vunpack.c.l.b16 %v3420
    %v3659 = vunpack.c.l.b16 %v3421
    %v3660 = vunpack.c.h.b16 %v3421
    %v3661 = vunpack.c.l.b16 %v3422
    %v3662 = vunpack.c.l.b16 %v3423
    %v3663 = vunpack.c.h.b16 %v3423
    %v3664 = vunpack.c.l.b16 %v3424
    %v3665 = vunpack.c.l.b16 %v3425
    %v3666 = vunpack.c.h.b16 %v3425
    %v3667 = vunpack.c.l.b16 %v3426
    %v3668 = vunpack.c.l.b16 %v3427
    %v3669 = vunpack.c.h.b16 %v3427
    %v3670 = vunpack.c.l.b16 %v3428
    %v3671 = vunpack.c.l.b16 %v3429
    %v3672 = vunpack.c.h.b16 %v3429
    %v3673 = vunpack.c.l.b16 %v3430
    %v3674 = vunpack.c.l.b16 %v3431
    %v3675 = vunpack.c.h.b16 %v3431
    %v3676 = vunpack.c.l.b16 %v3432
    %v3677 = vunpack.c.l.b16 %v3433
    %v3678 = vunpack.c.h.b16 %v3433
    %v3679 = vunpack.c.l.b16 %v3434
    %v3680 = vunpack.c.l.b16 %v3435
    %v3681 = vunpack.c.h.b16 %v3435
    %v3682 = vunpack.c.l.b16 %v3436
    %v3683 = vunpack.c.l.b16 %v3437
    %v3684 = vunpack.c.h.b16 %v3437
    %v3685 = vunpack.c.l.b16 %v3438
    %v3686 = vunpack.c.l.b16 %v3439
    %v3687 = vunpack.c.h.b16 %v3439
    %v3688 = vunpack.c.l.b16 %v3440
    %v3689 = vunpack.c.l.b16 %v3441
    %v3690 = vunpack.c.h.b16 %v3441
    %v3691 = vunpack.c.l.b16 %v3442
    %v3692 = vunpack.c.l.b16 %v3443
    %v3693 = vunpack.c.h.b16 %v3443
    %v3694 = vunpack.c.l.b16 %v3444
    %v3695 = vunpack.c.l.b16 %v3445
    %v3696 = vunpack.c.h.b16 %v3445
    %v3697 = vunpack.c.l.b16 %v3446
    %v3698 = vunpack.c.l.b16 %v3447
    %v3699 = vunpack.c.h.b16 %v3447
    %v3700 = vunpack.c.l.b16 %v3448
    %v3701 = vunpack.c.l.b16 %v3449
    %v3702 = vunpack.c.h.b16 %v3449
    %v3703 = vunpack.c.l.b16 %v3450
    %v3704 = vunpack.c.l.b16 %v3451
    %v3705 = vunpack.c.h.b16 %v3451
    %v3706 = vunpack.c.l.b16 %v3452
    %v3707 = vunpack.c.l.b16 %v3453
    %v3708 = vunpack.c.h.b16 %v3453
    %v3709 = vunpack.c.l.b16 %v3454
    %v3710 = vunpack.c.l.b16 %v3455
    %v3711 = vunpack.c.h.b16 %v3455
    %v3712 = vunpack.c.l.b16 %v3456
    %v3713 = vunpack.c.l.b16 %v3457
    %v3714 = vunpack.c.h.b16 %v3457
    %v3715 = vunpack.c.l.b16 %v3458
    %v3716 = vunpack.c.l.b16 %v3459
    %v3717 = vunpack.c.h.b16 %v3459
    %v3718 = vunpack.c.l.b16 %v3460
    %v3719 = vunpack.c.l.b16 %v3461
    %v3720 = vunpack.c.h.b16 %v3461
    %v3721 = vunpack.c.l.b16 %v3462
    %v3722 = vunpack.c.l.b16 %v3463
    %v3723 = vunpack.c.h.b16 %v3463
    %v3724 = vunpack.c.l.b16 %v3464
    %v3725 = vunpack.c.l.b16 %v3465
    %v3726 = vunpack.c.h.b16 %v3465
    %v3727 = vunpack.c.l.b16 %v3466
    %v3728 = vunpack.c.l.b16 %v3467
    %v3729 = vunpack.c.h.b16 %v3467
    %v3730 = vunpack.c.l.b16 %v3468
    %v3731 = vunpack.c.l.b16 %v3469
    %v3732 = vunpack.c.h.b16 %v3469
    %v3733 = vunpack.c.l.b16 %v3470
    %v3734 = vunpack.c.l.b16 %v3471
    %v3735 = vunpack.c.h.b16 %v3471
    %v3736 = vunpack.c.l.b16 %v3472
    %v3737 = vunpack.c.l.b16 %v3473
    %v3738 = vunpack.c.h.b16 %v3473
    %v3739 = vunpack.c.l.b16 %v3474
    %v3740 = vunpack.c.l.b16 %v3475
    %v3741 = vunpack.c.h.b16 %v3475
    %v3742 = vunpack.c.l.b16 %v3476
    %v3743 = vunpack.c.l.b16 %v3477
    %v3744 = vunpack.c.h.b16 %v3477
    %v3745 = vunpack.c.l.b16 %v3478
    %v3746 = vunpack.c.l.b16 %v3479
    %v3747 = vunpack.c.h.b16 %v3479
    %v3748 = vunpack.c.l.b16 %v3480
    %v3749 = vunpack.c.l.b16 %v3481
    %v3750 = vunpack.c.h.b16 %v3481
    %v3751 = vunpack.c.l.b16 %v3482
    %v3752 = vunpack.c.l.b16 %v3483
    %v3753 = vunpack.c.h.b16 %v3483
    %v3754 = vunpack.c.l.b16 %v3484
    %v3755 = vunpack.c.l.b16 %v3485
    %v3756 = vunpack.c.h.b16 %v3485
    %v3757 = vunpack.c.l.b16 %v3486
    %v3758 = vunpack.c.l.b16 %v3487
    %v3759 = vunpack.c.h.b16 %v3487
    %v3760 = vunpack.c.l.b16 %v3488
    %v3761 = vunpack.c.l.b16 %v3489
    %v3762 = vunpack.c.h.b16 %v3489
    %v3763 = vunpack.c.l.b16 %v3490
    %v3764 = vunpack.c.l.b16 %v3491
    %v3765 = vunpack.c.h.b16 %v3491
    %v3766 = vunpack.c.l.b16 %v3492
    %v3767 = vunpack.c.l.b16 %v3493
    %v3768 = vunpack.c.h.b16 %v3493
    %v3769 = vunpack.c.l.b16 %v3494
    %v3770 = vunpack.c.l.b16 %v3495
    %v3771 = vunpack.c.h.b16 %v3495
    %v3772 = vunpack.c.l.b16 %v3496
    %v3773 = vunpack.c.l.b16 %v3497
    %v3774 = vunpack.c.h.b16 %v3497
    %v3775 = vunpack.c.l.b16 %v3498
    %v3776 = vunpack.c.l.b16 %v3499
    %v3777 = vunpack.c.h.b16 %v3499
    %v3778 = vunpack.c.l.b16 %v3500
    %v3779 = vunpack.c.l.b16 %v3501
    %v3780 = vunpack.c.h.b16 %v3501
    %v3781 = vunpack.c.l.b16 %v3502
    %v3782 = vunpack.c.l.b16 %v3503
    %v3783 = vunpack.c.h.b16 %v3503
    %v3784 = vunpack.c.l.b16 %v3504
    %v3785 = vunpack.c.l.b16 %v3505
    %v3786 = vunpack.c.h.b16 %v3505
    %v3787 = vunpack.c.l.b16 %v3506
    %v3788 = vunpack.c.l.b16 %v3507
    %v3789 = vunpack.c.h.b16 %v3507
    %v3790 = vunpack.c.l.b16 %v3508
    %v3791 = vpack.c.b16 %v3635, %v3632
    %v3792 = vpack.c.b16 %v3636, %v3633
    %v3793 = vpack.c.b16 %v3637, %v3634
    %v3794 = vpack.c.b16 %v3641, %v3638
    %v3795 = vpack.c.b16 %v3642, %v3639
    %v3796 = vpack.c.b16 %v3643, %v3640
    %v3797 = vpack.c.b16 %v3647, %v3644
    %v3798 = vpack.c.b16 %v3648, %v3645
    %v3799 = vpack.c.b16 %v3649, %v3646
    %v3800 = vpack.c.b16 %v3653, %v3650
    %v3801 = vpack.c.b16 %v3654, %v3651
    %v3802 = vpack.c.b16 %v3655, %v3652
    %v3803 = vpack.c.b16 %v3659, %v3656
    %v3804 = vpack.c.b16 %v3660, %v3657
    %v3805 = vpack.c.b16 %v3661, %v3658
    %v3806 = vpack.c.b16 %v3665, %v3662
    %v3807 = vpack.c.b16 %v3666, %v3663
    %v3808 = vpack.c.b16 %v3667, %v3664
    %v3809 = vpack.c.b16 %v3671, %v3668
    %v3810 = vpack.c.b16 %v3672, %v3669
    %v3811 = vpack.c.b16 %v3673, %v3670
    %v3812 = vpack.c.b16 %v3677, %v3674
    %v3813 = vpack.c.b16 %v3678, %v3675
    %v3814 = vpack.c.b16 %v3679, %v3676
    %v3815 = vpack.c.b16 %v3683, %v3680
    %v3816 = vpack.c.b16 %v3684, %v3681
    %v3817 = vpack.c.b16 %v3685, %v3682
    %v3818 = vpack.c.b16 %v3689, %v3686
    %v3819 = vpack.c.b16 %v3690, %v3687
    %v3820 = vpack.c.b16 %v3691, %v3688
    %v3821 = vpack.c.b16 %v3695, %v3692
    %v3822 = vpack.c.b16 %v3696, %v3693
    %v3823 = vpack.c.b16 %v3697, %v3694
    %v3824 = vpack.c.b16 %v3701, %v3698
    %v3825 = vpack.c.b16 %v3702, %v3699
    %v3826 = vpack.c.b16 %v3703, %v3700
    %v3827 = vpack.c.b16 %v3707, %v3704
    %v3828 = vpack.c.b16 %v3708, %v3705
    %v3829 = vpack.c.b16 %v3709, %v3706
    %v3830 = vpack.c.b16 %v3713, %v3710
    %v3831 = vpack.c.b16 %v3714, %v3711
    %v3832 = vpack.c.b16 %v3715, %v3712
    %v3833 = vpack.c.b16 %v3719, %v3716
    %v3834 = vpack.c.b16 %v3720, %v3717
    %v3835 = vpack.c.b16 %v3721, %v3718
    %v3836 = vpack.c.b16 %v3725, %v3722
    %v3837 = vpack.c.b16 %v3726, %v3723
    %v3838 = vpack.c.b16 %v3727, %v3724
    %v3839 = vpack.c.b16 %v3731, %v3728
    %v3840 = vpack.c.b16 %v3732, %v3729
    %v3841 = vpack.c.b16 %v3733, %v3730
    %v3842 = vpack.c.b16 %v3737, %v3734
    %v3843 = vpack.c.b16 %v3738, %v3735
    %v3844 = vpack.c.b16 %v3739, %v3736
    %v3845 = vpack.c.b16 %v3743, %v3740
    %v3846 = vpack.c.b16 %v3744, %v3741
    %v3847 = vpack.c.b16 %v3745, %v3742
    %v3848 = vpack.c.b16 %v3749, %v3746
    %v3849 = vpack.c.b16 %v3750, %v3747
    %v3850 = vpack.c.b16 %v3751, %v3748
    %v3851 = vpack.c.b16 %v3755, %v3752
    %v3852 = vpack.c.b16 %v3756, %v3753
    %v3853 = vpack.c.b16 %v3757, %v3754
    %v3854 = vpack.c.b16 %v3761, %v3758
    %v3855 = vpack.c.b16 %v3762, %v3759
    %v3856 = vpack.c.b16 %v3763, %v3760
    %v3857 = vpack.c.b16 %v3767, %v3764
    %v3858 = vpack.c.b16 %v3768, %v3765
    %v3859 = vpack.c.b16 %v3769, %v3766
    %v3860 = vpack.c.b16 %v3773, %v3770
    %v3861 = vpack.c.b16 %v3774, %v3771
    %v3862 = vpack.c.b16 %v3775, %v3772
    %v3863 = vpack.c.b16 %v3779, %v3776
    %v3864 = vpack.c.b16 %v3780, %v3777
    %v3865 = vpack.c.b16 %v3781, %v3778
    %v3866 = vpack.c.b16 %v3785, %v3782
    %v3867 = vpack.c.b16 %v3786, %v3783
    %v3868 = vpack.c.b16 %v3787, %v3784
    %v3869 = vpack.c.b16 %v3788, %v3788
    %v3870 = vpack.c.b16 %v3789, %v3789
    %v3871 = vpack.c.b16 %v3790, %v3790
    %vm3950 = vcmask 293888
    %v3952 = vsel %vm3950, %v3278, 0
    %v3955 = vsel %vm3950, %v3279, 0
    %v3958 = vsel %vm3950, %v3280, 0
    %v3961 = vsel %vm3950, %v3281, 0
    %v3964 = vsel %vm3950, %v3282, 0
    %v3967 = vsel %vm3950, %v3283, 0
    %v3970 = vsel %vm3950, %v3284, 0
    %v3973 = vsel %vm3950, %v3285, 0
    %v3976 = vsel %vm3950, %v3286, 0
    %v3979 = vsel %vm3950, %v3287, 0
    %v3982 = vsel %vm3950, %v3288, 0
    %v3985 = vsel %vm3950, %v3289, 0
    %v3988 = vsel %vm3950, %v3290, 0
    %v3990 = vsel %vm3950, %v3276, 0
    %vm3992 = vcmask 1041408
    %v3994 = vsel %vm3992, %v3869, 0
    %v3997 = vsel %vm3992, %v3870, 0
    %v4000 = vsel %vm3992, %v3871, 0
    %4002 = vmatprep.subr.bf16.mxu0 %v3792
    %4003 = vmatpush1.bf16.msra.mxu0 %v3791
    %4004 = vmatprep.subr.bf16.mxu0 %v3795
    %4005 = vmatpush1.bf16.msra.mxu0 %v3794
    %4006 = vmatprep.subr.bf16.mxu0 %v3798
    %4007 = vmatpush1.bf16.msra.mxu0 %v3797
    %4008 = vmatprep.subr.bf16.mxu0 %v3801
    %4009 = vmatpush1.bf16.msra.mxu0 %v3800
    %4010 = vmatprep.subr.bf16.mxu0 %v3804
    %4011 = vmatpush1.bf16.msra.mxu0 %v3803
    %4012 = vmatprep.subr.bf16.mxu0 %v3807
    %4013 = vmatpush1.bf16.msra.mxu0 %v3806
    %4014 = vmatprep.subr.bf16.mxu0 %v3810
    %4015 = vmatpush1.bf16.msra.mxu0 %v3809
    %4016 = vmatprep.subr.bf16.mxu0 %v3813
    %4017 = vmatpush1.bf16.msra.mxu0 %v3812
    %4018 = vmatprep.subr.bf16.mxu0 %v3816
    %4019 = vmatpush1.bf16.msra.mxu0 %v3815
    %4020 = vmatprep.subr.bf16.mxu0 %v3819
    %4021 = vmatpush1.bf16.msra.mxu0 %v3818
    %4022 = vmatprep.subr.bf16.mxu0 %v3822
    %4023 = vmatpush1.bf16.msra.mxu0 %v3821
    %4024 = vmatprep.subr.bf16.mxu0 %v3825
    %4025 = vmatpush1.bf16.msra.mxu0 %v3824
    %4026 = vmatprep.subr.bf16.mxu0 %v3828
    %4027 = vmatpush1.bf16.msra.mxu0 %v3827
    %4028 = vmatprep.subr.bf16.mxu0 %v3831
    %4029 = vmatpush1.bf16.msra.mxu0 %v3830
    %4030 = vmatprep.subr.bf16.mxu0 %v3834
    %4031 = vmatpush1.bf16.msra.mxu0 %v3833
    %4032 = vmatprep.subr.bf16.mxu0 %v3837
    %4033 = vmatpush1.bf16.msra.mxu0 %v3836
    %4034 = vmatprep.mubr.bf16.mxu0 %v3293
    %4035 = vmatmul.mubr.bf16.gmra.mrb[0].mxu0 0
    %v4036 = vpop.f32.mrb[0].mxu0
    %v4037 = vadd.f32 %v3514, %v4036
    %v4038 = vpop.f32.mrb[0].mxu0
    %v4039 = vadd.f32 %v3518, %v4038
    %v4040 = vpop.f32.mrb[0].mxu0
    %v4041 = vadd.f32 %v3514, %v4040
    %v4042 = vpop.f32.mrb[0].mxu0
    %v4043 = vadd.f32 %v3518, %v4042
    %4044 = vmatprep.mubr.bf16.mxu0 %v3297
    %4045 = vmatmul.mubr.bf16.gmra.mrb[0].mxu0 %v3095
    %v4046 = vpop.f32.mrb[0].mxu0
    %v4047 = vadd.f32 %v3514, %v4046
    %v4048 = vpop.f32.mrb[0].mxu0
    %v4049 = vadd.f32 %v3518, %v4048
    %v4050 = vpop.f32.mrb[0].mxu0
    %v4051 = vadd.f32 %v3514, %v4050
    %v4052 = vpop.f32.mrb[0].mxu0
    %v4053 = vadd.f32 %v3518, %v4052
    %4054 = vmatprep.mubr.bf16.mxu0 %v3301
    %4055 = vmatmul.mubr.bf16.gmra.mrb[0].mxu0 %v3097
    %v4056 = vpop.f32.mrb[0].mxu0
    %v4057 = vadd.f32 %v3514, %v4056
    %v4058 = vpop.f32.mrb[0].mxu0
    %v4059 = vadd.f32 %v3518, %v4058
    %v4060 = vpop.f32.mrb[0].mxu0
    %v4061 = vadd.f32 %v3514, %v4060
    %v4062 = vpop.f32.mrb[0].mxu0
    %v4063 = vadd.f32 %v3518, %v4062
    %4064 = vmatprep.mubr.bf16.mxu0 %v3305
    %4065 = vmatmul.mubr.bf16.gmra.mrb[0].mxu0 %v3099
    %v4066 = vpop.f32.mrb[0].mxu0
    %v4067 = vadd.f32 %v3514, %v4066
    %v4068 = vpop.f32.mrb[0].mxu0
    %v4069 = vadd.f32 %v3518, %v4068
    %v4070 = vpop.f32.mrb[0].mxu0
    %v4071 = vadd.f32 %v3514, %v4070
    %v4072 = vpop.f32.mrb[0].mxu0
    %v4073 = vadd.f32 %v3518, %v4072
    %4074 = vmatprep.mubr.bf16.mxu0 %v3309
    %4075 = vmatmul.mubr.bf16.gmra.mrb[0].mxu0 %v3101
    %v4076 = vpop.f32.mrb[0].mxu0
    %v4077 = vadd.f32 %v3514, %v4076
    %v4078 = vpop.f32.mrb[0].mxu0
    %v4079 = vadd.f32 %v3518, %v4078
    %v4080 = vpop.f32.mrb[0].mxu0
    %v4081 = vadd.f32 %v3514, %v4080
    %v4082 = vpop.f32.mrb[0].mxu0
    %v4083 = vadd.f32 %v3518, %v4082
    %4084 = vmatprep.mubr.bf16.mxu0 %v3313
    %4085 = vmatmul.mubr.bf16.gmra.mrb[0].mxu0 %v3103
    %v4086 = vpop.f32.mrb[0].mxu0
    %v4087 = vadd.f32 %v3514, %v4086
    %v4088 = vpop.f32.mrb[0].mxu0
    %v4089 = vadd.f32 %v3518, %v4088
    %v4090 = vpop.f32.mrb[0].mxu0
    %v4091 = vadd.f32 %v3514, %v4090
    %v4092 = vpop.f32.mrb[0].mxu0
    %v4093 = vadd.f32 %v3518, %v4092
    %4094 = vmatprep.mubr.bf16.mxu0 %v3317
    %4095 = vmatmul.mubr.bf16.gmra.mrb[0].mxu0 %v3105
    %v4096 = vpop.f32.mrb[0].mxu0
    %v4097 = vadd.f32 %v3514, %v4096
    %v4098 = vpop.f32.mrb[0].mxu0
    %v4099 = vadd.f32 %v3518, %v4098
    %v4100 = vpop.f32.mrb[0].mxu0
    %v4101 = vadd.f32 %v3514, %v4100
    %v4102 = vpop.f32.mrb[0].mxu0
    %v4103 = vadd.f32 %v3518, %v4102
    %4104 = vmatprep.mubr.bf16.mxu0 %v3321
    %4105 = vmatmul.mubr.bf16.gmra.mrb[0].mxu0 %v3107
    %v4106 = vpop.f32.mrb[0].mxu0
    %v4107 = vadd.f32 %v3514, %v4106
    %v4108 = vpop.f32.mrb[0].mxu0
    %v4109 = vadd.f32 %v3518, %v4108
    %v4110 = vpop.f32.mrb[0].mxu0
    %v4111 = vadd.f32 %v3514, %v4110
    %v4112 = vpop.f32.mrb[0].mxu0
    %v4113 = vadd.f32 %v3518, %v4112
    %4114 = vmatprep.mubr.bf16.mxu0 %v3325
    %4115 = vmatmul.mubr.bf16.gmra.mrb[0].mxu0 %v3109
    %v4116 = vpop.f32.mrb[0].mxu0
    %v4117 = vadd.f32 %v3514, %v4116
    %v4118 = vpop.f32.mrb[0].mxu0
    %v4119 = vadd.f32 %v3518, %v4118
    %v4120 = vpop.f32.mrb[0].mxu0
    %v4121 = vadd.f32 %v3514, %v4120
    %v4122 = vpop.f32.mrb[0].mxu0
    %v4123 = vadd.f32 %v3518, %v4122
    %4124 = vmatprep.mubr.bf16.mxu0 %v3329
    %4125 = vmatmul.mubr.bf16.gmra.mrb[0].mxu0 %v3111
    %v4126 = vpop.f32.mrb[0].mxu0
    %v4127 = vadd.f32 %v3514, %v4126
    %v4128 = vpop.f32.mrb[0].mxu0
    %v4129 = vadd.f32 %v3518, %v4128
    %v4130 = vpop.f32.mrb[0].mxu0
    %v4131 = vadd.f32 %v3514, %v4130
    %v4132 = vpop.f32.mrb[0].mxu0
    %v4133 = vadd.f32 %v3518, %v4132
    %4134 = vmatprep.mubr.bf16.mxu0 %v3333
    %4135 = vmatmul.mubr.bf16.gmra.mrb[0].mxu0 %v3113
    %v4136 = vpop.f32.mrb[0].mxu0
    %v4137 = vadd.f32 %v3514, %v4136
    %v4138 = vpop.f32.mrb[0].mxu0
    %v4139 = vadd.f32 %v3518, %v4138
    %v4140 = vpop.f32.mrb[0].mxu0
    %v4141 = vadd.f32 %v3514, %v4140
    %v4142 = vpop.f32.mrb[0].mxu0
    %v4143 = vadd.f32 %v3518, %v4142
    %4144 = vmatprep.mubr.bf16.mxu0 %v3337
    %4145 = vmatmul.mubr.bf16.gmra.mrb[0].mxu0 %v3115
    %v4146 = vpop.f32.mrb[0].mxu0
    %v4147 = vadd.f32 %v3514, %v4146
    %v4148 = vpop.f32.mrb[0].mxu0
    %v4149 = vadd.f32 %v3518, %v4148
    %v4150 = vpop.f32.mrb[0].mxu0
    %v4151 = vadd.f32 %v3514, %v4150
    %v4152 = vpop.f32.mrb[0].mxu0
    %v4153 = vadd.f32 %v3518, %v4152
    %4154 = vmatprep.mubr.bf16.mxu0 %v3341
    %4155 = vmatmul.mubr.bf16.gmra.mrb[0].mxu0 %v3117
    %v4156 = vpop.f32.mrb[0].mxu0
    %v4157 = vadd.f32 %v3514, %v4156
    %v4158 = vpop.f32.mrb[0].mxu0
    %v4159 = vadd.f32 %v3518, %v4158
    %v4160 = vpop.f32.mrb[0].mxu0
    %v4161 = vadd.f32 %v3514, %v4160
    %v4162 = vpop.f32.mrb[0].mxu0
    %v4163 = vadd.f32 %v3518, %v4162
    %4164 = vmatprep.mubr.bf16.mxu0 %v3345
    %4165 = vmatmul.mubr.bf16.gmra.mrb[0].mxu0 %v3119
    %v4166 = vpop.f32.mrb[0].mxu0
    %v4167 = vadd.f32 %v3514, %v4166
    %v4168 = vpop.f32.mrb[0].mxu0
    %v4169 = vadd.f32 %v3518, %v4168
    %v4170 = vpop.f32.mrb[0].mxu0
    %v4171 = vadd.f32 %v3514, %v4170
    %v4172 = vpop.f32.mrb[0].mxu0
    %v4173 = vadd.f32 %v3518, %v4172
    %4174 = vdwg.mxu0
    %4175 = vmatprep.subr.bf16.mxu0 %v3840
    %4176 = vmatpush1.bf16.msra.mxu0 %v3839
    %4177 = vmatprep.subr.bf16.mxu0 %v3843
    %4178 = vmatpush1.bf16.msra.mxu0 %v3842
    %4179 = vmatprep.subr.bf16.mxu0 %v3846
    %4180 = vmatpush1.bf16.msra.mxu0 %v3845
    %4181 = vmatprep.subr.bf16.mxu0 %v3849
    %4182 = vmatpush1.bf16.msra.mxu0 %v3848
    %4183 = vmatprep.subr.bf16.mxu0 %v3852
    %4184 = vmatpush1.bf16.msra.mxu0 %v3851
    %4185 = vmatprep.subr.bf16.mxu0 %v3855
    %4186 = vmatpush1.bf16.msra.mxu0 %v3854
    %4187 = vmatprep.subr.bf16.mxu0 %v3858
    %4188 = vmatpush1.bf16.msra.mxu0 %v3857
    %4189 = vmatprep.subr.bf16.mxu0 %v3861
    %4190 = vmatpush1.bf16.msra.mxu0 %v3860
    %4191 = vmatprep.subr.bf16.mxu0 %v3864
    %4192 = vmatpush1.bf16.msra.mxu0 %v3863
    %4193 = vmatprep.subr.bf16.mxu0 %v3867
    %4194 = vmatpush1.bf16.msra.mxu0 %v3866
    %4195 = vmatprep.subr.bf16.mxu0 %v3997
    %4196 = vmatpush1.bf16.msra.mxu0 %v3994
    %4197 = vmatprep.subr.bf16.mxu0 0
    %4198 = vmatpush1.bf16.msra.mxu0 0
    %4199 = vmatprep.subr.bf16.mxu0 0
    %4200 = vmatpush1.bf16.msra.mxu0 0
    %4201 = vmatprep.subr.bf16.mxu0 0
    %4202 = vmatpush1.bf16.msra.mxu0 0
    %4203 = vmatprep.subr.bf16.mxu0 0
    %4204 = vmatpush1.bf16.msra.mxu0 0
    %4205 = vmatprep.subr.bf16.mxu0 0
    %4206 = vmatpush1.bf16.msra.mxu0 0
    %4207 = vmatprep.mubr.bf16.mxu0 %v3952
    %4208 = vmatmul.mubr.bf16.gmra.mrb[0].mxu0 %v3349
    %v4209 = vpop.f32.mrb[0].mxu0
    %v4210 = vadd.f32 %v4037, %v4209
    %v4211 = vpop.f32.mrb[0].mxu0
    %v4212 = vadd.f32 %v4039, %v4211
    %v4213 = vpop.f32.mrb[0].mxu0
    %v4214 = vadd.f32 %v4041, %v4213
    %v4215 = vpop.f32.mrb[0].mxu0
    %v4216 = vadd.f32 %v4043, %v4215
    %4217 = vmatprep.mubr.bf16.mxu0 %v3955
    %4218 = vmatmul.mubr.bf16.gmra.mrb[0].mxu0 %v3353
    %v4219 = vpop.f32.mrb[0].mxu0
    %v4220 = vadd.f32 %v4047, %v4219
    %v4221 = vpop.f32.mrb[0].mxu0
    %v4222 = vadd.f32 %v4049, %v4221
    %v4223 = vpop.f32.mrb[0].mxu0
    %v4224 = vadd.f32 %v4051, %v4223
    %v4225 = vpop.f32.mrb[0].mxu0
    %v4226 = vadd.f32 %v4053, %v4225
    %4227 = vmatprep.mubr.bf16.mxu0 %v3958
    %4228 = vmatmul.mubr.bf16.gmra.mrb[0].mxu0 %v3357
    %v4229 = vpop.f32.mrb[0].mxu0
    %v4230 = vadd.f32 %v4057, %v4229
    %v4231 = vpop.f32.mrb[0].mxu0
    %v4232 = vadd.f32 %v4059, %v4231
    %v4233 = vpop.f32.mrb[0].mxu0
    %v4234 = vadd.f32 %v4061, %v4233
    %v4235 = vpop.f32.mrb[0].mxu0
    %v4236 = vadd.f32 %v4063, %v4235
    %4237 = vmatprep.mubr.bf16.mxu0 %v3961
    %4238 = vmatmul.mubr.bf16.gmra.mrb[0].mxu0 %v3361
    %v4239 = vpop.f32.mrb[0].mxu0
    %v4240 = vadd.f32 %v4067, %v4239
    %v4241 = vpop.f32.mrb[0].mxu0
    %v4242 = vadd.f32 %v4069, %v4241
    %v4243 = vpop.f32.mrb[0].mxu0
    %v4244 = vadd.f32 %v4071, %v4243
    %v4245 = vpop.f32.mrb[0].mxu0
    %v4246 = vadd.f32 %v4073, %v4245
    %4247 = vmatprep.mubr.bf16.mxu0 %v3964
    %4248 = vmatmul.mubr.bf16.gmra.mrb[0].mxu0 %v3365
    %v4249 = vpop.f32.mrb[0].mxu0
    %v4250 = vadd.f32 %v4077, %v4249
    %v4251 = vpop.f32.mrb[0].mxu0
    %v4252 = vadd.f32 %v4079, %v4251
    %v4253 = vpop.f32.mrb[0].mxu0
    %v4254 = vadd.f32 %v4081, %v4253
    %v4255 = vpop.f32.mrb[0].mxu0
    %v4256 = vadd.f32 %v4083, %v4255
    %4257 = vmatprep.mubr.bf16.mxu0 %v3967
    %4258 = vmatmul.mubr.bf16.gmra.mrb[0].mxu0 %v3369
    %v4259 = vpop.f32.mrb[0].mxu0
    %v4260 = vadd.f32 %v4087, %v4259
    %v4261 = vpop.f32.mrb[0].mxu0
    %v4262 = vadd.f32 %v4089, %v4261
    %v4263 = vpop.f32.mrb[0].mxu0
    %v4264 = vadd.f32 %v4091, %v4263
    %v4265 = vpop.f32.mrb[0].mxu0
    %v4266 = vadd.f32 %v4093, %v4265
    %4267 = vmatprep.mubr.bf16.mxu0 %v3970
    %4268 = vmatmul.mubr.bf16.gmra.mrb[0].mxu0 %v3373
    %v4269 = vpop.f32.mrb[0].mxu0
    %v4270 = vadd.f32 %v4097, %v4269
    %v4271 = vpop.f32.mrb[0].mxu0
    %v4272 = vadd.f32 %v4099, %v4271
    %v4273 = vpop.f32.mrb[0].mxu0
    %v4274 = vadd.f32 %v4101, %v4273
    %v4275 = vpop.f32.mrb[0].mxu0
    %v4276 = vadd.f32 %v4103, %v4275
    %4277 = vmatprep.mubr.bf16.mxu0 %v3973
    %4278 = vmatmul.mubr.bf16.gmra.mrb[0].mxu0 %v3377
    %v4279 = vpop.f32.mrb[0].mxu0
    %v4280 = vadd.f32 %v4107, %v4279
    %v4281 = vpop.f32.mrb[0].mxu0
    %v4282 = vadd.f32 %v4109, %v4281
    %v4283 = vpop.f32.mrb[0].mxu0
    %v4284 = vadd.f32 %v4111, %v4283
    %v4285 = vpop.f32.mrb[0].mxu0
    %v4286 = vadd.f32 %v4113, %v4285
    %4287 = vmatprep.mubr.bf16.mxu0 %v3976
    %4288 = vmatmul.mubr.bf16.gmra.mrb[0].mxu0 %v3381
    %v4289 = vpop.f32.mrb[0].mxu0
    %v4290 = vadd.f32 %v4117, %v4289
    %v4291 = vpop.f32.mrb[0].mxu0
    %v4292 = vadd.f32 %v4119, %v4291
    %v4293 = vpop.f32.mrb[0].mxu0
    %v4294 = vadd.f32 %v4121, %v4293
    %v4295 = vpop.f32.mrb[0].mxu0
    %v4296 = vadd.f32 %v4123, %v4295
    %4297 = vmatprep.mubr.bf16.mxu0 %v3979
    %4298 = vmatmul.mubr.bf16.gmra.mrb[0].mxu0 %v3385
    %v4299 = vpop.f32.mrb[0].mxu0
    %v4300 = vadd.f32 %v4127, %v4299
    %v4301 = vpop.f32.mrb[0].mxu0
    %v4302 = vadd.f32 %v4129, %v4301
    %v4303 = vpop.f32.mrb[0].mxu0
    %v4304 = vadd.f32 %v4131, %v4303
    %v4305 = vpop.f32.mrb[0].mxu0
    %v4306 = vadd.f32 %v4133, %v4305
    %4307 = vmatprep.mubr.bf16.mxu0 %v3982
    %4308 = vmatmul.mubr.bf16.gmra.mrb[0].mxu0 %v3389
    %v4309 = vpop.f32.mrb[0].mxu0
    %v4310 = vadd.f32 %v4137, %v4309
    %v4311 = vpop.f32.mrb[0].mxu0
    %v4312 = vadd.f32 %v4139, %v4311
    %v4313 = vpop.f32.mrb[0].mxu0
    %v4314 = vadd.f32 %v4141, %v4313
    %v4315 = vpop.f32.mrb[0].mxu0
    %v4316 = vadd.f32 %v4143, %v4315
    %4317 = vmatprep.mubr.bf16.mxu0 %v3985
    %4318 = vmatmul.mubr.bf16.gmra.mrb[0].mxu0 %v3393
    %v4319 = vpop.f32.mrb[0].mxu0
    %v4320 = vadd.f32 %v4147, %v4319
    %v4321 = vpop.f32.mrb[0].mxu0
    %v4322 = vadd.f32 %v4149, %v4321
    %v4323 = vpop.f32.mrb[0].mxu0
    %v4324 = vadd.f32 %v4151, %v4323
    %v4325 = vpop.f32.mrb[0].mxu0
    %v4326 = vadd.f32 %v4153, %v4325
    %4327 = vmatprep.mubr.bf16.mxu0 %v3988
    %4328 = vmatmul.mubr.bf16.gmra.mrb[0].mxu0 %v3397
    %v4329 = vpop.f32.mrb[0].mxu0
    %v4330 = vadd.f32 %v4157, %v4329
    %v4331 = vpop.f32.mrb[0].mxu0
    %v4332 = vadd.f32 %v4159, %v4331
    %v4333 = vpop.f32.mrb[0].mxu0
    %v4334 = vadd.f32 %v4161, %v4333
    %v4335 = vpop.f32.mrb[0].mxu0
    %v4336 = vadd.f32 %v4163, %v4335
    %4337 = vmatprep.mubr.bf16.mxu0 %v3990
    %4338 = vmatmul.mubr.bf16.gmra.mrb[0].mxu0 %v3401
    %v4339 = vpop.f32.mrb[0].mxu0
    %v4340 = vadd.f32 %v4167, %v4339
    %v4341 = vpop.f32.mrb[0].mxu0
    %v4342 = vadd.f32 %v4169, %v4341
    %v4343 = vpop.f32.mrb[0].mxu0
    %v4344 = vadd.f32 %v4171, %v4343
    %v4345 = vpop.f32.mrb[0].mxu0
    %v4346 = vadd.f32 %v4173, %v4345
    %4347 = vdwg.mxu0
    %4348 = vmatprep.subr.bf16.mxu0 0
    %4349 = vmatpush1.bf16.msra.mxu0 %v3793
    %4350 = vmatprep.subr.bf16.mxu0 0
    %4351 = vmatpush1.bf16.msra.mxu0 %v3796
    %4352 = vmatprep.subr.bf16.mxu0 0
    %4353 = vmatpush1.bf16.msra.mxu0 %v3799
    %4354 = vmatprep.subr.bf16.mxu0 0
    %4355 = vmatpush1.bf16.msra.mxu0 %v3802
    %4356 = vmatprep.subr.bf16.mxu0 0
    %4357 = vmatpush1.bf16.msra.mxu0 %v3805
    %4358 = vmatprep.subr.bf16.mxu0 0
    %4359 = vmatpush1.bf16.msra.mxu0 %v3808
    %4360 = vmatprep.subr.bf16.mxu0 0
    %4361 = vmatpush1.bf16.msra.mxu0 %v3811
    %4362 = vmatprep.subr.bf16.mxu0 0
    %4363 = vmatpush1.bf16.msra.mxu0 %v3814
    %4364 = vmatprep.subr.bf16.mxu0 0
    %4365 = vmatpush1.bf16.msra.mxu0 %v3817
    %4366 = vmatprep.subr.bf16.mxu0 0
    %4367 = vmatpush1.bf16.msra.mxu0 %v3820
    %4368 = vmatprep.subr.bf16.mxu0 0
    %4369 = vmatpush1.bf16.msra.mxu0 %v3823
    %4370 = vmatprep.subr.bf16.mxu0 0
    %4371 = vmatpush1.bf16.msra.mxu0 %v3826
    %4372 = vmatprep.subr.bf16.mxu0 0
    %4373 = vmatpush1.bf16.msra.mxu0 %v3829
    %4374 = vmatprep.subr.bf16.mxu0 0
    %4375 = vmatpush1.bf16.msra.mxu0 %v3832
    %4376 = vmatprep.subr.bf16.mxu0 0
    %4377 = vmatpush1.bf16.msra.mxu0 %v3835
    %4378 = vmatprep.subr.bf16.mxu0 0
    %4379 = vmatpush1.bf16.msra.mxu0 %v3838
    %4380 = vmatprep.mubr.bf16.mxu0 %v3293
    %4381 = vmatmul.mubr.bf16.gmra.mrb[0].mxu0 0
    %v4382 = vpop.f32.mrb[0].mxu0
    %v4383 = vadd.f32 %v3522, %v4382
    %v4384 = vpop.f32.mrb[0].mxu0
    %v4385 = vpop.f32.mrb[0].mxu0
    %v4386 = vadd.f32 %v3522, %v4385
    %v4387 = vpop.f32.mrb[0].mxu0
    %4388 = vmatprep.mubr.bf16.mxu0 %v3297
    %4389 = vmatmul.mubr.bf16.gmra.mrb[0].mxu0 %v3095
    %v4390 = vpop.f32.mrb[0].mxu0
    %v4391 = vadd.f32 %v3522, %v4390
    %v4392 = vpop.f32.mrb[0].mxu0
    %v4393 = vpop.f32.mrb[0].mxu0
    %v4394 = vadd.f32 %v3522, %v4393
    %v4395 = vpop.f32.mrb[0].mxu0
    %4396 = vmatprep.mubr.bf16.mxu0 %v3301
    %4397 = vmatmul.mubr.bf16.gmra.mrb[0].mxu0 %v3097
    %v4398 = vpop.f32.mrb[0].mxu0
    %v4399 = vadd.f32 %v3522, %v4398
    %v4400 = vpop.f32.mrb[0].mxu0
    %v4401 = vpop.f32.mrb[0].mxu0
    %v4402 = vadd.f32 %v3522, %v4401
    %v4403 = vpop.f32.mrb[0].mxu0
    %4404 = vmatprep.mubr.bf16.mxu0 %v3305
    %4405 = vmatmul.mubr.bf16.gmra.mrb[0].mxu0 %v3099
    %v4406 = vpop.f32.mrb[0].mxu0
    %v4407 = vadd.f32 %v3522, %v4406
    %v4408 = vpop.f32.mrb[0].mxu0
    %v4409 = vpop.f32.mrb[0].mxu0
    %v4410 = vadd.f32 %v3522, %v4409
    %v4411 = vpop.f32.mrb[0].mxu0
    %4412 = vmatprep.mubr.bf16.mxu0 %v3309
    %4413 = vmatmul.mubr.bf16.gmra.mrb[0].mxu0 %v3101
    %v4414 = vpop.f32.mrb[0].mxu0
    %v4415 = vadd.f32 %v3522, %v4414
    %v4416 = vpop.f32.mrb[0].mxu0
    %v4417 = vpop.f32.mrb[0].mxu0
    %v4418 = vadd.f32 %v3522, %v4417
    %v4419 = vpop.f32.mrb[0].mxu0
    %4420 = vmatprep.mubr.bf16.mxu0 %v3313
    %4421 = vmatmul.mubr.bf16.gmra.mrb[0].mxu0 %v3103
    %v4422 = vpop.f32.mrb[0].mxu0
    %v4423 = vadd.f32 %v3522, %v4422
    %v4424 = vpop.f32.mrb[0].mxu0
    %v4425 = vpop.f32.mrb[0].mxu0
    %v4426 = vadd.f32 %v3522, %v4425
    %v4427 = vpop.f32.mrb[0].mxu0
    %4428 = vmatprep.mubr.bf16.mxu0 %v3317
    %4429 = vmatmul.mubr.bf16.gmra.mrb[0].mxu0 %v3105
    %v4430 = vpop.f32.mrb[0].mxu0
    %v4431 = vadd.f32 %v3522, %v4430
    %v4432 = vpop.f32.mrb[0].mxu0
    %v4433 = vpop.f32.mrb[0].mxu0
    %v4434 = vadd.f32 %v3522, %v4433
    %v4435 = vpop.f32.mrb[0].mxu0
    %4436 = vmatprep.mubr.bf16.mxu0 %v3321
    %4437 = vmatmul.mubr.bf16.gmra.mrb[0].mxu0 %v3107
    %v4438 = vpop.f32.mrb[0].mxu0
    %v4439 = vadd.f32 %v3522, %v4438
    %v4440 = vpop.f32.mrb[0].mxu0
    %v4441 = vpop.f32.mrb[0].mxu0
    %v4442 = vadd.f32 %v3522, %v4441
    %v4443 = vpop.f32.mrb[0].mxu0
    %4444 = vmatprep.mubr.bf16.mxu0 %v3325
    %4445 = vmatmul.mubr.bf16.gmra.mrb[0].mxu0 %v3109
    %v4446 = vpop.f32.mrb[0].mxu0
    %v4447 = vadd.f32 %v3522, %v4446
    %v4448 = vpop.f32.mrb[0].mxu0
    %v4449 = vpop.f32.mrb[0].mxu0
    %v4450 = vadd.f32 %v3522, %v4449
    %v4451 = vpop.f32.mrb[0].mxu0
    %4452 = vmatprep.mubr.bf16.mxu0 %v3329
    %4453 = vmatmul.mubr.bf16.gmra.mrb[0].mxu0 %v3111
    %v4454 = vpop.f32.mrb[0].mxu0
    %v4455 = vadd.f32 %v3522, %v4454
    %v4456 = vpop.f32.mrb[0].mxu0
    %v4457 = vpop.f32.mrb[0].mxu0
    %v4458 = vadd.f32 %v3522, %v4457
    %v4459 = vpop.f32.mrb[0].mxu0
    %4460 = vmatprep.mubr.bf16.mxu0 %v3333
    %4461 = vmatmul.mubr.bf16.gmra.mrb[0].mxu0 %v3113
    %v4462 = vpop.f32.mrb[0].mxu0
    %v4463 = vadd.f32 %v3522, %v4462
    %v4464 = vpop.f32.mrb[0].mxu0
    %v4465 = vpop.f32.mrb[0].mxu0
    %v4466 = vadd.f32 %v3522, %v4465
    %v4467 = vpop.f32.mrb[0].mxu0
    %4468 = vmatprep.mubr.bf16.mxu0 %v3337
    %4469 = vmatmul.mubr.bf16.gmra.mrb[0].mxu0 %v3115
    %v4470 = vpop.f32.mrb[0].mxu0
    %v4471 = vadd.f32 %v3522, %v4470
    %v4472 = vpop.f32.mrb[0].mxu0
    %v4473 = vpop.f32.mrb[0].mxu0
    %v4474 = vadd.f32 %v3522, %v4473
    %v4475 = vpop.f32.mrb[0].mxu0
    %4476 = vmatprep.mubr.bf16.mxu0 %v3341
    %4477 = vmatmul.mubr.bf16.gmra.mrb[0].mxu0 %v3117
    %v4478 = vpop.f32.mrb[0].mxu0
    %v4479 = vadd.f32 %v3522, %v4478
    %v4480 = vpop.f32.mrb[0].mxu0
    %v4481 = vpop.f32.mrb[0].mxu0
    %v4482 = vadd.f32 %v3522, %v4481
    %v4483 = vpop.f32.mrb[0].mxu0
    %4484 = vmatprep.mubr.bf16.mxu0 %v3345
    %4485 = vmatmul.mubr.bf16.gmra.mrb[0].mxu0 %v3119
    %v4486 = vpop.f32.mrb[0].mxu0
    %v4487 = vadd.f32 %v3522, %v4486
    %v4488 = vpop.f32.mrb[0].mxu0
    %v4489 = vpop.f32.mrb[0].mxu0
    %v4490 = vadd.f32 %v3522, %v4489
    %v4491 = vpop.f32.mrb[0].mxu0
    %4492 = vdwg.mxu0
    %4493 = vmatprep.subr.bf16.mxu0 0
    %4494 = vmatpush1.bf16.msra.mxu0 %v3841
    %4495 = vmatprep.subr.bf16.mxu0 0
    %4496 = vmatpush1.bf16.msra.mxu0 %v3844
    %4497 = vmatprep.subr.bf16.mxu0 0
    %4498 = vmatpush1.bf16.msra.mxu0 %v3847
    %4499 = vmatprep.subr.bf16.mxu0 0
    %4500 = vmatpush1.bf16.msra.mxu0 %v3850
    %4501 = vmatprep.subr.bf16.mxu0 0
    %4502 = vmatpush1.bf16.msra.mxu0 %v3853
    %4503 = vmatprep.subr.bf16.mxu0 0
    %4504 = vmatpush1.bf16.msra.mxu0 %v3856
    %4505 = vmatprep.subr.bf16.mxu0 0
    %4506 = vmatpush1.bf16.msra.mxu0 %v3859
    %4507 = vmatprep.subr.bf16.mxu0 0
    %4508 = vmatpush1.bf16.msra.mxu0 %v3862
    %4509 = vmatprep.subr.bf16.mxu0 0
    %4510 = vmatpush1.bf16.msra.mxu0 %v3865
    %4511 = vmatprep.subr.bf16.mxu0 0
    %4512 = vmatpush1.bf16.msra.mxu0 %v3868
    %4513 = vmatprep.subr.bf16.mxu0 0
    %4514 = vmatpush1.bf16.msra.mxu0 %v4000
    %4515 = vmatprep.subr.bf16.mxu0 0
    %4516 = vmatpush1.bf16.msra.mxu0 0
    %4517 = vmatprep.subr.bf16.mxu0 0
    %4518 = vmatpush1.bf16.msra.mxu0 0
    %4519 = vmatprep.subr.bf16.mxu0 0
    %4520 = vmatpush1.bf16.msra.mxu0 0
    %4521 = vmatprep.subr.bf16.mxu0 0
    %4522 = vmatpush1.bf16.msra.mxu0 0
    %4523 = vmatprep.subr.bf16.mxu0 0
    %4524 = vmatpush1.bf16.msra.mxu0 0
    %4525 = vmatprep.mubr.bf16.mxu0 %v3952
    %4526 = vmatmul.mubr.bf16.gmra.mrb[0].mxu0 %v3349
    %v4527 = vpop.f32.mrb[0].mxu0
    %v4528 = vadd.f32 %v4383, %v4527
    %v4529 = vpop.f32.mrb[0].mxu0
    %v4530 = vpop.f32.mrb[0].mxu0
    %v4531 = vadd.f32 %v4386, %v4530
    %v4532 = vpop.f32.mrb[0].mxu0
    %4533 = vmatprep.mubr.bf16.mxu0 %v3955
    %4534 = vmatmul.mubr.bf16.gmra.mrb[0].mxu0 %v3353
    %v4535 = vpop.f32.mrb[0].mxu0
    %v4536 = vadd.f32 %v4391, %v4535
    %v4537 = vpop.f32.mrb[0].mxu0
    %v4538 = vpop.f32.mrb[0].mxu0
    %v4539 = vadd.f32 %v4394, %v4538
    %v4540 = vpop.f32.mrb[0].mxu0
    %4541 = vmatprep.mubr.bf16.mxu0 %v3958
    %4542 = vmatmul.mubr.bf16.gmra.mrb[0].mxu0 %v3357
    %v4543 = vpop.f32.mrb[0].mxu0
    %v4544 = vadd.f32 %v4399, %v4543
    %v4545 = vpop.f32.mrb[0].mxu0
    %v4546 = vpop.f32.mrb[0].mxu0
    %v4547 = vadd.f32 %v4402, %v4546
    %v4548 = vpop.f32.mrb[0].mxu0
    %4549 = vmatprep.mubr.bf16.mxu0 %v3961
    %4550 = vmatmul.mubr.bf16.gmra.mrb[0].mxu0 %v3361
    %v4551 = vpop.f32.mrb[0].mxu0
    %v4552 = vadd.f32 %v4407, %v4551
    %v4553 = vpop.f32.mrb[0].mxu0
    %v4554 = vpop.f32.mrb[0].mxu0
    %v4555 = vadd.f32 %v4410, %v4554
    %v4556 = vpop.f32.mrb[0].mxu0
    %4557 = vmatprep.mubr.bf16.mxu0 %v3964
    %4558 = vmatmul.mubr.bf16.gmra.mrb[0].mxu0 %v3365
    %v4559 = vpop.f32.mrb[0].mxu0
    %v4560 = vadd.f32 %v4415, %v4559
    %v4561 = vpop.f32.mrb[0].mxu0
    %v4562 = vpop.f32.mrb[0].mxu0
    %v4563 = vadd.f32 %v4418, %v4562
    %v4564 = vpop.f32.mrb[0].mxu0
    %4565 = vmatprep.mubr.bf16.mxu0 %v3967
    %4566 = vmatmul.mubr.bf16.gmra.mrb[0].mxu0 %v3369
    %v4567 = vpop.f32.mrb[0].mxu0
    %v4568 = vadd.f32 %v4423, %v4567
    %v4569 = vpop.f32.mrb[0].mxu0
    %v4570 = vpop.f32.mrb[0].mxu0
    %v4571 = vadd.f32 %v4426, %v4570
    %v4572 = vpop.f32.mrb[0].mxu0
    %4573 = vmatprep.mubr.bf16.mxu0 %v3970
    %4574 = vmatmul.mubr.bf16.gmra.mrb[0].mxu0 %v3373
    %v4575 = vpop.f32.mrb[0].mxu0
    %v4576 = vadd.f32 %v4431, %v4575
    %v4577 = vpop.f32.mrb[0].mxu0
    %v4578 = vpop.f32.mrb[0].mxu0
    %v4579 = vadd.f32 %v4434, %v4578
    %v4580 = vpop.f32.mrb[0].mxu0
    %4581 = vmatprep.mubr.bf16.mxu0 %v3973
    %4582 = vmatmul.mubr.bf16.gmra.mrb[0].mxu0 %v3377
    %v4583 = vpop.f32.mrb[0].mxu0
    %v4584 = vadd.f32 %v4439, %v4583
    %v4585 = vpop.f32.mrb[0].mxu0
    %v4586 = vpop.f32.mrb[0].mxu0
    %v4587 = vadd.f32 %v4442, %v4586
    %v4588 = vpop.f32.mrb[0].mxu0
    %4589 = vmatprep.mubr.bf16.mxu0 %v3976
    %4590 = vmatmul.mubr.bf16.gmra.mrb[0].mxu0 %v3381
    %v4591 = vpop.f32.mrb[0].mxu0
    %v4592 = vadd.f32 %v4447, %v4591
    %v4593 = vpop.f32.mrb[0].mxu0
    %v4594 = vpop.f32.mrb[0].mxu0
    %v4595 = vadd.f32 %v4450, %v4594
    %v4596 = vpop.f32.mrb[0].mxu0
    %4597 = vmatprep.mubr.bf16.mxu0 %v3979
    %4598 = vmatmul.mubr.bf16.gmra.mrb[0].mxu0 %v3385
    %v4599 = vpop.f32.mrb[0].mxu0
    %v4600 = vadd.f32 %v4455, %v4599
    %v4601 = vpop.f32.mrb[0].mxu0
    %v4602 = vpop.f32.mrb[0].mxu0
    %v4603 = vadd.f32 %v4458, %v4602
    %v4604 = vpop.f32.mrb[0].mxu0
    %4605 = vmatprep.mubr.bf16.mxu0 %v3982
    %4606 = vmatmul.mubr.bf16.gmra.mrb[0].mxu0 %v3389
    %v4607 = vpop.f32.mrb[0].mxu0
    %v4608 = vadd.f32 %v4463, %v4607
    %v4609 = vpop.f32.mrb[0].mxu0
    %v4610 = vpop.f32.mrb[0].mxu0
    %v4611 = vadd.f32 %v4466, %v4610
    %v4612 = vpop.f32.mrb[0].mxu0
    %4613 = vmatprep.mubr.bf16.mxu0 %v3985
    %4614 = vmatmul.mubr.bf16.gmra.mrb[0].mxu0 %v3393
    %v4615 = vpop.f32.mrb[0].mxu0
    %v4616 = vadd.f32 %v4471, %v4615
    %v4617 = vpop.f32.mrb[0].mxu0
    %v4618 = vpop.f32.mrb[0].mxu0
    %v4619 = vadd.f32 %v4474, %v4618
    %v4620 = vpop.f32.mrb[0].mxu0
    %4621 = vmatprep.mubr.bf16.mxu0 %v3988
    %4622 = vmatmul.mubr.bf16.gmra.mrb[0].mxu0 %v3397
    %v4623 = vpop.f32.mrb[0].mxu0
    %v4624 = vadd.f32 %v4479, %v4623
    %v4625 = vpop.f32.mrb[0].mxu0
    %v4626 = vpop.f32.mrb[0].mxu0
    %v4627 = vadd.f32 %v4482, %v4626
    %v4628 = vpop.f32.mrb[0].mxu0
    %4629 = vmatprep.mubr.bf16.mxu0 %v3990
    %4630 = vmatmul.mubr.bf16.gmra.mrb[0].mxu0 %v3401
    %v4631 = vpop.f32.mrb[0].mxu0
    %v4632 = vadd.f32 %v4487, %v4631
    %v4633 = vpop.f32.mrb[0].mxu0
    %v4634 = vpop.f32.mrb[0].mxu0
    %v4635 = vadd.f32 %v4490, %v4634
    %v4636 = vpop.f32.mrb[0].mxu0
    %4637 = vdwg.mxu0
    %v4638 = vmax.f32 %v4210, 0.0
    %v4639 = vmax.f32 %v4212, 0.0
    %v4640 = vmax.f32 %v4528, 0.0
    %v4641 = vmax.f32 %v4214, 0.0
    %v4642 = vmax.f32 %v4216, 0.0
    %v4643 = vmax.f32 %v4531, 0.0
    %v4644 = vmax.f32 %v4220, 0.0
    %v4645 = vmax.f32 %v4222, 0.0
    %v4646 = vmax.f32 %v4536, 0.0
    %v4647 = vmax.f32 %v4224, 0.0
    %v4648 = vmax.f32 %v4226, 0.0
    %v4649 = vmax.f32 %v4539, 0.0
    %v4650 = vmax.f32 %v4230, 0.0
    %v4651 = vmax.f32 %v4232, 0.0
    %v4652 = vmax.f32 %v4544, 0.0
    %v4653 = vmax.f32 %v4234, 0.0
    %v4654 = vmax.f32 %v4236, 0.0
    %v4655 = vmax.f32 %v4547, 0.0
    %v4656 = vmax.f32 %v4240, 0.0
    %v4657 = vmax.f32 %v4242, 0.0
    %v4658 = vmax.f32 %v4552, 0.0
    %v4659 = vmax.f32 %v4244, 0.0
    %v4660 = vmax.f32 %v4246, 0.0
    %v4661 = vmax.f32 %v4555, 0.0
    %v4662 = vmax.f32 %v4250, 0.0
    %v4663 = vmax.f32 %v4252, 0.0
    %v4664 = vmax.f32 %v4560, 0.0
    %v4665 = vmax.f32 %v4254, 0.0
    %v4666 = vmax.f32 %v4256, 0.0
    %v4667 = vmax.f32 %v4563, 0.0
    %v4668 = vmax.f32 %v4260, 0.0
    %v4669 = vmax.f32 %v4262, 0.0
    %v4670 = vmax.f32 %v4568, 0.0
    %v4671 = vmax.f32 %v4264, 0.0
    %v4672 = vmax.f32 %v4266, 0.0
    %v4673 = vmax.f32 %v4571, 0.0
    %v4674 = vmax.f32 %v4270, 0.0
    %v4675 = vmax.f32 %v4272, 0.0
    %v4676 = vmax.f32 %v4576, 0.0
    %v4677 = vmax.f32 %v4274, 0.0
    %v4678 = vmax.f32 %v4276, 0.0
    %v4679 = vmax.f32 %v4579, 0.0
    %v4680 = vmax.f32 %v4280, 0.0
    %v4681 = vmax.f32 %v4282, 0.0
    %v4682 = vmax.f32 %v4584, 0.0
    %v4683 = vmax.f32 %v4284, 0.0
    %v4684 = vmax.f32 %v4286, 0.0
    %v4685 = vmax.f32 %v4587, 0.0
    %v4686 = vmax.f32 %v4290, 0.0
    %v4687 = vmax.f32 %v4292, 0.0
    %v4688 = vmax.f32 %v4592, 0.0
    %v4689 = vmax.f32 %v4294, 0.0
    %v4690 = vmax.f32 %v4296, 0.0
    %v4691 = vmax.f32 %v4595, 0.0
    %v4692 = vmax.f32 %v4300, 0.0
    %v4693 = vmax.f32 %v4302, 0.0
    %v4694 = vmax.f32 %v4600, 0.0
    %v4695 = vmax.f32 %v4304, 0.0
    %v4696 = vmax.f32 %v4306, 0.0
    %v4697 = vmax.f32 %v4603, 0.0
    %v4698 = vmax.f32 %v4310, 0.0
    %v4699 = vmax.f32 %v4312, 0.0
    %v4700 = vmax.f32 %v4608, 0.0
    %v4701 = vmax.f32 %v4314, 0.0
    %v4702 = vmax.f32 %v4316, 0.0
    %v4703 = vmax.f32 %v4611, 0.0
    %v4704 = vmax.f32 %v4320, 0.0
    %v4705 = vmax.f32 %v4322, 0.0
    %v4706 = vmax.f32 %v4616, 0.0
    %v4707 = vmax.f32 %v4324, 0.0
    %v4708 = vmax.f32 %v4326, 0.0
    %v4709 = vmax.f32 %v4619, 0.0
    %v4710 = vmax.f32 %v4330, 0.0
    %v4711 = vmax.f32 %v4332, 0.0
    %v4712 = vmax.f32 %v4624, 0.0
    %v4713 = vmax.f32 %v4334, 0.0
    %v4714 = vmax.f32 %v4336, 0.0
    %v4715 = vmax.f32 %v4627, 0.0
    %v4716 = vmax.f32 %v4340, 0.0
    %v4717 = vmax.f32 %v4342, 0.0
    %v4718 = vmax.f32 %v4632, 0.0
    %v4719 = vmax.f32 %v4344, 0.0
    %v4720 = vmax.f32 %v4346, 0.0
    %v4721 = vmax.f32 %v4635, 0.0
    %v4722 = vpack.c.bf16 %v4641, %v4638
    %v4723 = vpack.c.bf16 %v4642, %v4639
    %v4724 = vpack.c.bf16 %v4643, %v4640
    %v4725 = vpack.c.bf16 %v4647, %v4644
    %v4726 = vpack.c.bf16 %v4648, %v4645
    %v4727 = vpack.c.bf16 %v4649, %v4646
    %v4728 = vpack.c.bf16 %v4653, %v4650
    %v4729 = vpack.c.bf16 %v4654, %v4651
    %v4730 = vpack.c.bf16 %v4655, %v4652
    %v4731 = vpack.c.bf16 %v4659, %v4656
    %v4732 = vpack.c.bf16 %v4660, %v4657
    %v4733 = vpack.c.bf16 %v4661, %v4658
    %v4734 = vpack.c.bf16 %v4665, %v4662
    %v4735 = vpack.c.bf16 %v4666, %v4663
    %v4736 = vpack.c.bf16 %v4667, %v4664
    %v4737 = vpack.c.bf16 %v4671, %v4668
    %v4738 = vpack.c.bf16 %v4672, %v4669
    %v4739 = vpack.c.bf16 %v4673, %v4670
    %v4740 = vpack.c.bf16 %v4677, %v4674
    %v4741 = vpack.c.bf16 %v4678, %v4675
    %v4742 = vpack.c.bf16 %v4679, %v4676
    %v4743 = vpack.c.bf16 %v4683, %v4680
    %v4744 = vpack.c.bf16 %v4684, %v4681
    %v4745 = vpack.c.bf16 %v4685, %v4682
    %v4746 = vpack.c.bf16 %v4689, %v4686
    %v4747 = vpack.c.bf16 %v4690, %v4687
    %v4748 = vpack.c.bf16 %v4691, %v4688
    %v4749 = vpack.c.bf16 %v4695, %v4692
    %v4750 = vpack.c.bf16 %v4696, %v4693
    %v4751 = vpack.c.bf16 %v4697, %v4694
    %v4752 = vpack.c.bf16 %v4701, %v4698
    %v4753 = vpack.c.bf16 %v4702, %v4699
    %v4754 = vpack.c.bf16 %v4703, %v4700
    %v4755 = vpack.c.bf16 %v4707, %v4704
    %v4756 = vpack.c.bf16 %v4708, %v4705
    %v4757 = vpack.c.bf16 %v4709, %v4706
    %v4758 = vpack.c.bf16 %v4713, %v4710
    %v4759 = vpack.c.bf16 %v4714, %v4711
    %v4760 = vpack.c.bf16 %v4715, %v4712
    %v4761 = vpack.c.bf16 %v4719, %v4716
    %v4762 = vpack.c.bf16 %v4720, %v4717
    %v4763 = vpack.c.bf16 %v4721, %v4718
    %v4764 = vld [vmem:[#allocation7] sm:$0xff]
    %v4765 = vld [vmem:[#allocation7 + $0x8] sm:$0xff]
    %v4766 = vld [vmem:[#allocation7 + $0x10] sm:$0xff]
    %v4767 = vld [vmem:[#allocation7 + $0x18] sm:$0xff]
    %v4768 = vld [vmem:[#allocation7 + $0x20] sm:$0xff]
    %v4769 = vld [vmem:[#allocation7 + $0x28] sm:$0xff]
    %v4770 = vld [vmem:[#allocation7 + $0x30] sm:$0xff]
    %v4771 = vld [vmem:[#allocation7 + $0x38] sm:$0xff]
    %v4772 = vld [vmem:[#allocation7 + $0x40] sm:$0xff]
    %v4773 = vld [vmem:[#allocation7 + $0x48] sm:$0xff]
    %v4774 = vld [vmem:[#allocation7 + $0x50] sm:$0xff]
    %v4775 = vld [vmem:[#allocation7 + $0x58] sm:$0xff]
    %v4776 = vld [vmem:[#allocation7 + $0x60] sm:$0xff]
    %v4777 = vld [vmem:[#allocation7 + $0x68] sm:$0xff]
    %v4778 = vld [vmem:[#allocation7 + $0x70] sm:$0xff]
    %v4779 = vld [vmem:[#allocation7 + $0x78] sm:$0xff]
    %v4780 = vld [vmem:[#allocation7 + $0x80] sm:$0xff]
    %v4781 = vld [vmem:[#allocation7 + $0x88] sm:$0xff]
    %v4782 = vld [vmem:[#allocation7 + $0x90] sm:$0xff]
    %v4783 = vld [vmem:[#allocation7 + $0x98] sm:$0xff]
    %v4784 = vld [vmem:[#allocation7 + $0xa0] sm:$0xff]
    %v4785 = vld [vmem:[#allocation7 + $0xa8] sm:$0xff]
    %v4786 = vld [vmem:[#allocation7 + $0xb0] sm:$0xff]
    %v4787 = vld [vmem:[#allocation7 + $0xb8] sm:$0xff]
    %v4788 = vld [vmem:[#allocation7 + $0xc0] sm:$0xff]
    %v4789 = vld [vmem:[#allocation7 + $0xc8] sm:$0xff]
    %v4790 = vld [vmem:[#allocation7 + $0xd0] sm:$0xff]
    %v4791 = vld [vmem:[#allocation7 + $0xd8] sm:$0xff]
    %v4792 = vld [vmem:[#allocation7 + $0xe0] sm:$0xff]
    %v4793 = vld [vmem:[#allocation7 + $0xe8] sm:$0xff]
    %v4794 = vld [vmem:[#allocation7 + $0xf0] sm:$0xff]
    %v4795 = vld [vmem:[#allocation7 + $0xf8] sm:$0xff]
    %v4796 = vld [vmem:[#allocation7 + $0x100] sm:$0xff]
    %v4797 = vld [vmem:[#allocation7 + $0x108] sm:$0xff]
    %v4798 = vld [vmem:[#allocation7 + $0x110] sm:$0xff]
    %v4799 = vld [vmem:[#allocation7 + $0x118] sm:$0xff]
    %v4800 = vld [vmem:[#allocation7 + $0x120] sm:$0xff]
    %v4801 = vld [vmem:[#allocation7 + $0x128] sm:$0xff]
    %v4802 = vld [vmem:[#allocation7 + $0x130] sm:$0xff]
    %v4803 = vld [vmem:[#allocation7 + $0x138] sm:$0xff]
    %v4804 = vld [vmem:[#allocation7 + $0x140] sm:$0xff]
    %v4805 = vld [vmem:[#allocation7 + $0x148] sm:$0xff]
    %v4806 = vld [vmem:[#allocation7 + $0x150] sm:$0xff]
    %v4807 = vld [vmem:[#allocation7 + $0x158] sm:$0xff]
    %v4808 = vld [vmem:[#allocation7 + $0x160] sm:$0xff]
    %v4809 = vld [vmem:[#allocation7 + $0x168] sm:$0xff]
    %v4810 = vld [vmem:[#allocation7 + $0x170] sm:$0xff]
    %v4811 = vld [vmem:[#allocation7 + $0x178] sm:$0xff]
    %v4812 = vld [vmem:[#allocation7 + $0x180] sm:$0xff]
    %v4813 = vld [vmem:[#allocation7 + $0x188] sm:$0xff]
    %v4814 = vld [vmem:[#allocation7 + $0x190] sm:$0xff]
    %v4815 = vld [vmem:[#allocation7 + $0x198] sm:$0xff]
    %v4816 = vld [vmem:[#allocation7 + $0x1a0] sm:$0xff]
    %v4817 = vld [vmem:[#allocation7 + $0x1a8] sm:$0xff]
    %v4818 = vld [vmem:[#allocation7 + $0x1b0] sm:$0xff]
    %v4819 = vld [vmem:[#allocation7 + $0x1b8] sm:$0xff]
    %v4820 = vld [vmem:[#allocation7 + $0x1c0] sm:$0xff]
    %v4821 = vld [vmem:[#allocation7 + $0x1c8] sm:$0xff]
    %v4822 = vld [vmem:[#allocation7 + $0x1d0] sm:$0xff]
    %v4823 = vld [vmem:[#allocation7 + $0x1d8] sm:$0xff]
    %v4824 = vld [vmem:[#allocation7 + $0x1e0] sm:$0xff]
    %v4825 = vld [vmem:[#allocation7 + $0x1e8] sm:$0xff]
    %v4826 = vld [vmem:[#allocation7 + $0x1f0] sm:$0xff]
    %v4827 = vld [vmem:[#allocation7 + $0x1f8] sm:$0xff]
    %v4828 = vld [vmem:[#allocation7 + $0x200] sm:$0xff]
    %v4829 = vld [vmem:[#allocation7 + $0x208] sm:$0xff]
    %v4830 = vld [vmem:[#allocation7 + $0x210] sm:$0xff]
    %v4831 = vld [vmem:[#allocation7 + $0x218] sm:$0xff]
    %v4832 = vld [vmem:[#allocation7 + $0x220] sm:$0xff]
    %v4833 = vld [vmem:[#allocation7 + $0x228] sm:$0xff]
    %s4834 = scalar_lea.vmem [#allocation7], 560
    %v4835 = vld [vmem:[%s4834] sm:$0xff]
    %v4836 = vld [vmem:[%s4834 + $0x8] sm:$0xff]
    %v4837 = vld [vmem:[%s4834 + $0x10] sm:$0xff]
    %v4838 = vld [vmem:[%s4834 + $0x18] sm:$0xff]
    %v4839 = vld [vmem:[%s4834 + $0x20] sm:$0xff]
    %v4840 = vld [vmem:[%s4834 + $0x28] sm:$0xff]
    %v4841 = vld [vmem:[%s4834 + $0x30] sm:$0xff]
    %v4842 = vld [vmem:[%s4834 + $0x38] sm:$0xff]
    %v4843 = vld [vmem:[%s4834 + $0x40] sm:$0xff]
    %v4844 = vld [vmem:[%s4834 + $0x48] sm:$0xff]
    %v4845 = vld [vmem:[%s4834 + $0x50] sm:$0xff]
    %v4846 = vld [vmem:[%s4834 + $0x58] sm:$0xff]
    %v4847 = vld [vmem:[%s4834 + $0x60] sm:$0xff]
    %v4848 = vld [vmem:[%s4834 + $0x68] sm:$0xff]
    %v4849 = vld [vmem:[%s4834 + $0x70] sm:$0xff]
    %v4850 = vld [vmem:[%s4834 + $0x78] sm:$0xff]
    %v4851 = vld [vmem:[%s4834 + $0x80] sm:$0xff]
    %v4852 = vld [vmem:[%s4834 + $0x88] sm:$0xff]
    %v4853 = vld [vmem:[%s4834 + $0x90] sm:$0xff]
    %v4854 = vld [vmem:[%s4834 + $0x98] sm:$0xff]
    %v4855 = vld [vmem:[%s4834 + $0xa0] sm:$0xff]
    %v4856 = vld [vmem:[%s4834 + $0xa8] sm:$0xff]
    %v4857 = vld [vmem:[%s4834 + $0xb0] sm:$0xff]
    %v4858 = vld [vmem:[%s4834 + $0xb8] sm:$0xff]
    %v4859 = vld [vmem:[%s4834 + $0xc0] sm:$0xff]
    %v4860 = vld [vmem:[%s4834 + $0xc8] sm:$0xff]
    %v4861 = vld [vmem:[%s4834 + $0xd0] sm:$0xff]
    %v4862 = vld [vmem:[%s4834 + $0xd8] sm:$0xff]
    %v4863 = vld [vmem:[%s4834 + $0xe0] sm:$0xff]
    %v4864 = vld [vmem:[%s4834 + $0xe8] sm:$0xff]
    %v4865 = vld [vmem:[%s4834 + $0xf0] sm:$0xff]
    %v4866 = vld [vmem:[%s4834 + $0xf8] sm:$0xff]
    %v4867 = vld [vmem:[%s4834 + $0x100] sm:$0xff]
    %v4868 = vld [vmem:[%s4834 + $0x108] sm:$0xff]
    %v4869 = vld [vmem:[%s4834 + $0x110] sm:$0xff]
    %v4870 = vld [vmem:[%s4834 + $0x118] sm:$0xff]
    %v4871 = vld [vmem:[%s4834 + $0x120] sm:$0xff]
    %v4872 = vld [vmem:[%s4834 + $0x128] sm:$0xff]
    %v4873 = vld [vmem:[%s4834 + $0x130] sm:$0xff]
    %v4874 = vld [vmem:[%s4834 + $0x138] sm:$0xff]
    %v4875 = vld [vmem:[%s4834 + $0x140] sm:$0xff]
    %v4876 = vld [vmem:[%s4834 + $0x148] sm:$0xff]
    %v4877 = vld [vmem:[%s4834 + $0x150] sm:$0xff]
    %v4878 = vld [vmem:[%s4834 + $0x158] sm:$0xff]
    %v4879 = vld [vmem:[%s4834 + $0x160] sm:$0xff]
    %v4880 = vld [vmem:[%s4834 + $0x168] sm:$0xff]
    %v4881 = vld [vmem:[%s4834 + $0x170] sm:$0xff]
    %v4882 = vld [vmem:[%s4834 + $0x178] sm:$0xff]
    %v4883 = vld [vmem:[%s4834 + $0x180] sm:$0xff]
    %v4884 = vld [vmem:[%s4834 + $0x188] sm:$0xff]
    %v4885 = vld [vmem:[%s4834 + $0x190] sm:$0xff]
    %v4886 = vld [vmem:[%s4834 + $0x198] sm:$0xff]
    %v4887 = vld [vmem:[%s4834 + $0x1a0] sm:$0xff]
    %v4888 = vld [vmem:[%s4834 + $0x1a8] sm:$0xff]
    %v4889 = vld [vmem:[%s4834 + $0x1b0] sm:$0xff]
    %v4890 = vld [vmem:[%s4834 + $0x1b8] sm:$0xff]
    %v4891 = vld [vmem:[%s4834 + $0x1c0] sm:$0xff]
    %v4892 = vld [vmem:[%s4834 + $0x1c8] sm:$0xff]
    %v4893 = vld [vmem:[%s4834 + $0x1d0] sm:$0xff]
    %v4894 = vld [vmem:[%s4834 + $0x1d8] sm:$0xff]
    %v4895 = vld [vmem:[%s4834 + $0x1e0] sm:$0xff]
    %v4896 = vld [vmem:[%s4834 + $0x1e8] sm:$0xff]
    %v4897 = vld [vmem:[%s4834 + $0x1f0] sm:$0xff]
    %v4898 = vld [vmem:[%s4834 + $0x1f8] sm:$0xff]
    %v4899 = vld [vmem:[%s4834 + $0x200] sm:$0xff]
    %v4900 = vld [vmem:[%s4834 + $0x208] sm:$0xff]
    %v4901 = vld [vmem:[%s4834 + $0x210] sm:$0xff]
    %v4902 = vld [vmem:[%s4834 + $0x218] sm:$0xff]
    %v4903 = vld [vmem:[%s4834 + $0x220] sm:$0xff]
    %v4904 = vld [vmem:[%s4834 + $0x228] sm:$0xff]
    %v4975 = vunpack.c.l.b16 %v4835
    %v4976 = vunpack.c.h.b16 %v4835
    %v4977 = vunpack.c.l.b16 %v4836
    %v4978 = vunpack.c.h.b16 %v4836
    %v4979 = vunpack.c.l.b16 %v4837
    %v4980 = vunpack.c.h.b16 %v4837
    %v4981 = vunpack.c.l.b16 %v4838
    %v4982 = vunpack.c.h.b16 %v4838
    %v4983 = vunpack.c.l.b16 %v4839
    %v4984 = vunpack.c.h.b16 %v4839
    %v4985 = vunpack.c.l.b16 %v4840
    %v4986 = vunpack.c.h.b16 %v4840
    %v4987 = vunpack.c.l.b16 %v4841
    %v4988 = vunpack.c.h.b16 %v4841
    %v4989 = vunpack.c.l.b16 %v4842
    %v4990 = vunpack.c.h.b16 %v4842
    %v4991 = vunpack.c.l.b16 %v4843
    %v4992 = vunpack.c.h.b16 %v4843
    %v4993 = vunpack.c.l.b16 %v4844
    %v4994 = vunpack.c.h.b16 %v4844
    %v4995 = vunpack.c.l.b16 %v4845
    %v4996 = vunpack.c.h.b16 %v4845
    %v4997 = vunpack.c.l.b16 %v4846
    %v4998 = vunpack.c.h.b16 %v4846
    %v4999 = vunpack.c.l.b16 %v4847
    %v5000 = vunpack.c.h.b16 %v4847
    %v5001 = vunpack.c.l.b16 %v4848
    %v5002 = vunpack.c.h.b16 %v4848
    %v5003 = vunpack.c.l.b16 %v4849
    %v5004 = vunpack.c.h.b16 %v4849
    %v5005 = vunpack.c.l.b16 %v4850
    %v5006 = vunpack.c.h.b16 %v4850
    %v5007 = vunpack.c.l.b16 %v4851
    %v5008 = vunpack.c.h.b16 %v4851
    %v5009 = vunpack.c.l.b16 %v4852
    %v5010 = vunpack.c.h.b16 %v4852
    %v5011 = vunpack.c.l.b16 %v4853
    %v5012 = vunpack.c.h.b16 %v4853
    %v5013 = vunpack.c.l.b16 %v4854
    %v5014 = vunpack.c.h.b16 %v4854
    %v5015 = vunpack.c.l.b16 %v4855
    %v5016 = vunpack.c.h.b16 %v4855
    %v5017 = vunpack.c.l.b16 %v4856
    %v5018 = vunpack.c.h.b16 %v4856
    %v5019 = vunpack.c.l.b16 %v4857
    %v5020 = vunpack.c.h.b16 %v4857
    %v5021 = vunpack.c.l.b16 %v4858
    %v5022 = vunpack.c.h.b16 %v4858
    %v5023 = vunpack.c.l.b16 %v4859
    %v5024 = vunpack.c.h.b16 %v4859
    %v5025 = vunpack.c.l.b16 %v4860
    %v5026 = vunpack.c.h.b16 %v4860
    %v5027 = vunpack.c.l.b16 %v4861
    %v5028 = vunpack.c.h.b16 %v4861
    %v5029 = vunpack.c.l.b16 %v4862
    %v5030 = vunpack.c.h.b16 %v4862
    %v5031 = vunpack.c.l.b16 %v4863
    %v5032 = vunpack.c.h.b16 %v4863
    %v5033 = vunpack.c.l.b16 %v4864
    %v5034 = vunpack.c.h.b16 %v4864
    %v5035 = vunpack.c.l.b16 %v4865
    %v5036 = vunpack.c.h.b16 %v4865
    %v5037 = vunpack.c.l.b16 %v4866
    %v5038 = vunpack.c.h.b16 %v4866
    %v5039 = vunpack.c.l.b16 %v4867
    %v5040 = vunpack.c.h.b16 %v4867
    %v5041 = vunpack.c.l.b16 %v4868
    %v5042 = vunpack.c.h.b16 %v4868
    %v5043 = vunpack.c.l.b16 %v4869
    %v5044 = vunpack.c.h.b16 %v4869
    %v5045 = vunpack.c.l.b16 %v4870
    %v5046 = vunpack.c.h.b16 %v4870
    %v5047 = vunpack.c.l.b16 %v4871
    %v5048 = vunpack.c.h.b16 %v4871
    %v5049 = vunpack.c.l.b16 %v4872
    %v5050 = vunpack.c.h.b16 %v4872
    %v5051 = vunpack.c.l.b16 %v4873
    %v5052 = vunpack.c.h.b16 %v4873
    %v5053 = vunpack.c.l.b16 %v4874
    %v5054 = vunpack.c.h.b16 %v4874
    %v5055 = vunpack.c.l.b16 %v4875
    %v5056 = vunpack.c.h.b16 %v4875
    %v5057 = vunpack.c.l.b16 %v4876
    %v5058 = vunpack.c.h.b16 %v4876
    %v5059 = vunpack.c.l.b16 %v4877
    %v5060 = vunpack.c.h.b16 %v4877
    %v5061 = vunpack.c.l.b16 %v4878
    %v5062 = vunpack.c.h.b16 %v4878
    %v5063 = vunpack.c.l.b16 %v4879
    %v5064 = vunpack.c.h.b16 %v4879
    %v5065 = vunpack.c.l.b16 %v4880
    %v5066 = vunpack.c.h.b16 %v4880
    %v5067 = vunpack.c.l.b16 %v4881
    %v5068 = vunpack.c.h.b16 %v4881
    %v5069 = vunpack.c.l.b16 %v4882
    %v5070 = vunpack.c.h.b16 %v4882
    %v5071 = vunpack.c.l.b16 %v4883
    %v5072 = vunpack.c.h.b16 %v4883
    %v5073 = vunpack.c.l.b16 %v4884
    %v5074 = vunpack.c.h.b16 %v4884
    %v5075 = vunpack.c.l.b16 %v4885
    %v5076 = vunpack.c.h.b16 %v4885
    %v5077 = vunpack.c.l.b16 %v4886
    %v5078 = vunpack.c.h.b16 %v4886
    %v5079 = vunpack.c.l.b16 %v4887
    %v5080 = vunpack.c.h.b16 %v4887
    %v5081 = vunpack.c.l.b16 %v4888
    %v5082 = vunpack.c.h.b16 %v4888
    %v5083 = vunpack.c.l.b16 %v4889
    %v5084 = vunpack.c.h.b16 %v4889
    %v5085 = vunpack.c.l.b16 %v4890
    %v5086 = vunpack.c.h.b16 %v4890
    %v5087 = vunpack.c.l.b16 %v4891
    %v5088 = vunpack.c.h.b16 %v4891
    %v5089 = vunpack.c.l.b16 %v4892
    %v5090 = vunpack.c.h.b16 %v4892
    %v5091 = vunpack.c.l.b16 %v4893
    %v5092 = vunpack.c.h.b16 %v4893
    %v5093 = vunpack.c.l.b16 %v4894
    %v5094 = vunpack.c.h.b16 %v4894
    %v5095 = vunpack.c.l.b16 %v4895
    %v5096 = vunpack.c.h.b16 %v4895
    %v5097 = vunpack.c.l.b16 %v4896
    %v5098 = vunpack.c.h.b16 %v4896
    %v5099 = vunpack.c.l.b16 %v4897
    %v5100 = vunpack.c.h.b16 %v4897
    %v5101 = vunpack.c.l.b16 %v4898
    %v5102 = vunpack.c.h.b16 %v4898
    %v5103 = vunpack.c.l.b16 %v4899
    %v5104 = vunpack.c.h.b16 %v4899
    %v5105 = vunpack.c.l.b16 %v4900
    %v5106 = vunpack.c.h.b16 %v4900
    %v5107 = vunpack.c.l.b16 %v4901
    %v5108 = vunpack.c.h.b16 %v4901
    %v5109 = vunpack.c.l.b16 %v4902
    %v5110 = vunpack.c.h.b16 %v4902
    %v5111 = vunpack.c.l.b16 %v4903
    %v5112 = vunpack.c.h.b16 %v4903
    %v5113 = vunpack.c.l.b16 %v4904
    %v5114 = vunpack.c.h.b16 %v4904
    %v5115 = vpack.c.b16 %v4979, %v4975
    %v5116 = vpack.c.b16 %v4980, %v4976
    %v5117 = vpack.c.b16 %v4981, %v4977
    %v5118 = vpack.c.b16 %v4982, %v4978
    %v5119 = vpack.c.b16 %v4987, %v4983
    %v5120 = vpack.c.b16 %v4988, %v4984
    %v5121 = vpack.c.b16 %v4989, %v4985
    %v5122 = vpack.c.b16 %v4990, %v4986
    %v5123 = vpack.c.b16 %v4995, %v4991
    %v5124 = vpack.c.b16 %v4996, %v4992
    %v5125 = vpack.c.b16 %v4997, %v4993
    %v5126 = vpack.c.b16 %v4998, %v4994
    %v5127 = vpack.c.b16 %v5003, %v4999
    %v5128 = vpack.c.b16 %v5004, %v5000
    %v5129 = vpack.c.b16 %v5005, %v5001
    %v5130 = vpack.c.b16 %v5006, %v5002
    %v5131 = vpack.c.b16 %v5011, %v5007
    %v5132 = vpack.c.b16 %v5012, %v5008
    %v5133 = vpack.c.b16 %v5013, %v5009
    %v5134 = vpack.c.b16 %v5014, %v5010
    %v5135 = vpack.c.b16 %v5019, %v5015
    %v5136 = vpack.c.b16 %v5020, %v5016
    %v5137 = vpack.c.b16 %v5021, %v5017
    %v5138 = vpack.c.b16 %v5022, %v5018
    %v5139 = vpack.c.b16 %v5027, %v5023
    %v5140 = vpack.c.b16 %v5028, %v5024
    %v5141 = vpack.c.b16 %v5029, %v5025
    %v5142 = vpack.c.b16 %v5030, %v5026
    %v5143 = vpack.c.b16 %v5035, %v5031
    %v5144 = vpack.c.b16 %v5036, %v5032
    %v5145 = vpack.c.b16 %v5037, %v5033
    %v5146 = vpack.c.b16 %v5038, %v5034
    %v5147 = vpack.c.b16 %v5043, %v5039
    %v5148 = vpack.c.b16 %v5044, %v5040
    %v5149 = vpack.c.b16 %v5045, %v5041
    %v5150 = vpack.c.b16 %v5046, %v5042
    %v5151 = vpack.c.b16 %v5051, %v5047
    %v5152 = vpack.c.b16 %v5052, %v5048
    %v5153 = vpack.c.b16 %v5053, %v5049
    %v5154 = vpack.c.b16 %v5054, %v5050
    %v5155 = vpack.c.b16 %v5059, %v5055
    %v5156 = vpack.c.b16 %v5060, %v5056
    %v5157 = vpack.c.b16 %v5061, %v5057
    %v5158 = vpack.c.b16 %v5062, %v5058
    %v5159 = vpack.c.b16 %v5067, %v5063
    %v5160 = vpack.c.b16 %v5068, %v5064
    %v5161 = vpack.c.b16 %v5069, %v5065
    %v5162 = vpack.c.b16 %v5070, %v5066
    %v5163 = vpack.c.b16 %v5075, %v5071
    %v5164 = vpack.c.b16 %v5076, %v5072
    %v5165 = vpack.c.b16 %v5077, %v5073
    %v5166 = vpack.c.b16 %v5078, %v5074
    %v5167 = vpack.c.b16 %v5083, %v5079
    %v5168 = vpack.c.b16 %v5084, %v5080
    %v5169 = vpack.c.b16 %v5085, %v5081
    %v5170 = vpack.c.b16 %v5086, %v5082
    %v5171 = vpack.c.b16 %v5091, %v5087
    %v5172 = vpack.c.b16 %v5092, %v5088
    %v5173 = vpack.c.b16 %v5093, %v5089
    %v5174 = vpack.c.b16 %v5094, %v5090
    %v5175 = vpack.c.b16 %v5099, %v5095
    %v5176 = vpack.c.b16 %v5100, %v5096
    %v5177 = vpack.c.b16 %v5101, %v5097
    %v5178 = vpack.c.b16 %v5102, %v5098
    %v5179 = vpack.c.b16 %v5107, %v5103
    %v5180 = vpack.c.b16 %v5108, %v5104
    %v5181 = vpack.c.b16 %v5109, %v5105
    %v5182 = vpack.c.b16 %v5110, %v5106
    %v5183 = vpack.c.b16 %v5111, %v5111
    %v5184 = vpack.c.b16 %v5112, %v5112
    %v5185 = vpack.c.b16 %v5113, %v5113
    %v5186 = vpack.c.b16 %v5114, %v5114
    %v5256 = vsel %vm2080, %v4727, 0
    %v5259 = vsel %vm2123, %v5183, 0
    %v5262 = vsel %vm2123, %v5184, 0
    %v5265 = vsel %vm2123, %v5185, 0
    %v5268 = vsel %vm2123, %v5186, 0
    %5270 = vmatprep.subr.bf16.mxu0 %v5116
    %5271 = vmatpush1.bf16.msra.mxu0 %v5115
    %5272 = vmatprep.subr.bf16.mxu0 %v5120
    %5273 = vmatpush1.bf16.msra.mxu0 %v5119
    %5274 = vmatprep.subr.bf16.mxu0 %v5124
    %5275 = vmatpush1.bf16.msra.mxu0 %v5123
    %5276 = vmatprep.subr.bf16.mxu0 %v5128
    %5277 = vmatpush1.bf16.msra.mxu0 %v5127
    %5278 = vmatprep.subr.bf16.mxu0 %v5132
    %5279 = vmatpush1.bf16.msra.mxu0 %v5131
    %5280 = vmatprep.subr.bf16.mxu0 %v5136
    %5281 = vmatpush1.bf16.msra.mxu0 %v5135
    %5282 = vmatprep.subr.bf16.mxu0 %v5140
    %5283 = vmatpush1.bf16.msra.mxu0 %v5139
    %5284 = vmatprep.subr.bf16.mxu0 %v5144
    %5285 = vmatpush1.bf16.msra.mxu0 %v5143
    %5286 = vmatprep.subr.bf16.mxu0 %v5148
    %5287 = vmatpush1.bf16.msra.mxu0 %v5147
    %5288 = vmatprep.subr.bf16.mxu0 %v5152
    %5289 = vmatpush1.bf16.msra.mxu0 %v5151
    %5290 = vmatprep.subr.bf16.mxu0 %v5156
    %5291 = vmatpush1.bf16.msra.mxu0 %v5155
    %5292 = vmatprep.subr.bf16.mxu0 %v5160
    %5293 = vmatpush1.bf16.msra.mxu0 %v5159
    %5294 = vmatprep.subr.bf16.mxu0 %v5164
    %5295 = vmatpush1.bf16.msra.mxu0 %v5163
    %5296 = vmatprep.subr.bf16.mxu0 %v5168
    %5297 = vmatpush1.bf16.msra.mxu0 %v5167
    %5298 = vmatprep.subr.bf16.mxu0 %v5172
    %5299 = vmatpush1.bf16.msra.mxu0 %v5171
    %5300 = vmatprep.subr.bf16.mxu0 %v5176
    %5301 = vmatpush1.bf16.msra.mxu0 %v5175
    %5302 = vmatprep.mubr.bf16.mxu0 %v4726
    %5303 = vmatmul.mubr.bf16.gmra.mrb[0].mxu0 %v4725
    %v5304 = vpop.f32.mrb[0].mxu0
    %v5305 = vadd.f32 0.0, %v5304
    %v5306 = vpop.f32.mrb[0].mxu0
    %v5307 = vadd.f32 0.0, %v5306
    %v5308 = vpop.f32.mrb[0].mxu0
    %v5309 = vadd.f32 0.0, %v5308
    %v5310 = vpop.f32.mrb[0].mxu0
    %v5311 = vadd.f32 0.0, %v5310
    %5312 = vdwg.mxu0
    %5313 = vmatprep.subr.bf16.mxu0 %v5180
    %5314 = vmatpush1.bf16.msra.mxu0 %v5179
    %5315 = vmatprep.subr.bf16.mxu0 %v5262
    %5316 = vmatpush1.bf16.msra.mxu0 %v5259
    %5317 = vmatprep.subr.bf16.mxu0 0
    %5318 = vmatpush1.bf16.msra.mxu0 0
    %5319 = vmatprep.subr.bf16.mxu0 0
    %5320 = vmatpush1.bf16.msra.mxu0 0
    %5321 = vmatprep.subr.bf16.mxu0 0
    %5322 = vmatpush1.bf16.msra.mxu0 0
    %5323 = vmatprep.subr.bf16.mxu0 0
    %5324 = vmatpush1.bf16.msra.mxu0 0
    %5325 = vmatprep.subr.bf16.mxu0 0
    %5326 = vmatpush1.bf16.msra.mxu0 0
    %5327 = vmatprep.subr.bf16.mxu0 0
    %5328 = vmatpush1.bf16.msra.mxu0 0
    %5329 = vmatprep.subr.bf16.mxu0 0
    %5330 = vmatpush1.bf16.msra.mxu0 0
    %5331 = vmatprep.subr.bf16.mxu0 0
    %5332 = vmatpush1.bf16.msra.mxu0 0
    %5333 = vmatprep.subr.bf16.mxu0 0
    %5334 = vmatpush1.bf16.msra.mxu0 0
    %5335 = vmatprep.subr.bf16.mxu0 0
    %5336 = vmatpush1.bf16.msra.mxu0 0
    %5337 = vmatprep.subr.bf16.mxu0 0
    %5338 = vmatpush1.bf16.msra.mxu0 0
    %5339 = vmatprep.subr.bf16.mxu0 0
    %5340 = vmatpush1.bf16.msra.mxu0 0
    %5341 = vmatprep.subr.bf16.mxu0 0
    %5342 = vmatpush1.bf16.msra.mxu0 0
    %5343 = vmatprep.subr.bf16.mxu0 0
    %5344 = vmatpush1.bf16.msra.mxu0 0
    %5345 = vmatprep.mubr.bf16.mxu0 0
    %5346 = vmatmul.mubr.bf16.gmra.mrb[0].mxu0 %v5256
    %v5347 = vpop.f32.mrb[0].mxu0
    %v5348 = vadd.f32 %v5305, %v5347
    %v5349 = vpop.f32.mrb[0].mxu0
    %v5350 = vadd.f32 %v5307, %v5349
    %v5351 = vpop.f32.mrb[0].mxu0
    %v5352 = vadd.f32 %v5309, %v5351
    %v5353 = vpop.f32.mrb[0].mxu0
    %v5354 = vadd.f32 %v5311, %v5353
    %5355 = vdwg.mxu0
    %5356 = vmatprep.subr.bf16.mxu0 %v5118
    %5357 = vmatpush1.bf16.msra.mxu0 %v5117
    %5358 = vmatprep.subr.bf16.mxu0 %v5122
    %5359 = vmatpush1.bf16.msra.mxu0 %v5121
    %5360 = vmatprep.subr.bf16.mxu0 %v5126
    %5361 = vmatpush1.bf16.msra.mxu0 %v5125
    %5362 = vmatprep.subr.bf16.mxu0 %v5130
    %5363 = vmatpush1.bf16.msra.mxu0 %v5129
    %5364 = vmatprep.subr.bf16.mxu0 %v5134
    %5365 = vmatpush1.bf16.msra.mxu0 %v5133
    %5366 = vmatprep.subr.bf16.mxu0 %v5138
    %5367 = vmatpush1.bf16.msra.mxu0 %v5137
    %5368 = vmatprep.subr.bf16.mxu0 %v5142
    %5369 = vmatpush1.bf16.msra.mxu0 %v5141
    %5370 = vmatprep.subr.bf16.mxu0 %v5146
    %5371 = vmatpush1.bf16.msra.mxu0 %v5145
    %5372 = vmatprep.subr.bf16.mxu0 %v5150
    %5373 = vmatpush1.bf16.msra.mxu0 %v5149
    %5374 = vmatprep.subr.bf16.mxu0 %v5154
    %5375 = vmatpush1.bf16.msra.mxu0 %v5153
    %5376 = vmatprep.subr.bf16.mxu0 %v5158
    %5377 = vmatpush1.bf16.msra.mxu0 %v5157
    %5378 = vmatprep.subr.bf16.mxu0 %v5162
    %5379 = vmatpush1.bf16.msra.mxu0 %v5161
    %5380 = vmatprep.subr.bf16.mxu0 %v5166
    %5381 = vmatpush1.bf16.msra.mxu0 %v5165
    %5382 = vmatprep.subr.bf16.mxu0 %v5170
    %5383 = vmatpush1.bf16.msra.mxu0 %v5169
    %5384 = vmatprep.subr.bf16.mxu0 %v5174
    %5385 = vmatpush1.bf16.msra.mxu0 %v5173
    %5386 = vmatprep.subr.bf16.mxu0 %v5178
    %5387 = vmatpush1.bf16.msra.mxu0 %v5177
    %5388 = vmatprep.mubr.bf16.mxu0 %v4726
    %5389 = vmatmul.mubr.bf16.gmra.mrb[0].mxu0 %v4725
    %v5390 = vpop.f32.mrb[0].mxu0
    %v5391 = vadd.f32 0.0, %v5390
    %v5392 = vpop.f32.mrb[0].mxu0
    %v5393 = vadd.f32 0.0, %v5392
    %v5394 = vpop.f32.mrb[0].mxu0
    %v5395 = vadd.f32 0.0, %v5394
    %v5396 = vpop.f32.mrb[0].mxu0
    %v5397 = vadd.f32 0.0, %v5396
    %5398 = vdwg.mxu0
    %5399 = vmatprep.subr.bf16.mxu0 %v5182
    %5400 = vmatpush1.bf16.msra.mxu0 %v5181
    %5401 = vmatprep.subr.bf16.mxu0 %v5268
    %5402 = vmatpush1.bf16.msra.mxu0 %v5265
    %5403 = vmatprep.subr.bf16.mxu0 0
    %5404 = vmatpush1.bf16.msra.mxu0 0
    %5405 = vmatprep.subr.bf16.mxu0 0
    %5406 = vmatpush1.bf16.msra.mxu0 0
    %5407 = vmatprep.subr.bf16.mxu0 0
    %5408 = vmatpush1.bf16.msra.mxu0 0
    %5409 = vmatprep.subr.bf16.mxu0 0
    %5410 = vmatpush1.bf16.msra.mxu0 0
    %5411 = vmatprep.subr.bf16.mxu0 0
    %5412 = vmatpush1.bf16.msra.mxu0 0
    %5413 = vmatprep.subr.bf16.mxu0 0
    %5414 = vmatpush1.bf16.msra.mxu0 0
    %5415 = vmatprep.subr.bf16.mxu0 0
    %5416 = vmatpush1.bf16.msra.mxu0 0
    %5417 = vmatprep.subr.bf16.mxu0 0
    %5418 = vmatpush1.bf16.msra.mxu0 0
    %5419 = vmatprep.subr.bf16.mxu0 0
    %5420 = vmatpush1.bf16.msra.mxu0 0
    %5421 = vmatprep.subr.bf16.mxu0 0
    %5422 = vmatpush1.bf16.msra.mxu0 0
    %5423 = vmatprep.subr.bf16.mxu0 0
    %5424 = vmatpush1.bf16.msra.mxu0 0
    %5425 = vmatprep.subr.bf16.mxu0 0
    %5426 = vmatpush1.bf16.msra.mxu0 0
    %5427 = vmatprep.subr.bf16.mxu0 0
    %5428 = vmatpush1.bf16.msra.mxu0 0
    %5429 = vmatprep.subr.bf16.mxu0 0
    %5430 = vmatpush1.bf16.msra.mxu0 0
    %5431 = vmatprep.mubr.bf16.mxu0 0
    %5432 = vmatmul.mubr.bf16.gmra.mrb[0].mxu0 %v5256
    %v5433 = vpop.f32.mrb[0].mxu0
    %v5434 = vadd.f32 %v5391, %v5433
    %v5435 = vpop.f32.mrb[0].mxu0
    %v5436 = vadd.f32 %v5393, %v5435
    %v5437 = vpop.f32.mrb[0].mxu0
    %v5438 = vadd.f32 %v5395, %v5437
    %v5439 = vpop.f32.mrb[0].mxu0
    %v5440 = vadd.f32 %v5397, %v5439
    %5441 = vdwg.mxu0
    %v5512 = vunpack.c.l.b16 %v4764
    %v5513 = vunpack.c.h.b16 %v4764
    %v5514 = vunpack.c.l.b16 %v4765
    %v5515 = vunpack.c.h.b16 %v4765
    %v5516 = vunpack.c.l.b16 %v4766
    %v5517 = vunpack.c.h.b16 %v4766
    %v5518 = vunpack.c.l.b16 %v4767
    %v5519 = vunpack.c.h.b16 %v4767
    %v5520 = vunpack.c.l.b16 %v4768
    %v5521 = vunpack.c.h.b16 %v4768
    %v5522 = vunpack.c.l.b16 %v4769
    %v5523 = vunpack.c.h.b16 %v4769
    %v5524 = vunpack.c.l.b16 %v4770
    %v5525 = vunpack.c.h.b16 %v4770
    %v5526 = vunpack.c.l.b16 %v4771
    %v5527 = vunpack.c.h.b16 %v4771
    %v5528 = vunpack.c.l.b16 %v4772
    %v5529 = vunpack.c.h.b16 %v4772
    %v5530 = vunpack.c.l.b16 %v4773
    %v5531 = vunpack.c.h.b16 %v4773
    %v5532 = vunpack.c.l.b16 %v4774
    %v5533 = vunpack.c.h.b16 %v4774
    %v5534 = vunpack.c.l.b16 %v4775
    %v5535 = vunpack.c.h.b16 %v4775
    %v5536 = vunpack.c.l.b16 %v4776
    %v5537 = vunpack.c.h.b16 %v4776
    %v5538 = vunpack.c.l.b16 %v4777
    %v5539 = vunpack.c.h.b16 %v4777
    %v5540 = vunpack.c.l.b16 %v4778
    %v5541 = vunpack.c.h.b16 %v4778
    %v5542 = vunpack.c.l.b16 %v4779
    %v5543 = vunpack.c.h.b16 %v4779
    %v5544 = vunpack.c.l.b16 %v4780
    %v5545 = vunpack.c.h.b16 %v4780
    %v5546 = vunpack.c.l.b16 %v4781
    %v5547 = vunpack.c.h.b16 %v4781
    %v5548 = vunpack.c.l.b16 %v4782
    %v5549 = vunpack.c.h.b16 %v4782
    %v5550 = vunpack.c.l.b16 %v4783
    %v5551 = vunpack.c.h.b16 %v4783
    %v5552 = vunpack.c.l.b16 %v4784
    %v5553 = vunpack.c.h.b16 %v4784
    %v5554 = vunpack.c.l.b16 %v4785
    %v5555 = vunpack.c.h.b16 %v4785
    %v5556 = vunpack.c.l.b16 %v4786
    %v5557 = vunpack.c.h.b16 %v4786
    %v5558 = vunpack.c.l.b16 %v4787
    %v5559 = vunpack.c.h.b16 %v4787
    %v5560 = vunpack.c.l.b16 %v4788
    %v5561 = vunpack.c.h.b16 %v4788
    %v5562 = vunpack.c.l.b16 %v4789
    %v5563 = vunpack.c.h.b16 %v4789
    %v5564 = vunpack.c.l.b16 %v4790
    %v5565 = vunpack.c.h.b16 %v4790
    %v5566 = vunpack.c.l.b16 %v4791
    %v5567 = vunpack.c.h.b16 %v4791
    %v5568 = vunpack.c.l.b16 %v4792
    %v5569 = vunpack.c.h.b16 %v4792
    %v5570 = vunpack.c.l.b16 %v4793
    %v5571 = vunpack.c.h.b16 %v4793
    %v5572 = vunpack.c.l.b16 %v4794
    %v5573 = vunpack.c.h.b16 %v4794
    %v5574 = vunpack.c.l.b16 %v4795
    %v5575 = vunpack.c.h.b16 %v4795
    %v5576 = vunpack.c.l.b16 %v4796
    %v5577 = vunpack.c.h.b16 %v4796
    %v5578 = vunpack.c.l.b16 %v4797
    %v5579 = vunpack.c.h.b16 %v4797
    %v5580 = vunpack.c.l.b16 %v4798
    %v5581 = vunpack.c.h.b16 %v4798
    %v5582 = vunpack.c.l.b16 %v4799
    %v5583 = vunpack.c.h.b16 %v4799
    %v5584 = vunpack.c.l.b16 %v4800
    %v5585 = vunpack.c.h.b16 %v4800
    %v5586 = vunpack.c.l.b16 %v4801
    %v5587 = vunpack.c.h.b16 %v4801
    %v5588 = vunpack.c.l.b16 %v4802
    %v5589 = vunpack.c.h.b16 %v4802
    %v5590 = vunpack.c.l.b16 %v4803
    %v5591 = vunpack.c.h.b16 %v4803
    %v5592 = vunpack.c.l.b16 %v4804
    %v5593 = vunpack.c.h.b16 %v4804
    %v5594 = vunpack.c.l.b16 %v4805
    %v5595 = vunpack.c.h.b16 %v4805
    %v5596 = vunpack.c.l.b16 %v4806
    %v5597 = vunpack.c.h.b16 %v4806
    %v5598 = vunpack.c.l.b16 %v4807
    %v5599 = vunpack.c.h.b16 %v4807
    %v5600 = vunpack.c.l.b16 %v4808
    %v5601 = vunpack.c.h.b16 %v4808
    %v5602 = vunpack.c.l.b16 %v4809
    %v5603 = vunpack.c.h.b16 %v4809
    %v5604 = vunpack.c.l.b16 %v4810
    %v5605 = vunpack.c.h.b16 %v4810
    %v5606 = vunpack.c.l.b16 %v4811
    %v5607 = vunpack.c.h.b16 %v4811
    %v5608 = vunpack.c.l.b16 %v4812
    %v5609 = vunpack.c.h.b16 %v4812
    %v5610 = vunpack.c.l.b16 %v4813
    %v5611 = vunpack.c.h.b16 %v4813
    %v5612 = vunpack.c.l.b16 %v4814
    %v5613 = vunpack.c.h.b16 %v4814
    %v5614 = vunpack.c.l.b16 %v4815
    %v5615 = vunpack.c.h.b16 %v4815
    %v5616 = vunpack.c.l.b16 %v4816
    %v5617 = vunpack.c.h.b16 %v4816
    %v5618 = vunpack.c.l.b16 %v4817
    %v5619 = vunpack.c.h.b16 %v4817
    %v5620 = vunpack.c.l.b16 %v4818
    %v5621 = vunpack.c.h.b16 %v4818
    %v5622 = vunpack.c.l.b16 %v4819
    %v5623 = vunpack.c.h.b16 %v4819
    %v5624 = vunpack.c.l.b16 %v4820
    %v5625 = vunpack.c.h.b16 %v4820
    %v5626 = vunpack.c.l.b16 %v4821
    %v5627 = vunpack.c.h.b16 %v4821
    %v5628 = vunpack.c.l.b16 %v4822
    %v5629 = vunpack.c.h.b16 %v4822
    %v5630 = vunpack.c.l.b16 %v4823
    %v5631 = vunpack.c.h.b16 %v4823
    %v5632 = vunpack.c.l.b16 %v4824
    %v5633 = vunpack.c.h.b16 %v4824
    %v5634 = vunpack.c.l.b16 %v4825
    %v5635 = vunpack.c.h.b16 %v4825
    %v5636 = vunpack.c.l.b16 %v4826
    %v5637 = vunpack.c.h.b16 %v4826
    %v5638 = vunpack.c.l.b16 %v4827
    %v5639 = vunpack.c.h.b16 %v4827
    %v5640 = vunpack.c.l.b16 %v4828
    %v5641 = vunpack.c.h.b16 %v4828
    %v5642 = vunpack.c.l.b16 %v4829
    %v5643 = vunpack.c.h.b16 %v4829
    %v5644 = vunpack.c.l.b16 %v4830
    %v5645 = vunpack.c.h.b16 %v4830
    %v5646 = vunpack.c.l.b16 %v4831
    %v5647 = vunpack.c.h.b16 %v4831
    %v5648 = vunpack.c.l.b16 %v4832
    %v5649 = vunpack.c.h.b16 %v4832
    %v5650 = vunpack.c.l.b16 %v4833
    %v5651 = vunpack.c.h.b16 %v4833
    %v5652 = vpack.c.b16 %v5516, %v5512
    %v5653 = vpack.c.b16 %v5517, %v5513
    %v5654 = vpack.c.b16 %v5518, %v5514
    %v5655 = vpack.c.b16 %v5519, %v5515
    %v5656 = vpack.c.b16 %v5524, %v5520
    %v5657 = vpack.c.b16 %v5525, %v5521
    %v5658 = vpack.c.b16 %v5526, %v5522
    %v5659 = vpack.c.b16 %v5527, %v5523
    %v5660 = vpack.c.b16 %v5532, %v5528
    %v5661 = vpack.c.b16 %v5533, %v5529
    %v5662 = vpack.c.b16 %v5534, %v5530
    %v5663 = vpack.c.b16 %v5535, %v5531
    %v5664 = vpack.c.b16 %v5540, %v5536
    %v5665 = vpack.c.b16 %v5541, %v5537
    %v5666 = vpack.c.b16 %v5542, %v5538
    %v5667 = vpack.c.b16 %v5543, %v5539
    %v5668 = vpack.c.b16 %v5548, %v5544
    %v5669 = vpack.c.b16 %v5549, %v5545
    %v5670 = vpack.c.b16 %v5550, %v5546
    %v5671 = vpack.c.b16 %v5551, %v5547
    %v5672 = vpack.c.b16 %v5556, %v5552
    %v5673 = vpack.c.b16 %v5557, %v5553
    %v5674 = vpack.c.b16 %v5558, %v5554
    %v5675 = vpack.c.b16 %v5559, %v5555
    %v5676 = vpack.c.b16 %v5564, %v5560
    %v5677 = vpack.c.b16 %v5565, %v5561
    %v5678 = vpack.c.b16 %v5566, %v5562
    %v5679 = vpack.c.b16 %v5567, %v5563
    %v5680 = vpack.c.b16 %v5572, %v5568
    %v5681 = vpack.c.b16 %v5573, %v5569
    %v5682 = vpack.c.b16 %v5574, %v5570
    %v5683 = vpack.c.b16 %v5575, %v5571
    %v5684 = vpack.c.b16 %v5580, %v5576
    %v5685 = vpack.c.b16 %v5581, %v5577
    %v5686 = vpack.c.b16 %v5582, %v5578
    %v5687 = vpack.c.b16 %v5583, %v5579
    %v5688 = vpack.c.b16 %v5588, %v5584
    %v5689 = vpack.c.b16 %v5589, %v5585
    %v5690 = vpack.c.b16 %v5590, %v5586
    %v5691 = vpack.c.b16 %v5591, %v5587
    %v5692 = vpack.c.b16 %v5596, %v5592
    %v5693 = vpack.c.b16 %v5597, %v5593
    %v5694 = vpack.c.b16 %v5598, %v5594
    %v5695 = vpack.c.b16 %v5599, %v5595
    %v5696 = vpack.c.b16 %v5604, %v5600
    %v5697 = vpack.c.b16 %v5605, %v5601
    %v5698 = vpack.c.b16 %v5606, %v5602
    %v5699 = vpack.c.b16 %v5607, %v5603
    %v5700 = vpack.c.b16 %v5612, %v5608
    %v5701 = vpack.c.b16 %v5613, %v5609
    %v5702 = vpack.c.b16 %v5614, %v5610
    %v5703 = vpack.c.b16 %v5615, %v5611
    %v5704 = vpack.c.b16 %v5620, %v5616
    %v5705 = vpack.c.b16 %v5621, %v5617
    %v5706 = vpack.c.b16 %v5622, %v5618
    %v5707 = vpack.c.b16 %v5623, %v5619
    %v5708 = vpack.c.b16 %v5628, %v5624
    %v5709 = vpack.c.b16 %v5629, %v5625
    %v5710 = vpack.c.b16 %v5630, %v5626
    %v5711 = vpack.c.b16 %v5631, %v5627
    %v5712 = vpack.c.b16 %v5636, %v5632
    %v5713 = vpack.c.b16 %v5637, %v5633
    %v5714 = vpack.c.b16 %v5638, %v5634
    %v5715 = vpack.c.b16 %v5639, %v5635
    %v5716 = vpack.c.b16 %v5644, %v5640
    %v5717 = vpack.c.b16 %v5645, %v5641
    %v5718 = vpack.c.b16 %v5646, %v5642
    %v5719 = vpack.c.b16 %v5647, %v5643
    %v5720 = vpack.c.b16 %v5648, %v5648
    %v5721 = vpack.c.b16 %v5649, %v5649
    %v5722 = vpack.c.b16 %v5650, %v5650
    %v5723 = vpack.c.b16 %v5651, %v5651
    %v5793 = vsel %vm2080, %v4724, 0
    %v5796 = vsel %vm2123, %v5720, 0
    %v5799 = vsel %vm2123, %v5721, 0
    %v5802 = vsel %vm2123, %v5722, 0
    %v5805 = vsel %vm2123, %v5723, 0
    %5807 = vmatprep.subr.bf16.mxu0 %v5653
    %5808 = vmatpush1.bf16.msra.mxu0 %v5652
    %5809 = vmatprep.subr.bf16.mxu0 %v5657
    %5810 = vmatpush1.bf16.msra.mxu0 %v5656
    %5811 = vmatprep.subr.bf16.mxu0 %v5661
    %5812 = vmatpush1.bf16.msra.mxu0 %v5660
    %5813 = vmatprep.subr.bf16.mxu0 %v5665
    %5814 = vmatpush1.bf16.msra.mxu0 %v5664
    %5815 = vmatprep.subr.bf16.mxu0 %v5669
    %5816 = vmatpush1.bf16.msra.mxu0 %v5668
    %5817 = vmatprep.subr.bf16.mxu0 %v5673
    %5818 = vmatpush1.bf16.msra.mxu0 %v5672
    %5819 = vmatprep.subr.bf16.mxu0 %v5677
    %5820 = vmatpush1.bf16.msra.mxu0 %v5676
    %5821 = vmatprep.subr.bf16.mxu0 %v5681
    %5822 = vmatpush1.bf16.msra.mxu0 %v5680
    %5823 = vmatprep.subr.bf16.mxu0 %v5685
    %5824 = vmatpush1.bf16.msra.mxu0 %v5684
    %5825 = vmatprep.subr.bf16.mxu0 %v5689
    %5826 = vmatpush1.bf16.msra.mxu0 %v5688
    %5827 = vmatprep.subr.bf16.mxu0 %v5693
    %5828 = vmatpush1.bf16.msra.mxu0 %v5692
    %5829 = vmatprep.subr.bf16.mxu0 %v5697
    %5830 = vmatpush1.bf16.msra.mxu0 %v5696
    %5831 = vmatprep.subr.bf16.mxu0 %v5701
    %5832 = vmatpush1.bf16.msra.mxu0 %v5700
    %5833 = vmatprep.subr.bf16.mxu0 %v5705
    %5834 = vmatpush1.bf16.msra.mxu0 %v5704
    %5835 = vmatprep.subr.bf16.mxu0 %v5709
    %5836 = vmatpush1.bf16.msra.mxu0 %v5708
    %5837 = vmatprep.subr.bf16.mxu0 %v5713
    %5838 = vmatpush1.bf16.msra.mxu0 %v5712
    %5839 = vmatprep.mubr.bf16.mxu0 %v4723
    %5840 = vmatmul.mubr.bf16.gmra.mrb[0].mxu0 %v4722
    %v5841 = vpop.f32.mrb[0].mxu0
    %v5842 = vadd.f32 %v5348, %v5841
    %v5843 = vpop.f32.mrb[0].mxu0
    %v5844 = vadd.f32 %v5350, %v5843
    %v5845 = vpop.f32.mrb[0].mxu0
    %v5846 = vadd.f32 %v5352, %v5845
    %v5847 = vpop.f32.mrb[0].mxu0
    %v5848 = vadd.f32 %v5354, %v5847
    %5849 = vdwg.mxu0
    %5850 = vmatprep.subr.bf16.mxu0 %v5717
    %5851 = vmatpush1.bf16.msra.mxu0 %v5716
    %5852 = vmatprep.subr.bf16.mxu0 %v5799
    %5853 = vmatpush1.bf16.msra.mxu0 %v5796
    %5854 = vmatprep.subr.bf16.mxu0 0
    %5855 = vmatpush1.bf16.msra.mxu0 0
    %5856 = vmatprep.subr.bf16.mxu0 0
    %5857 = vmatpush1.bf16.msra.mxu0 0
    %5858 = vmatprep.subr.bf16.mxu0 0
    %5859 = vmatpush1.bf16.msra.mxu0 0
    %5860 = vmatprep.subr.bf16.mxu0 0
    %5861 = vmatpush1.bf16.msra.mxu0 0
    %5862 = vmatprep.subr.bf16.mxu0 0
    %5863 = vmatpush1.bf16.msra.mxu0 0
    %5864 = vmatprep.subr.bf16.mxu0 0
    %5865 = vmatpush1.bf16.msra.mxu0 0
    %5866 = vmatprep.subr.bf16.mxu0 0
    %5867 = vmatpush1.bf16.msra.mxu0 0
    %5868 = vmatprep.subr.bf16.mxu0 0
    %5869 = vmatpush1.bf16.msra.mxu0 0
    %5870 = vmatprep.subr.bf16.mxu0 0
    %5871 = vmatpush1.bf16.msra.mxu0 0
    %5872 = vmatprep.subr.bf16.mxu0 0
    %5873 = vmatpush1.bf16.msra.mxu0 0
    %5874 = vmatprep.subr.bf16.mxu0 0
    %5875 = vmatpush1.bf16.msra.mxu0 0
    %5876 = vmatprep.subr.bf16.mxu0 0
    %5877 = vmatpush1.bf16.msra.mxu0 0
    %5878 = vmatprep.subr.bf16.mxu0 0
    %5879 = vmatpush1.bf16.msra.mxu0 0
    %5880 = vmatprep.subr.bf16.mxu0 0
    %5881 = vmatpush1.bf16.msra.mxu0 0
    %5882 = vmatprep.mubr.bf16.mxu0 0
    %5883 = vmatmul.mubr.bf16.gmra.mrb[0].mxu0 %v5793
    %v5884 = vpop.f32.mrb[0].mxu0
    %v5885 = vadd.f32 %v5842, %v5884
    %v5886 = vpop.f32.mrb[0].mxu0
    %v5887 = vadd.f32 %v5844, %v5886
    %v5888 = vpop.f32.mrb[0].mxu0
    %v5889 = vadd.f32 %v5846, %v5888
    %v5890 = vpop.f32.mrb[0].mxu0
    %v5891 = vadd.f32 %v5848, %v5890
    %5892 = vdwg.mxu0
    %5893 = vmatprep.subr.bf16.mxu0 %v5655
    %5894 = vmatpush1.bf16.msra.mxu0 %v5654
    %5895 = vmatprep.subr.bf16.mxu0 %v5659
    %5896 = vmatpush1.bf16.msra.mxu0 %v5658
    %5897 = vmatprep.subr.bf16.mxu0 %v5663
    %5898 = vmatpush1.bf16.msra.mxu0 %v5662
    %5899 = vmatprep.subr.bf16.mxu0 %v5667
    %5900 = vmatpush1.bf16.msra.mxu0 %v5666
    %5901 = vmatprep.subr.bf16.mxu0 %v5671
    %5902 = vmatpush1.bf16.msra.mxu0 %v5670
    %5903 = vmatprep.subr.bf16.mxu0 %v5675
    %5904 = vmatpush1.bf16.msra.mxu0 %v5674
    %5905 = vmatprep.subr.bf16.mxu0 %v5679
    %5906 = vmatpush1.bf16.msra.mxu0 %v5678
    %5907 = vmatprep.subr.bf16.mxu0 %v5683
    %5908 = vmatpush1.bf16.msra.mxu0 %v5682
    %5909 = vmatprep.subr.bf16.mxu0 %v5687
    %5910 = vmatpush1.bf16.msra.mxu0 %v5686
    %5911 = vmatprep.subr.bf16.mxu0 %v5691
    %5912 = vmatpush1.bf16.msra.mxu0 %v5690
    %5913 = vmatprep.subr.bf16.mxu0 %v5695
    %5914 = vmatpush1.bf16.msra.mxu0 %v5694
    %5915 = vmatprep.subr.bf16.mxu0 %v5699
    %5916 = vmatpush1.bf16.msra.mxu0 %v5698
    %5917 = vmatprep.subr.bf16.mxu0 %v5703
    %5918 = vmatpush1.bf16.msra.mxu0 %v5702
    %5919 = vmatprep.subr.bf16.mxu0 %v5707
    %5920 = vmatpush1.bf16.msra.mxu0 %v5706
    %5921 = vmatprep.subr.bf16.mxu0 %v5711
    %5922 = vmatpush1.bf16.msra.mxu0 %v5710
    %5923 = vmatprep.subr.bf16.mxu0 %v5715
    %5924 = vmatpush1.bf16.msra.mxu0 %v5714
    %5925 = vmatprep.mubr.bf16.mxu0 %v4723
    %5926 = vmatmul.mubr.bf16.gmra.mrb[0].mxu0 %v4722
    %v5927 = vpop.f32.mrb[0].mxu0
    %v5928 = vadd.f32 %v5434, %v5927
    %v5929 = vpop.f32.mrb[0].mxu0
    %v5930 = vadd.f32 %v5436, %v5929
    %v5931 = vpop.f32.mrb[0].mxu0
    %v5932 = vadd.f32 %v5438, %v5931
    %v5933 = vpop.f32.mrb[0].mxu0
    %v5934 = vadd.f32 %v5440, %v5933
    %5935 = vdwg.mxu0
    %5936 = vmatprep.subr.bf16.mxu0 %v5719
    %5937 = vmatpush1.bf16.msra.mxu0 %v5718
    %5938 = vmatprep.subr.bf16.mxu0 %v5805
    %5939 = vmatpush1.bf16.msra.mxu0 %v5802
    %5940 = vmatprep.subr.bf16.mxu0 0
    %5941 = vmatpush1.bf16.msra.mxu0 0
    %5942 = vmatprep.subr.bf16.mxu0 0
    %5943 = vmatpush1.bf16.msra.mxu0 0
    %5944 = vmatprep.subr.bf16.mxu0 0
    %5945 = vmatpush1.bf16.msra.mxu0 0
    %5946 = vmatprep.subr.bf16.mxu0 0
    %5947 = vmatpush1.bf16.msra.mxu0 0
    %5948 = vmatprep.subr.bf16.mxu0 0
    %5949 = vmatpush1.bf16.msra.mxu0 0
    %5950 = vmatprep.subr.bf16.mxu0 0
    %5951 = vmatpush1.bf16.msra.mxu0 0
    %5952 = vmatprep.subr.bf16.mxu0 0
    %5953 = vmatpush1.bf16.msra.mxu0 0
    %5954 = vmatprep.subr.bf16.mxu0 0
    %5955 = vmatpush1.bf16.msra.mxu0 0
    %5956 = vmatprep.subr.bf16.mxu0 0
    %5957 = vmatpush1.bf16.msra.mxu0 0
    %5958 = vmatprep.subr.bf16.mxu0 0
    %5959 = vmatpush1.bf16.msra.mxu0 0
    %5960 = vmatprep.subr.bf16.mxu0 0
    %5961 = vmatpush1.bf16.msra.mxu0 0
    %5962 = vmatprep.subr.bf16.mxu0 0
    %5963 = vmatpush1.bf16.msra.mxu0 0
    %5964 = vmatprep.subr.bf16.mxu0 0
    %5965 = vmatpush1.bf16.msra.mxu0 0
    %5966 = vmatprep.subr.bf16.mxu0 0
    %5967 = vmatpush1.bf16.msra.mxu0 0
    %5968 = vmatprep.mubr.bf16.mxu0 0
    %5969 = vmatmul.mubr.bf16.gmra.mrb[0].mxu0 %v5793
    %v5970 = vpop.f32.mrb[0].mxu0
    %v5971 = vadd.f32 %v5928, %v5970
    %v5972 = vpop.f32.mrb[0].mxu0
    %v5973 = vadd.f32 %v5930, %v5972
    %v5974 = vpop.f32.mrb[0].mxu0
    %v5975 = vadd.f32 %v5932, %v5974
    %v5976 = vpop.f32.mrb[0].mxu0
    %v5977 = vadd.f32 %v5934, %v5976
    %5978 = vdwg.mxu0
    %s5979 = scalar_lea.vmem [#allocation7], 1120
    %v5980 = vld [vmem:[%s5979] sm:$0xff]
    %v5981 = vld [vmem:[%s5979 + $0x8] sm:$0xff]
    %v5982 = vld [vmem:[%s5979 + $0x10] sm:$0xff]
    %v5983 = vld [vmem:[%s5979 + $0x18] sm:$0xff]
    %v5984 = vld [vmem:[%s5979 + $0x20] sm:$0xff]
    %v5985 = vld [vmem:[%s5979 + $0x28] sm:$0xff]
    %v5986 = vld [vmem:[%s5979 + $0x30] sm:$0xff]
    %v5987 = vld [vmem:[%s5979 + $0x38] sm:$0xff]
    %v5988 = vld [vmem:[%s5979 + $0x40] sm:$0xff]
    %v5989 = vld [vmem:[%s5979 + $0x48] sm:$0xff]
    %v5990 = vld [vmem:[%s5979 + $0x50] sm:$0xff]
    %v5991 = vld [vmem:[%s5979 + $0x58] sm:$0xff]
    %v5992 = vld [vmem:[%s5979 + $0x60] sm:$0xff]
    %v5993 = vld [vmem:[%s5979 + $0x68] sm:$0xff]
    %v5994 = vld [vmem:[%s5979 + $0x70] sm:$0xff]
    %v5995 = vld [vmem:[%s5979 + $0x78] sm:$0xff]
    %v5996 = vld [vmem:[%s5979 + $0x80] sm:$0xff]
    %v5997 = vld [vmem:[%s5979 + $0x88] sm:$0xff]
    %v5998 = vld [vmem:[%s5979 + $0x90] sm:$0xff]
    %v5999 = vld [vmem:[%s5979 + $0x98] sm:$0xff]
    %v6000 = vld [vmem:[%s5979 + $0xa0] sm:$0xff]
    %v6001 = vld [vmem:[%s5979 + $0xa8] sm:$0xff]
    %v6002 = vld [vmem:[%s5979 + $0xb0] sm:$0xff]
    %v6003 = vld [vmem:[%s5979 + $0xb8] sm:$0xff]
    %v6004 = vld [vmem:[%s5979 + $0xc0] sm:$0xff]
    %v6005 = vld [vmem:[%s5979 + $0xc8] sm:$0xff]
    %v6006 = vld [vmem:[%s5979 + $0xd0] sm:$0xff]
    %v6007 = vld [vmem:[%s5979 + $0xd8] sm:$0xff]
    %v6008 = vld [vmem:[%s5979 + $0xe0] sm:$0xff]
    %v6009 = vld [vmem:[%s5979 + $0xe8] sm:$0xff]
    %v6010 = vld [vmem:[%s5979 + $0xf0] sm:$0xff]
    %v6011 = vld [vmem:[%s5979 + $0xf8] sm:$0xff]
    %v6012 = vld [vmem:[%s5979 + $0x100] sm:$0xff]
    %v6013 = vld [vmem:[%s5979 + $0x108] sm:$0xff]
    %v6014 = vld [vmem:[%s5979 + $0x110] sm:$0xff]
    %v6015 = vld [vmem:[%s5979 + $0x118] sm:$0xff]
    %v6016 = vld [vmem:[%s5979 + $0x120] sm:$0xff]
    %v6017 = vld [vmem:[%s5979 + $0x128] sm:$0xff]
    %v6018 = vld [vmem:[%s5979 + $0x130] sm:$0xff]
    %v6019 = vld [vmem:[%s5979 + $0x138] sm:$0xff]
    %v6020 = vld [vmem:[%s5979 + $0x140] sm:$0xff]
    %v6021 = vld [vmem:[%s5979 + $0x148] sm:$0xff]
    %v6022 = vld [vmem:[%s5979 + $0x150] sm:$0xff]
    %v6023 = vld [vmem:[%s5979 + $0x158] sm:$0xff]
    %v6024 = vld [vmem:[%s5979 + $0x160] sm:$0xff]
    %v6025 = vld [vmem:[%s5979 + $0x168] sm:$0xff]
    %v6026 = vld [vmem:[%s5979 + $0x170] sm:$0xff]
    %v6027 = vld [vmem:[%s5979 + $0x178] sm:$0xff]
    %v6028 = vld [vmem:[%s5979 + $0x180] sm:$0xff]
    %v6029 = vld [vmem:[%s5979 + $0x188] sm:$0xff]
    %v6030 = vld [vmem:[%s5979 + $0x190] sm:$0xff]
    %v6031 = vld [vmem:[%s5979 + $0x198] sm:$0xff]
    %v6032 = vld [vmem:[%s5979 + $0x1a0] sm:$0xff]
    %v6033 = vld [vmem:[%s5979 + $0x1a8] sm:$0xff]
    %v6034 = vld [vmem:[%s5979 + $0x1b0] sm:$0xff]
    %v6035 = vld [vmem:[%s5979 + $0x1b8] sm:$0xff]
    %v6036 = vld [vmem:[%s5979 + $0x1c0] sm:$0xff]
    %v6037 = vld [vmem:[%s5979 + $0x1c8] sm:$0xff]
    %v6038 = vld [vmem:[%s5979 + $0x1d0] sm:$0xff]
    %v6039 = vld [vmem:[%s5979 + $0x1d8] sm:$0xff]
    %v6040 = vld [vmem:[%s5979 + $0x1e0] sm:$0xff]
    %v6041 = vld [vmem:[%s5979 + $0x1e8] sm:$0xff]
    %v6042 = vld [vmem:[%s5979 + $0x1f0] sm:$0xff]
    %v6043 = vld [vmem:[%s5979 + $0x1f8] sm:$0xff]
    %v6044 = vld [vmem:[%s5979 + $0x200] sm:$0xff]
    %v6045 = vld [vmem:[%s5979 + $0x208] sm:$0xff]
    %v6046 = vld [vmem:[%s5979 + $0x210] sm:$0xff]
    %v6047 = vld [vmem:[%s5979 + $0x218] sm:$0xff]
    %v6048 = vld [vmem:[%s5979 + $0x220] sm:$0xff]
    %v6049 = vld [vmem:[%s5979 + $0x228] sm:$0xff]
    %v6120 = vunpack.c.l.b16 %v5980
    %v6121 = vunpack.c.h.b16 %v5980
    %v6122 = vunpack.c.l.b16 %v5981
    %v6123 = vunpack.c.h.b16 %v5981
    %v6124 = vunpack.c.l.b16 %v5982
    %v6125 = vunpack.c.h.b16 %v5982
    %v6126 = vunpack.c.l.b16 %v5983
    %v6127 = vunpack.c.h.b16 %v5983
    %v6128 = vunpack.c.l.b16 %v5984
    %v6129 = vunpack.c.h.b16 %v5984
    %v6130 = vunpack.c.l.b16 %v5985
    %v6131 = vunpack.c.h.b16 %v5985
    %v6132 = vunpack.c.l.b16 %v5986
    %v6133 = vunpack.c.h.b16 %v5986
    %v6134 = vunpack.c.l.b16 %v5987
    %v6135 = vunpack.c.h.b16 %v5987
    %v6136 = vunpack.c.l.b16 %v5988
    %v6137 = vunpack.c.h.b16 %v5988
    %v6138 = vunpack.c.l.b16 %v5989
    %v6139 = vunpack.c.h.b16 %v5989
    %v6140 = vunpack.c.l.b16 %v5990
    %v6141 = vunpack.c.h.b16 %v5990
    %v6142 = vunpack.c.l.b16 %v5991
    %v6143 = vunpack.c.h.b16 %v5991
    %v6144 = vunpack.c.l.b16 %v5992
    %v6145 = vunpack.c.h.b16 %v5992
    %v6146 = vunpack.c.l.b16 %v5993
    %v6147 = vunpack.c.h.b16 %v5993
    %v6148 = vunpack.c.l.b16 %v5994
    %v6149 = vunpack.c.h.b16 %v5994
    %v6150 = vunpack.c.l.b16 %v5995
    %v6151 = vunpack.c.h.b16 %v5995
    %v6152 = vunpack.c.l.b16 %v5996
    %v6153 = vunpack.c.h.b16 %v5996
    %v6154 = vunpack.c.l.b16 %v5997
    %v6155 = vunpack.c.h.b16 %v5997
    %v6156 = vunpack.c.l.b16 %v5998
    %v6157 = vunpack.c.h.b16 %v5998
    %v6158 = vunpack.c.l.b16 %v5999
    %v6159 = vunpack.c.h.b16 %v5999
    %v6160 = vunpack.c.l.b16 %v6000
    %v6161 = vunpack.c.h.b16 %v6000
    %v6162 = vunpack.c.l.b16 %v6001
    %v6163 = vunpack.c.h.b16 %v6001
    %v6164 = vunpack.c.l.b16 %v6002
    %v6165 = vunpack.c.h.b16 %v6002
    %v6166 = vunpack.c.l.b16 %v6003
    %v6167 = vunpack.c.h.b16 %v6003
    %v6168 = vunpack.c.l.b16 %v6004
    %v6169 = vunpack.c.h.b16 %v6004
    %v6170 = vunpack.c.l.b16 %v6005
    %v6171 = vunpack.c.h.b16 %v6005
    %v6172 = vunpack.c.l.b16 %v6006
    %v6173 = vunpack.c.h.b16 %v6006
    %v6174 = vunpack.c.l.b16 %v6007
    %v6175 = vunpack.c.h.b16 %v6007
    %v6176 = vunpack.c.l.b16 %v6008
    %v6177 = vunpack.c.h.b16 %v6008
    %v6178 = vunpack.c.l.b16 %v6009
    %v6179 = vunpack.c.h.b16 %v6009
    %v6180 = vunpack.c.l.b16 %v6010
    %v6181 = vunpack.c.h.b16 %v6010
    %v6182 = vunpack.c.l.b16 %v6011
    %v6183 = vunpack.c.h.b16 %v6011
    %v6184 = vunpack.c.l.b16 %v6012
    %v6185 = vunpack.c.h.b16 %v6012
    %v6186 = vunpack.c.l.b16 %v6013
    %v6187 = vunpack.c.h.b16 %v6013
    %v6188 = vunpack.c.l.b16 %v6014
    %v6189 = vunpack.c.h.b16 %v6014
    %v6190 = vunpack.c.l.b16 %v6015
    %v6191 = vunpack.c.h.b16 %v6015
    %v6192 = vunpack.c.l.b16 %v6016
    %v6193 = vunpack.c.h.b16 %v6016
    %v6194 = vunpack.c.l.b16 %v6017
    %v6195 = vunpack.c.h.b16 %v6017
    %v6196 = vunpack.c.l.b16 %v6018
    %v6197 = vunpack.c.h.b16 %v6018
    %v6198 = vunpack.c.l.b16 %v6019
    %v6199 = vunpack.c.h.b16 %v6019
    %v6200 = vunpack.c.l.b16 %v6020
    %v6201 = vunpack.c.h.b16 %v6020
    %v6202 = vunpack.c.l.b16 %v6021
    %v6203 = vunpack.c.h.b16 %v6021
    %v6204 = vunpack.c.l.b16 %v6022
    %v6205 = vunpack.c.h.b16 %v6022
    %v6206 = vunpack.c.l.b16 %v6023
    %v6207 = vunpack.c.h.b16 %v6023
    %v6208 = vunpack.c.l.b16 %v6024
    %v6209 = vunpack.c.h.b16 %v6024
    %v6210 = vunpack.c.l.b16 %v6025
    %v6211 = vunpack.c.h.b16 %v6025
    %v6212 = vunpack.c.l.b16 %v6026
    %v6213 = vunpack.c.h.b16 %v6026
    %v6214 = vunpack.c.l.b16 %v6027
    %v6215 = vunpack.c.h.b16 %v6027
    %v6216 = vunpack.c.l.b16 %v6028
    %v6217 = vunpack.c.h.b16 %v6028
    %v6218 = vunpack.c.l.b16 %v6029
    %v6219 = vunpack.c.h.b16 %v6029
    %v6220 = vunpack.c.l.b16 %v6030
    %v6221 = vunpack.c.h.b16 %v6030
    %v6222 = vunpack.c.l.b16 %v6031
    %v6223 = vunpack.c.h.b16 %v6031
    %v6224 = vunpack.c.l.b16 %v6032
    %v6225 = vunpack.c.h.b16 %v6032
    %v6226 = vunpack.c.l.b16 %v6033
    %v6227 = vunpack.c.h.b16 %v6033
    %v6228 = vunpack.c.l.b16 %v6034
    %v6229 = vunpack.c.h.b16 %v6034
    %v6230 = vunpack.c.l.b16 %v6035
    %v6231 = vunpack.c.h.b16 %v6035
    %v6232 = vunpack.c.l.b16 %v6036
    %v6233 = vunpack.c.h.b16 %v6036
    %v6234 = vunpack.c.l.b16 %v6037
    %v6235 = vunpack.c.h.b16 %v6037
    %v6236 = vunpack.c.l.b16 %v6038
    %v6237 = vunpack.c.h.b16 %v6038
    %v6238 = vunpack.c.l.b16 %v6039
    %v6239 = vunpack.c.h.b16 %v6039
    %v6240 = vunpack.c.l.b16 %v6040
    %v6241 = vunpack.c.h.b16 %v6040
    %v6242 = vunpack.c.l.b16 %v6041
    %v6243 = vunpack.c.h.b16 %v6041
    %v6244 = vunpack.c.l.b16 %v6042
    %v6245 = vunpack.c.h.b16 %v6042
    %v6246 = vunpack.c.l.b16 %v6043
    %v6247 = vunpack.c.h.b16 %v6043
    %v6248 = vunpack.c.l.b16 %v6044
    %v6249 = vunpack.c.h.b16 %v6044
    %v6250 = vunpack.c.l.b16 %v6045
    %v6251 = vunpack.c.h.b16 %v6045
    %v6252 = vunpack.c.l.b16 %v6046
    %v6253 = vunpack.c.h.b16 %v6046
    %v6254 = vunpack.c.l.b16 %v6047
    %v6255 = vunpack.c.h.b16 %v6047
    %v6256 = vunpack.c.l.b16 %v6048
    %v6257 = vunpack.c.h.b16 %v6048
    %v6258 = vunpack.c.l.b16 %v6049
    %v6259 = vunpack.c.h.b16 %v6049
    %v6260 = vpack.c.b16 %v6124, %v6120
    %v6261 = vpack.c.b16 %v6125, %v6121
    %v6262 = vpack.c.b16 %v6126, %v6122
    %v6263 = vpack.c.b16 %v6127, %v6123
    %v6264 = vpack.c.b16 %v6132, %v6128
    %v6265 = vpack.c.b16 %v6133, %v6129
    %v6266 = vpack.c.b16 %v6134, %v6130
    %v6267 = vpack.c.b16 %v6135, %v6131
    %v6268 = vpack.c.b16 %v6140, %v6136
    %v6269 = vpack.c.b16 %v6141, %v6137
    %v6270 = vpack.c.b16 %v6142, %v6138
    %v6271 = vpack.c.b16 %v6143, %v6139
    %v6272 = vpack.c.b16 %v6148, %v6144
    %v6273 = vpack.c.b16 %v6149, %v6145
    %v6274 = vpack.c.b16 %v6150, %v6146
    %v6275 = vpack.c.b16 %v6151, %v6147
    %v6276 = vpack.c.b16 %v6156, %v6152
    %v6277 = vpack.c.b16 %v6157, %v6153
    %v6278 = vpack.c.b16 %v6158, %v6154
    %v6279 = vpack.c.b16 %v6159, %v6155
    %v6280 = vpack.c.b16 %v6164, %v6160
    %v6281 = vpack.c.b16 %v6165, %v6161
    %v6282 = vpack.c.b16 %v6166, %v6162
    %v6283 = vpack.c.b16 %v6167, %v6163
    %v6284 = vpack.c.b16 %v6172, %v6168
    %v6285 = vpack.c.b16 %v6173, %v6169
    %v6286 = vpack.c.b16 %v6174, %v6170
    %v6287 = vpack.c.b16 %v6175, %v6171
    %v6288 = vpack.c.b16 %v6180, %v6176
    %v6289 = vpack.c.b16 %v6181, %v6177
    %v6290 = vpack.c.b16 %v6182, %v6178
    %v6291 = vpack.c.b16 %v6183, %v6179
    %v6292 = vpack.c.b16 %v6188, %v6184
    %v6293 = vpack.c.b16 %v6189, %v6185
    %v6294 = vpack.c.b16 %v6190, %v6186
    %v6295 = vpack.c.b16 %v6191, %v6187
    %v6296 = vpack.c.b16 %v6196, %v6192
    %v6297 = vpack.c.b16 %v6197, %v6193
    %v6298 = vpack.c.b16 %v6198, %v6194
    %v6299 = vpack.c.b16 %v6199, %v6195
    %v6300 = vpack.c.b16 %v6204, %v6200
    %v6301 = vpack.c.b16 %v6205, %v6201
    %v6302 = vpack.c.b16 %v6206, %v6202
    %v6303 = vpack.c.b16 %v6207, %v6203
    %v6304 = vpack.c.b16 %v6212, %v6208
    %v6305 = vpack.c.b16 %v6213, %v6209
    %v6306 = vpack.c.b16 %v6214, %v6210
    %v6307 = vpack.c.b16 %v6215, %v6211
    %v6308 = vpack.c.b16 %v6220, %v6216
    %v6309 = vpack.c.b16 %v6221, %v6217
    %v6310 = vpack.c.b16 %v6222, %v6218
    %v6311 = vpack.c.b16 %v6223, %v6219
    %v6312 = vpack.c.b16 %v6228, %v6224
    %v6313 = vpack.c.b16 %v6229, %v6225
    %v6314 = vpack.c.b16 %v6230, %v6226
    %v6315 = vpack.c.b16 %v6231, %v6227
    %v6316 = vpack.c.b16 %v6236, %v6232
    %v6317 = vpack.c.b16 %v6237, %v6233
    %v6318 = vpack.c.b16 %v6238, %v6234
    %v6319 = vpack.c.b16 %v6239, %v6235
    %v6320 = vpack.c.b16 %v6244, %v6240
    %v6321 = vpack.c.b16 %v6245, %v6241
    %v6322 = vpack.c.b16 %v6246, %v6242
    %v6323 = vpack.c.b16 %v6247, %v6243
    %v6324 = vpack.c.b16 %v6252, %v6248
    %v6325 = vpack.c.b16 %v6253, %v6249
    %v6326 = vpack.c.b16 %v6254, %v6250
    %v6327 = vpack.c.b16 %v6255, %v6251
    %v6328 = vpack.c.b16 %v6256, %v6256
    %v6329 = vpack.c.b16 %v6257, %v6257
    %v6330 = vpack.c.b16 %v6258, %v6258
    %v6331 = vpack.c.b16 %v6259, %v6259
    %v6401 = vsel %vm2080, %v4730, 0
    %v6404 = vsel %vm2123, %v6328, 0
    %v6407 = vsel %vm2123, %v6329, 0
    %v6410 = vsel %vm2123, %v6330, 0
    %v6413 = vsel %vm2123, %v6331, 0
    %6415 = vmatprep.subr.bf16.mxu0 %v6261
    %6416 = vmatpush1.bf16.msra.mxu0 %v6260
    %6417 = vmatprep.subr.bf16.mxu0 %v6265
    %6418 = vmatpush1.bf16.msra.mxu0 %v6264
    %6419 = vmatprep.subr.bf16.mxu0 %v6269
    %6420 = vmatpush1.bf16.msra.mxu0 %v6268
    %6421 = vmatprep.subr.bf16.mxu0 %v6273
    %6422 = vmatpush1.bf16.msra.mxu0 %v6272
    %6423 = vmatprep.subr.bf16.mxu0 %v6277
    %6424 = vmatpush1.bf16.msra.mxu0 %v6276
    %6425 = vmatprep.subr.bf16.mxu0 %v6281
    %6426 = vmatpush1.bf16.msra.mxu0 %v6280
    %6427 = vmatprep.subr.bf16.mxu0 %v6285
    %6428 = vmatpush1.bf16.msra.mxu0 %v6284
    %6429 = vmatprep.subr.bf16.mxu0 %v6289
    %6430 = vmatpush1.bf16.msra.mxu0 %v6288
    %6431 = vmatprep.subr.bf16.mxu0 %v6293
    %6432 = vmatpush1.bf16.msra.mxu0 %v6292
    %6433 = vmatprep.subr.bf16.mxu0 %v6297
    %6434 = vmatpush1.bf16.msra.mxu0 %v6296
    %6435 = vmatprep.subr.bf16.mxu0 %v6301
    %6436 = vmatpush1.bf16.msra.mxu0 %v6300
    %6437 = vmatprep.subr.bf16.mxu0 %v6305
    %6438 = vmatpush1.bf16.msra.mxu0 %v6304
    %6439 = vmatprep.subr.bf16.mxu0 %v6309
    %6440 = vmatpush1.bf16.msra.mxu0 %v6308
    %6441 = vmatprep.subr.bf16.mxu0 %v6313
    %6442 = vmatpush1.bf16.msra.mxu0 %v6312
    %6443 = vmatprep.subr.bf16.mxu0 %v6317
    %6444 = vmatpush1.bf16.msra.mxu0 %v6316
    %6445 = vmatprep.subr.bf16.mxu0 %v6321
    %6446 = vmatpush1.bf16.msra.mxu0 %v6320
    %6447 = vmatprep.mubr.bf16.mxu0 %v4729
    %6448 = vmatmul.mubr.bf16.gmra.mrb[0].mxu0 %v4728
    %v6449 = vpop.f32.mrb[0].mxu0
    %v6450 = vadd.f32 0.0, %v6449
    %v6451 = vpop.f32.mrb[0].mxu0
    %v6452 = vadd.f32 0.0, %v6451
    %v6453 = vpop.f32.mrb[0].mxu0
    %v6454 = vadd.f32 0.0, %v6453
    %v6455 = vpop.f32.mrb[0].mxu0
    %v6456 = vadd.f32 0.0, %v6455
    %6457 = vdwg.mxu0
    %6458 = vmatprep.subr.bf16.mxu0 %v6325
    %6459 = vmatpush1.bf16.msra.mxu0 %v6324
    %6460 = vmatprep.subr.bf16.mxu0 %v6407
    %6461 = vmatpush1.bf16.msra.mxu0 %v6404
    %6462 = vmatprep.subr.bf16.mxu0 0
    %6463 = vmatpush1.bf16.msra.mxu0 0
    %6464 = vmatprep.subr.bf16.mxu0 0
    %6465 = vmatpush1.bf16.msra.mxu0 0
    %6466 = vmatprep.subr.bf16.mxu0 0
    %6467 = vmatpush1.bf16.msra.mxu0 0
    %6468 = vmatprep.subr.bf16.mxu0 0
    %6469 = vmatpush1.bf16.msra.mxu0 0
    %6470 = vmatprep.subr.bf16.mxu0 0
    %6471 = vmatpush1.bf16.msra.mxu0 0
    %6472 = vmatprep.subr.bf16.mxu0 0
    %6473 = vmatpush1.bf16.msra.mxu0 0
    %6474 = vmatprep.subr.bf16.mxu0 0
    %6475 = vmatpush1.bf16.msra.mxu0 0
    %6476 = vmatprep.subr.bf16.mxu0 0
    %6477 = vmatpush1.bf16.msra.mxu0 0
    %6478 = vmatprep.subr.bf16.mxu0 0
    %6479 = vmatpush1.bf16.msra.mxu0 0
    %6480 = vmatprep.subr.bf16.mxu0 0
    %6481 = vmatpush1.bf16.msra.mxu0 0
    %6482 = vmatprep.subr.bf16.mxu0 0
    %6483 = vmatpush1.bf16.msra.mxu0 0
    %6484 = vmatprep.subr.bf16.mxu0 0
    %6485 = vmatpush1.bf16.msra.mxu0 0
    %6486 = vmatprep.subr.bf16.mxu0 0
    %6487 = vmatpush1.bf16.msra.mxu0 0
    %6488 = vmatprep.subr.bf16.mxu0 0
    %6489 = vmatpush1.bf16.msra.mxu0 0
    %6490 = vmatprep.mubr.bf16.mxu0 0
    %6491 = vmatmul.mubr.bf16.gmra.mrb[0].mxu0 %v6401
    %v6492 = vpop.f32.mrb[0].mxu0
    %v6493 = vadd.f32 %v6450, %v6492
    %v6494 = vpop.f32.mrb[0].mxu0
    %v6495 = vadd.f32 %v6452, %v6494
    %v6496 = vpop.f32.mrb[0].mxu0
    %v6497 = vadd.f32 %v6454, %v6496
    %v6498 = vpop.f32.mrb[0].mxu0
    %v6499 = vadd.f32 %v6456, %v6498
    %6500 = vdwg.mxu0
    %6501 = vmatprep.subr.bf16.mxu0 %v6263
    %6502 = vmatpush1.bf16.msra.mxu0 %v6262
    %6503 = vmatprep.subr.bf16.mxu0 %v6267
    %6504 = vmatpush1.bf16.msra.mxu0 %v6266
    %6505 = vmatprep.subr.bf16.mxu0 %v6271
    %6506 = vmatpush1.bf16.msra.mxu0 %v6270
    %6507 = vmatprep.subr.bf16.mxu0 %v6275
    %6508 = vmatpush1.bf16.msra.mxu0 %v6274
    %6509 = vmatprep.subr.bf16.mxu0 %v6279
    %6510 = vmatpush1.bf16.msra.mxu0 %v6278
    %6511 = vmatprep.subr.bf16.mxu0 %v6283
    %6512 = vmatpush1.bf16.msra.mxu0 %v6282
    %6513 = vmatprep.subr.bf16.mxu0 %v6287
    %6514 = vmatpush1.bf16.msra.mxu0 %v6286
    %6515 = vmatprep.subr.bf16.mxu0 %v6291
    %6516 = vmatpush1.bf16.msra.mxu0 %v6290
    %6517 = vmatprep.subr.bf16.mxu0 %v6295
    %6518 = vmatpush1.bf16.msra.mxu0 %v6294
    %6519 = vmatprep.subr.bf16.mxu0 %v6299
    %6520 = vmatpush1.bf16.msra.mxu0 %v6298
    %6521 = vmatprep.subr.bf16.mxu0 %v6303
    %6522 = vmatpush1.bf16.msra.mxu0 %v6302
    %6523 = vmatprep.subr.bf16.mxu0 %v6307
    %6524 = vmatpush1.bf16.msra.mxu0 %v6306
    %6525 = vmatprep.subr.bf16.mxu0 %v6311
    %6526 = vmatpush1.bf16.msra.mxu0 %v6310
    %6527 = vmatprep.subr.bf16.mxu0 %v6315
    %6528 = vmatpush1.bf16.msra.mxu0 %v6314
    %6529 = vmatprep.subr.bf16.mxu0 %v6319
    %6530 = vmatpush1.bf16.msra.mxu0 %v6318
    %6531 = vmatprep.subr.bf16.mxu0 %v6323
    %6532 = vmatpush1.bf16.msra.mxu0 %v6322
    %6533 = vmatprep.mubr.bf16.mxu0 %v4729
    %6534 = vmatmul.mubr.bf16.gmra.mrb[0].mxu0 %v4728
    %v6535 = vpop.f32.mrb[0].mxu0
    %v6536 = vadd.f32 0.0, %v6535
    %v6537 = vpop.f32.mrb[0].mxu0
    %v6538 = vadd.f32 0.0, %v6537
    %v6539 = vpop.f32.mrb[0].mxu0
    %v6540 = vadd.f32 0.0, %v6539
    %v6541 = vpop.f32.mrb[0].mxu0
    %v6542 = vadd.f32 0.0, %v6541
    %6543 = vdwg.mxu0
    %6544 = vmatprep.subr.bf16.mxu0 %v6327
    %6545 = vmatpush1.bf16.msra.mxu0 %v6326
    %6546 = vmatprep.subr.bf16.mxu0 %v6413
    %6547 = vmatpush1.bf16.msra.mxu0 %v6410
    %6548 = vmatprep.subr.bf16.mxu0 0
    %6549 = vmatpush1.bf16.msra.mxu0 0
    %6550 = vmatprep.subr.bf16.mxu0 0
    %6551 = vmatpush1.bf16.msra.mxu0 0
    %6552 = vmatprep.subr.bf16.mxu0 0
    %6553 = vmatpush1.bf16.msra.mxu0 0
    %6554 = vmatprep.subr.bf16.mxu0 0
    %6555 = vmatpush1.bf16.msra.mxu0 0
    %6556 = vmatprep.subr.bf16.mxu0 0
    %6557 = vmatpush1.bf16.msra.mxu0 0
    %6558 = vmatprep.subr.bf16.mxu0 0
    %6559 = vmatpush1.bf16.msra.mxu0 0
    %6560 = vmatprep.subr.bf16.mxu0 0
    %6561 = vmatpush1.bf16.msra.mxu0 0
    %6562 = vmatprep.subr.bf16.mxu0 0
    %6563 = vmatpush1.bf16.msra.mxu0 0
    %6564 = vmatprep.subr.bf16.mxu0 0
    %6565 = vmatpush1.bf16.msra.mxu0 0
    %6566 = vmatprep.subr.bf16.mxu0 0
    %6567 = vmatpush1.bf16.msra.mxu0 0
    %6568 = vmatprep.subr.bf16.mxu0 0
    %6569 = vmatpush1.bf16.msra.mxu0 0
    %6570 = vmatprep.subr.bf16.mxu0 0
    %6571 = vmatpush1.bf16.msra.mxu0 0
    %6572 = vmatprep.subr.bf16.mxu0 0
    %6573 = vmatpush1.bf16.msra.mxu0 0
    %6574 = vmatprep.subr.bf16.mxu0 0
    %6575 = vmatpush1.bf16.msra.mxu0 0
    %6576 = vmatprep.mubr.bf16.mxu0 0
    %6577 = vmatmul.mubr.bf16.gmra.mrb[0].mxu0 %v6401
    %v6578 = vpop.f32.mrb[0].mxu0
    %v6579 = vadd.f32 %v6536, %v6578
    %v6580 = vpop.f32.mrb[0].mxu0
    %v6581 = vadd.f32 %v6538, %v6580
    %v6582 = vpop.f32.mrb[0].mxu0
    %v6583 = vadd.f32 %v6540, %v6582
    %v6584 = vpop.f32.mrb[0].mxu0
    %v6585 = vadd.f32 %v6542, %v6584
    %6586 = vdwg.mxu0
    %v6587 = vadd.f32 %v5885, %v6493
    %v6588 = vadd.f32 %v5887, %v6495
    %v6589 = vadd.f32 %v5971, %v6579
    %v6590 = vadd.f32 %v5973, %v6581
    %v6591 = vadd.f32 %v5889, %v6497
    %v6592 = vadd.f32 %v5891, %v6499
    %v6593 = vadd.f32 %v5975, %v6583
    %v6594 = vadd.f32 %v5977, %v6585
    %s6595 = scalar_lea.vmem [#allocation7], 1680
    %v6596 = vld [vmem:[%s6595] sm:$0xff]
    %v6597 = vld [vmem:[%s6595 + $0x8] sm:$0xff]
    %v6598 = vld [vmem:[%s6595 + $0x10] sm:$0xff]
    %v6599 = vld [vmem:[%s6595 + $0x18] sm:$0xff]
    %v6600 = vld [vmem:[%s6595 + $0x20] sm:$0xff]
    %v6601 = vld [vmem:[%s6595 + $0x28] sm:$0xff]
    %v6602 = vld [vmem:[%s6595 + $0x30] sm:$0xff]
    %v6603 = vld [vmem:[%s6595 + $0x38] sm:$0xff]
    %v6604 = vld [vmem:[%s6595 + $0x40] sm:$0xff]
    %v6605 = vld [vmem:[%s6595 + $0x48] sm:$0xff]
    %v6606 = vld [vmem:[%s6595 + $0x50] sm:$0xff]
    %v6607 = vld [vmem:[%s6595 + $0x58] sm:$0xff]
    %v6608 = vld [vmem:[%s6595 + $0x60] sm:$0xff]
    %v6609 = vld [vmem:[%s6595 + $0x68] sm:$0xff]
    %v6610 = vld [vmem:[%s6595 + $0x70] sm:$0xff]
    %v6611 = vld [vmem:[%s6595 + $0x78] sm:$0xff]
    %v6612 = vld [vmem:[%s6595 + $0x80] sm:$0xff]
    %v6613 = vld [vmem:[%s6595 + $0x88] sm:$0xff]
    %v6614 = vld [vmem:[%s6595 + $0x90] sm:$0xff]
    %v6615 = vld [vmem:[%s6595 + $0x98] sm:$0xff]
    %v6616 = vld [vmem:[%s6595 + $0xa0] sm:$0xff]
    %v6617 = vld [vmem:[%s6595 + $0xa8] sm:$0xff]
    %v6618 = vld [vmem:[%s6595 + $0xb0] sm:$0xff]
    %v6619 = vld [vmem:[%s6595 + $0xb8] sm:$0xff]
    %v6620 = vld [vmem:[%s6595 + $0xc0] sm:$0xff]
    %v6621 = vld [vmem:[%s6595 + $0xc8] sm:$0xff]
    %v6622 = vld [vmem:[%s6595 + $0xd0] sm:$0xff]
    %v6623 = vld [vmem:[%s6595 + $0xd8] sm:$0xff]
    %v6624 = vld [vmem:[%s6595 + $0xe0] sm:$0xff]
    %v6625 = vld [vmem:[%s6595 + $0xe8] sm:$0xff]
    %v6626 = vld [vmem:[%s6595 + $0xf0] sm:$0xff]
    %v6627 = vld [vmem:[%s6595 + $0xf8] sm:$0xff]
    %v6628 = vld [vmem:[%s6595 + $0x100] sm:$0xff]
    %v6629 = vld [vmem:[%s6595 + $0x108] sm:$0xff]
    %v6630 = vld [vmem:[%s6595 + $0x110] sm:$0xff]
    %v6631 = vld [vmem:[%s6595 + $0x118] sm:$0xff]
    %v6632 = vld [vmem:[%s6595 + $0x120] sm:$0xff]
    %v6633 = vld [vmem:[%s6595 + $0x128] sm:$0xff]
    %v6634 = vld [vmem:[%s6595 + $0x130] sm:$0xff]
    %v6635 = vld [vmem:[%s6595 + $0x138] sm:$0xff]
    %v6636 = vld [vmem:[%s6595 + $0x140] sm:$0xff]
    %v6637 = vld [vmem:[%s6595 + $0x148] sm:$0xff]
    %v6638 = vld [vmem:[%s6595 + $0x150] sm:$0xff]
    %v6639 = vld [vmem:[%s6595 + $0x158] sm:$0xff]
    %v6640 = vld [vmem:[%s6595 + $0x160] sm:$0xff]
    %v6641 = vld [vmem:[%s6595 + $0x168] sm:$0xff]
    %v6642 = vld [vmem:[%s6595 + $0x170] sm:$0xff]
    %v6643 = vld [vmem:[%s6595 + $0x178] sm:$0xff]
    %v6644 = vld [vmem:[%s6595 + $0x180] sm:$0xff]
    %v6645 = vld [vmem:[%s6595 + $0x188] sm:$0xff]
    %v6646 = vld [vmem:[%s6595 + $0x190] sm:$0xff]
    %v6647 = vld [vmem:[%s6595 + $0x198] sm:$0xff]
    %v6648 = vld [vmem:[%s6595 + $0x1a0] sm:$0xff]
    %v6649 = vld [vmem:[%s6595 + $0x1a8] sm:$0xff]
    %v6650 = vld [vmem:[%s6595 + $0x1b0] sm:$0xff]
    %v6651 = vld [vmem:[%s6595 + $0x1b8] sm:$0xff]
    %v6652 = vld [vmem:[%s6595 + $0x1c0] sm:$0xff]
    %v6653 = vld [vmem:[%s6595 + $0x1c8] sm:$0xff]
    %v6654 = vld [vmem:[%s6595 + $0x1d0] sm:$0xff]
    %v6655 = vld [vmem:[%s6595 + $0x1d8] sm:$0xff]
    %v6656 = vld [vmem:[%s6595 + $0x1e0] sm:$0xff]
    %v6657 = vld [vmem:[%s6595 + $0x1e8] sm:$0xff]
    %v6658 = vld [vmem:[%s6595 + $0x1f0] sm:$0xff]
    %v6659 = vld [vmem:[%s6595 + $0x1f8] sm:$0xff]
    %v6660 = vld [vmem:[%s6595 + $0x200] sm:$0xff]
    %v6661 = vld [vmem:[%s6595 + $0x208] sm:$0xff]
    %v6662 = vld [vmem:[%s6595 + $0x210] sm:$0xff]
    %v6663 = vld [vmem:[%s6595 + $0x218] sm:$0xff]
    %v6664 = vld [vmem:[%s6595 + $0x220] sm:$0xff]
    %v6665 = vld [vmem:[%s6595 + $0x228] sm:$0xff]
    %v6736 = vunpack.c.l.b16 %v6596
    %v6737 = vunpack.c.h.b16 %v6596
    %v6738 = vunpack.c.l.b16 %v6597
    %v6739 = vunpack.c.h.b16 %v6597
    %v6740 = vunpack.c.l.b16 %v6598
    %v6741 = vunpack.c.h.b16 %v6598
    %v6742 = vunpack.c.l.b16 %v6599
    %v6743 = vunpack.c.h.b16 %v6599
    %v6744 = vunpack.c.l.b16 %v6600
    %v6745 = vunpack.c.h.b16 %v6600
    %v6746 = vunpack.c.l.b16 %v6601
    %v6747 = vunpack.c.h.b16 %v6601
    %v6748 = vunpack.c.l.b16 %v6602
    %v6749 = vunpack.c.h.b16 %v6602
    %v6750 = vunpack.c.l.b16 %v6603
    %v6751 = vunpack.c.h.b16 %v6603
    %v6752 = vunpack.c.l.b16 %v6604
    %v6753 = vunpack.c.h.b16 %v6604
    %v6754 = vunpack.c.l.b16 %v6605
    %v6755 = vunpack.c.h.b16 %v6605
    %v6756 = vunpack.c.l.b16 %v6606
    %v6757 = vunpack.c.h.b16 %v6606
    %v6758 = vunpack.c.l.b16 %v6607
    %v6759 = vunpack.c.h.b16 %v6607
    %v6760 = vunpack.c.l.b16 %v6608
    %v6761 = vunpack.c.h.b16 %v6608
    %v6762 = vunpack.c.l.b16 %v6609
    %v6763 = vunpack.c.h.b16 %v6609
    %v6764 = vunpack.c.l.b16 %v6610
    %v6765 = vunpack.c.h.b16 %v6610
    %v6766 = vunpack.c.l.b16 %v6611
    %v6767 = vunpack.c.h.b16 %v6611
    %v6768 = vunpack.c.l.b16 %v6612
    %v6769 = vunpack.c.h.b16 %v6612
    %v6770 = vunpack.c.l.b16 %v6613
    %v6771 = vunpack.c.h.b16 %v6613
    %v6772 = vunpack.c.l.b16 %v6614
    %v6773 = vunpack.c.h.b16 %v6614
    %v6774 = vunpack.c.l.b16 %v6615
    %v6775 = vunpack.c.h.b16 %v6615
    %v6776 = vunpack.c.l.b16 %v6616
    %v6777 = vunpack.c.h.b16 %v6616
    %v6778 = vunpack.c.l.b16 %v6617
    %v6779 = vunpack.c.h.b16 %v6617
    %v6780 = vunpack.c.l.b16 %v6618
    %v6781 = vunpack.c.h.b16 %v6618
    %v6782 = vunpack.c.l.b16 %v6619
    %v6783 = vunpack.c.h.b16 %v6619
    %v6784 = vunpack.c.l.b16 %v6620
    %v6785 = vunpack.c.h.b16 %v6620
    %v6786 = vunpack.c.l.b16 %v6621
    %v6787 = vunpack.c.h.b16 %v6621
    %v6788 = vunpack.c.l.b16 %v6622
    %v6789 = vunpack.c.h.b16 %v6622
    %v6790 = vunpack.c.l.b16 %v6623
    %v6791 = vunpack.c.h.b16 %v6623
    %v6792 = vunpack.c.l.b16 %v6624
    %v6793 = vunpack.c.h.b16 %v6624
    %v6794 = vunpack.c.l.b16 %v6625
    %v6795 = vunpack.c.h.b16 %v6625
    %v6796 = vunpack.c.l.b16 %v6626
    %v6797 = vunpack.c.h.b16 %v6626
    %v6798 = vunpack.c.l.b16 %v6627
    %v6799 = vunpack.c.h.b16 %v6627
    %v6800 = vunpack.c.l.b16 %v6628
    %v6801 = vunpack.c.h.b16 %v6628
    %v6802 = vunpack.c.l.b16 %v6629
    %v6803 = vunpack.c.h.b16 %v6629
    %v6804 = vunpack.c.l.b16 %v6630
    %v6805 = vunpack.c.h.b16 %v6630
    %v6806 = vunpack.c.l.b16 %v6631
    %v6807 = vunpack.c.h.b16 %v6631
    %v6808 = vunpack.c.l.b16 %v6632
    %v6809 = vunpack.c.h.b16 %v6632
    %v6810 = vunpack.c.l.b16 %v6633
    %v6811 = vunpack.c.h.b16 %v6633
    %v6812 = vunpack.c.l.b16 %v6634
    %v6813 = vunpack.c.h.b16 %v6634
    %v6814 = vunpack.c.l.b16 %v6635
    %v6815 = vunpack.c.h.b16 %v6635
    %v6816 = vunpack.c.l.b16 %v6636
    %v6817 = vunpack.c.h.b16 %v6636
    %v6818 = vunpack.c.l.b16 %v6637
    %v6819 = vunpack.c.h.b16 %v6637
    %v6820 = vunpack.c.l.b16 %v6638
    %v6821 = vunpack.c.h.b16 %v6638
    %v6822 = vunpack.c.l.b16 %v6639
    %v6823 = vunpack.c.h.b16 %v6639
    %v6824 = vunpack.c.l.b16 %v6640
    %v6825 = vunpack.c.h.b16 %v6640
    %v6826 = vunpack.c.l.b16 %v6641
    %v6827 = vunpack.c.h.b16 %v6641
    %v6828 = vunpack.c.l.b16 %v6642
    %v6829 = vunpack.c.h.b16 %v6642
    %v6830 = vunpack.c.l.b16 %v6643
    %v6831 = vunpack.c.h.b16 %v6643
    %v6832 = vunpack.c.l.b16 %v6644
    %v6833 = vunpack.c.h.b16 %v6644
    %v6834 = vunpack.c.l.b16 %v6645
    %v6835 = vunpack.c.h.b16 %v6645
    %v6836 = vunpack.c.l.b16 %v6646
    %v6837 = vunpack.c.h.b16 %v6646
    %v6838 = vunpack.c.l.b16 %v6647
    %v6839 = vunpack.c.h.b16 %v6647
    %v6840 = vunpack.c.l.b16 %v6648
    %v6841 = vunpack.c.h.b16 %v6648
    %v6842 = vunpack.c.l.b16 %v6649
    %v6843 = vunpack.c.h.b16 %v6649
    %v6844 = vunpack.c.l.b16 %v6650
    %v6845 = vunpack.c.h.b16 %v6650
    %v6846 = vunpack.c.l.b16 %v6651
    %v6847 = vunpack.c.h.b16 %v6651
    %v6848 = vunpack.c.l.b16 %v6652
    %v6849 = vunpack.c.h.b16 %v6652
    %v6850 = vunpack.c.l.b16 %v6653
    %v6851 = vunpack.c.h.b16 %v6653
    %v6852 = vunpack.c.l.b16 %v6654
    %v6853 = vunpack.c.h.b16 %v6654
    %v6854 = vunpack.c.l.b16 %v6655
    %v6855 = vunpack.c.h.b16 %v6655
    %v6856 = vunpack.c.l.b16 %v6656
    %v6857 = vunpack.c.h.b16 %v6656
    %v6858 = vunpack.c.l.b16 %v6657
    %v6859 = vunpack.c.h.b16 %v6657
    %v6860 = vunpack.c.l.b16 %v6658
    %v6861 = vunpack.c.h.b16 %v6658
    %v6862 = vunpack.c.l.b16 %v6659
    %v6863 = vunpack.c.h.b16 %v6659
    %v6864 = vunpack.c.l.b16 %v6660
    %v6865 = vunpack.c.h.b16 %v6660
    %v6866 = vunpack.c.l.b16 %v6661
    %v6867 = vunpack.c.h.b16 %v6661
    %v6868 = vunpack.c.l.b16 %v6662
    %v6869 = vunpack.c.h.b16 %v6662
    %v6870 = vunpack.c.l.b16 %v6663
    %v6871 = vunpack.c.h.b16 %v6663
    %v6872 = vunpack.c.l.b16 %v6664
    %v6873 = vunpack.c.h.b16 %v6664
    %v6874 = vunpack.c.l.b16 %v6665
    %v6875 = vunpack.c.h.b16 %v6665
    %v6876 = vpack.c.b16 %v6740, %v6736
    %v6877 = vpack.c.b16 %v6741, %v6737
    %v6878 = vpack.c.b16 %v6742, %v6738
    %v6879 = vpack.c.b16 %v6743, %v6739
    %v6880 = vpack.c.b16 %v6748, %v6744
    %v6881 = vpack.c.b16 %v6749, %v6745
    %v6882 = vpack.c.b16 %v6750, %v6746
    %v6883 = vpack.c.b16 %v6751, %v6747
    %v6884 = vpack.c.b16 %v6756, %v6752
    %v6885 = vpack.c.b16 %v6757, %v6753
    %v6886 = vpack.c.b16 %v6758, %v6754
    %v6887 = vpack.c.b16 %v6759, %v6755
    %v6888 = vpack.c.b16 %v6764, %v6760
    %v6889 = vpack.c.b16 %v6765, %v6761
    %v6890 = vpack.c.b16 %v6766, %v6762
    %v6891 = vpack.c.b16 %v6767, %v6763
    %v6892 = vpack.c.b16 %v6772, %v6768
    %v6893 = vpack.c.b16 %v6773, %v6769
    %v6894 = vpack.c.b16 %v6774, %v6770
    %v6895 = vpack.c.b16 %v6775, %v6771
    %v6896 = vpack.c.b16 %v6780, %v6776
    %v6897 = vpack.c.b16 %v6781, %v6777
    %v6898 = vpack.c.b16 %v6782, %v6778
    %v6899 = vpack.c.b16 %v6783, %v6779
    %v6900 = vpack.c.b16 %v6788, %v6784
    %v6901 = vpack.c.b16 %v6789, %v6785
    %v6902 = vpack.c.b16 %v6790, %v6786
    %v6903 = vpack.c.b16 %v6791, %v6787
    %v6904 = vpack.c.b16 %v6796, %v6792
    %v6905 = vpack.c.b16 %v6797, %v6793
    %v6906 = vpack.c.b16 %v6798, %v6794
    %v6907 = vpack.c.b16 %v6799, %v6795
    %v6908 = vpack.c.b16 %v6804, %v6800
    %v6909 = vpack.c.b16 %v6805, %v6801
    %v6910 = vpack.c.b16 %v6806, %v6802
    %v6911 = vpack.c.b16 %v6807, %v6803
    %v6912 = vpack.c.b16 %v6812, %v6808
    %v6913 = vpack.c.b16 %v6813, %v6809
    %v6914 = vpack.c.b16 %v6814, %v6810
    %v6915 = vpack.c.b16 %v6815, %v6811
    %v6916 = vpack.c.b16 %v6820, %v6816
    %v6917 = vpack.c.b16 %v6821, %v6817
    %v6918 = vpack.c.b16 %v6822, %v6818
    %v6919 = vpack.c.b16 %v6823, %v6819
    %v6920 = vpack.c.b16 %v6828, %v6824
    %v6921 = vpack.c.b16 %v6829, %v6825
    %v6922 = vpack.c.b16 %v6830, %v6826
    %v6923 = vpack.c.b16 %v6831, %v6827
    %v6924 = vpack.c.b16 %v6836, %v6832
    %v6925 = vpack.c.b16 %v6837, %v6833
    %v6926 = vpack.c.b16 %v6838, %v6834
    %v6927 = vpack.c.b16 %v6839, %v6835
    %v6928 = vpack.c.b16 %v6844, %v6840
    %v6929 = vpack.c.b16 %v6845, %v6841
    %v6930 = vpack.c.b16 %v6846, %v6842
    %v6931 = vpack.c.b16 %v6847, %v6843
    %v6932 = vpack.c.b16 %v6852, %v6848
    %v6933 = vpack.c.b16 %v6853, %v6849
    %v6934 = vpack.c.b16 %v6854, %v6850
    %v6935 = vpack.c.b16 %v6855, %v6851
    %v6936 = vpack.c.b16 %v6860, %v6856
    %v6937 = vpack.c.b16 %v6861, %v6857
    %v6938 = vpack.c.b16 %v6862, %v6858
    %v6939 = vpack.c.b16 %v6863, %v6859
    %v6940 = vpack.c.b16 %v6868, %v6864
    %v6941 = vpack.c.b16 %v6869, %v6865
    %v6942 = vpack.c.b16 %v6870, %v6866
    %v6943 = vpack.c.b16 %v6871, %v6867
    %v6944 = vpack.c.b16 %v6872, %v6872
    %v6945 = vpack.c.b16 %v6873, %v6873
    %v6946 = vpack.c.b16 %v6874, %v6874
    %v6947 = vpack.c.b16 %v6875, %v6875
    %v7017 = vsel %vm2080, %v4733, 0
    %v7020 = vsel %vm2123, %v6944, 0
    %v7023 = vsel %vm2123, %v6945, 0
    %v7026 = vsel %vm2123, %v6946, 0
    %v7029 = vsel %vm2123, %v6947, 0
    %7031 = vmatprep.subr.bf16.mxu0 %v6877
    %7032 = vmatpush1.bf16.msra.mxu0 %v6876
    %7033 = vmatprep.subr.bf16.mxu0 %v6881
    %7034 = vmatpush1.bf16.msra.mxu0 %v6880
    %7035 = vmatprep.subr.bf16.mxu0 %v6885
    %7036 = vmatpush1.bf16.msra.mxu0 %v6884
    %7037 = vmatprep.subr.bf16.mxu0 %v6889
    %7038 = vmatpush1.bf16.msra.mxu0 %v6888
    %7039 = vmatprep.subr.bf16.mxu0 %v6893
    %7040 = vmatpush1.bf16.msra.mxu0 %v6892
    %7041 = vmatprep.subr.bf16.mxu0 %v6897
    %7042 = vmatpush1.bf16.msra.mxu0 %v6896
    %7043 = vmatprep.subr.bf16.mxu0 %v6901
    %7044 = vmatpush1.bf16.msra.mxu0 %v6900
    %7045 = vmatprep.subr.bf16.mxu0 %v6905
    %7046 = vmatpush1.bf16.msra.mxu0 %v6904
    %7047 = vmatprep.subr.bf16.mxu0 %v6909
    %7048 = vmatpush1.bf16.msra.mxu0 %v6908
    %7049 = vmatprep.subr.bf16.mxu0 %v6913
    %7050 = vmatpush1.bf16.msra.mxu0 %v6912
    %7051 = vmatprep.subr.bf16.mxu0 %v6917
    %7052 = vmatpush1.bf16.msra.mxu0 %v6916
    %7053 = vmatprep.subr.bf16.mxu0 %v6921
    %7054 = vmatpush1.bf16.msra.mxu0 %v6920
    %7055 = vmatprep.subr.bf16.mxu0 %v6925
    %7056 = vmatpush1.bf16.msra.mxu0 %v6924
    %7057 = vmatprep.subr.bf16.mxu0 %v6929
    %7058 = vmatpush1.bf16.msra.mxu0 %v6928
    %7059 = vmatprep.subr.bf16.mxu0 %v6933
    %7060 = vmatpush1.bf16.msra.mxu0 %v6932
    %7061 = vmatprep.subr.bf16.mxu0 %v6937
    %7062 = vmatpush1.bf16.msra.mxu0 %v6936
    %7063 = vmatprep.mubr.bf16.mxu0 %v4732
    %7064 = vmatmul.mubr.bf16.gmra.mrb[0].mxu0 %v4731
    %v7065 = vpop.f32.mrb[0].mxu0
    %v7066 = vadd.f32 0.0, %v7065
    %v7067 = vpop.f32.mrb[0].mxu0
    %v7068 = vadd.f32 0.0, %v7067
    %v7069 = vpop.f32.mrb[0].mxu0
    %v7070 = vadd.f32 0.0, %v7069
    %v7071 = vpop.f32.mrb[0].mxu0
    %v7072 = vadd.f32 0.0, %v7071
    %7073 = vdwg.mxu0
    %7074 = vmatprep.subr.bf16.mxu0 %v6941
    %7075 = vmatpush1.bf16.msra.mxu0 %v6940
    %7076 = vmatprep.subr.bf16.mxu0 %v7023
    %7077 = vmatpush1.bf16.msra.mxu0 %v7020
    %7078 = vmatprep.subr.bf16.mxu0 0
    %7079 = vmatpush1.bf16.msra.mxu0 0
    %7080 = vmatprep.subr.bf16.mxu0 0
    %7081 = vmatpush1.bf16.msra.mxu0 0
    %7082 = vmatprep.subr.bf16.mxu0 0
    %7083 = vmatpush1.bf16.msra.mxu0 0
    %7084 = vmatprep.subr.bf16.mxu0 0
    %7085 = vmatpush1.bf16.msra.mxu0 0
    %7086 = vmatprep.subr.bf16.mxu0 0
    %7087 = vmatpush1.bf16.msra.mxu0 0
    %7088 = vmatprep.subr.bf16.mxu0 0
    %7089 = vmatpush1.bf16.msra.mxu0 0
    %7090 = vmatprep.subr.bf16.mxu0 0
    %7091 = vmatpush1.bf16.msra.mxu0 0
    %7092 = vmatprep.subr.bf16.mxu0 0
    %7093 = vmatpush1.bf16.msra.mxu0 0
    %7094 = vmatprep.subr.bf16.mxu0 0
    %7095 = vmatpush1.bf16.msra.mxu0 0
    %7096 = vmatprep.subr.bf16.mxu0 0
    %7097 = vmatpush1.bf16.msra.mxu0 0
    %7098 = vmatprep.subr.bf16.mxu0 0
    %7099 = vmatpush1.bf16.msra.mxu0 0
    %7100 = vmatprep.subr.bf16.mxu0 0
    %7101 = vmatpush1.bf16.msra.mxu0 0
    %7102 = vmatprep.subr.bf16.mxu0 0
    %7103 = vmatpush1.bf16.msra.mxu0 0
    %7104 = vmatprep.subr.bf16.mxu0 0
    %7105 = vmatpush1.bf16.msra.mxu0 0
    %7106 = vmatprep.mubr.bf16.mxu0 0
    %7107 = vmatmul.mubr.bf16.gmra.mrb[0].mxu0 %v7017
    %v7108 = vpop.f32.mrb[0].mxu0
    %v7109 = vadd.f32 %v7066, %v7108
    %v7110 = vpop.f32.mrb[0].mxu0
    %v7111 = vadd.f32 %v7068, %v7110
    %v7112 = vpop.f32.mrb[0].mxu0
    %v7113 = vadd.f32 %v7070, %v7112
    %v7114 = vpop.f32.mrb[0].mxu0
    %v7115 = vadd.f32 %v7072, %v7114
    %7116 = vdwg.mxu0
    %7117 = vmatprep.subr.bf16.mxu0 %v6879
    %7118 = vmatpush1.bf16.msra.mxu0 %v6878
    %7119 = vmatprep.subr.bf16.mxu0 %v6883
    %7120 = vmatpush1.bf16.msra.mxu0 %v6882
    %7121 = vmatprep.subr.bf16.mxu0 %v6887
    %7122 = vmatpush1.bf16.msra.mxu0 %v6886
    %7123 = vmatprep.subr.bf16.mxu0 %v6891
    %7124 = vmatpush1.bf16.msra.mxu0 %v6890
    %7125 = vmatprep.subr.bf16.mxu0 %v6895
    %7126 = vmatpush1.bf16.msra.mxu0 %v6894
    %7127 = vmatprep.subr.bf16.mxu0 %v6899
    %7128 = vmatpush1.bf16.msra.mxu0 %v6898
    %7129 = vmatprep.subr.bf16.mxu0 %v6903
    %7130 = vmatpush1.bf16.msra.mxu0 %v6902
    %7131 = vmatprep.subr.bf16.mxu0 %v6907
    %7132 = vmatpush1.bf16.msra.mxu0 %v6906
    %7133 = vmatprep.subr.bf16.mxu0 %v6911
    %7134 = vmatpush1.bf16.msra.mxu0 %v6910
    %7135 = vmatprep.subr.bf16.mxu0 %v6915
    %7136 = vmatpush1.bf16.msra.mxu0 %v6914
    %7137 = vmatprep.subr.bf16.mxu0 %v6919
    %7138 = vmatpush1.bf16.msra.mxu0 %v6918
    %7139 = vmatprep.subr.bf16.mxu0 %v6923
    %7140 = vmatpush1.bf16.msra.mxu0 %v6922
    %7141 = vmatprep.subr.bf16.mxu0 %v6927
    %7142 = vmatpush1.bf16.msra.mxu0 %v6926
    %7143 = vmatprep.subr.bf16.mxu0 %v6931
    %7144 = vmatpush1.bf16.msra.mxu0 %v6930
    %7145 = vmatprep.subr.bf16.mxu0 %v6935
    %7146 = vmatpush1.bf16.msra.mxu0 %v6934
    %7147 = vmatprep.subr.bf16.mxu0 %v6939
    %7148 = vmatpush1.bf16.msra.mxu0 %v6938
    %7149 = vmatprep.mubr.bf16.mxu0 %v4732
    %7150 = vmatmul.mubr.bf16.gmra.mrb[0].mxu0 %v4731
    %v7151 = vpop.f32.mrb[0].mxu0
    %v7152 = vadd.f32 0.0, %v7151
    %v7153 = vpop.f32.mrb[0].mxu0
    %v7154 = vadd.f32 0.0, %v7153
    %v7155 = vpop.f32.mrb[0].mxu0
    %v7156 = vadd.f32 0.0, %v7155
    %v7157 = vpop.f32.mrb[0].mxu0
    %v7158 = vadd.f32 0.0, %v7157
    %7159 = vdwg.mxu0
    %7160 = vmatprep.subr.bf16.mxu0 %v6943
    %7161 = vmatpush1.bf16.msra.mxu0 %v6942
    %7162 = vmatprep.subr.bf16.mxu0 %v7029
    %7163 = vmatpush1.bf16.msra.mxu0 %v7026
    %7164 = vmatprep.subr.bf16.mxu0 0
    %7165 = vmatpush1.bf16.msra.mxu0 0
    %7166 = vmatprep.subr.bf16.mxu0 0
    %7167 = vmatpush1.bf16.msra.mxu0 0
    %7168 = vmatprep.subr.bf16.mxu0 0
    %7169 = vmatpush1.bf16.msra.mxu0 0
    %7170 = vmatprep.subr.bf16.mxu0 0
    %7171 = vmatpush1.bf16.msra.mxu0 0
    %7172 = vmatprep.subr.bf16.mxu0 0
    %7173 = vmatpush1.bf16.msra.mxu0 0
    %7174 = vmatprep.subr.bf16.mxu0 0
    %7175 = vmatpush1.bf16.msra.mxu0 0
    %7176 = vmatprep.subr.bf16.mxu0 0
    %7177 = vmatpush1.bf16.msra.mxu0 0
    %7178 = vmatprep.subr.bf16.mxu0 0
    %7179 = vmatpush1.bf16.msra.mxu0 0
    %7180 = vmatprep.subr.bf16.mxu0 0
    %7181 = vmatpush1.bf16.msra.mxu0 0
    %7182 = vmatprep.subr.bf16.mxu0 0
    %7183 = vmatpush1.bf16.msra.mxu0 0
    %7184 = vmatprep.subr.bf16.mxu0 0
    %7185 = vmatpush1.bf16.msra.mxu0 0
    %7186 = vmatprep.subr.bf16.mxu0 0
    %7187 = vmatpush1.bf16.msra.mxu0 0
    %7188 = vmatprep.subr.bf16.mxu0 0
    %7189 = vmatpush1.bf16.msra.mxu0 0
    %7190 = vmatprep.subr.bf16.mxu0 0
    %7191 = vmatpush1.bf16.msra.mxu0 0
    %7192 = vmatprep.mubr.bf16.mxu0 0
    %7193 = vmatmul.mubr.bf16.gmra.mrb[0].mxu0 %v7017
    %v7194 = vpop.f32.mrb[0].mxu0
    %v7195 = vadd.f32 %v7152, %v7194
    %v7196 = vpop.f32.mrb[0].mxu0
    %v7197 = vadd.f32 %v7154, %v7196
    %v7198 = vpop.f32.mrb[0].mxu0
    %v7199 = vadd.f32 %v7156, %v7198
    %v7200 = vpop.f32.mrb[0].mxu0
    %v7201 = vadd.f32 %v7158, %v7200
    %7202 = vdwg.mxu0
    %v7203 = vadd.f32 %v6587, %v7109
    %v7204 = vadd.f32 %v6588, %v7111
    %v7205 = vadd.f32 %v6589, %v7195
    %v7206 = vadd.f32 %v6590, %v7197
    %v7207 = vadd.f32 %v6591, %v7113
    %v7208 = vadd.f32 %v6592, %v7115
    %v7209 = vadd.f32 %v6593, %v7199
    %v7210 = vadd.f32 %v6594, %v7201
    %s7211 = scalar_lea.vmem [#allocation7], 2240
    %v7212 = vld [vmem:[%s7211] sm:$0xff]
    %v7213 = vld [vmem:[%s7211 + $0x8] sm:$0xff]
    %v7214 = vld [vmem:[%s7211 + $0x10] sm:$0xff]
    %v7215 = vld [vmem:[%s7211 + $0x18] sm:$0xff]
    %v7216 = vld [vmem:[%s7211 + $0x20] sm:$0xff]
    %v7217 = vld [vmem:[%s7211 + $0x28] sm:$0xff]
    %v7218 = vld [vmem:[%s7211 + $0x30] sm:$0xff]
    %v7219 = vld [vmem:[%s7211 + $0x38] sm:$0xff]
    %v7220 = vld [vmem:[%s7211 + $0x40] sm:$0xff]
    %v7221 = vld [vmem:[%s7211 + $0x48] sm:$0xff]
    %v7222 = vld [vmem:[%s7211 + $0x50] sm:$0xff]
    %v7223 = vld [vmem:[%s7211 + $0x58] sm:$0xff]
    %v7224 = vld [vmem:[%s7211 + $0x60] sm:$0xff]
    %v7225 = vld [vmem:[%s7211 + $0x68] sm:$0xff]
    %v7226 = vld [vmem:[%s7211 + $0x70] sm:$0xff]
    %v7227 = vld [vmem:[%s7211 + $0x78] sm:$0xff]
    %v7228 = vld [vmem:[%s7211 + $0x80] sm:$0xff]
    %v7229 = vld [vmem:[%s7211 + $0x88] sm:$0xff]
    %v7230 = vld [vmem:[%s7211 + $0x90] sm:$0xff]
    %v7231 = vld [vmem:[%s7211 + $0x98] sm:$0xff]
    %v7232 = vld [vmem:[%s7211 + $0xa0] sm:$0xff]
    %v7233 = vld [vmem:[%s7211 + $0xa8] sm:$0xff]
    %v7234 = vld [vmem:[%s7211 + $0xb0] sm:$0xff]
    %v7235 = vld [vmem:[%s7211 + $0xb8] sm:$0xff]
    %v7236 = vld [vmem:[%s7211 + $0xc0] sm:$0xff]
    %v7237 = vld [vmem:[%s7211 + $0xc8] sm:$0xff]
    %v7238 = vld [vmem:[%s7211 + $0xd0] sm:$0xff]
    %v7239 = vld [vmem:[%s7211 + $0xd8] sm:$0xff]
    %v7240 = vld [vmem:[%s7211 + $0xe0] sm:$0xff]
    %v7241 = vld [vmem:[%s7211 + $0xe8] sm:$0xff]
    %v7242 = vld [vmem:[%s7211 + $0xf0] sm:$0xff]
    %v7243 = vld [vmem:[%s7211 + $0xf8] sm:$0xff]
    %v7244 = vld [vmem:[%s7211 + $0x100] sm:$0xff]
    %v7245 = vld [vmem:[%s7211 + $0x108] sm:$0xff]
    %v7246 = vld [vmem:[%s7211 + $0x110] sm:$0xff]
    %v7247 = vld [vmem:[%s7211 + $0x118] sm:$0xff]
    %v7248 = vld [vmem:[%s7211 + $0x120] sm:$0xff]
    %v7249 = vld [vmem:[%s7211 + $0x128] sm:$0xff]
    %v7250 = vld [vmem:[%s7211 + $0x130] sm:$0xff]
    %v7251 = vld [vmem:[%s7211 + $0x138] sm:$0xff]
    %v7252 = vld [vmem:[%s7211 + $0x140] sm:$0xff]
    %v7253 = vld [vmem:[%s7211 + $0x148] sm:$0xff]
    %v7254 = vld [vmem:[%s7211 + $0x150] sm:$0xff]
    %v7255 = vld [vmem:[%s7211 + $0x158] sm:$0xff]
    %v7256 = vld [vmem:[%s7211 + $0x160] sm:$0xff]
    %v7257 = vld [vmem:[%s7211 + $0x168] sm:$0xff]
    %v7258 = vld [vmem:[%s7211 + $0x170] sm:$0xff]
    %v7259 = vld [vmem:[%s7211 + $0x178] sm:$0xff]
    %v7260 = vld [vmem:[%s7211 + $0x180] sm:$0xff]
    %v7261 = vld [vmem:[%s7211 + $0x188] sm:$0xff]
    %v7262 = vld [vmem:[%s7211 + $0x190] sm:$0xff]
    %v7263 = vld [vmem:[%s7211 + $0x198] sm:$0xff]
    %v7264 = vld [vmem:[%s7211 + $0x1a0] sm:$0xff]
    %v7265 = vld [vmem:[%s7211 + $0x1a8] sm:$0xff]
    %v7266 = vld [vmem:[%s7211 + $0x1b0] sm:$0xff]
    %v7267 = vld [vmem:[%s7211 + $0x1b8] sm:$0xff]
    %v7268 = vld [vmem:[%s7211 + $0x1c0] sm:$0xff]
    %v7269 = vld [vmem:[%s7211 + $0x1c8] sm:$0xff]
    %v7270 = vld [vmem:[%s7211 + $0x1d0] sm:$0xff]
    %v7271 = vld [vmem:[%s7211 + $0x1d8] sm:$0xff]
    %v7272 = vld [vmem:[%s7211 + $0x1e0] sm:$0xff]
    %v7273 = vld [vmem:[%s7211 + $0x1e8] sm:$0xff]
    %v7274 = vld [vmem:[%s7211 + $0x1f0] sm:$0xff]
    %v7275 = vld [vmem:[%s7211 + $0x1f8] sm:$0xff]
    %v7276 = vld [vmem:[%s7211 + $0x200] sm:$0xff]
    %v7277 = vld [vmem:[%s7211 + $0x208] sm:$0xff]
    %v7278 = vld [vmem:[%s7211 + $0x210] sm:$0xff]
    %v7279 = vld [vmem:[%s7211 + $0x218] sm:$0xff]
    %v7280 = vld [vmem:[%s7211 + $0x220] sm:$0xff]
    %v7281 = vld [vmem:[%s7211 + $0x228] sm:$0xff]
    %v7352 = vunpack.c.l.b16 %v7212
    %v7353 = vunpack.c.h.b16 %v7212
    %v7354 = vunpack.c.l.b16 %v7213
    %v7355 = vunpack.c.h.b16 %v7213
    %v7356 = vunpack.c.l.b16 %v7214
    %v7357 = vunpack.c.h.b16 %v7214
    %v7358 = vunpack.c.l.b16 %v7215
    %v7359 = vunpack.c.h.b16 %v7215
    %v7360 = vunpack.c.l.b16 %v7216
    %v7361 = vunpack.c.h.b16 %v7216
    %v7362 = vunpack.c.l.b16 %v7217
    %v7363 = vunpack.c.h.b16 %v7217
    %v7364 = vunpack.c.l.b16 %v7218
    %v7365 = vunpack.c.h.b16 %v7218
    %v7366 = vunpack.c.l.b16 %v7219
    %v7367 = vunpack.c.h.b16 %v7219
    %v7368 = vunpack.c.l.b16 %v7220
    %v7369 = vunpack.c.h.b16 %v7220
    %v7370 = vunpack.c.l.b16 %v7221
    %v7371 = vunpack.c.h.b16 %v7221
    %v7372 = vunpack.c.l.b16 %v7222
    %v7373 = vunpack.c.h.b16 %v7222
    %v7374 = vunpack.c.l.b16 %v7223
    %v7375 = vunpack.c.h.b16 %v7223
    %v7376 = vunpack.c.l.b16 %v7224
    %v7377 = vunpack.c.h.b16 %v7224
    %v7378 = vunpack.c.l.b16 %v7225
    %v7379 = vunpack.c.h.b16 %v7225
    %v7380 = vunpack.c.l.b16 %v7226
    %v7381 = vunpack.c.h.b16 %v7226
    %v7382 = vunpack.c.l.b16 %v7227
    %v7383 = vunpack.c.h.b16 %v7227
    %v7384 = vunpack.c.l.b16 %v7228
    %v7385 = vunpack.c.h.b16 %v7228
    %v7386 = vunpack.c.l.b16 %v7229
    %v7387 = vunpack.c.h.b16 %v7229
    %v7388 = vunpack.c.l.b16 %v7230
    %v7389 = vunpack.c.h.b16 %v7230
    %v7390 = vunpack.c.l.b16 %v7231
    %v7391 = vunpack.c.h.b16 %v7231
    %v7392 = vunpack.c.l.b16 %v7232
    %v7393 = vunpack.c.h.b16 %v7232
    %v7394 = vunpack.c.l.b16 %v7233
    %v7395 = vunpack.c.h.b16 %v7233
    %v7396 = vunpack.c.l.b16 %v7234
    %v7397 = vunpack.c.h.b16 %v7234
    %v7398 = vunpack.c.l.b16 %v7235
    %v7399 = vunpack.c.h.b16 %v7235
    %v7400 = vunpack.c.l.b16 %v7236
    %v7401 = vunpack.c.h.b16 %v7236
    %v7402 = vunpack.c.l.b16 %v7237
    %v7403 = vunpack.c.h.b16 %v7237
    %v7404 = vunpack.c.l.b16 %v7238
    %v7405 = vunpack.c.h.b16 %v7238
    %v7406 = vunpack.c.l.b16 %v7239
    %v7407 = vunpack.c.h.b16 %v7239
    %v7408 = vunpack.c.l.b16 %v7240
    %v7409 = vunpack.c.h.b16 %v7240
    %v7410 = vunpack.c.l.b16 %v7241
    %v7411 = vunpack.c.h.b16 %v7241
    %v7412 = vunpack.c.l.b16 %v7242
    %v7413 = vunpack.c.h.b16 %v7242
    %v7414 = vunpack.c.l.b16 %v7243
    %v7415 = vunpack.c.h.b16 %v7243
    %v7416 = vunpack.c.l.b16 %v7244
    %v7417 = vunpack.c.h.b16 %v7244
    %v7418 = vunpack.c.l.b16 %v7245
    %v7419 = vunpack.c.h.b16 %v7245
    %v7420 = vunpack.c.l.b16 %v7246
    %v7421 = vunpack.c.h.b16 %v7246
    %v7422 = vunpack.c.l.b16 %v7247
    %v7423 = vunpack.c.h.b16 %v7247
    %v7424 = vunpack.c.l.b16 %v7248
    %v7425 = vunpack.c.h.b16 %v7248
    %v7426 = vunpack.c.l.b16 %v7249
    %v7427 = vunpack.c.h.b16 %v7249
    %v7428 = vunpack.c.l.b16 %v7250
    %v7429 = vunpack.c.h.b16 %v7250
    %v7430 = vunpack.c.l.b16 %v7251
    %v7431 = vunpack.c.h.b16 %v7251
    %v7432 = vunpack.c.l.b16 %v7252
    %v7433 = vunpack.c.h.b16 %v7252
    %v7434 = vunpack.c.l.b16 %v7253
    %v7435 = vunpack.c.h.b16 %v7253
    %v7436 = vunpack.c.l.b16 %v7254
    %v7437 = vunpack.c.h.b16 %v7254
    %v7438 = vunpack.c.l.b16 %v7255
    %v7439 = vunpack.c.h.b16 %v7255
    %v7440 = vunpack.c.l.b16 %v7256
    %v7441 = vunpack.c.h.b16 %v7256
    %v7442 = vunpack.c.l.b16 %v7257
    %v7443 = vunpack.c.h.b16 %v7257
    %v7444 = vunpack.c.l.b16 %v7258
    %v7445 = vunpack.c.h.b16 %v7258
    %v7446 = vunpack.c.l.b16 %v7259
    %v7447 = vunpack.c.h.b16 %v7259
    %v7448 = vunpack.c.l.b16 %v7260
    %v7449 = vunpack.c.h.b16 %v7260
    %v7450 = vunpack.c.l.b16 %v7261
    %v7451 = vunpack.c.h.b16 %v7261
    %v7452 = vunpack.c.l.b16 %v7262
    %v7453 = vunpack.c.h.b16 %v7262
    %v7454 = vunpack.c.l.b16 %v7263
    %v7455 = vunpack.c.h.b16 %v7263
    %v7456 = vunpack.c.l.b16 %v7264
    %v7457 = vunpack.c.h.b16 %v7264
    %v7458 = vunpack.c.l.b16 %v7265
    %v7459 = vunpack.c.h.b16 %v7265
    %v7460 = vunpack.c.l.b16 %v7266
    %v7461 = vunpack.c.h.b16 %v7266
    %v7462 = vunpack.c.l.b16 %v7267
    %v7463 = vunpack.c.h.b16 %v7267
    %v7464 = vunpack.c.l.b16 %v7268
    %v7465 = vunpack.c.h.b16 %v7268
    %v7466 = vunpack.c.l.b16 %v7269
    %v7467 = vunpack.c.h.b16 %v7269
    %v7468 = vunpack.c.l.b16 %v7270
    %v7469 = vunpack.c.h.b16 %v7270
    %v7470 = vunpack.c.l.b16 %v7271
    %v7471 = vunpack.c.h.b16 %v7271
    %v7472 = vunpack.c.l.b16 %v7272
    %v7473 = vunpack.c.h.b16 %v7272
    %v7474 = vunpack.c.l.b16 %v7273
    %v7475 = vunpack.c.h.b16 %v7273
    %v7476 = vunpack.c.l.b16 %v7274
    %v7477 = vunpack.c.h.b16 %v7274
    %v7478 = vunpack.c.l.b16 %v7275
    %v7479 = vunpack.c.h.b16 %v7275
    %v7480 = vunpack.c.l.b16 %v7276
    %v7481 = vunpack.c.h.b16 %v7276
    %v7482 = vunpack.c.l.b16 %v7277
    %v7483 = vunpack.c.h.b16 %v7277
    %v7484 = vunpack.c.l.b16 %v7278
    %v7485 = vunpack.c.h.b16 %v7278
    %v7486 = vunpack.c.l.b16 %v7279
    %v7487 = vunpack.c.h.b16 %v7279
    %v7488 = vunpack.c.l.b16 %v7280
    %v7489 = vunpack.c.h.b16 %v7280
    %v7490 = vunpack.c.l.b16 %v7281
    %v7491 = vunpack.c.h.b16 %v7281
    %v7492 = vpack.c.b16 %v7356, %v7352
    %v7493 = vpack.c.b16 %v7357, %v7353
    %v7494 = vpack.c.b16 %v7358, %v7354
    %v7495 = vpack.c.b16 %v7359, %v7355
    %v7496 = vpack.c.b16 %v7364, %v7360
    %v7497 = vpack.c.b16 %v7365, %v7361
    %v7498 = vpack.c.b16 %v7366, %v7362
    %v7499 = vpack.c.b16 %v7367, %v7363
    %v7500 = vpack.c.b16 %v7372, %v7368
    %v7501 = vpack.c.b16 %v7373, %v7369
    %v7502 = vpack.c.b16 %v7374, %v7370
    %v7503 = vpack.c.b16 %v7375, %v7371
    %v7504 = vpack.c.b16 %v7380, %v7376
    %v7505 = vpack.c.b16 %v7381, %v7377
    %v7506 = vpack.c.b16 %v7382, %v7378
    %v7507 = vpack.c.b16 %v7383, %v7379
    %v7508 = vpack.c.b16 %v7388, %v7384
    %v7509 = vpack.c.b16 %v7389, %v7385
    %v7510 = vpack.c.b16 %v7390, %v7386
    %v7511 = vpack.c.b16 %v7391, %v7387
    %v7512 = vpack.c.b16 %v7396, %v7392
    %v7513 = vpack.c.b16 %v7397, %v7393
    %v7514 = vpack.c.b16 %v7398, %v7394
    %v7515 = vpack.c.b16 %v7399, %v7395
    %v7516 = vpack.c.b16 %v7404, %v7400
    %v7517 = vpack.c.b16 %v7405, %v7401
    %v7518 = vpack.c.b16 %v7406, %v7402
    %v7519 = vpack.c.b16 %v7407, %v7403
    %v7520 = vpack.c.b16 %v7412, %v7408
    %v7521 = vpack.c.b16 %v7413, %v7409
    %v7522 = vpack.c.b16 %v7414, %v7410
    %v7523 = vpack.c.b16 %v7415, %v7411
    %v7524 = vpack.c.b16 %v7420, %v7416
    %v7525 = vpack.c.b16 %v7421, %v7417
    %v7526 = vpack.c.b16 %v7422, %v7418
    %v7527 = vpack.c.b16 %v7423, %v7419
    %v7528 = vpack.c.b16 %v7428, %v7424
    %v7529 = vpack.c.b16 %v7429, %v7425
    %v7530 = vpack.c.b16 %v7430, %v7426
    %v7531 = vpack.c.b16 %v7431, %v7427
    %v7532 = vpack.c.b16 %v7436, %v7432
    %v7533 = vpack.c.b16 %v7437, %v7433
    %v7534 = vpack.c.b16 %v7438, %v7434
    %v7535 = vpack.c.b16 %v7439, %v7435
    %v7536 = vpack.c.b16 %v7444, %v7440
    %v7537 = vpack.c.b16 %v7445, %v7441
    %v7538 = vpack.c.b16 %v7446, %v7442
    %v7539 = vpack.c.b16 %v7447, %v7443
    %v7540 = vpack.c.b16 %v7452, %v7448
    %v7541 = vpack.c.b16 %v7453, %v7449
    %v7542 = vpack.c.b16 %v7454, %v7450
    %v7543 = vpack.c.b16 %v7455, %v7451
    %v7544 = vpack.c.b16 %v7460, %v7456
    %v7545 = vpack.c.b16 %v7461, %v7457
    %v7546 = vpack.c.b16 %v7462, %v7458
    %v7547 = vpack.c.b16 %v7463, %v7459
    %v7548 = vpack.c.b16 %v7468, %v7464
    %v7549 = vpack.c.b16 %v7469, %v7465
    %v7550 = vpack.c.b16 %v7470, %v7466
    %v7551 = vpack.c.b16 %v7471, %v7467
    %v7552 = vpack.c.b16 %v7476, %v7472
    %v7553 = vpack.c.b16 %v7477, %v7473
    %v7554 = vpack.c.b16 %v7478, %v7474
    %v7555 = vpack.c.b16 %v7479, %v7475
    %v7556 = vpack.c.b16 %v7484, %v7480
    %v7557 = vpack.c.b16 %v7485, %v7481
    %v7558 = vpack.c.b16 %v7486, %v7482
    %v7559 = vpack.c.b16 %v7487, %v7483
    %v7560 = vpack.c.b16 %v7488, %v7488
    %v7561 = vpack.c.b16 %v7489, %v7489
    %v7562 = vpack.c.b16 %v7490, %v7490
    %v7563 = vpack.c.b16 %v7491, %v7491
    %v7633 = vsel %vm2080, %v4736, 0
    %v7636 = vsel %vm2123, %v7560, 0
    %v7639 = vsel %vm2123, %v7561, 0
    %v7642 = vsel %vm2123, %v7562, 0
    %v7645 = vsel %vm2123, %v7563, 0
    %7647 = vmatprep.subr.bf16.mxu0 %v7493
    %7648 = vmatpush1.bf16.msra.mxu0 %v7492
    %7649 = vmatprep.subr.bf16.mxu0 %v7497
    %7650 = vmatpush1.bf16.msra.mxu0 %v7496
    %7651 = vmatprep.subr.bf16.mxu0 %v7501
    %7652 = vmatpush1.bf16.msra.mxu0 %v7500
    %7653 = vmatprep.subr.bf16.mxu0 %v7505
    %7654 = vmatpush1.bf16.msra.mxu0 %v7504
    %7655 = vmatprep.subr.bf16.mxu0 %v7509
    %7656 = vmatpush1.bf16.msra.mxu0 %v7508
    %7657 = vmatprep.subr.bf16.mxu0 %v7513
    %7658 = vmatpush1.bf16.msra.mxu0 %v7512
    %7659 = vmatprep.subr.bf16.mxu0 %v7517
    %7660 = vmatpush1.bf16.msra.mxu0 %v7516
    %7661 = vmatprep.subr.bf16.mxu0 %v7521
    %7662 = vmatpush1.bf16.msra.mxu0 %v7520
    %7663 = vmatprep.subr.bf16.mxu0 %v7525
    %7664 = vmatpush1.bf16.msra.mxu0 %v7524
    %7665 = vmatprep.subr.bf16.mxu0 %v7529
    %7666 = vmatpush1.bf16.msra.mxu0 %v7528
    %7667 = vmatprep.subr.bf16.mxu0 %v7533
    %7668 = vmatpush1.bf16.msra.mxu0 %v7532
    %7669 = vmatprep.subr.bf16.mxu0 %v7537
    %7670 = vmatpush1.bf16.msra.mxu0 %v7536
    %7671 = vmatprep.subr.bf16.mxu0 %v7541
    %7672 = vmatpush1.bf16.msra.mxu0 %v7540
    %7673 = vmatprep.subr.bf16.mxu0 %v7545
    %7674 = vmatpush1.bf16.msra.mxu0 %v7544
    %7675 = vmatprep.subr.bf16.mxu0 %v7549
    %7676 = vmatpush1.bf16.msra.mxu0 %v7548
    %7677 = vmatprep.subr.bf16.mxu0 %v7553
    %7678 = vmatpush1.bf16.msra.mxu0 %v7552
    %7679 = vmatprep.mubr.bf16.mxu0 %v4735
    %7680 = vmatmul.mubr.bf16.gmra.mrb[0].mxu0 %v4734
    %v7681 = vpop.f32.mrb[0].mxu0
    %v7682 = vadd.f32 0.0, %v7681
    %v7683 = vpop.f32.mrb[0].mxu0
    %v7684 = vadd.f32 0.0, %v7683
    %v7685 = vpop.f32.mrb[0].mxu0
    %v7686 = vadd.f32 0.0, %v7685
    %v7687 = vpop.f32.mrb[0].mxu0
    %v7688 = vadd.f32 0.0, %v7687
    %7689 = vdwg.mxu0
    %7690 = vmatprep.subr.bf16.mxu0 %v7557
    %7691 = vmatpush1.bf16.msra.mxu0 %v7556
    %7692 = vmatprep.subr.bf16.mxu0 %v7639
    %7693 = vmatpush1.bf16.msra.mxu0 %v7636
    %7694 = vmatprep.subr.bf16.mxu0 0
    %7695 = vmatpush1.bf16.msra.mxu0 0
    %7696 = vmatprep.subr.bf16.mxu0 0
    %7697 = vmatpush1.bf16.msra.mxu0 0
    %7698 = vmatprep.subr.bf16.mxu0 0
    %7699 = vmatpush1.bf16.msra.mxu0 0
    %7700 = vmatprep.subr.bf16.mxu0 0
    %7701 = vmatpush1.bf16.msra.mxu0 0
    %7702 = vmatprep.subr.bf16.mxu0 0
    %7703 = vmatpush1.bf16.msra.mxu0 0
    %7704 = vmatprep.subr.bf16.mxu0 0
    %7705 = vmatpush1.bf16.msra.mxu0 0
    %7706 = vmatprep.subr.bf16.mxu0 0
    %7707 = vmatpush1.bf16.msra.mxu0 0
    %7708 = vmatprep.subr.bf16.mxu0 0
    %7709 = vmatpush1.bf16.msra.mxu0 0
    %7710 = vmatprep.subr.bf16.mxu0 0
    %7711 = vmatpush1.bf16.msra.mxu0 0
    %7712 = vmatprep.subr.bf16.mxu0 0
    %7713 = vmatpush1.bf16.msra.mxu0 0
    %7714 = vmatprep.subr.bf16.mxu0 0
    %7715 = vmatpush1.bf16.msra.mxu0 0
    %7716 = vmatprep.subr.bf16.mxu0 0
    %7717 = vmatpush1.bf16.msra.mxu0 0
    %7718 = vmatprep.subr.bf16.mxu0 0
    %7719 = vmatpush1.bf16.msra.mxu0 0
    %7720 = vmatprep.subr.bf16.mxu0 0
    %7721 = vmatpush1.bf16.msra.mxu0 0
    %7722 = vmatprep.mubr.bf16.mxu0 0
    %7723 = vmatmul.mubr.bf16.gmra.mrb[0].mxu0 %v7633
    %v7724 = vpop.f32.mrb[0].mxu0
    %v7725 = vadd.f32 %v7682, %v7724
    %v7726 = vpop.f32.mrb[0].mxu0
    %v7727 = vadd.f32 %v7684, %v7726
    %v7728 = vpop.f32.mrb[0].mxu0
    %v7729 = vadd.f32 %v7686, %v7728
    %v7730 = vpop.f32.mrb[0].mxu0
    %v7731 = vadd.f32 %v7688, %v7730
    %7732 = vdwg.mxu0
    %7733 = vmatprep.subr.bf16.mxu0 %v7495
    %7734 = vmatpush1.bf16.msra.mxu0 %v7494
    %7735 = vmatprep.subr.bf16.mxu0 %v7499
    %7736 = vmatpush1.bf16.msra.mxu0 %v7498
    %7737 = vmatprep.subr.bf16.mxu0 %v7503
    %7738 = vmatpush1.bf16.msra.mxu0 %v7502
    %7739 = vmatprep.subr.bf16.mxu0 %v7507
    %7740 = vmatpush1.bf16.msra.mxu0 %v7506
    %7741 = vmatprep.subr.bf16.mxu0 %v7511
    %7742 = vmatpush1.bf16.msra.mxu0 %v7510
    %7743 = vmatprep.subr.bf16.mxu0 %v7515
    %7744 = vmatpush1.bf16.msra.mxu0 %v7514
    %7745 = vmatprep.subr.bf16.mxu0 %v7519
    %7746 = vmatpush1.bf16.msra.mxu0 %v7518
    %7747 = vmatprep.subr.bf16.mxu0 %v7523
    %7748 = vmatpush1.bf16.msra.mxu0 %v7522
    %7749 = vmatprep.subr.bf16.mxu0 %v7527
    %7750 = vmatpush1.bf16.msra.mxu0 %v7526
    %7751 = vmatprep.subr.bf16.mxu0 %v7531
    %7752 = vmatpush1.bf16.msra.mxu0 %v7530
    %7753 = vmatprep.subr.bf16.mxu0 %v7535
    %7754 = vmatpush1.bf16.msra.mxu0 %v7534
    %7755 = vmatprep.subr.bf16.mxu0 %v7539
    %7756 = vmatpush1.bf16.msra.mxu0 %v7538
    %7757 = vmatprep.subr.bf16.mxu0 %v7543
    %7758 = vmatpush1.bf16.msra.mxu0 %v7542
    %7759 = vmatprep.subr.bf16.mxu0 %v7547
    %7760 = vmatpush1.bf16.msra.mxu0 %v7546
    %7761 = vmatprep.subr.bf16.mxu0 %v7551
    %7762 = vmatpush1.bf16.msra.mxu0 %v7550
    %7763 = vmatprep.subr.bf16.mxu0 %v7555
    %7764 = vmatpush1.bf16.msra.mxu0 %v7554
    %7765 = vmatprep.mubr.bf16.mxu0 %v4735
    %7766 = vmatmul.mubr.bf16.gmra.mrb[0].mxu0 %v4734
    %v7767 = vpop.f32.mrb[0].mxu0
    %v7768 = vadd.f32 0.0, %v7767
    %v7769 = vpop.f32.mrb[0].mxu0
    %v7770 = vadd.f32 0.0, %v7769
    %v7771 = vpop.f32.mrb[0].mxu0
    %v7772 = vadd.f32 0.0, %v7771
    %v7773 = vpop.f32.mrb[0].mxu0
    %v7774 = vadd.f32 0.0, %v7773
    %7775 = vdwg.mxu0
    %7776 = vmatprep.subr.bf16.mxu0 %v7559
    %7777 = vmatpush1.bf16.msra.mxu0 %v7558
    %7778 = vmatprep.subr.bf16.mxu0 %v7645
    %7779 = vmatpush1.bf16.msra.mxu0 %v7642
    %7780 = vmatprep.subr.bf16.mxu0 0
    %7781 = vmatpush1.bf16.msra.mxu0 0
    %7782 = vmatprep.subr.bf16.mxu0 0
    %7783 = vmatpush1.bf16.msra.mxu0 0
    %7784 = vmatprep.subr.bf16.mxu0 0
    %7785 = vmatpush1.bf16.msra.mxu0 0
    %7786 = vmatprep.subr.bf16.mxu0 0
    %7787 = vmatpush1.bf16.msra.mxu0 0
    %7788 = vmatprep.subr.bf16.mxu0 0
    %7789 = vmatpush1.bf16.msra.mxu0 0
    %7790 = vmatprep.subr.bf16.mxu0 0
    %7791 = vmatpush1.bf16.msra.mxu0 0
    %7792 = vmatprep.subr.bf16.mxu0 0
    %7793 = vmatpush1.bf16.msra.mxu0 0
    %7794 = vmatprep.subr.bf16.mxu0 0
    %7795 = vmatpush1.bf16.msra.mxu0 0
    %7796 = vmatprep.subr.bf16.mxu0 0
    %7797 = vmatpush1.bf16.msra.mxu0 0
    %7798 = vmatprep.subr.bf16.mxu0 0
    %7799 = vmatpush1.bf16.msra.mxu0 0
    %7800 = vmatprep.subr.bf16.mxu0 0
    %7801 = vmatpush1.bf16.msra.mxu0 0
    %7802 = vmatprep.subr.bf16.mxu0 0
    %7803 = vmatpush1.bf16.msra.mxu0 0
    %7804 = vmatprep.subr.bf16.mxu0 0
    %7805 = vmatpush1.bf16.msra.mxu0 0
    %7806 = vmatprep.subr.bf16.mxu0 0
    %7807 = vmatpush1.bf16.msra.mxu0 0
    %7808 = vmatprep.mubr.bf16.mxu0 0
    %7809 = vmatmul.mubr.bf16.gmra.mrb[0].mxu0 %v7633
    %v7810 = vpop.f32.mrb[0].mxu0
    %v7811 = vadd.f32 %v7768, %v7810
    %v7812 = vpop.f32.mrb[0].mxu0
    %v7813 = vadd.f32 %v7770, %v7812
    %v7814 = vpop.f32.mrb[0].mxu0
    %v7815 = vadd.f32 %v7772, %v7814
    %v7816 = vpop.f32.mrb[0].mxu0
    %v7817 = vadd.f32 %v7774, %v7816
    %7818 = vdwg.mxu0
    %v7819 = vadd.f32 %v7203, %v7725
    %v7820 = vadd.f32 %v7204, %v7727
    %v7821 = vadd.f32 %v7205, %v7811
    %v7822 = vadd.f32 %v7206, %v7813
    %v7823 = vadd.f32 %v7207, %v7729
    %v7824 = vadd.f32 %v7208, %v7731
    %v7825 = vadd.f32 %v7209, %v7815
    %v7826 = vadd.f32 %v7210, %v7817
    %s7827 = scalar_lea.vmem [#allocation7], 2800
    %v7828 = vld [vmem:[%s7827] sm:$0xff]
    %v7829 = vld [vmem:[%s7827 + $0x8] sm:$0xff]
    %v7830 = vld [vmem:[%s7827 + $0x10] sm:$0xff]
    %v7831 = vld [vmem:[%s7827 + $0x18] sm:$0xff]
    %v7832 = vld [vmem:[%s7827 + $0x20] sm:$0xff]
    %v7833 = vld [vmem:[%s7827 + $0x28] sm:$0xff]
    %v7834 = vld [vmem:[%s7827 + $0x30] sm:$0xff]
    %v7835 = vld [vmem:[%s7827 + $0x38] sm:$0xff]
    %v7836 = vld [vmem:[%s7827 + $0x40] sm:$0xff]
    %v7837 = vld [vmem:[%s7827 + $0x48] sm:$0xff]
    %v7838 = vld [vmem:[%s7827 + $0x50] sm:$0xff]
    %v7839 = vld [vmem:[%s7827 + $0x58] sm:$0xff]
    %v7840 = vld [vmem:[%s7827 + $0x60] sm:$0xff]
    %v7841 = vld [vmem:[%s7827 + $0x68] sm:$0xff]
    %v7842 = vld [vmem:[%s7827 + $0x70] sm:$0xff]
    %v7843 = vld [vmem:[%s7827 + $0x78] sm:$0xff]
    %v7844 = vld [vmem:[%s7827 + $0x80] sm:$0xff]
    %v7845 = vld [vmem:[%s7827 + $0x88] sm:$0xff]
    %v7846 = vld [vmem:[%s7827 + $0x90] sm:$0xff]
    %v7847 = vld [vmem:[%s7827 + $0x98] sm:$0xff]
    %v7848 = vld [vmem:[%s7827 + $0xa0] sm:$0xff]
    %v7849 = vld [vmem:[%s7827 + $0xa8] sm:$0xff]
    %v7850 = vld [vmem:[%s7827 + $0xb0] sm:$0xff]
    %v7851 = vld [vmem:[%s7827 + $0xb8] sm:$0xff]
    %v7852 = vld [vmem:[%s7827 + $0xc0] sm:$0xff]
    %v7853 = vld [vmem:[%s7827 + $0xc8] sm:$0xff]
    %v7854 = vld [vmem:[%s7827 + $0xd0] sm:$0xff]
    %v7855 = vld [vmem:[%s7827 + $0xd8] sm:$0xff]
    %v7856 = vld [vmem:[%s7827 + $0xe0] sm:$0xff]
    %v7857 = vld [vmem:[%s7827 + $0xe8] sm:$0xff]
    %v7858 = vld [vmem:[%s7827 + $0xf0] sm:$0xff]
    %v7859 = vld [vmem:[%s7827 + $0xf8] sm:$0xff]
    %v7860 = vld [vmem:[%s7827 + $0x100] sm:$0xff]
    %v7861 = vld [vmem:[%s7827 + $0x108] sm:$0xff]
    %v7862 = vld [vmem:[%s7827 + $0x110] sm:$0xff]
    %v7863 = vld [vmem:[%s7827 + $0x118] sm:$0xff]
    %v7864 = vld [vmem:[%s7827 + $0x120] sm:$0xff]
    %v7865 = vld [vmem:[%s7827 + $0x128] sm:$0xff]
    %v7866 = vld [vmem:[%s7827 + $0x130] sm:$0xff]
    %v7867 = vld [vmem:[%s7827 + $0x138] sm:$0xff]
    %v7868 = vld [vmem:[%s7827 + $0x140] sm:$0xff]
    %v7869 = vld [vmem:[%s7827 + $0x148] sm:$0xff]
    %v7870 = vld [vmem:[%s7827 + $0x150] sm:$0xff]
    %v7871 = vld [vmem:[%s7827 + $0x158] sm:$0xff]
    %v7872 = vld [vmem:[%s7827 + $0x160] sm:$0xff]
    %v7873 = vld [vmem:[%s7827 + $0x168] sm:$0xff]
    %v7874 = vld [vmem:[%s7827 + $0x170] sm:$0xff]
    %v7875 = vld [vmem:[%s7827 + $0x178] sm:$0xff]
    %v7876 = vld [vmem:[%s7827 + $0x180] sm:$0xff]
    %v7877 = vld [vmem:[%s7827 + $0x188] sm:$0xff]
    %v7878 = vld [vmem:[%s7827 + $0x190] sm:$0xff]
    %v7879 = vld [vmem:[%s7827 + $0x198] sm:$0xff]
    %v7880 = vld [vmem:[%s7827 + $0x1a0] sm:$0xff]
    %v7881 = vld [vmem:[%s7827 + $0x1a8] sm:$0xff]
    %v7882 = vld [vmem:[%s7827 + $0x1b0] sm:$0xff]
    %v7883 = vld [vmem:[%s7827 + $0x1b8] sm:$0xff]
    %v7884 = vld [vmem:[%s7827 + $0x1c0] sm:$0xff]
    %v7885 = vld [vmem:[%s7827 + $0x1c8] sm:$0xff]
    %v7886 = vld [vmem:[%s7827 + $0x1d0] sm:$0xff]
    %v7887 = vld [vmem:[%s7827 + $0x1d8] sm:$0xff]
    %v7888 = vld [vmem:[%s7827 + $0x1e0] sm:$0xff]
    %v7889 = vld [vmem:[%s7827 + $0x1e8] sm:$0xff]
    %v7890 = vld [vmem:[%s7827 + $0x1f0] sm:$0xff]
    %v7891 = vld [vmem:[%s7827 + $0x1f8] sm:$0xff]
    %v7892 = vld [vmem:[%s7827 + $0x200] sm:$0xff]
    %v7893 = vld [vmem:[%s7827 + $0x208] sm:$0xff]
    %v7894 = vld [vmem:[%s7827 + $0x210] sm:$0xff]
    %v7895 = vld [vmem:[%s7827 + $0x218] sm:$0xff]
    %v7896 = vld [vmem:[%s7827 + $0x220] sm:$0xff]
    %v7897 = vld [vmem:[%s7827 + $0x228] sm:$0xff]
    %v7968 = vunpack.c.l.b16 %v7828
    %v7969 = vunpack.c.h.b16 %v7828
    %v7970 = vunpack.c.l.b16 %v7829
    %v7971 = vunpack.c.h.b16 %v7829
    %v7972 = vunpack.c.l.b16 %v7830
    %v7973 = vunpack.c.h.b16 %v7830
    %v7974 = vunpack.c.l.b16 %v7831
    %v7975 = vunpack.c.h.b16 %v7831
    %v7976 = vunpack.c.l.b16 %v7832
    %v7977 = vunpack.c.h.b16 %v7832
    %v7978 = vunpack.c.l.b16 %v7833
    %v7979 = vunpack.c.h.b16 %v7833
    %v7980 = vunpack.c.l.b16 %v7834
    %v7981 = vunpack.c.h.b16 %v7834
    %v7982 = vunpack.c.l.b16 %v7835
    %v7983 = vunpack.c.h.b16 %v7835
    %v7984 = vunpack.c.l.b16 %v7836
    %v7985 = vunpack.c.h.b16 %v7836
    %v7986 = vunpack.c.l.b16 %v7837
    %v7987 = vunpack.c.h.b16 %v7837
    %v7988 = vunpack.c.l.b16 %v7838
    %v7989 = vunpack.c.h.b16 %v7838
    %v7990 = vunpack.c.l.b16 %v7839
    %v7991 = vunpack.c.h.b16 %v7839
    %v7992 = vunpack.c.l.b16 %v7840
    %v7993 = vunpack.c.h.b16 %v7840
    %v7994 = vunpack.c.l.b16 %v7841
    %v7995 = vunpack.c.h.b16 %v7841
    %v7996 = vunpack.c.l.b16 %v7842
    %v7997 = vunpack.c.h.b16 %v7842
    %v7998 = vunpack.c.l.b16 %v7843
    %v7999 = vunpack.c.h.b16 %v7843
    %v8000 = vunpack.c.l.b16 %v7844
    %v8001 = vunpack.c.h.b16 %v7844
    %v8002 = vunpack.c.l.b16 %v7845
    %v8003 = vunpack.c.h.b16 %v7845
    %v8004 = vunpack.c.l.b16 %v7846
    %v8005 = vunpack.c.h.b16 %v7846
    %v8006 = vunpack.c.l.b16 %v7847
    %v8007 = vunpack.c.h.b16 %v7847
    %v8008 = vunpack.c.l.b16 %v7848
    %v8009 = vunpack.c.h.b16 %v7848
    %v8010 = vunpack.c.l.b16 %v7849
    %v8011 = vunpack.c.h.b16 %v7849
    %v8012 = vunpack.c.l.b16 %v7850
    %v8013 = vunpack.c.h.b16 %v7850
    %v8014 = vunpack.c.l.b16 %v7851
    %v8015 = vunpack.c.h.b16 %v7851
    %v8016 = vunpack.c.l.b16 %v7852
    %v8017 = vunpack.c.h.b16 %v7852
    %v8018 = vunpack.c.l.b16 %v7853
    %v8019 = vunpack.c.h.b16 %v7853
    %v8020 = vunpack.c.l.b16 %v7854
    %v8021 = vunpack.c.h.b16 %v7854
    %v8022 = vunpack.c.l.b16 %v7855
    %v8023 = vunpack.c.h.b16 %v7855
    %v8024 = vunpack.c.l.b16 %v7856
    %v8025 = vunpack.c.h.b16 %v7856
    %v8026 = vunpack.c.l.b16 %v7857
    %v8027 = vunpack.c.h.b16 %v7857
    %v8028 = vunpack.c.l.b16 %v7858
    %v8029 = vunpack.c.h.b16 %v7858
    %v8030 = vunpack.c.l.b16 %v7859
    %v8031 = vunpack.c.h.b16 %v7859
    %v8032 = vunpack.c.l.b16 %v7860
    %v8033 = vunpack.c.h.b16 %v7860
    %v8034 = vunpack.c.l.b16 %v7861
    %v8035 = vunpack.c.h.b16 %v7861
    %v8036 = vunpack.c.l.b16 %v7862
    %v8037 = vunpack.c.h.b16 %v7862
    %v8038 = vunpack.c.l.b16 %v7863
    %v8039 = vunpack.c.h.b16 %v7863
    %v8040 = vunpack.c.l.b16 %v7864
    %v8041 = vunpack.c.h.b16 %v7864
    %v8042 = vunpack.c.l.b16 %v7865
    %v8043 = vunpack.c.h.b16 %v7865
    %v8044 = vunpack.c.l.b16 %v7866
    %v8045 = vunpack.c.h.b16 %v7866
    %v8046 = vunpack.c.l.b16 %v7867
    %v8047 = vunpack.c.h.b16 %v7867
    %v8048 = vunpack.c.l.b16 %v7868
    %v8049 = vunpack.c.h.b16 %v7868
    %v8050 = vunpack.c.l.b16 %v7869
    %v8051 = vunpack.c.h.b16 %v7869
    %v8052 = vunpack.c.l.b16 %v7870
    %v8053 = vunpack.c.h.b16 %v7870
    %v8054 = vunpack.c.l.b16 %v7871
    %v8055 = vunpack.c.h.b16 %v7871
    %v8056 = vunpack.c.l.b16 %v7872
    %v8057 = vunpack.c.h.b16 %v7872
    %v8058 = vunpack.c.l.b16 %v7873
    %v8059 = vunpack.c.h.b16 %v7873
    %v8060 = vunpack.c.l.b16 %v7874
    %v8061 = vunpack.c.h.b16 %v7874
    %v8062 = vunpack.c.l.b16 %v7875
    %v8063 = vunpack.c.h.b16 %v7875
    %v8064 = vunpack.c.l.b16 %v7876
    %v8065 = vunpack.c.h.b16 %v7876
    %v8066 = vunpack.c.l.b16 %v7877
    %v8067 = vunpack.c.h.b16 %v7877
    %v8068 = vunpack.c.l.b16 %v7878
    %v8069 = vunpack.c.h.b16 %v7878
    %v8070 = vunpack.c.l.b16 %v7879
    %v8071 = vunpack.c.h.b16 %v7879
    %v8072 = vunpack.c.l.b16 %v7880
    %v8073 = vunpack.c.h.b16 %v7880
    %v8074 = vunpack.c.l.b16 %v7881
    %v8075 = vunpack.c.h.b16 %v7881
    %v8076 = vunpack.c.l.b16 %v7882
    %v8077 = vunpack.c.h.b16 %v7882
    %v8078 = vunpack.c.l.b16 %v7883
    %v8079 = vunpack.c.h.b16 %v7883
    %v8080 = vunpack.c.l.b16 %v7884
    %v8081 = vunpack.c.h.b16 %v7884
    %v8082 = vunpack.c.l.b16 %v7885
    %v8083 = vunpack.c.h.b16 %v7885
    %v8084 = vunpack.c.l.b16 %v7886
    %v8085 = vunpack.c.h.b16 %v7886
    %v8086 = vunpack.c.l.b16 %v7887
    %v8087 = vunpack.c.h.b16 %v7887
    %v8088 = vunpack.c.l.b16 %v7888
    %v8089 = vunpack.c.h.b16 %v7888
    %v8090 = vunpack.c.l.b16 %v7889
    %v8091 = vunpack.c.h.b16 %v7889
    %v8092 = vunpack.c.l.b16 %v7890
    %v8093 = vunpack.c.h.b16 %v7890
    %v8094 = vunpack.c.l.b16 %v7891
    %v8095 = vunpack.c.h.b16 %v7891
    %v8096 = vunpack.c.l.b16 %v7892
    %v8097 = vunpack.c.h.b16 %v7892
    %v8098 = vunpack.c.l.b16 %v7893
    %v8099 = vunpack.c.h.b16 %v7893
    %v8100 = vunpack.c.l.b16 %v7894
    %v8101 = vunpack.c.h.b16 %v7894
    %v8102 = vunpack.c.l.b16 %v7895
    %v8103 = vunpack.c.h.b16 %v7895
    %v8104 = vunpack.c.l.b16 %v7896
    %v8105 = vunpack.c.h.b16 %v7896
    %v8106 = vunpack.c.l.b16 %v7897
    %v8107 = vunpack.c.h.b16 %v7897
    %v8108 = vpack.c.b16 %v7972, %v7968
    %v8109 = vpack.c.b16 %v7973, %v7969
    %v8110 = vpack.c.b16 %v7974, %v7970
    %v8111 = vpack.c.b16 %v7975, %v7971
    %v8112 = vpack.c.b16 %v7980, %v7976
    %v8113 = vpack.c.b16 %v7981, %v7977
    %v8114 = vpack.c.b16 %v7982, %v7978
    %v8115 = vpack.c.b16 %v7983, %v7979
    %v8116 = vpack.c.b16 %v7988, %v7984
    %v8117 = vpack.c.b16 %v7989, %v7985
    %v8118 = vpack.c.b16 %v7990, %v7986
    %v8119 = vpack.c.b16 %v7991, %v7987
    %v8120 = vpack.c.b16 %v7996, %v7992
    %v8121 = vpack.c.b16 %v7997, %v7993
    %v8122 = vpack.c.b16 %v7998, %v7994
    %v8123 = vpack.c.b16 %v7999, %v7995
    %v8124 = vpack.c.b16 %v8004, %v8000
    %v8125 = vpack.c.b16 %v8005, %v8001
    %v8126 = vpack.c.b16 %v8006, %v8002
    %v8127 = vpack.c.b16 %v8007, %v8003
    %v8128 = vpack.c.b16 %v8012, %v8008
    %v8129 = vpack.c.b16 %v8013, %v8009
    %v8130 = vpack.c.b16 %v8014, %v8010
    %v8131 = vpack.c.b16 %v8015, %v8011
    %v8132 = vpack.c.b16 %v8020, %v8016
    %v8133 = vpack.c.b16 %v8021, %v8017
    %v8134 = vpack.c.b16 %v8022, %v8018
    %v8135 = vpack.c.b16 %v8023, %v8019
    %v8136 = vpack.c.b16 %v8028, %v8024
    %v8137 = vpack.c.b16 %v8029, %v8025
    %v8138 = vpack.c.b16 %v8030, %v8026
    %v8139 = vpack.c.b16 %v8031, %v8027
    %v8140 = vpack.c.b16 %v8036, %v8032
    %v8141 = vpack.c.b16 %v8037, %v8033
    %v8142 = vpack.c.b16 %v8038, %v8034
    %v8143 = vpack.c.b16 %v8039, %v8035
    %v8144 = vpack.c.b16 %v8044, %v8040
    %v8145 = vpack.c.b16 %v8045, %v8041
    %v8146 = vpack.c.b16 %v8046, %v8042
    %v8147 = vpack.c.b16 %v8047, %v8043
    %v8148 = vpack.c.b16 %v8052, %v8048
    %v8149 = vpack.c.b16 %v8053, %v8049
    %v8150 = vpack.c.b16 %v8054, %v8050
    %v8151 = vpack.c.b16 %v8055, %v8051
    %v8152 = vpack.c.b16 %v8060, %v8056
    %v8153 = vpack.c.b16 %v8061, %v8057
    %v8154 = vpack.c.b16 %v8062, %v8058
    %v8155 = vpack.c.b16 %v8063, %v8059
    %v8156 = vpack.c.b16 %v8068, %v8064
    %v8157 = vpack.c.b16 %v8069, %v8065
    %v8158 = vpack.c.b16 %v8070, %v8066
    %v8159 = vpack.c.b16 %v8071, %v8067
    %v8160 = vpack.c.b16 %v8076, %v8072
    %v8161 = vpack.c.b16 %v8077, %v8073
    %v8162 = vpack.c.b16 %v8078, %v8074
    %v8163 = vpack.c.b16 %v8079, %v8075
    %v8164 = vpack.c.b16 %v8084, %v8080
    %v8165 = vpack.c.b16 %v8085, %v8081
    %v8166 = vpack.c.b16 %v8086, %v8082
    %v8167 = vpack.c.b16 %v8087, %v8083
    %v8168 = vpack.c.b16 %v8092, %v8088
    %v8169 = vpack.c.b16 %v8093, %v8089
    %v8170 = vpack.c.b16 %v8094, %v8090
    %v8171 = vpack.c.b16 %v8095, %v8091
    %v8172 = vpack.c.b16 %v8100, %v8096
    %v8173 = vpack.c.b16 %v8101, %v8097
    %v8174 = vpack.c.b16 %v8102, %v8098
    %v8175 = vpack.c.b16 %v8103, %v8099
    %v8176 = vpack.c.b16 %v8104, %v8104
    %v8177 = vpack.c.b16 %v8105, %v8105
    %v8178 = vpack.c.b16 %v8106, %v8106
    %v8179 = vpack.c.b16 %v8107, %v8107
    %v8249 = vsel %vm2080, %v4739, 0
    %v8252 = vsel %vm2123, %v8176, 0
    %v8255 = vsel %vm2123, %v8177, 0
    %v8258 = vsel %vm2123, %v8178, 0
    %v8261 = vsel %vm2123, %v8179, 0
    %8263 = vmatprep.subr.bf16.mxu0 %v8109
    %8264 = vmatpush1.bf16.msra.mxu0 %v8108
    %8265 = vmatprep.subr.bf16.mxu0 %v8113
    %8266 = vmatpush1.bf16.msra.mxu0 %v8112
    %8267 = vmatprep.subr.bf16.mxu0 %v8117
    %8268 = vmatpush1.bf16.msra.mxu0 %v8116
    %8269 = vmatprep.subr.bf16.mxu0 %v8121
    %8270 = vmatpush1.bf16.msra.mxu0 %v8120
    %8271 = vmatprep.subr.bf16.mxu0 %v8125
    %8272 = vmatpush1.bf16.msra.mxu0 %v8124
    %8273 = vmatprep.subr.bf16.mxu0 %v8129
    %8274 = vmatpush1.bf16.msra.mxu0 %v8128
    %8275 = vmatprep.subr.bf16.mxu0 %v8133
    %8276 = vmatpush1.bf16.msra.mxu0 %v8132
    %8277 = vmatprep.subr.bf16.mxu0 %v8137
    %8278 = vmatpush1.bf16.msra.mxu0 %v8136
    %8279 = vmatprep.subr.bf16.mxu0 %v8141
    %8280 = vmatpush1.bf16.msra.mxu0 %v8140
    %8281 = vmatprep.subr.bf16.mxu0 %v8145
    %8282 = vmatpush1.bf16.msra.mxu0 %v8144
    %8283 = vmatprep.subr.bf16.mxu0 %v8149
    %8284 = vmatpush1.bf16.msra.mxu0 %v8148
    %8285 = vmatprep.subr.bf16.mxu0 %v8153
    %8286 = vmatpush1.bf16.msra.mxu0 %v8152
    %8287 = vmatprep.subr.bf16.mxu0 %v8157
    %8288 = vmatpush1.bf16.msra.mxu0 %v8156
    %8289 = vmatprep.subr.bf16.mxu0 %v8161
    %8290 = vmatpush1.bf16.msra.mxu0 %v8160
    %8291 = vmatprep.subr.bf16.mxu0 %v8165
    %8292 = vmatpush1.bf16.msra.mxu0 %v8164
    %8293 = vmatprep.subr.bf16.mxu0 %v8169
    %8294 = vmatpush1.bf16.msra.mxu0 %v8168
    %8295 = vmatprep.mubr.bf16.mxu0 %v4738
    %8296 = vmatmul.mubr.bf16.gmra.mrb[0].mxu0 %v4737
    %v8297 = vpop.f32.mrb[0].mxu0
    %v8298 = vadd.f32 0.0, %v8297
    %v8299 = vpop.f32.mrb[0].mxu0
    %v8300 = vadd.f32 0.0, %v8299
    %v8301 = vpop.f32.mrb[0].mxu0
    %v8302 = vadd.f32 0.0, %v8301
    %v8303 = vpop.f32.mrb[0].mxu0
    %v8304 = vadd.f32 0.0, %v8303
    %8305 = vdwg.mxu0
    %8306 = vmatprep.subr.bf16.mxu0 %v8173
    %8307 = vmatpush1.bf16.msra.mxu0 %v8172
    %8308 = vmatprep.subr.bf16.mxu0 %v8255
    %8309 = vmatpush1.bf16.msra.mxu0 %v8252
    %8310 = vmatprep.subr.bf16.mxu0 0
    %8311 = vmatpush1.bf16.msra.mxu0 0
    %8312 = vmatprep.subr.bf16.mxu0 0
    %8313 = vmatpush1.bf16.msra.mxu0 0
    %8314 = vmatprep.subr.bf16.mxu0 0
    %8315 = vmatpush1.bf16.msra.mxu0 0
    %8316 = vmatprep.subr.bf16.mxu0 0
    %8317 = vmatpush1.bf16.msra.mxu0 0
    %8318 = vmatprep.subr.bf16.mxu0 0
    %8319 = vmatpush1.bf16.msra.mxu0 0
    %8320 = vmatprep.subr.bf16.mxu0 0
    %8321 = vmatpush1.bf16.msra.mxu0 0
    %8322 = vmatprep.subr.bf16.mxu0 0
    %8323 = vmatpush1.bf16.msra.mxu0 0
    %8324 = vmatprep.subr.bf16.mxu0 0
    %8325 = vmatpush1.bf16.msra.mxu0 0
    %8326 = vmatprep.subr.bf16.mxu0 0
    %8327 = vmatpush1.bf16.msra.mxu0 0
    %8328 = vmatprep.subr.bf16.mxu0 0
    %8329 = vmatpush1.bf16.msra.mxu0 0
    %8330 = vmatprep.subr.bf16.mxu0 0
    %8331 = vmatpush1.bf16.msra.mxu0 0
    %8332 = vmatprep.subr.bf16.mxu0 0
    %8333 = vmatpush1.bf16.msra.mxu0 0
    %8334 = vmatprep.subr.bf16.mxu0 0
    %8335 = vmatpush1.bf16.msra.mxu0 0
    %8336 = vmatprep.subr.bf16.mxu0 0
    %8337 = vmatpush1.bf16.msra.mxu0 0
    %8338 = vmatprep.mubr.bf16.mxu0 0
    %8339 = vmatmul.mubr.bf16.gmra.mrb[0].mxu0 %v8249
    %v8340 = vpop.f32.mrb[0].mxu0
    %v8341 = vadd.f32 %v8298, %v8340
    %v8342 = vpop.f32.mrb[0].mxu0
    %v8343 = vadd.f32 %v8300, %v8342
    %v8344 = vpop.f32.mrb[0].mxu0
    %v8345 = vadd.f32 %v8302, %v8344
    %v8346 = vpop.f32.mrb[0].mxu0
    %v8347 = vadd.f32 %v8304, %v8346
    %8348 = vdwg.mxu0
    %8349 = vmatprep.subr.bf16.mxu0 %v8111
    %8350 = vmatpush1.bf16.msra.mxu0 %v8110
    %8351 = vmatprep.subr.bf16.mxu0 %v8115
    %8352 = vmatpush1.bf16.msra.mxu0 %v8114
    %8353 = vmatprep.subr.bf16.mxu0 %v8119
    %8354 = vmatpush1.bf16.msra.mxu0 %v8118
    %8355 = vmatprep.subr.bf16.mxu0 %v8123
    %8356 = vmatpush1.bf16.msra.mxu0 %v8122
    %8357 = vmatprep.subr.bf16.mxu0 %v8127
    %8358 = vmatpush1.bf16.msra.mxu0 %v8126
    %8359 = vmatprep.subr.bf16.mxu0 %v8131
    %8360 = vmatpush1.bf16.msra.mxu0 %v8130
    %8361 = vmatprep.subr.bf16.mxu0 %v8135
    %8362 = vmatpush1.bf16.msra.mxu0 %v8134
    %8363 = vmatprep.subr.bf16.mxu0 %v8139
    %8364 = vmatpush1.bf16.msra.mxu0 %v8138
    %8365 = vmatprep.subr.bf16.mxu0 %v8143
    %8366 = vmatpush1.bf16.msra.mxu0 %v8142
    %8367 = vmatprep.subr.bf16.mxu0 %v8147
    %8368 = vmatpush1.bf16.msra.mxu0 %v8146
    %8369 = vmatprep.subr.bf16.mxu0 %v8151
    %8370 = vmatpush1.bf16.msra.mxu0 %v8150
    %8371 = vmatprep.subr.bf16.mxu0 %v8155
    %8372 = vmatpush1.bf16.msra.mxu0 %v8154
    %8373 = vmatprep.subr.bf16.mxu0 %v8159
    %8374 = vmatpush1.bf16.msra.mxu0 %v8158
    %8375 = vmatprep.subr.bf16.mxu0 %v8163
    %8376 = vmatpush1.bf16.msra.mxu0 %v8162
    %8377 = vmatprep.subr.bf16.mxu0 %v8167
    %8378 = vmatpush1.bf16.msra.mxu0 %v8166
    %8379 = vmatprep.subr.bf16.mxu0 %v8171
    %8380 = vmatpush1.bf16.msra.mxu0 %v8170
    %8381 = vmatprep.mubr.bf16.mxu0 %v4738
    %8382 = vmatmul.mubr.bf16.gmra.mrb[0].mxu0 %v4737
    %v8383 = vpop.f32.mrb[0].mxu0
    %v8384 = vadd.f32 0.0, %v8383
    %v8385 = vpop.f32.mrb[0].mxu0
    %v8386 = vadd.f32 0.0, %v8385
    %v8387 = vpop.f32.mrb[0].mxu0
    %v8388 = vadd.f32 0.0, %v8387
    %v8389 = vpop.f32.mrb[0].mxu0
    %v8390 = vadd.f32 0.0, %v8389
    %8391 = vdwg.mxu0
    %8392 = vmatprep.subr.bf16.mxu0 %v8175
    %8393 = vmatpush1.bf16.msra.mxu0 %v8174
    %8394 = vmatprep.subr.bf16.mxu0 %v8261
    %8395 = vmatpush1.bf16.msra.mxu0 %v8258
    %8396 = vmatprep.subr.bf16.mxu0 0
    %8397 = vmatpush1.bf16.msra.mxu0 0
    %8398 = vmatprep.subr.bf16.mxu0 0
    %8399 = vmatpush1.bf16.msra.mxu0 0
    %8400 = vmatprep.subr.bf16.mxu0 0
    %8401 = vmatpush1.bf16.msra.mxu0 0
    %8402 = vmatprep.subr.bf16.mxu0 0
    %8403 = vmatpush1.bf16.msra.mxu0 0
    %8404 = vmatprep.subr.bf16.mxu0 0
    %8405 = vmatpush1.bf16.msra.mxu0 0
    %8406 = vmatprep.subr.bf16.mxu0 0
    %8407 = vmatpush1.bf16.msra.mxu0 0
    %8408 = vmatprep.subr.bf16.mxu0 0
    %8409 = vmatpush1.bf16.msra.mxu0 0
    %8410 = vmatprep.subr.bf16.mxu0 0
    %8411 = vmatpush1.bf16.msra.mxu0 0
    %8412 = vmatprep.subr.bf16.mxu0 0
    %8413 = vmatpush1.bf16.msra.mxu0 0
    %8414 = vmatprep.subr.bf16.mxu0 0
    %8415 = vmatpush1.bf16.msra.mxu0 0
    %8416 = vmatprep.subr.bf16.mxu0 0
    %8417 = vmatpush1.bf16.msra.mxu0 0
    %8418 = vmatprep.subr.bf16.mxu0 0
    %8419 = vmatpush1.bf16.msra.mxu0 0
    %8420 = vmatprep.subr.bf16.mxu0 0
    %8421 = vmatpush1.bf16.msra.mxu0 0
    %8422 = vmatprep.subr.bf16.mxu0 0
    %8423 = vmatpush1.bf16.msra.mxu0 0
    %8424 = vmatprep.mubr.bf16.mxu0 0
    %8425 = vmatmul.mubr.bf16.gmra.mrb[0].mxu0 %v8249
    %v8426 = vpop.f32.mrb[0].mxu0
    %v8427 = vadd.f32 %v8384, %v8426
    %v8428 = vpop.f32.mrb[0].mxu0
    %v8429 = vadd.f32 %v8386, %v8428
    %v8430 = vpop.f32.mrb[0].mxu0
    %v8431 = vadd.f32 %v8388, %v8430
    %v8432 = vpop.f32.mrb[0].mxu0
    %v8433 = vadd.f32 %v8390, %v8432
    %8434 = vdwg.mxu0
    %v8435 = vadd.f32 %v7819, %v8341
    %v8436 = vadd.f32 %v7820, %v8343
    %v8437 = vadd.f32 %v7821, %v8427
    %v8438 = vadd.f32 %v7822, %v8429
    %v8439 = vadd.f32 %v7823, %v8345
    %v8440 = vadd.f32 %v7824, %v8347
    %v8441 = vadd.f32 %v7825, %v8431
    %v8442 = vadd.f32 %v7826, %v8433
    %s8443 = scalar_lea.vmem [#allocation7], 3360
    %v8444 = vld [vmem:[%s8443] sm:$0xff]
    %v8445 = vld [vmem:[%s8443 + $0x8] sm:$0xff]
    %v8446 = vld [vmem:[%s8443 + $0x10] sm:$0xff]
    %v8447 = vld [vmem:[%s8443 + $0x18] sm:$0xff]
    %v8448 = vld [vmem:[%s8443 + $0x20] sm:$0xff]
    %v8449 = vld [vmem:[%s8443 + $0x28] sm:$0xff]
    %v8450 = vld [vmem:[%s8443 + $0x30] sm:$0xff]
    %v8451 = vld [vmem:[%s8443 + $0x38] sm:$0xff]
    %v8452 = vld [vmem:[%s8443 + $0x40] sm:$0xff]
    %v8453 = vld [vmem:[%s8443 + $0x48] sm:$0xff]
    %v8454 = vld [vmem:[%s8443 + $0x50] sm:$0xff]
    %v8455 = vld [vmem:[%s8443 + $0x58] sm:$0xff]
    %v8456 = vld [vmem:[%s8443 + $0x60] sm:$0xff]
    %v8457 = vld [vmem:[%s8443 + $0x68] sm:$0xff]
    %v8458 = vld [vmem:[%s8443 + $0x70] sm:$0xff]
    %v8459 = vld [vmem:[%s8443 + $0x78] sm:$0xff]
    %v8460 = vld [vmem:[%s8443 + $0x80] sm:$0xff]
    %v8461 = vld [vmem:[%s8443 + $0x88] sm:$0xff]
    %v8462 = vld [vmem:[%s8443 + $0x90] sm:$0xff]
    %v8463 = vld [vmem:[%s8443 + $0x98] sm:$0xff]
    %v8464 = vld [vmem:[%s8443 + $0xa0] sm:$0xff]
    %v8465 = vld [vmem:[%s8443 + $0xa8] sm:$0xff]
    %v8466 = vld [vmem:[%s8443 + $0xb0] sm:$0xff]
    %v8467 = vld [vmem:[%s8443 + $0xb8] sm:$0xff]
    %v8468 = vld [vmem:[%s8443 + $0xc0] sm:$0xff]
    %v8469 = vld [vmem:[%s8443 + $0xc8] sm:$0xff]
    %v8470 = vld [vmem:[%s8443 + $0xd0] sm:$0xff]
    %v8471 = vld [vmem:[%s8443 + $0xd8] sm:$0xff]
    %v8472 = vld [vmem:[%s8443 + $0xe0] sm:$0xff]
    %v8473 = vld [vmem:[%s8443 + $0xe8] sm:$0xff]
    %v8474 = vld [vmem:[%s8443 + $0xf0] sm:$0xff]
    %v8475 = vld [vmem:[%s8443 + $0xf8] sm:$0xff]
    %v8476 = vld [vmem:[%s8443 + $0x100] sm:$0xff]
    %v8477 = vld [vmem:[%s8443 + $0x108] sm:$0xff]
    %v8478 = vld [vmem:[%s8443 + $0x110] sm:$0xff]
    %v8479 = vld [vmem:[%s8443 + $0x118] sm:$0xff]
    %v8480 = vld [vmem:[%s8443 + $0x120] sm:$0xff]
    %v8481 = vld [vmem:[%s8443 + $0x128] sm:$0xff]
    %v8482 = vld [vmem:[%s8443 + $0x130] sm:$0xff]
    %v8483 = vld [vmem:[%s8443 + $0x138] sm:$0xff]
    %v8484 = vld [vmem:[%s8443 + $0x140] sm:$0xff]
    %v8485 = vld [vmem:[%s8443 + $0x148] sm:$0xff]
    %v8486 = vld [vmem:[%s8443 + $0x150] sm:$0xff]
    %v8487 = vld [vmem:[%s8443 + $0x158] sm:$0xff]
    %v8488 = vld [vmem:[%s8443 + $0x160] sm:$0xff]
    %v8489 = vld [vmem:[%s8443 + $0x168] sm:$0xff]
    %v8490 = vld [vmem:[%s8443 + $0x170] sm:$0xff]
    %v8491 = vld [vmem:[%s8443 + $0x178] sm:$0xff]
    %v8492 = vld [vmem:[%s8443 + $0x180] sm:$0xff]
    %v8493 = vld [vmem:[%s8443 + $0x188] sm:$0xff]
    %v8494 = vld [vmem:[%s8443 + $0x190] sm:$0xff]
    %v8495 = vld [vmem:[%s8443 + $0x198] sm:$0xff]
    %v8496 = vld [vmem:[%s8443 + $0x1a0] sm:$0xff]
    %v8497 = vld [vmem:[%s8443 + $0x1a8] sm:$0xff]
    %v8498 = vld [vmem:[%s8443 + $0x1b0] sm:$0xff]
    %v8499 = vld [vmem:[%s8443 + $0x1b8] sm:$0xff]
    %v8500 = vld [vmem:[%s8443 + $0x1c0] sm:$0xff]
    %v8501 = vld [vmem:[%s8443 + $0x1c8] sm:$0xff]
    %v8502 = vld [vmem:[%s8443 + $0x1d0] sm:$0xff]
    %v8503 = vld [vmem:[%s8443 + $0x1d8] sm:$0xff]
    %v8504 = vld [vmem:[%s8443 + $0x1e0] sm:$0xff]
    %v8505 = vld [vmem:[%s8443 + $0x1e8] sm:$0xff]
    %v8506 = vld [vmem:[%s8443 + $0x1f0] sm:$0xff]
    %v8507 = vld [vmem:[%s8443 + $0x1f8] sm:$0xff]
    %v8508 = vld [vmem:[%s8443 + $0x200] sm:$0xff]
    %v8509 = vld [vmem:[%s8443 + $0x208] sm:$0xff]
    %v8510 = vld [vmem:[%s8443 + $0x210] sm:$0xff]
    %v8511 = vld [vmem:[%s8443 + $0x218] sm:$0xff]
    %v8512 = vld [vmem:[%s8443 + $0x220] sm:$0xff]
    %v8513 = vld [vmem:[%s8443 + $0x228] sm:$0xff]
    %v8584 = vunpack.c.l.b16 %v8444
    %v8585 = vunpack.c.h.b16 %v8444
    %v8586 = vunpack.c.l.b16 %v8445
    %v8587 = vunpack.c.h.b16 %v8445
    %v8588 = vunpack.c.l.b16 %v8446
    %v8589 = vunpack.c.h.b16 %v8446
    %v8590 = vunpack.c.l.b16 %v8447
    %v8591 = vunpack.c.h.b16 %v8447
    %v8592 = vunpack.c.l.b16 %v8448
    %v8593 = vunpack.c.h.b16 %v8448
    %v8594 = vunpack.c.l.b16 %v8449
    %v8595 = vunpack.c.h.b16 %v8449
    %v8596 = vunpack.c.l.b16 %v8450
    %v8597 = vunpack.c.h.b16 %v8450
    %v8598 = vunpack.c.l.b16 %v8451
    %v8599 = vunpack.c.h.b16 %v8451
    %v8600 = vunpack.c.l.b16 %v8452
    %v8601 = vunpack.c.h.b16 %v8452
    %v8602 = vunpack.c.l.b16 %v8453
    %v8603 = vunpack.c.h.b16 %v8453
    %v8604 = vunpack.c.l.b16 %v8454
    %v8605 = vunpack.c.h.b16 %v8454
    %v8606 = vunpack.c.l.b16 %v8455
    %v8607 = vunpack.c.h.b16 %v8455
    %v8608 = vunpack.c.l.b16 %v8456
    %v8609 = vunpack.c.h.b16 %v8456
    %v8610 = vunpack.c.l.b16 %v8457
    %v8611 = vunpack.c.h.b16 %v8457
    %v8612 = vunpack.c.l.b16 %v8458
    %v8613 = vunpack.c.h.b16 %v8458
    %v8614 = vunpack.c.l.b16 %v8459
    %v8615 = vunpack.c.h.b16 %v8459
    %v8616 = vunpack.c.l.b16 %v8460
    %v8617 = vunpack.c.h.b16 %v8460
    %v8618 = vunpack.c.l.b16 %v8461
    %v8619 = vunpack.c.h.b16 %v8461
    %v8620 = vunpack.c.l.b16 %v8462
    %v8621 = vunpack.c.h.b16 %v8462
    %v8622 = vunpack.c.l.b16 %v8463
    %v8623 = vunpack.c.h.b16 %v8463
    %v8624 = vunpack.c.l.b16 %v8464
    %v8625 = vunpack.c.h.b16 %v8464
    %v8626 = vunpack.c.l.b16 %v8465
    %v8627 = vunpack.c.h.b16 %v8465
    %v8628 = vunpack.c.l.b16 %v8466
    %v8629 = vunpack.c.h.b16 %v8466
    %v8630 = vunpack.c.l.b16 %v8467
    %v8631 = vunpack.c.h.b16 %v8467
    %v8632 = vunpack.c.l.b16 %v8468
    %v8633 = vunpack.c.h.b16 %v8468
    %v8634 = vunpack.c.l.b16 %v8469
    %v8635 = vunpack.c.h.b16 %v8469
    %v8636 = vunpack.c.l.b16 %v8470
    %v8637 = vunpack.c.h.b16 %v8470
    %v8638 = vunpack.c.l.b16 %v8471
    %v8639 = vunpack.c.h.b16 %v8471
    %v8640 = vunpack.c.l.b16 %v8472
    %v8641 = vunpack.c.h.b16 %v8472
    %v8642 = vunpack.c.l.b16 %v8473
    %v8643 = vunpack.c.h.b16 %v8473
    %v8644 = vunpack.c.l.b16 %v8474
    %v8645 = vunpack.c.h.b16 %v8474
    %v8646 = vunpack.c.l.b16 %v8475
    %v8647 = vunpack.c.h.b16 %v8475
    %v8648 = vunpack.c.l.b16 %v8476
    %v8649 = vunpack.c.h.b16 %v8476
    %v8650 = vunpack.c.l.b16 %v8477
    %v8651 = vunpack.c.h.b16 %v8477
    %v8652 = vunpack.c.l.b16 %v8478
    %v8653 = vunpack.c.h.b16 %v8478
    %v8654 = vunpack.c.l.b16 %v8479
    %v8655 = vunpack.c.h.b16 %v8479
    %v8656 = vunpack.c.l.b16 %v8480
    %v8657 = vunpack.c.h.b16 %v8480
    %v8658 = vunpack.c.l.b16 %v8481
    %v8659 = vunpack.c.h.b16 %v8481
    %v8660 = vunpack.c.l.b16 %v8482
    %v8661 = vunpack.c.h.b16 %v8482
    %v8662 = vunpack.c.l.b16 %v8483
    %v8663 = vunpack.c.h.b16 %v8483
    %v8664 = vunpack.c.l.b16 %v8484
    %v8665 = vunpack.c.h.b16 %v8484
    %v8666 = vunpack.c.l.b16 %v8485
    %v8667 = vunpack.c.h.b16 %v8485
    %v8668 = vunpack.c.l.b16 %v8486
    %v8669 = vunpack.c.h.b16 %v8486
    %v8670 = vunpack.c.l.b16 %v8487
    %v8671 = vunpack.c.h.b16 %v8487
    %v8672 = vunpack.c.l.b16 %v8488
    %v8673 = vunpack.c.h.b16 %v8488
    %v8674 = vunpack.c.l.b16 %v8489
    %v8675 = vunpack.c.h.b16 %v8489
    %v8676 = vunpack.c.l.b16 %v8490
    %v8677 = vunpack.c.h.b16 %v8490
    %v8678 = vunpack.c.l.b16 %v8491
    %v8679 = vunpack.c.h.b16 %v8491
    %v8680 = vunpack.c.l.b16 %v8492
    %v8681 = vunpack.c.h.b16 %v8492
    %v8682 = vunpack.c.l.b16 %v8493
    %v8683 = vunpack.c.h.b16 %v8493
    %v8684 = vunpack.c.l.b16 %v8494
    %v8685 = vunpack.c.h.b16 %v8494
    %v8686 = vunpack.c.l.b16 %v8495
    %v8687 = vunpack.c.h.b16 %v8495
    %v8688 = vunpack.c.l.b16 %v8496
    %v8689 = vunpack.c.h.b16 %v8496
    %v8690 = vunpack.c.l.b16 %v8497
    %v8691 = vunpack.c.h.b16 %v8497
    %v8692 = vunpack.c.l.b16 %v8498
    %v8693 = vunpack.c.h.b16 %v8498
    %v8694 = vunpack.c.l.b16 %v8499
    %v8695 = vunpack.c.h.b16 %v8499
    %v8696 = vunpack.c.l.b16 %v8500
    %v8697 = vunpack.c.h.b16 %v8500
    %v8698 = vunpack.c.l.b16 %v8501
    %v8699 = vunpack.c.h.b16 %v8501
    %v8700 = vunpack.c.l.b16 %v8502
    %v8701 = vunpack.c.h.b16 %v8502
    %v8702 = vunpack.c.l.b16 %v8503
    %v8703 = vunpack.c.h.b16 %v8503
    %v8704 = vunpack.c.l.b16 %v8504
    %v8705 = vunpack.c.h.b16 %v8504
    %v8706 = vunpack.c.l.b16 %v8505
    %v8707 = vunpack.c.h.b16 %v8505
    %v8708 = vunpack.c.l.b16 %v8506
    %v8709 = vunpack.c.h.b16 %v8506
    %v8710 = vunpack.c.l.b16 %v8507
    %v8711 = vunpack.c.h.b16 %v8507
    %v8712 = vunpack.c.l.b16 %v8508
    %v8713 = vunpack.c.h.b16 %v8508
    %v8714 = vunpack.c.l.b16 %v8509
    %v8715 = vunpack.c.h.b16 %v8509
    %v8716 = vunpack.c.l.b16 %v8510
    %v8717 = vunpack.c.h.b16 %v8510
    %v8718 = vunpack.c.l.b16 %v8511
    %v8719 = vunpack.c.h.b16 %v8511
    %v8720 = vunpack.c.l.b16 %v8512
    %v8721 = vunpack.c.h.b16 %v8512
    %v8722 = vunpack.c.l.b16 %v8513
    %v8723 = vunpack.c.h.b16 %v8513
    %v8724 = vpack.c.b16 %v8588, %v8584
    %v8725 = vpack.c.b16 %v8589, %v8585
    %v8726 = vpack.c.b16 %v8590, %v8586
    %v8727 = vpack.c.b16 %v8591, %v8587
    %v8728 = vpack.c.b16 %v8596, %v8592
    %v8729 = vpack.c.b16 %v8597, %v8593
    %v8730 = vpack.c.b16 %v8598, %v8594
    %v8731 = vpack.c.b16 %v8599, %v8595
    %v8732 = vpack.c.b16 %v8604, %v8600
    %v8733 = vpack.c.b16 %v8605, %v8601
    %v8734 = vpack.c.b16 %v8606, %v8602
    %v8735 = vpack.c.b16 %v8607, %v8603
    %v8736 = vpack.c.b16 %v8612, %v8608
    %v8737 = vpack.c.b16 %v8613, %v8609
    %v8738 = vpack.c.b16 %v8614, %v8610
    %v8739 = vpack.c.b16 %v8615, %v8611
    %v8740 = vpack.c.b16 %v8620, %v8616
    %v8741 = vpack.c.b16 %v8621, %v8617
    %v8742 = vpack.c.b16 %v8622, %v8618
    %v8743 = vpack.c.b16 %v8623, %v8619
    %v8744 = vpack.c.b16 %v8628, %v8624
    %v8745 = vpack.c.b16 %v8629, %v8625
    %v8746 = vpack.c.b16 %v8630, %v8626
    %v8747 = vpack.c.b16 %v8631, %v8627
    %v8748 = vpack.c.b16 %v8636, %v8632
    %v8749 = vpack.c.b16 %v8637, %v8633
    %v8750 = vpack.c.b16 %v8638, %v8634
    %v8751 = vpack.c.b16 %v8639, %v8635
    %v8752 = vpack.c.b16 %v8644, %v8640
    %v8753 = vpack.c.b16 %v8645, %v8641
    %v8754 = vpack.c.b16 %v8646, %v8642
    %v8755 = vpack.c.b16 %v8647, %v8643
    %v8756 = vpack.c.b16 %v8652, %v8648
    %v8757 = vpack.c.b16 %v8653, %v8649
    %v8758 = vpack.c.b16 %v8654, %v8650
    %v8759 = vpack.c.b16 %v8655, %v8651
    %v8760 = vpack.c.b16 %v8660, %v8656
    %v8761 = vpack.c.b16 %v8661, %v8657
    %v8762 = vpack.c.b16 %v8662, %v8658
    %v8763 = vpack.c.b16 %v8663, %v8659
    %v8764 = vpack.c.b16 %v8668, %v8664
    %v8765 = vpack.c.b16 %v8669, %v8665
    %v8766 = vpack.c.b16 %v8670, %v8666
    %v8767 = vpack.c.b16 %v8671, %v8667
    %v8768 = vpack.c.b16 %v8676, %v8672
    %v8769 = vpack.c.b16 %v8677, %v8673
    %v8770 = vpack.c.b16 %v8678, %v8674
    %v8771 = vpack.c.b16 %v8679, %v8675
    %v8772 = vpack.c.b16 %v8684, %v8680
    %v8773 = vpack.c.b16 %v8685, %v8681
    %v8774 = vpack.c.b16 %v8686, %v8682
    %v8775 = vpack.c.b16 %v8687, %v8683
    %v8776 = vpack.c.b16 %v8692, %v8688
    %v8777 = vpack.c.b16 %v8693, %v8689
    %v8778 = vpack.c.b16 %v8694, %v8690
    %v8779 = vpack.c.b16 %v8695, %v8691
    %v8780 = vpack.c.b16 %v8700, %v8696
    %v8781 = vpack.c.b16 %v8701, %v8697
    %v8782 = vpack.c.b16 %v8702, %v8698
    %v8783 = vpack.c.b16 %v8703, %v8699
    %v8784 = vpack.c.b16 %v8708, %v8704
    %v8785 = vpack.c.b16 %v8709, %v8705
    %v8786 = vpack.c.b16 %v8710, %v8706
    %v8787 = vpack.c.b16 %v8711, %v8707
    %v8788 = vpack.c.b16 %v8716, %v8712
    %v8789 = vpack.c.b16 %v8717, %v8713
    %v8790 = vpack.c.b16 %v8718, %v8714
    %v8791 = vpack.c.b16 %v8719, %v8715
    %v8792 = vpack.c.b16 %v8720, %v8720
    %v8793 = vpack.c.b16 %v8721, %v8721
    %v8794 = vpack.c.b16 %v8722, %v8722
    %v8795 = vpack.c.b16 %v8723, %v8723
    %v8865 = vsel %vm2080, %v4742, 0
    %v8868 = vsel %vm2123, %v8792, 0
    %v8871 = vsel %vm2123, %v8793, 0
    %v8874 = vsel %vm2123, %v8794, 0
    %v8877 = vsel %vm2123, %v8795, 0
    %8879 = vmatprep.subr.bf16.mxu0 %v8725
    %8880 = vmatpush1.bf16.msra.mxu0 %v8724
    %8881 = vmatprep.subr.bf16.mxu0 %v8729
    %8882 = vmatpush1.bf16.msra.mxu0 %v8728
    %8883 = vmatprep.subr.bf16.mxu0 %v8733
    %8884 = vmatpush1.bf16.msra.mxu0 %v8732
    %8885 = vmatprep.subr.bf16.mxu0 %v8737
    %8886 = vmatpush1.bf16.msra.mxu0 %v8736
    %8887 = vmatprep.subr.bf16.mxu0 %v8741
    %8888 = vmatpush1.bf16.msra.mxu0 %v8740
    %8889 = vmatprep.subr.bf16.mxu0 %v8745
    %8890 = vmatpush1.bf16.msra.mxu0 %v8744
    %8891 = vmatprep.subr.bf16.mxu0 %v8749
    %8892 = vmatpush1.bf16.msra.mxu0 %v8748
    %8893 = vmatprep.subr.bf16.mxu0 %v8753
    %8894 = vmatpush1.bf16.msra.mxu0 %v8752
    %8895 = vmatprep.subr.bf16.mxu0 %v8757
    %8896 = vmatpush1.bf16.msra.mxu0 %v8756
    %8897 = vmatprep.subr.bf16.mxu0 %v8761
    %8898 = vmatpush1.bf16.msra.mxu0 %v8760
    %8899 = vmatprep.subr.bf16.mxu0 %v8765
    %8900 = vmatpush1.bf16.msra.mxu0 %v8764
    %8901 = vmatprep.subr.bf16.mxu0 %v8769
    %8902 = vmatpush1.bf16.msra.mxu0 %v8768
    %8903 = vmatprep.subr.bf16.mxu0 %v8773
    %8904 = vmatpush1.bf16.msra.mxu0 %v8772
    %8905 = vmatprep.subr.bf16.mxu0 %v8777
    %8906 = vmatpush1.bf16.msra.mxu0 %v8776
    %8907 = vmatprep.subr.bf16.mxu0 %v8781
    %8908 = vmatpush1.bf16.msra.mxu0 %v8780
    %8909 = vmatprep.subr.bf16.mxu0 %v8785
    %8910 = vmatpush1.bf16.msra.mxu0 %v8784
    %8911 = vmatprep.mubr.bf16.mxu0 %v4741
    %8912 = vmatmul.mubr.bf16.gmra.mrb[0].mxu0 %v4740
    %v8913 = vpop.f32.mrb[0].mxu0
    %v8914 = vadd.f32 0.0, %v8913
    %v8915 = vpop.f32.mrb[0].mxu0
    %v8916 = vadd.f32 0.0, %v8915
    %v8917 = vpop.f32.mrb[0].mxu0
    %v8918 = vadd.f32 0.0, %v8917
    %v8919 = vpop.f32.mrb[0].mxu0
    %v8920 = vadd.f32 0.0, %v8919
    %8921 = vdwg.mxu0
    %8922 = vmatprep.subr.bf16.mxu0 %v8789
    %8923 = vmatpush1.bf16.msra.mxu0 %v8788
    %8924 = vmatprep.subr.bf16.mxu0 %v8871
    %8925 = vmatpush1.bf16.msra.mxu0 %v8868
    %8926 = vmatprep.subr.bf16.mxu0 0
    %8927 = vmatpush1.bf16.msra.mxu0 0
    %8928 = vmatprep.subr.bf16.mxu0 0
    %8929 = vmatpush1.bf16.msra.mxu0 0
    %8930 = vmatprep.subr.bf16.mxu0 0
    %8931 = vmatpush1.bf16.msra.mxu0 0
    %8932 = vmatprep.subr.bf16.mxu0 0
    %8933 = vmatpush1.bf16.msra.mxu0 0
    %8934 = vmatprep.subr.bf16.mxu0 0
    %8935 = vmatpush1.bf16.msra.mxu0 0
    %8936 = vmatprep.subr.bf16.mxu0 0
    %8937 = vmatpush1.bf16.msra.mxu0 0
    %8938 = vmatprep.subr.bf16.mxu0 0
    %8939 = vmatpush1.bf16.msra.mxu0 0
    %8940 = vmatprep.subr.bf16.mxu0 0
    %8941 = vmatpush1.bf16.msra.mxu0 0
    %8942 = vmatprep.subr.bf16.mxu0 0
    %8943 = vmatpush1.bf16.msra.mxu0 0
    %8944 = vmatprep.subr.bf16.mxu0 0
    %8945 = vmatpush1.bf16.msra.mxu0 0
    %8946 = vmatprep.subr.bf16.mxu0 0
    %8947 = vmatpush1.bf16.msra.mxu0 0
    %8948 = vmatprep.subr.bf16.mxu0 0
    %8949 = vmatpush1.bf16.msra.mxu0 0
    %8950 = vmatprep.subr.bf16.mxu0 0
    %8951 = vmatpush1.bf16.msra.mxu0 0
    %8952 = vmatprep.subr.bf16.mxu0 0
    %8953 = vmatpush1.bf16.msra.mxu0 0
    %8954 = vmatprep.mubr.bf16.mxu0 0
    %8955 = vmatmul.mubr.bf16.gmra.mrb[0].mxu0 %v8865
    %v8956 = vpop.f32.mrb[0].mxu0
    %v8957 = vadd.f32 %v8914, %v8956
    %v8958 = vpop.f32.mrb[0].mxu0
    %v8959 = vadd.f32 %v8916, %v8958
    %v8960 = vpop.f32.mrb[0].mxu0
    %v8961 = vadd.f32 %v8918, %v8960
    %v8962 = vpop.f32.mrb[0].mxu0
    %v8963 = vadd.f32 %v8920, %v8962
    %8964 = vdwg.mxu0
    %8965 = vmatprep.subr.bf16.mxu0 %v8727
    %8966 = vmatpush1.bf16.msra.mxu0 %v8726
    %8967 = vmatprep.subr.bf16.mxu0 %v8731
    %8968 = vmatpush1.bf16.msra.mxu0 %v8730
    %8969 = vmatprep.subr.bf16.mxu0 %v8735
    %8970 = vmatpush1.bf16.msra.mxu0 %v8734
    %8971 = vmatprep.subr.bf16.mxu0 %v8739
    %8972 = vmatpush1.bf16.msra.mxu0 %v8738
    %8973 = vmatprep.subr.bf16.mxu0 %v8743
    %8974 = vmatpush1.bf16.msra.mxu0 %v8742
    %8975 = vmatprep.subr.bf16.mxu0 %v8747
    %8976 = vmatpush1.bf16.msra.mxu0 %v8746
    %8977 = vmatprep.subr.bf16.mxu0 %v8751
    %8978 = vmatpush1.bf16.msra.mxu0 %v8750
    %8979 = vmatprep.subr.bf16.mxu0 %v8755
    %8980 = vmatpush1.bf16.msra.mxu0 %v8754
    %8981 = vmatprep.subr.bf16.mxu0 %v8759
    %8982 = vmatpush1.bf16.msra.mxu0 %v8758
    %8983 = vmatprep.subr.bf16.mxu0 %v8763
    %8984 = vmatpush1.bf16.msra.mxu0 %v8762
    %8985 = vmatprep.subr.bf16.mxu0 %v8767
    %8986 = vmatpush1.bf16.msra.mxu0 %v8766
    %8987 = vmatprep.subr.bf16.mxu0 %v8771
    %8988 = vmatpush1.bf16.msra.mxu0 %v8770
    %8989 = vmatprep.subr.bf16.mxu0 %v8775
    %8990 = vmatpush1.bf16.msra.mxu0 %v8774
    %8991 = vmatprep.subr.bf16.mxu0 %v8779
    %8992 = vmatpush1.bf16.msra.mxu0 %v8778
    %8993 = vmatprep.subr.bf16.mxu0 %v8783
    %8994 = vmatpush1.bf16.msra.mxu0 %v8782
    %8995 = vmatprep.subr.bf16.mxu0 %v8787
    %8996 = vmatpush1.bf16.msra.mxu0 %v8786
    %8997 = vmatprep.mubr.bf16.mxu0 %v4741
    %8998 = vmatmul.mubr.bf16.gmra.mrb[0].mxu0 %v4740
    %v8999 = vpop.f32.mrb[0].mxu0
    %v9000 = vadd.f32 0.0, %v8999
    %v9001 = vpop.f32.mrb[0].mxu0
    %v9002 = vadd.f32 0.0, %v9001
    %v9003 = vpop.f32.mrb[0].mxu0
    %v9004 = vadd.f32 0.0, %v9003
    %v9005 = vpop.f32.mrb[0].mxu0
    %v9006 = vadd.f32 0.0, %v9005
    %9007 = vdwg.mxu0
    %9008 = vmatprep.subr.bf16.mxu0 %v8791
    %9009 = vmatpush1.bf16.msra.mxu0 %v8790
    %9010 = vmatprep.subr.bf16.mxu0 %v8877
    %9011 = vmatpush1.bf16.msra.mxu0 %v8874
    %9012 = vmatprep.subr.bf16.mxu0 0
    %9013 = vmatpush1.bf16.msra.mxu0 0
    %9014 = vmatprep.subr.bf16.mxu0 0
    %9015 = vmatpush1.bf16.msra.mxu0 0
    %9016 = vmatprep.subr.bf16.mxu0 0
    %9017 = vmatpush1.bf16.msra.mxu0 0
    %9018 = vmatprep.subr.bf16.mxu0 0
    %9019 = vmatpush1.bf16.msra.mxu0 0
    %9020 = vmatprep.subr.bf16.mxu0 0
    %9021 = vmatpush1.bf16.msra.mxu0 0
    %9022 = vmatprep.subr.bf16.mxu0 0
    %9023 = vmatpush1.bf16.msra.mxu0 0
    %9024 = vmatprep.subr.bf16.mxu0 0
    %9025 = vmatpush1.bf16.msra.mxu0 0
    %9026 = vmatprep.subr.bf16.mxu0 0
    %9027 = vmatpush1.bf16.msra.mxu0 0
    %9028 = vmatprep.subr.bf16.mxu0 0
    %9029 = vmatpush1.bf16.msra.mxu0 0
    %9030 = vmatprep.subr.bf16.mxu0 0
    %9031 = vmatpush1.bf16.msra.mxu0 0
    %9032 = vmatprep.subr.bf16.mxu0 0
    %9033 = vmatpush1.bf16.msra.mxu0 0
    %9034 = vmatprep.subr.bf16.mxu0 0
    %9035 = vmatpush1.bf16.msra.mxu0 0
    %9036 = vmatprep.subr.bf16.mxu0 0
    %9037 = vmatpush1.bf16.msra.mxu0 0
    %9038 = vmatprep.subr.bf16.mxu0 0
    %9039 = vmatpush1.bf16.msra.mxu0 0
    %9040 = vmatprep.mubr.bf16.mxu0 0
    %9041 = vmatmul.mubr.bf16.gmra.mrb[0].mxu0 %v8865
    %v9042 = vpop.f32.mrb[0].mxu0
    %v9043 = vadd.f32 %v9000, %v9042
    %v9044 = vpop.f32.mrb[0].mxu0
    %v9045 = vadd.f32 %v9002, %v9044
    %v9046 = vpop.f32.mrb[0].mxu0
    %v9047 = vadd.f32 %v9004, %v9046
    %v9048 = vpop.f32.mrb[0].mxu0
    %v9049 = vadd.f32 %v9006, %v9048
    %9050 = vdwg.mxu0
    %v9051 = vadd.f32 %v8435, %v8957
    %v9052 = vadd.f32 %v8436, %v8959
    %v9053 = vadd.f32 %v8437, %v9043
    %v9054 = vadd.f32 %v8438, %v9045
    %v9055 = vadd.f32 %v8439, %v8961
    %v9056 = vadd.f32 %v8440, %v8963
    %v9057 = vadd.f32 %v8441, %v9047
    %v9058 = vadd.f32 %v8442, %v9049
    %s9059 = scalar_lea.vmem [#allocation7], 3920
    %v9060 = vld [vmem:[%s9059] sm:$0xff]
    %v9061 = vld [vmem:[%s9059 + $0x8] sm:$0xff]
    %v9062 = vld [vmem:[%s9059 + $0x10] sm:$0xff]
    %v9063 = vld [vmem:[%s9059 + $0x18] sm:$0xff]
    %v9064 = vld [vmem:[%s9059 + $0x20] sm:$0xff]
    %v9065 = vld [vmem:[%s9059 + $0x28] sm:$0xff]
    %v9066 = vld [vmem:[%s9059 + $0x30] sm:$0xff]
    %v9067 = vld [vmem:[%s9059 + $0x38] sm:$0xff]
    %v9068 = vld [vmem:[%s9059 + $0x40] sm:$0xff]
    %v9069 = vld [vmem:[%s9059 + $0x48] sm:$0xff]
    %v9070 = vld [vmem:[%s9059 + $0x50] sm:$0xff]
    %v9071 = vld [vmem:[%s9059 + $0x58] sm:$0xff]
    %v9072 = vld [vmem:[%s9059 + $0x60] sm:$0xff]
    %v9073 = vld [vmem:[%s9059 + $0x68] sm:$0xff]
    %v9074 = vld [vmem:[%s9059 + $0x70] sm:$0xff]
    %v9075 = vld [vmem:[%s9059 + $0x78] sm:$0xff]
    %v9076 = vld [vmem:[%s9059 + $0x80] sm:$0xff]
    %v9077 = vld [vmem:[%s9059 + $0x88] sm:$0xff]
    %v9078 = vld [vmem:[%s9059 + $0x90] sm:$0xff]
    %v9079 = vld [vmem:[%s9059 + $0x98] sm:$0xff]
    %v9080 = vld [vmem:[%s9059 + $0xa0] sm:$0xff]
    %v9081 = vld [vmem:[%s9059 + $0xa8] sm:$0xff]
    %v9082 = vld [vmem:[%s9059 + $0xb0] sm:$0xff]
    %v9083 = vld [vmem:[%s9059 + $0xb8] sm:$0xff]
    %v9084 = vld [vmem:[%s9059 + $0xc0] sm:$0xff]
    %v9085 = vld [vmem:[%s9059 + $0xc8] sm:$0xff]
    %v9086 = vld [vmem:[%s9059 + $0xd0] sm:$0xff]
    %v9087 = vld [vmem:[%s9059 + $0xd8] sm:$0xff]
    %v9088 = vld [vmem:[%s9059 + $0xe0] sm:$0xff]
    %v9089 = vld [vmem:[%s9059 + $0xe8] sm:$0xff]
    %v9090 = vld [vmem:[%s9059 + $0xf0] sm:$0xff]
    %v9091 = vld [vmem:[%s9059 + $0xf8] sm:$0xff]
    %v9092 = vld [vmem:[%s9059 + $0x100] sm:$0xff]
    %v9093 = vld [vmem:[%s9059 + $0x108] sm:$0xff]
    %v9094 = vld [vmem:[%s9059 + $0x110] sm:$0xff]
    %v9095 = vld [vmem:[%s9059 + $0x118] sm:$0xff]
    %v9096 = vld [vmem:[%s9059 + $0x120] sm:$0xff]
    %v9097 = vld [vmem:[%s9059 + $0x128] sm:$0xff]
    %v9098 = vld [vmem:[%s9059 + $0x130] sm:$0xff]
    %v9099 = vld [vmem:[%s9059 + $0x138] sm:$0xff]
    %v9100 = vld [vmem:[%s9059 + $0x140] sm:$0xff]
    %v9101 = vld [vmem:[%s9059 + $0x148] sm:$0xff]
    %v9102 = vld [vmem:[%s9059 + $0x150] sm:$0xff]
    %v9103 = vld [vmem:[%s9059 + $0x158] sm:$0xff]
    %v9104 = vld [vmem:[%s9059 + $0x160] sm:$0xff]
    %v9105 = vld [vmem:[%s9059 + $0x168] sm:$0xff]
    %v9106 = vld [vmem:[%s9059 + $0x170] sm:$0xff]
    %v9107 = vld [vmem:[%s9059 + $0x178] sm:$0xff]
    %v9108 = vld [vmem:[%s9059 + $0x180] sm:$0xff]
    %v9109 = vld [vmem:[%s9059 + $0x188] sm:$0xff]
    %v9110 = vld [vmem:[%s9059 + $0x190] sm:$0xff]
    %v9111 = vld [vmem:[%s9059 + $0x198] sm:$0xff]
    %v9112 = vld [vmem:[%s9059 + $0x1a0] sm:$0xff]
    %v9113 = vld [vmem:[%s9059 + $0x1a8] sm:$0xff]
    %v9114 = vld [vmem:[%s9059 + $0x1b0] sm:$0xff]
    %v9115 = vld [vmem:[%s9059 + $0x1b8] sm:$0xff]
    %v9116 = vld [vmem:[%s9059 + $0x1c0] sm:$0xff]
    %v9117 = vld [vmem:[%s9059 + $0x1c8] sm:$0xff]
    %v9118 = vld [vmem:[%s9059 + $0x1d0] sm:$0xff]
    %v9119 = vld [vmem:[%s9059 + $0x1d8] sm:$0xff]
    %v9120 = vld [vmem:[%s9059 + $0x1e0] sm:$0xff]
    %v9121 = vld [vmem:[%s9059 + $0x1e8] sm:$0xff]
    %v9122 = vld [vmem:[%s9059 + $0x1f0] sm:$0xff]
    %v9123 = vld [vmem:[%s9059 + $0x1f8] sm:$0xff]
    %v9124 = vld [vmem:[%s9059 + $0x200] sm:$0xff]
    %v9125 = vld [vmem:[%s9059 + $0x208] sm:$0xff]
    %v9126 = vld [vmem:[%s9059 + $0x210] sm:$0xff]
    %v9127 = vld [vmem:[%s9059 + $0x218] sm:$0xff]
    %v9128 = vld [vmem:[%s9059 + $0x220] sm:$0xff]
    %v9129 = vld [vmem:[%s9059 + $0x228] sm:$0xff]
    %v9200 = vunpack.c.l.b16 %v9060
    %v9201 = vunpack.c.h.b16 %v9060
    %v9202 = vunpack.c.l.b16 %v9061
    %v9203 = vunpack.c.h.b16 %v9061
    %v9204 = vunpack.c.l.b16 %v9062
    %v9205 = vunpack.c.h.b16 %v9062
    %v9206 = vunpack.c.l.b16 %v9063
    %v9207 = vunpack.c.h.b16 %v9063
    %v9208 = vunpack.c.l.b16 %v9064
    %v9209 = vunpack.c.h.b16 %v9064
    %v9210 = vunpack.c.l.b16 %v9065
    %v9211 = vunpack.c.h.b16 %v9065
    %v9212 = vunpack.c.l.b16 %v9066
    %v9213 = vunpack.c.h.b16 %v9066
    %v9214 = vunpack.c.l.b16 %v9067
    %v9215 = vunpack.c.h.b16 %v9067
    %v9216 = vunpack.c.l.b16 %v9068
    %v9217 = vunpack.c.h.b16 %v9068
    %v9218 = vunpack.c.l.b16 %v9069
    %v9219 = vunpack.c.h.b16 %v9069
    %v9220 = vunpack.c.l.b16 %v9070
    %v9221 = vunpack.c.h.b16 %v9070
    %v9222 = vunpack.c.l.b16 %v9071
    %v9223 = vunpack.c.h.b16 %v9071
    %v9224 = vunpack.c.l.b16 %v9072
    %v9225 = vunpack.c.h.b16 %v9072
    %v9226 = vunpack.c.l.b16 %v9073
    %v9227 = vunpack.c.h.b16 %v9073
    %v9228 = vunpack.c.l.b16 %v9074
    %v9229 = vunpack.c.h.b16 %v9074
    %v9230 = vunpack.c.l.b16 %v9075
    %v9231 = vunpack.c.h.b16 %v9075
    %v9232 = vunpack.c.l.b16 %v9076
    %v9233 = vunpack.c.h.b16 %v9076
    %v9234 = vunpack.c.l.b16 %v9077
    %v9235 = vunpack.c.h.b16 %v9077
    %v9236 = vunpack.c.l.b16 %v9078
    %v9237 = vunpack.c.h.b16 %v9078
    %v9238 = vunpack.c.l.b16 %v9079
    %v9239 = vunpack.c.h.b16 %v9079
    %v9240 = vunpack.c.l.b16 %v9080
    %v9241 = vunpack.c.h.b16 %v9080
    %v9242 = vunpack.c.l.b16 %v9081
    %v9243 = vunpack.c.h.b16 %v9081
    %v9244 = vunpack.c.l.b16 %v9082
    %v9245 = vunpack.c.h.b16 %v9082
    %v9246 = vunpack.c.l.b16 %v9083
    %v9247 = vunpack.c.h.b16 %v9083
    %v9248 = vunpack.c.l.b16 %v9084
    %v9249 = vunpack.c.h.b16 %v9084
    %v9250 = vunpack.c.l.b16 %v9085
    %v9251 = vunpack.c.h.b16 %v9085
    %v9252 = vunpack.c.l.b16 %v9086
    %v9253 = vunpack.c.h.b16 %v9086
    %v9254 = vunpack.c.l.b16 %v9087
    %v9255 = vunpack.c.h.b16 %v9087
    %v9256 = vunpack.c.l.b16 %v9088
    %v9257 = vunpack.c.h.b16 %v9088
    %v9258 = vunpack.c.l.b16 %v9089
    %v9259 = vunpack.c.h.b16 %v9089
    %v9260 = vunpack.c.l.b16 %v9090
    %v9261 = vunpack.c.h.b16 %v9090
    %v9262 = vunpack.c.l.b16 %v9091
    %v9263 = vunpack.c.h.b16 %v9091
    %v9264 = vunpack.c.l.b16 %v9092
    %v9265 = vunpack.c.h.b16 %v9092
    %v9266 = vunpack.c.l.b16 %v9093
    %v9267 = vunpack.c.h.b16 %v9093
    %v9268 = vunpack.c.l.b16 %v9094
    %v9269 = vunpack.c.h.b16 %v9094
    %v9270 = vunpack.c.l.b16 %v9095
    %v9271 = vunpack.c.h.b16 %v9095
    %v9272 = vunpack.c.l.b16 %v9096
    %v9273 = vunpack.c.h.b16 %v9096
    %v9274 = vunpack.c.l.b16 %v9097
    %v9275 = vunpack.c.h.b16 %v9097
    %v9276 = vunpack.c.l.b16 %v9098
    %v9277 = vunpack.c.h.b16 %v9098
    %v9278 = vunpack.c.l.b16 %v9099
    %v9279 = vunpack.c.h.b16 %v9099
    %v9280 = vunpack.c.l.b16 %v9100
    %v9281 = vunpack.c.h.b16 %v9100
    %v9282 = vunpack.c.l.b16 %v9101
    %v9283 = vunpack.c.h.b16 %v9101
    %v9284 = vunpack.c.l.b16 %v9102
    %v9285 = vunpack.c.h.b16 %v9102
    %v9286 = vunpack.c.l.b16 %v9103
    %v9287 = vunpack.c.h.b16 %v9103
    %v9288 = vunpack.c.l.b16 %v9104
    %v9289 = vunpack.c.h.b16 %v9104
    %v9290 = vunpack.c.l.b16 %v9105
    %v9291 = vunpack.c.h.b16 %v9105
    %v9292 = vunpack.c.l.b16 %v9106
    %v9293 = vunpack.c.h.b16 %v9106
    %v9294 = vunpack.c.l.b16 %v9107
    %v9295 = vunpack.c.h.b16 %v9107
    %v9296 = vunpack.c.l.b16 %v9108
    %v9297 = vunpack.c.h.b16 %v9108
    %v9298 = vunpack.c.l.b16 %v9109
    %v9299 = vunpack.c.h.b16 %v9109
    %v9300 = vunpack.c.l.b16 %v9110
    %v9301 = vunpack.c.h.b16 %v9110
    %v9302 = vunpack.c.l.b16 %v9111
    %v9303 = vunpack.c.h.b16 %v9111
    %v9304 = vunpack.c.l.b16 %v9112
    %v9305 = vunpack.c.h.b16 %v9112
    %v9306 = vunpack.c.l.b16 %v9113
    %v9307 = vunpack.c.h.b16 %v9113
    %v9308 = vunpack.c.l.b16 %v9114
    %v9309 = vunpack.c.h.b16 %v9114
    %v9310 = vunpack.c.l.b16 %v9115
    %v9311 = vunpack.c.h.b16 %v9115
    %v9312 = vunpack.c.l.b16 %v9116
    %v9313 = vunpack.c.h.b16 %v9116
    %v9314 = vunpack.c.l.b16 %v9117
    %v9315 = vunpack.c.h.b16 %v9117
    %v9316 = vunpack.c.l.b16 %v9118
    %v9317 = vunpack.c.h.b16 %v9118
    %v9318 = vunpack.c.l.b16 %v9119
    %v9319 = vunpack.c.h.b16 %v9119
    %v9320 = vunpack.c.l.b16 %v9120
    %v9321 = vunpack.c.h.b16 %v9120
    %v9322 = vunpack.c.l.b16 %v9121
    %v9323 = vunpack.c.h.b16 %v9121
    %v9324 = vunpack.c.l.b16 %v9122
    %v9325 = vunpack.c.h.b16 %v9122
    %v9326 = vunpack.c.l.b16 %v9123
    %v9327 = vunpack.c.h.b16 %v9123
    %v9328 = vunpack.c.l.b16 %v9124
    %v9329 = vunpack.c.h.b16 %v9124
    %v9330 = vunpack.c.l.b16 %v9125
    %v9331 = vunpack.c.h.b16 %v9125
    %v9332 = vunpack.c.l.b16 %v9126
    %v9333 = vunpack.c.h.b16 %v9126
    %v9334 = vunpack.c.l.b16 %v9127
    %v9335 = vunpack.c.h.b16 %v9127
    %v9336 = vunpack.c.l.b16 %v9128
    %v9337 = vunpack.c.h.b16 %v9128
    %v9338 = vunpack.c.l.b16 %v9129
    %v9339 = vunpack.c.h.b16 %v9129
    %v9340 = vpack.c.b16 %v9204, %v9200
    %v9341 = vpack.c.b16 %v9205, %v9201
    %v9342 = vpack.c.b16 %v9206, %v9202
    %v9343 = vpack.c.b16 %v9207, %v9203
    %v9344 = vpack.c.b16 %v9212, %v9208
    %v9345 = vpack.c.b16 %v9213, %v9209
    %v9346 = vpack.c.b16 %v9214, %v9210
    %v9347 = vpack.c.b16 %v9215, %v9211
    %v9348 = vpack.c.b16 %v9220, %v9216
    %v9349 = vpack.c.b16 %v9221, %v9217
    %v9350 = vpack.c.b16 %v9222, %v9218
    %v9351 = vpack.c.b16 %v9223, %v9219
    %v9352 = vpack.c.b16 %v9228, %v9224
    %v9353 = vpack.c.b16 %v9229, %v9225
    %v9354 = vpack.c.b16 %v9230, %v9226
    %v9355 = vpack.c.b16 %v9231, %v9227
    %v9356 = vpack.c.b16 %v9236, %v9232
    %v9357 = vpack.c.b16 %v9237, %v9233
    %v9358 = vpack.c.b16 %v9238, %v9234
    %v9359 = vpack.c.b16 %v9239, %v9235
    %v9360 = vpack.c.b16 %v9244, %v9240
    %v9361 = vpack.c.b16 %v9245, %v9241
    %v9362 = vpack.c.b16 %v9246, %v9242
    %v9363 = vpack.c.b16 %v9247, %v9243
    %v9364 = vpack.c.b16 %v9252, %v9248
    %v9365 = vpack.c.b16 %v9253, %v9249
    %v9366 = vpack.c.b16 %v9254, %v9250
    %v9367 = vpack.c.b16 %v9255, %v9251
    %v9368 = vpack.c.b16 %v9260, %v9256
    %v9369 = vpack.c.b16 %v9261, %v9257
    %v9370 = vpack.c.b16 %v9262, %v9258
    %v9371 = vpack.c.b16 %v9263, %v9259
    %v9372 = vpack.c.b16 %v9268, %v9264
    %v9373 = vpack.c.b16 %v9269, %v9265
    %v9374 = vpack.c.b16 %v9270, %v9266
    %v9375 = vpack.c.b16 %v9271, %v9267
    %v9376 = vpack.c.b16 %v9276, %v9272
    %v9377 = vpack.c.b16 %v9277, %v9273
    %v9378 = vpack.c.b16 %v9278, %v9274
    %v9379 = vpack.c.b16 %v9279, %v9275
    %v9380 = vpack.c.b16 %v9284, %v9280
    %v9381 = vpack.c.b16 %v9285, %v9281
    %v9382 = vpack.c.b16 %v9286, %v9282
    %v9383 = vpack.c.b16 %v9287, %v9283
    %v9384 = vpack.c.b16 %v9292, %v9288
    %v9385 = vpack.c.b16 %v9293, %v9289
    %v9386 = vpack.c.b16 %v9294, %v9290
    %v9387 = vpack.c.b16 %v9295, %v9291
    %v9388 = vpack.c.b16 %v9300, %v9296
    %v9389 = vpack.c.b16 %v9301, %v9297
    %v9390 = vpack.c.b16 %v9302, %v9298
    %v9391 = vpack.c.b16 %v9303, %v9299
    %v9392 = vpack.c.b16 %v9308, %v9304
    %v9393 = vpack.c.b16 %v9309, %v9305
    %v9394 = vpack.c.b16 %v9310, %v9306
    %v9395 = vpack.c.b16 %v9311, %v9307
    %v9396 = vpack.c.b16 %v9316, %v9312
    %v9397 = vpack.c.b16 %v9317, %v9313
    %v9398 = vpack.c.b16 %v9318, %v9314
    %v9399 = vpack.c.b16 %v9319, %v9315
    %v9400 = vpack.c.b16 %v9324, %v9320
    %v9401 = vpack.c.b16 %v9325, %v9321
    %v9402 = vpack.c.b16 %v9326, %v9322
    %v9403 = vpack.c.b16 %v9327, %v9323
    %v9404 = vpack.c.b16 %v9332, %v9328
    %v9405 = vpack.c.b16 %v9333, %v9329
    %v9406 = vpack.c.b16 %v9334, %v9330
    %v9407 = vpack.c.b16 %v9335, %v9331
    %v9408 = vpack.c.b16 %v9336, %v9336
    %v9409 = vpack.c.b16 %v9337, %v9337
    %v9410 = vpack.c.b16 %v9338, %v9338
    %v9411 = vpack.c.b16 %v9339, %v9339
    %v9481 = vsel %vm2080, %v4745, 0
    %v9484 = vsel %vm2123, %v9408, 0
    %v9487 = vsel %vm2123, %v9409, 0
    %v9490 = vsel %vm2123, %v9410, 0
    %v9493 = vsel %vm2123, %v9411, 0
    %9495 = vmatprep.subr.bf16.mxu0 %v9341
    %9496 = vmatpush1.bf16.msra.mxu0 %v9340
    %9497 = vmatprep.subr.bf16.mxu0 %v9345
    %9498 = vmatpush1.bf16.msra.mxu0 %v9344
    %9499 = vmatprep.subr.bf16.mxu0 %v9349
    %9500 = vmatpush1.bf16.msra.mxu0 %v9348
    %9501 = vmatprep.subr.bf16.mxu0 %v9353
    %9502 = vmatpush1.bf16.msra.mxu0 %v9352
    %9503 = vmatprep.subr.bf16.mxu0 %v9357
    %9504 = vmatpush1.bf16.msra.mxu0 %v9356
    %9505 = vmatprep.subr.bf16.mxu0 %v9361
    %9506 = vmatpush1.bf16.msra.mxu0 %v9360
    %9507 = vmatprep.subr.bf16.mxu0 %v9365
    %9508 = vmatpush1.bf16.msra.mxu0 %v9364
    %9509 = vmatprep.subr.bf16.mxu0 %v9369
    %9510 = vmatpush1.bf16.msra.mxu0 %v9368
    %9511 = vmatprep.subr.bf16.mxu0 %v9373
    %9512 = vmatpush1.bf16.msra.mxu0 %v9372
    %9513 = vmatprep.subr.bf16.mxu0 %v9377
    %9514 = vmatpush1.bf16.msra.mxu0 %v9376
    %9515 = vmatprep.subr.bf16.mxu0 %v9381
    %9516 = vmatpush1.bf16.msra.mxu0 %v9380
    %9517 = vmatprep.subr.bf16.mxu0 %v9385
    %9518 = vmatpush1.bf16.msra.mxu0 %v9384
    %9519 = vmatprep.subr.bf16.mxu0 %v9389
    %9520 = vmatpush1.bf16.msra.mxu0 %v9388
    %9521 = vmatprep.subr.bf16.mxu0 %v9393
    %9522 = vmatpush1.bf16.msra.mxu0 %v9392
    %9523 = vmatprep.subr.bf16.mxu0 %v9397
    %9524 = vmatpush1.bf16.msra.mxu0 %v9396
    %9525 = vmatprep.subr.bf16.mxu0 %v9401
    %9526 = vmatpush1.bf16.msra.mxu0 %v9400
    %9527 = vmatprep.mubr.bf16.mxu0 %v4744
    %9528 = vmatmul.mubr.bf16.gmra.mrb[0].mxu0 %v4743
    %v9529 = vpop.f32.mrb[0].mxu0
    %v9530 = vadd.f32 0.0, %v9529
    %v9531 = vpop.f32.mrb[0].mxu0
    %v9532 = vadd.f32 0.0, %v9531
    %v9533 = vpop.f32.mrb[0].mxu0
    %v9534 = vadd.f32 0.0, %v9533
    %v9535 = vpop.f32.mrb[0].mxu0
    %v9536 = vadd.f32 0.0, %v9535
    %9537 = vdwg.mxu0
    %9538 = vmatprep.subr.bf16.mxu0 %v9405
    %9539 = vmatpush1.bf16.msra.mxu0 %v9404
    %9540 = vmatprep.subr.bf16.mxu0 %v9487
    %9541 = vmatpush1.bf16.msra.mxu0 %v9484
    %9542 = vmatprep.subr.bf16.mxu0 0
    %9543 = vmatpush1.bf16.msra.mxu0 0
    %9544 = vmatprep.subr.bf16.mxu0 0
    %9545 = vmatpush1.bf16.msra.mxu0 0
    %9546 = vmatprep.subr.bf16.mxu0 0
    %9547 = vmatpush1.bf16.msra.mxu0 0
    %9548 = vmatprep.subr.bf16.mxu0 0
    %9549 = vmatpush1.bf16.msra.mxu0 0
    %9550 = vmatprep.subr.bf16.mxu0 0
    %9551 = vmatpush1.bf16.msra.mxu0 0
    %9552 = vmatprep.subr.bf16.mxu0 0
    %9553 = vmatpush1.bf16.msra.mxu0 0
    %9554 = vmatprep.subr.bf16.mxu0 0
    %9555 = vmatpush1.bf16.msra.mxu0 0
    %9556 = vmatprep.subr.bf16.mxu0 0
    %9557 = vmatpush1.bf16.msra.mxu0 0
    %9558 = vmatprep.subr.bf16.mxu0 0
    %9559 = vmatpush1.bf16.msra.mxu0 0
    %9560 = vmatprep.subr.bf16.mxu0 0
    %9561 = vmatpush1.bf16.msra.mxu0 0
    %9562 = vmatprep.subr.bf16.mxu0 0
    %9563 = vmatpush1.bf16.msra.mxu0 0
    %9564 = vmatprep.subr.bf16.mxu0 0
    %9565 = vmatpush1.bf16.msra.mxu0 0
    %9566 = vmatprep.subr.bf16.mxu0 0
    %9567 = vmatpush1.bf16.msra.mxu0 0
    %9568 = vmatprep.subr.bf16.mxu0 0
    %9569 = vmatpush1.bf16.msra.mxu0 0
    %9570 = vmatprep.mubr.bf16.mxu0 0
    %9571 = vmatmul.mubr.bf16.gmra.mrb[0].mxu0 %v9481
    %v9572 = vpop.f32.mrb[0].mxu0
    %v9573 = vadd.f32 %v9530, %v9572
    %v9574 = vpop.f32.mrb[0].mxu0
    %v9575 = vadd.f32 %v9532, %v9574
    %v9576 = vpop.f32.mrb[0].mxu0
    %v9577 = vadd.f32 %v9534, %v9576
    %v9578 = vpop.f32.mrb[0].mxu0
    %v9579 = vadd.f32 %v9536, %v9578
    %9580 = vdwg.mxu0
    %9581 = vmatprep.subr.bf16.mxu0 %v9343
    %9582 = vmatpush1.bf16.msra.mxu0 %v9342
    %9583 = vmatprep.subr.bf16.mxu0 %v9347
    %9584 = vmatpush1.bf16.msra.mxu0 %v9346
    %9585 = vmatprep.subr.bf16.mxu0 %v9351
    %9586 = vmatpush1.bf16.msra.mxu0 %v9350
    %9587 = vmatprep.subr.bf16.mxu0 %v9355
    %9588 = vmatpush1.bf16.msra.mxu0 %v9354
    %9589 = vmatprep.subr.bf16.mxu0 %v9359
    %9590 = vmatpush1.bf16.msra.mxu0 %v9358
    %9591 = vmatprep.subr.bf16.mxu0 %v9363
    %9592 = vmatpush1.bf16.msra.mxu0 %v9362
    %9593 = vmatprep.subr.bf16.mxu0 %v9367
    %9594 = vmatpush1.bf16.msra.mxu0 %v9366
    %9595 = vmatprep.subr.bf16.mxu0 %v9371
    %9596 = vmatpush1.bf16.msra.mxu0 %v9370
    %9597 = vmatprep.subr.bf16.mxu0 %v9375
    %9598 = vmatpush1.bf16.msra.mxu0 %v9374
    %9599 = vmatprep.subr.bf16.mxu0 %v9379
    %9600 = vmatpush1.bf16.msra.mxu0 %v9378
    %9601 = vmatprep.subr.bf16.mxu0 %v9383
    %9602 = vmatpush1.bf16.msra.mxu0 %v9382
    %9603 = vmatprep.subr.bf16.mxu0 %v9387
    %9604 = vmatpush1.bf16.msra.mxu0 %v9386
    %9605 = vmatprep.subr.bf16.mxu0 %v9391
    %9606 = vmatpush1.bf16.msra.mxu0 %v9390
    %9607 = vmatprep.subr.bf16.mxu0 %v9395
    %9608 = vmatpush1.bf16.msra.mxu0 %v9394
    %9609 = vmatprep.subr.bf16.mxu0 %v9399
    %9610 = vmatpush1.bf16.msra.mxu0 %v9398
    %9611 = vmatprep.subr.bf16.mxu0 %v9403
    %9612 = vmatpush1.bf16.msra.mxu0 %v9402
    %9613 = vmatprep.mubr.bf16.mxu0 %v4744
    %9614 = vmatmul.mubr.bf16.gmra.mrb[0].mxu0 %v4743
    %v9615 = vpop.f32.mrb[0].mxu0
    %v9616 = vadd.f32 0.0, %v9615
    %v9617 = vpop.f32.mrb[0].mxu0
    %v9618 = vadd.f32 0.0, %v9617
    %v9619 = vpop.f32.mrb[0].mxu0
    %v9620 = vadd.f32 0.0, %v9619
    %v9621 = vpop.f32.mrb[0].mxu0
    %v9622 = vadd.f32 0.0, %v9621
    %9623 = vdwg.mxu0
    %9624 = vmatprep.subr.bf16.mxu0 %v9407
    %9625 = vmatpush1.bf16.msra.mxu0 %v9406
    %9626 = vmatprep.subr.bf16.mxu0 %v9493
    %9627 = vmatpush1.bf16.msra.mxu0 %v9490
    %9628 = vmatprep.subr.bf16.mxu0 0
    %9629 = vmatpush1.bf16.msra.mxu0 0
    %9630 = vmatprep.subr.bf16.mxu0 0
    %9631 = vmatpush1.bf16.msra.mxu0 0
    %9632 = vmatprep.subr.bf16.mxu0 0
    %9633 = vmatpush1.bf16.msra.mxu0 0
    %9634 = vmatprep.subr.bf16.mxu0 0
    %9635 = vmatpush1.bf16.msra.mxu0 0
    %9636 = vmatprep.subr.bf16.mxu0 0
    %9637 = vmatpush1.bf16.msra.mxu0 0
    %9638 = vmatprep.subr.bf16.mxu0 0
    %9639 = vmatpush1.bf16.msra.mxu0 0
    %9640 = vmatprep.subr.bf16.mxu0 0
    %9641 = vmatpush1.bf16.msra.mxu0 0
    %9642 = vmatprep.subr.bf16.mxu0 0
    %9643 = vmatpush1.bf16.msra.mxu0 0
    %9644 = vmatprep.subr.bf16.mxu0 0
    %9645 = vmatpush1.bf16.msra.mxu0 0
    %9646 = vmatprep.subr.bf16.mxu0 0
    %9647 = vmatpush1.bf16.msra.mxu0 0
    %9648 = vmatprep.subr.bf16.mxu0 0
    %9649 = vmatpush1.bf16.msra.mxu0 0
    %9650 = vmatprep.subr.bf16.mxu0 0
    %9651 = vmatpush1.bf16.msra.mxu0 0
    %9652 = vmatprep.subr.bf16.mxu0 0
    %9653 = vmatpush1.bf16.msra.mxu0 0
    %9654 = vmatprep.subr.bf16.mxu0 0
    %9655 = vmatpush1.bf16.msra.mxu0 0
    %9656 = vmatprep.mubr.bf16.mxu0 0
    %9657 = vmatmul.mubr.bf16.gmra.mrb[0].mxu0 %v9481
    %v9658 = vpop.f32.mrb[0].mxu0
    %v9659 = vadd.f32 %v9616, %v9658
    %v9660 = vpop.f32.mrb[0].mxu0
    %v9661 = vadd.f32 %v9618, %v9660
    %v9662 = vpop.f32.mrb[0].mxu0
    %v9663 = vadd.f32 %v9620, %v9662
    %v9664 = vpop.f32.mrb[0].mxu0
    %v9665 = vadd.f32 %v9622, %v9664
    %9666 = vdwg.mxu0
    %v9667 = vadd.f32 %v9051, %v9573
    %v9668 = vadd.f32 %v9052, %v9575
    %v9669 = vadd.f32 %v9053, %v9659
    %v9670 = vadd.f32 %v9054, %v9661
    %v9671 = vadd.f32 %v9055, %v9577
    %v9672 = vadd.f32 %v9056, %v9579
    %v9673 = vadd.f32 %v9057, %v9663
    %v9674 = vadd.f32 %v9058, %v9665
    %s9675 = scalar_lea.vmem [#allocation7], 4480
    %v9676 = vld [vmem:[%s9675] sm:$0xff]
    %v9677 = vld [vmem:[%s9675 + $0x8] sm:$0xff]
    %v9678 = vld [vmem:[%s9675 + $0x10] sm:$0xff]
    %v9679 = vld [vmem:[%s9675 + $0x18] sm:$0xff]
    %v9680 = vld [vmem:[%s9675 + $0x20] sm:$0xff]
    %v9681 = vld [vmem:[%s9675 + $0x28] sm:$0xff]
    %v9682 = vld [vmem:[%s9675 + $0x30] sm:$0xff]
    %v9683 = vld [vmem:[%s9675 + $0x38] sm:$0xff]
    %v9684 = vld [vmem:[%s9675 + $0x40] sm:$0xff]
    %v9685 = vld [vmem:[%s9675 + $0x48] sm:$0xff]
    %v9686 = vld [vmem:[%s9675 + $0x50] sm:$0xff]
    %v9687 = vld [vmem:[%s9675 + $0x58] sm:$0xff]
    %v9688 = vld [vmem:[%s9675 + $0x60] sm:$0xff]
    %v9689 = vld [vmem:[%s9675 + $0x68] sm:$0xff]
    %v9690 = vld [vmem:[%s9675 + $0x70] sm:$0xff]
    %v9691 = vld [vmem:[%s9675 + $0x78] sm:$0xff]
    %v9692 = vld [vmem:[%s9675 + $0x80] sm:$0xff]
    %v9693 = vld [vmem:[%s9675 + $0x88] sm:$0xff]
    %v9694 = vld [vmem:[%s9675 + $0x90] sm:$0xff]
    %v9695 = vld [vmem:[%s9675 + $0x98] sm:$0xff]
    %v9696 = vld [vmem:[%s9675 + $0xa0] sm:$0xff]
    %v9697 = vld [vmem:[%s9675 + $0xa8] sm:$0xff]
    %v9698 = vld [vmem:[%s9675 + $0xb0] sm:$0xff]
    %v9699 = vld [vmem:[%s9675 + $0xb8] sm:$0xff]
    %v9700 = vld [vmem:[%s9675 + $0xc0] sm:$0xff]
    %v9701 = vld [vmem:[%s9675 + $0xc8] sm:$0xff]
    %v9702 = vld [vmem:[%s9675 + $0xd0] sm:$0xff]
    %v9703 = vld [vmem:[%s9675 + $0xd8] sm:$0xff]
    %v9704 = vld [vmem:[%s9675 + $0xe0] sm:$0xff]
    %v9705 = vld [vmem:[%s9675 + $0xe8] sm:$0xff]
    %v9706 = vld [vmem:[%s9675 + $0xf0] sm:$0xff]
    %v9707 = vld [vmem:[%s9675 + $0xf8] sm:$0xff]
    %v9708 = vld [vmem:[%s9675 + $0x100] sm:$0xff]
    %v9709 = vld [vmem:[%s9675 + $0x108] sm:$0xff]
    %v9710 = vld [vmem:[%s9675 + $0x110] sm:$0xff]
    %v9711 = vld [vmem:[%s9675 + $0x118] sm:$0xff]
    %v9712 = vld [vmem:[%s9675 + $0x120] sm:$0xff]
    %v9713 = vld [vmem:[%s9675 + $0x128] sm:$0xff]
    %v9714 = vld [vmem:[%s9675 + $0x130] sm:$0xff]
    %v9715 = vld [vmem:[%s9675 + $0x138] sm:$0xff]
    %v9716 = vld [vmem:[%s9675 + $0x140] sm:$0xff]
    %v9717 = vld [vmem:[%s9675 + $0x148] sm:$0xff]
    %v9718 = vld [vmem:[%s9675 + $0x150] sm:$0xff]
    %v9719 = vld [vmem:[%s9675 + $0x158] sm:$0xff]
    %v9720 = vld [vmem:[%s9675 + $0x160] sm:$0xff]
    %v9721 = vld [vmem:[%s9675 + $0x168] sm:$0xff]
    %v9722 = vld [vmem:[%s9675 + $0x170] sm:$0xff]
    %v9723 = vld [vmem:[%s9675 + $0x178] sm:$0xff]
    %v9724 = vld [vmem:[%s9675 + $0x180] sm:$0xff]
    %v9725 = vld [vmem:[%s9675 + $0x188] sm:$0xff]
    %v9726 = vld [vmem:[%s9675 + $0x190] sm:$0xff]
    %v9727 = vld [vmem:[%s9675 + $0x198] sm:$0xff]
    %v9728 = vld [vmem:[%s9675 + $0x1a0] sm:$0xff]
    %v9729 = vld [vmem:[%s9675 + $0x1a8] sm:$0xff]
    %v9730 = vld [vmem:[%s9675 + $0x1b0] sm:$0xff]
    %v9731 = vld [vmem:[%s9675 + $0x1b8] sm:$0xff]
    %v9732 = vld [vmem:[%s9675 + $0x1c0] sm:$0xff]
    %v9733 = vld [vmem:[%s9675 + $0x1c8] sm:$0xff]
    %v9734 = vld [vmem:[%s9675 + $0x1d0] sm:$0xff]
    %v9735 = vld [vmem:[%s9675 + $0x1d8] sm:$0xff]
    %v9736 = vld [vmem:[%s9675 + $0x1e0] sm:$0xff]
    %v9737 = vld [vmem:[%s9675 + $0x1e8] sm:$0xff]
    %v9738 = vld [vmem:[%s9675 + $0x1f0] sm:$0xff]
    %v9739 = vld [vmem:[%s9675 + $0x1f8] sm:$0xff]
    %v9740 = vld [vmem:[%s9675 + $0x200] sm:$0xff]
    %v9741 = vld [vmem:[%s9675 + $0x208] sm:$0xff]
    %v9742 = vld [vmem:[%s9675 + $0x210] sm:$0xff]
    %v9743 = vld [vmem:[%s9675 + $0x218] sm:$0xff]
    %v9744 = vld [vmem:[%s9675 + $0x220] sm:$0xff]
    %v9745 = vld [vmem:[%s9675 + $0x228] sm:$0xff]
    %v9816 = vunpack.c.l.b16 %v9676
    %v9817 = vunpack.c.h.b16 %v9676
    %v9818 = vunpack.c.l.b16 %v9677
    %v9819 = vunpack.c.h.b16 %v9677
    %v9820 = vunpack.c.l.b16 %v9678
    %v9821 = vunpack.c.h.b16 %v9678
    %v9822 = vunpack.c.l.b16 %v9679
    %v9823 = vunpack.c.h.b16 %v9679
    %v9824 = vunpack.c.l.b16 %v9680
    %v9825 = vunpack.c.h.b16 %v9680
    %v9826 = vunpack.c.l.b16 %v9681
    %v9827 = vunpack.c.h.b16 %v9681
    %v9828 = vunpack.c.l.b16 %v9682
    %v9829 = vunpack.c.h.b16 %v9682
    %v9830 = vunpack.c.l.b16 %v9683
    %v9831 = vunpack.c.h.b16 %v9683
    %v9832 = vunpack.c.l.b16 %v9684
    %v9833 = vunpack.c.h.b16 %v9684
    %v9834 = vunpack.c.l.b16 %v9685
    %v9835 = vunpack.c.h.b16 %v9685
    %v9836 = vunpack.c.l.b16 %v9686
    %v9837 = vunpack.c.h.b16 %v9686
    %v9838 = vunpack.c.l.b16 %v9687
    %v9839 = vunpack.c.h.b16 %v9687
    %v9840 = vunpack.c.l.b16 %v9688
    %v9841 = vunpack.c.h.b16 %v9688
    %v9842 = vunpack.c.l.b16 %v9689
    %v9843 = vunpack.c.h.b16 %v9689
    %v9844 = vunpack.c.l.b16 %v9690
    %v9845 = vunpack.c.h.b16 %v9690
    %v9846 = vunpack.c.l.b16 %v9691
    %v9847 = vunpack.c.h.b16 %v9691
    %v9848 = vunpack.c.l.b16 %v9692
    %v9849 = vunpack.c.h.b16 %v9692
    %v9850 = vunpack.c.l.b16 %v9693
    %v9851 = vunpack.c.h.b16 %v9693
    %v9852 = vunpack.c.l.b16 %v9694
    %v9853 = vunpack.c.h.b16 %v9694
    %v9854 = vunpack.c.l.b16 %v9695
    %v9855 = vunpack.c.h.b16 %v9695
    %v9856 = vunpack.c.l.b16 %v9696
    %v9857 = vunpack.c.h.b16 %v9696
    %v9858 = vunpack.c.l.b16 %v9697
    %v9859 = vunpack.c.h.b16 %v9697
    %v9860 = vunpack.c.l.b16 %v9698
    %v9861 = vunpack.c.h.b16 %v9698
    %v9862 = vunpack.c.l.b16 %v9699
    %v9863 = vunpack.c.h.b16 %v9699
    %v9864 = vunpack.c.l.b16 %v9700
    %v9865 = vunpack.c.h.b16 %v9700
    %v9866 = vunpack.c.l.b16 %v9701
    %v9867 = vunpack.c.h.b16 %v9701
    %v9868 = vunpack.c.l.b16 %v9702
    %v9869 = vunpack.c.h.b16 %v9702
    %v9870 = vunpack.c.l.b16 %v9703
    %v9871 = vunpack.c.h.b16 %v9703
    %v9872 = vunpack.c.l.b16 %v9704
    %v9873 = vunpack.c.h.b16 %v9704
    %v9874 = vunpack.c.l.b16 %v9705
    %v9875 = vunpack.c.h.b16 %v9705
    %v9876 = vunpack.c.l.b16 %v9706
    %v9877 = vunpack.c.h.b16 %v9706
    %v9878 = vunpack.c.l.b16 %v9707
    %v9879 = vunpack.c.h.b16 %v9707
    %v9880 = vunpack.c.l.b16 %v9708
    %v9881 = vunpack.c.h.b16 %v9708
    %v9882 = vunpack.c.l.b16 %v9709
    %v9883 = vunpack.c.h.b16 %v9709
    %v9884 = vunpack.c.l.b16 %v9710
    %v9885 = vunpack.c.h.b16 %v9710
    %v9886 = vunpack.c.l.b16 %v9711
    %v9887 = vunpack.c.h.b16 %v9711
    %v9888 = vunpack.c.l.b16 %v9712
    %v9889 = vunpack.c.h.b16 %v9712
    %v9890 = vunpack.c.l.b16 %v9713
    %v9891 = vunpack.c.h.b16 %v9713
    %v9892 = vunpack.c.l.b16 %v9714
    %v9893 = vunpack.c.h.b16 %v9714
    %v9894 = vunpack.c.l.b16 %v9715
    %v9895 = vunpack.c.h.b16 %v9715
    %v9896 = vunpack.c.l.b16 %v9716
    %v9897 = vunpack.c.h.b16 %v9716
    %v9898 = vunpack.c.l.b16 %v9717
    %v9899 = vunpack.c.h.b16 %v9717
    %v9900 = vunpack.c.l.b16 %v9718
    %v9901 = vunpack.c.h.b16 %v9718
    %v9902 = vunpack.c.l.b16 %v9719
    %v9903 = vunpack.c.h.b16 %v9719
    %v9904 = vunpack.c.l.b16 %v9720
    %v9905 = vunpack.c.h.b16 %v9720
    %v9906 = vunpack.c.l.b16 %v9721
    %v9907 = vunpack.c.h.b16 %v9721
    %v9908 = vunpack.c.l.b16 %v9722
    %v9909 = vunpack.c.h.b16 %v9722
    %v9910 = vunpack.c.l.b16 %v9723
    %v9911 = vunpack.c.h.b16 %v9723
    %v9912 = vunpack.c.l.b16 %v9724
    %v9913 = vunpack.c.h.b16 %v9724
    %v9914 = vunpack.c.l.b16 %v9725
    %v9915 = vunpack.c.h.b16 %v9725
    %v9916 = vunpack.c.l.b16 %v9726
    %v9917 = vunpack.c.h.b16 %v9726
    %v9918 = vunpack.c.l.b16 %v9727
    %v9919 = vunpack.c.h.b16 %v9727
    %v9920 = vunpack.c.l.b16 %v9728
    %v9921 = vunpack.c.h.b16 %v9728
    %v9922 = vunpack.c.l.b16 %v9729
    %v9923 = vunpack.c.h.b16 %v9729
    %v9924 = vunpack.c.l.b16 %v9730
    %v9925 = vunpack.c.h.b16 %v9730
    %v9926 = vunpack.c.l.b16 %v9731
    %v9927 = vunpack.c.h.b16 %v9731
    %v9928 = vunpack.c.l.b16 %v9732
    %v9929 = vunpack.c.h.b16 %v9732
    %v9930 = vunpack.c.l.b16 %v9733
    %v9931 = vunpack.c.h.b16 %v9733
    %v9932 = vunpack.c.l.b16 %v9734
    %v9933 = vunpack.c.h.b16 %v9734
    %v9934 = vunpack.c.l.b16 %v9735
    %v9935 = vunpack.c.h.b16 %v9735
    %v9936 = vunpack.c.l.b16 %v9736
    %v9937 = vunpack.c.h.b16 %v9736
    %v9938 = vunpack.c.l.b16 %v9737
    %v9939 = vunpack.c.h.b16 %v9737
    %v9940 = vunpack.c.l.b16 %v9738
    %v9941 = vunpack.c.h.b16 %v9738
    %v9942 = vunpack.c.l.b16 %v9739
    %v9943 = vunpack.c.h.b16 %v9739
    %v9944 = vunpack.c.l.b16 %v9740
    %v9945 = vunpack.c.h.b16 %v9740
    %v9946 = vunpack.c.l.b16 %v9741
    %v9947 = vunpack.c.h.b16 %v9741
    %v9948 = vunpack.c.l.b16 %v9742
    %v9949 = vunpack.c.h.b16 %v9742
    %v9950 = vunpack.c.l.b16 %v9743
    %v9951 = vunpack.c.h.b16 %v9743
    %v9952 = vunpack.c.l.b16 %v9744
    %v9953 = vunpack.c.h.b16 %v9744
    %v9954 = vunpack.c.l.b16 %v9745
    %v9955 = vunpack.c.h.b16 %v9745
    %v9956 = vpack.c.b16 %v9820, %v9816
    %v9957 = vpack.c.b16 %v9821, %v9817
    %v9958 = vpack.c.b16 %v9822, %v9818
    %v9959 = vpack.c.b16 %v9823, %v9819
    %v9960 = vpack.c.b16 %v9828, %v9824
    %v9961 = vpack.c.b16 %v9829, %v9825
    %v9962 = vpack.c.b16 %v9830, %v9826
    %v9963 = vpack.c.b16 %v9831, %v9827
    %v9964 = vpack.c.b16 %v9836, %v9832
    %v9965 = vpack.c.b16 %v9837, %v9833
    %v9966 = vpack.c.b16 %v9838, %v9834
    %v9967 = vpack.c.b16 %v9839, %v9835
    %v9968 = vpack.c.b16 %v9844, %v9840
    %v9969 = vpack.c.b16 %v9845, %v9841
    %v9970 = vpack.c.b16 %v9846, %v9842
    %v9971 = vpack.c.b16 %v9847, %v9843
    %v9972 = vpack.c.b16 %v9852, %v9848
    %v9973 = vpack.c.b16 %v9853, %v9849
    %v9974 = vpack.c.b16 %v9854, %v9850
    %v9975 = vpack.c.b16 %v9855, %v9851
    %v9976 = vpack.c.b16 %v9860, %v9856
    %v9977 = vpack.c.b16 %v9861, %v9857
    %v9978 = vpack.c.b16 %v9862, %v9858
    %v9979 = vpack.c.b16 %v9863, %v9859
    %v9980 = vpack.c.b16 %v9868, %v9864
    %v9981 = vpack.c.b16 %v9869, %v9865
    %v9982 = vpack.c.b16 %v9870, %v9866
    %v9983 = vpack.c.b16 %v9871, %v9867
    %v9984 = vpack.c.b16 %v9876, %v9872
    %v9985 = vpack.c.b16 %v9877, %v9873
    %v9986 = vpack.c.b16 %v9878, %v9874
    %v9987 = vpack.c.b16 %v9879, %v9875
    %v9988 = vpack.c.b16 %v9884, %v9880
    %v9989 = vpack.c.b16 %v9885, %v9881
    %v9990 = vpack.c.b16 %v9886, %v9882
    %v9991 = vpack.c.b16 %v9887, %v9883
    %v9992 = vpack.c.b16 %v9892, %v9888
    %v9993 = vpack.c.b16 %v9893, %v9889
    %v9994 = vpack.c.b16 %v9894, %v9890
    %v9995 = vpack.c.b16 %v9895, %v9891
    %v9996 = vpack.c.b16 %v9900, %v9896
    %v9997 = vpack.c.b16 %v9901, %v9897
    %v9998 = vpack.c.b16 %v9902, %v9898
    %v9999 = vpack.c.b16 %v9903, %v9899
    %v10000 = vpack.c.b16 %v9908, %v9904
    %v10001 = vpack.c.b16 %v9909, %v9905
    %v10002 = vpack.c.b16 %v9910, %v9906
    %v10003 = vpack.c.b16 %v9911, %v9907
    %v10004 = vpack.c.b16 %v9916, %v9912
    %v10005 = vpack.c.b16 %v9917, %v9913
    %v10006 = vpack.c.b16 %v9918, %v9914
    %v10007 = vpack.c.b16 %v9919, %v9915
    %v10008 = vpack.c.b16 %v9924, %v9920
    %v10009 = vpack.c.b16 %v9925, %v9921
    %v10010 = vpack.c.b16 %v9926, %v9922
    %v10011 = vpack.c.b16 %v9927, %v9923
    %v10012 = vpack.c.b16 %v9932, %v9928
    %v10013 = vpack.c.b16 %v9933, %v9929
    %v10014 = vpack.c.b16 %v9934, %v9930
    %v10015 = vpack.c.b16 %v9935, %v9931
    %v10016 = vpack.c.b16 %v9940, %v9936
    %v10017 = vpack.c.b16 %v9941, %v9937
    %v10018 = vpack.c.b16 %v9942, %v9938
    %v10019 = vpack.c.b16 %v9943, %v9939
    %v10020 = vpack.c.b16 %v9948, %v9944
    %v10021 = vpack.c.b16 %v9949, %v9945
    %v10022 = vpack.c.b16 %v9950, %v9946
    %v10023 = vpack.c.b16 %v9951, %v9947
    %v10024 = vpack.c.b16 %v9952, %v9952
    %v10025 = vpack.c.b16 %v9953, %v9953
    %v10026 = vpack.c.b16 %v9954, %v9954
    %v10027 = vpack.c.b16 %v9955, %v9955
    %v10097 = vsel %vm2080, %v4748, 0
    %v10100 = vsel %vm2123, %v10024, 0
    %v10103 = vsel %vm2123, %v10025, 0
    %v10106 = vsel %vm2123, %v10026, 0
    %v10109 = vsel %vm2123, %v10027, 0
    %10111 = vmatprep.subr.bf16.mxu0 %v9957
    %10112 = vmatpush1.bf16.msra.mxu0 %v9956
    %10113 = vmatprep.subr.bf16.mxu0 %v9961
    %10114 = vmatpush1.bf16.msra.mxu0 %v9960
    %10115 = vmatprep.subr.bf16.mxu0 %v9965
    %10116 = vmatpush1.bf16.msra.mxu0 %v9964
    %10117 = vmatprep.subr.bf16.mxu0 %v9969
    %10118 = vmatpush1.bf16.msra.mxu0 %v9968
    %10119 = vmatprep.subr.bf16.mxu0 %v9973
    %10120 = vmatpush1.bf16.msra.mxu0 %v9972
    %10121 = vmatprep.subr.bf16.mxu0 %v9977
    %10122 = vmatpush1.bf16.msra.mxu0 %v9976
    %10123 = vmatprep.subr.bf16.mxu0 %v9981
    %10124 = vmatpush1.bf16.msra.mxu0 %v9980
    %10125 = vmatprep.subr.bf16.mxu0 %v9985
    %10126 = vmatpush1.bf16.msra.mxu0 %v9984
    %10127 = vmatprep.subr.bf16.mxu0 %v9989
    %10128 = vmatpush1.bf16.msra.mxu0 %v9988
    %10129 = vmatprep.subr.bf16.mxu0 %v9993
    %10130 = vmatpush1.bf16.msra.mxu0 %v9992
    %10131 = vmatprep.subr.bf16.mxu0 %v9997
    %10132 = vmatpush1.bf16.msra.mxu0 %v9996
    %10133 = vmatprep.subr.bf16.mxu0 %v10001
    %10134 = vmatpush1.bf16.msra.mxu0 %v10000
    %10135 = vmatprep.subr.bf16.mxu0 %v10005
    %10136 = vmatpush1.bf16.msra.mxu0 %v10004
    %10137 = vmatprep.subr.bf16.mxu0 %v10009
    %10138 = vmatpush1.bf16.msra.mxu0 %v10008
    %10139 = vmatprep.subr.bf16.mxu0 %v10013
    %10140 = vmatpush1.bf16.msra.mxu0 %v10012
    %10141 = vmatprep.subr.bf16.mxu0 %v10017
    %10142 = vmatpush1.bf16.msra.mxu0 %v10016
    %10143 = vmatprep.mubr.bf16.mxu0 %v4747
    %10144 = vmatmul.mubr.bf16.gmra.mrb[0].mxu0 %v4746
    %v10145 = vpop.f32.mrb[0].mxu0
    %v10146 = vadd.f32 0.0, %v10145
    %v10147 = vpop.f32.mrb[0].mxu0
    %v10148 = vadd.f32 0.0, %v10147
    %v10149 = vpop.f32.mrb[0].mxu0
    %v10150 = vadd.f32 0.0, %v10149
    %v10151 = vpop.f32.mrb[0].mxu0
    %v10152 = vadd.f32 0.0, %v10151
    %10153 = vdwg.mxu0
    %10154 = vmatprep.subr.bf16.mxu0 %v10021
    %10155 = vmatpush1.bf16.msra.mxu0 %v10020
    %10156 = vmatprep.subr.bf16.mxu0 %v10103
    %10157 = vmatpush1.bf16.msra.mxu0 %v10100
    %10158 = vmatprep.subr.bf16.mxu0 0
    %10159 = vmatpush1.bf16.msra.mxu0 0
    %10160 = vmatprep.subr.bf16.mxu0 0
    %10161 = vmatpush1.bf16.msra.mxu0 0
    %10162 = vmatprep.subr.bf16.mxu0 0
    %10163 = vmatpush1.bf16.msra.mxu0 0
    %10164 = vmatprep.subr.bf16.mxu0 0
    %10165 = vmatpush1.bf16.msra.mxu0 0
    %10166 = vmatprep.subr.bf16.mxu0 0
    %10167 = vmatpush1.bf16.msra.mxu0 0
    %10168 = vmatprep.subr.bf16.mxu0 0
    %10169 = vmatpush1.bf16.msra.mxu0 0
    %10170 = vmatprep.subr.bf16.mxu0 0
    %10171 = vmatpush1.bf16.msra.mxu0 0
    %10172 = vmatprep.subr.bf16.mxu0 0
    %10173 = vmatpush1.bf16.msra.mxu0 0
    %10174 = vmatprep.subr.bf16.mxu0 0
    %10175 = vmatpush1.bf16.msra.mxu0 0
    %10176 = vmatprep.subr.bf16.mxu0 0
    %10177 = vmatpush1.bf16.msra.mxu0 0
    %10178 = vmatprep.subr.bf16.mxu0 0
    %10179 = vmatpush1.bf16.msra.mxu0 0
    %10180 = vmatprep.subr.bf16.mxu0 0
    %10181 = vmatpush1.bf16.msra.mxu0 0
    %10182 = vmatprep.subr.bf16.mxu0 0
    %10183 = vmatpush1.bf16.msra.mxu0 0
    %10184 = vmatprep.subr.bf16.mxu0 0
    %10185 = vmatpush1.bf16.msra.mxu0 0
    %10186 = vmatprep.mubr.bf16.mxu0 0
    %10187 = vmatmul.mubr.bf16.gmra.mrb[0].mxu0 %v10097
    %v10188 = vpop.f32.mrb[0].mxu0
    %v10189 = vadd.f32 %v10146, %v10188
    %v10190 = vpop.f32.mrb[0].mxu0
    %v10191 = vadd.f32 %v10148, %v10190
    %v10192 = vpop.f32.mrb[0].mxu0
    %v10193 = vadd.f32 %v10150, %v10192
    %v10194 = vpop.f32.mrb[0].mxu0
    %v10195 = vadd.f32 %v10152, %v10194
    %10196 = vdwg.mxu0
    %10197 = vmatprep.subr.bf16.mxu0 %v9959
    %10198 = vmatpush1.bf16.msra.mxu0 %v9958
    %10199 = vmatprep.subr.bf16.mxu0 %v9963
    %10200 = vmatpush1.bf16.msra.mxu0 %v9962
    %10201 = vmatprep.subr.bf16.mxu0 %v9967
    %10202 = vmatpush1.bf16.msra.mxu0 %v9966
    %10203 = vmatprep.subr.bf16.mxu0 %v9971
    %10204 = vmatpush1.bf16.msra.mxu0 %v9970
    %10205 = vmatprep.subr.bf16.mxu0 %v9975
    %10206 = vmatpush1.bf16.msra.mxu0 %v9974
    %10207 = vmatprep.subr.bf16.mxu0 %v9979
    %10208 = vmatpush1.bf16.msra.mxu0 %v9978
    %10209 = vmatprep.subr.bf16.mxu0 %v9983
    %10210 = vmatpush1.bf16.msra.mxu0 %v9982
    %10211 = vmatprep.subr.bf16.mxu0 %v9987
    %10212 = vmatpush1.bf16.msra.mxu0 %v9986
    %10213 = vmatprep.subr.bf16.mxu0 %v9991
    %10214 = vmatpush1.bf16.msra.mxu0 %v9990
    %10215 = vmatprep.subr.bf16.mxu0 %v9995
    %10216 = vmatpush1.bf16.msra.mxu0 %v9994
    %10217 = vmatprep.subr.bf16.mxu0 %v9999
    %10218 = vmatpush1.bf16.msra.mxu0 %v9998
    %10219 = vmatprep.subr.bf16.mxu0 %v10003
    %10220 = vmatpush1.bf16.msra.mxu0 %v10002
    %10221 = vmatprep.subr.bf16.mxu0 %v10007
    %10222 = vmatpush1.bf16.msra.mxu0 %v10006
    %10223 = vmatprep.subr.bf16.mxu0 %v10011
    %10224 = vmatpush1.bf16.msra.mxu0 %v10010
    %10225 = vmatprep.subr.bf16.mxu0 %v10015
    %10226 = vmatpush1.bf16.msra.mxu0 %v10014
    %10227 = vmatprep.subr.bf16.mxu0 %v10019
    %10228 = vmatpush1.bf16.msra.mxu0 %v10018
    %10229 = vmatprep.mubr.bf16.mxu0 %v4747
    %10230 = vmatmul.mubr.bf16.gmra.mrb[0].mxu0 %v4746
    %v10231 = vpop.f32.mrb[0].mxu0
    %v10232 = vadd.f32 0.0, %v10231
    %v10233 = vpop.f32.mrb[0].mxu0
    %v10234 = vadd.f32 0.0, %v10233
    %v10235 = vpop.f32.mrb[0].mxu0
    %v10236 = vadd.f32 0.0, %v10235
    %v10237 = vpop.f32.mrb[0].mxu0
    %v10238 = vadd.f32 0.0, %v10237
    %10239 = vdwg.mxu0
    %10240 = vmatprep.subr.bf16.mxu0 %v10023
    %10241 = vmatpush1.bf16.msra.mxu0 %v10022
    %10242 = vmatprep.subr.bf16.mxu0 %v10109
    %10243 = vmatpush1.bf16.msra.mxu0 %v10106
    %10244 = vmatprep.subr.bf16.mxu0 0
    %10245 = vmatpush1.bf16.msra.mxu0 0
    %10246 = vmatprep.subr.bf16.mxu0 0
    %10247 = vmatpush1.bf16.msra.mxu0 0
    %10248 = vmatprep.subr.bf16.mxu0 0
    %10249 = vmatpush1.bf16.msra.mxu0 0
    %10250 = vmatprep.subr.bf16.mxu0 0
    %10251 = vmatpush1.bf16.msra.mxu0 0
    %10252 = vmatprep.subr.bf16.mxu0 0
    %10253 = vmatpush1.bf16.msra.mxu0 0
    %10254 = vmatprep.subr.bf16.mxu0 0
    %10255 = vmatpush1.bf16.msra.mxu0 0
    %10256 = vmatprep.subr.bf16.mxu0 0
    %10257 = vmatpush1.bf16.msra.mxu0 0
    %10258 = vmatprep.subr.bf16.mxu0 0
    %10259 = vmatpush1.bf16.msra.mxu0 0
    %10260 = vmatprep.subr.bf16.mxu0 0
    %10261 = vmatpush1.bf16.msra.mxu0 0
    %10262 = vmatprep.subr.bf16.mxu0 0
    %10263 = vmatpush1.bf16.msra.mxu0 0
    %10264 = vmatprep.subr.bf16.mxu0 0
    %10265 = vmatpush1.bf16.msra.mxu0 0
    %10266 = vmatprep.subr.bf16.mxu0 0
    %10267 = vmatpush1.bf16.msra.mxu0 0
    %10268 = vmatprep.subr.bf16.mxu0 0
    %10269 = vmatpush1.bf16.msra.mxu0 0
    %10270 = vmatprep.subr.bf16.mxu0 0
    %10271 = vmatpush1.bf16.msra.mxu0 0
    %10272 = vmatprep.mubr.bf16.mxu0 0
    %10273 = vmatmul.mubr.bf16.gmra.mrb[0].mxu0 %v10097
    %v10274 = vpop.f32.mrb[0].mxu0
    %v10275 = vadd.f32 %v10232, %v10274
    %v10276 = vpop.f32.mrb[0].mxu0
    %v10277 = vadd.f32 %v10234, %v10276
    %v10278 = vpop.f32.mrb[0].mxu0
    %v10279 = vadd.f32 %v10236, %v10278
    %v10280 = vpop.f32.mrb[0].mxu0
    %v10281 = vadd.f32 %v10238, %v10280
    %10282 = vdwg.mxu0
    %v10283 = vadd.f32 %v9667, %v10189
    %v10284 = vadd.f32 %v9668, %v10191
    %v10285 = vadd.f32 %v9669, %v10275
    %v10286 = vadd.f32 %v9670, %v10277
    %v10287 = vadd.f32 %v9671, %v10193
    %v10288 = vadd.f32 %v9672, %v10195
    %v10289 = vadd.f32 %v9673, %v10279
    %v10290 = vadd.f32 %v9674, %v10281
    %s10291 = scalar_lea.vmem [#allocation7], 5040
    %v10292 = vld [vmem:[%s10291] sm:$0xff]
    %v10293 = vld [vmem:[%s10291 + $0x8] sm:$0xff]
    %v10294 = vld [vmem:[%s10291 + $0x10] sm:$0xff]
    %v10295 = vld [vmem:[%s10291 + $0x18] sm:$0xff]
    %v10296 = vld [vmem:[%s10291 + $0x20] sm:$0xff]
    %v10297 = vld [vmem:[%s10291 + $0x28] sm:$0xff]
    %v10298 = vld [vmem:[%s10291 + $0x30] sm:$0xff]
    %v10299 = vld [vmem:[%s10291 + $0x38] sm:$0xff]
    %v10300 = vld [vmem:[%s10291 + $0x40] sm:$0xff]
    %v10301 = vld [vmem:[%s10291 + $0x48] sm:$0xff]
    %v10302 = vld [vmem:[%s10291 + $0x50] sm:$0xff]
    %v10303 = vld [vmem:[%s10291 + $0x58] sm:$0xff]
    %v10304 = vld [vmem:[%s10291 + $0x60] sm:$0xff]
    %v10305 = vld [vmem:[%s10291 + $0x68] sm:$0xff]
    %v10306 = vld [vmem:[%s10291 + $0x70] sm:$0xff]
    %v10307 = vld [vmem:[%s10291 + $0x78] sm:$0xff]
    %v10308 = vld [vmem:[%s10291 + $0x80] sm:$0xff]
    %v10309 = vld [vmem:[%s10291 + $0x88] sm:$0xff]
    %v10310 = vld [vmem:[%s10291 + $0x90] sm:$0xff]
    %v10311 = vld [vmem:[%s10291 + $0x98] sm:$0xff]
    %v10312 = vld [vmem:[%s10291 + $0xa0] sm:$0xff]
    %v10313 = vld [vmem:[%s10291 + $0xa8] sm:$0xff]
    %v10314 = vld [vmem:[%s10291 + $0xb0] sm:$0xff]
    %v10315 = vld [vmem:[%s10291 + $0xb8] sm:$0xff]
    %v10316 = vld [vmem:[%s10291 + $0xc0] sm:$0xff]
    %v10317 = vld [vmem:[%s10291 + $0xc8] sm:$0xff]
    %v10318 = vld [vmem:[%s10291 + $0xd0] sm:$0xff]
    %v10319 = vld [vmem:[%s10291 + $0xd8] sm:$0xff]
    %v10320 = vld [vmem:[%s10291 + $0xe0] sm:$0xff]
    %v10321 = vld [vmem:[%s10291 + $0xe8] sm:$0xff]
    %v10322 = vld [vmem:[%s10291 + $0xf0] sm:$0xff]
    %v10323 = vld [vmem:[%s10291 + $0xf8] sm:$0xff]
    %v10324 = vld [vmem:[%s10291 + $0x100] sm:$0xff]
    %v10325 = vld [vmem:[%s10291 + $0x108] sm:$0xff]
    %v10326 = vld [vmem:[%s10291 + $0x110] sm:$0xff]
    %v10327 = vld [vmem:[%s10291 + $0x118] sm:$0xff]
    %v10328 = vld [vmem:[%s10291 + $0x120] sm:$0xff]
    %v10329 = vld [vmem:[%s10291 + $0x128] sm:$0xff]
    %v10330 = vld [vmem:[%s10291 + $0x130] sm:$0xff]
    %v10331 = vld [vmem:[%s10291 + $0x138] sm:$0xff]
    %v10332 = vld [vmem:[%s10291 + $0x140] sm:$0xff]
    %v10333 = vld [vmem:[%s10291 + $0x148] sm:$0xff]
    %v10334 = vld [vmem:[%s10291 + $0x150] sm:$0xff]
    %v10335 = vld [vmem:[%s10291 + $0x158] sm:$0xff]
    %v10336 = vld [vmem:[%s10291 + $0x160] sm:$0xff]
    %v10337 = vld [vmem:[%s10291 + $0x168] sm:$0xff]
    %v10338 = vld [vmem:[%s10291 + $0x170] sm:$0xff]
    %v10339 = vld [vmem:[%s10291 + $0x178] sm:$0xff]
    %v10340 = vld [vmem:[%s10291 + $0x180] sm:$0xff]
    %v10341 = vld [vmem:[%s10291 + $0x188] sm:$0xff]
    %v10342 = vld [vmem:[%s10291 + $0x190] sm:$0xff]
    %v10343 = vld [vmem:[%s10291 + $0x198] sm:$0xff]
    %v10344 = vld [vmem:[%s10291 + $0x1a0] sm:$0xff]
    %v10345 = vld [vmem:[%s10291 + $0x1a8] sm:$0xff]
    %v10346 = vld [vmem:[%s10291 + $0x1b0] sm:$0xff]
    %v10347 = vld [vmem:[%s10291 + $0x1b8] sm:$0xff]
    %v10348 = vld [vmem:[%s10291 + $0x1c0] sm:$0xff]
    %v10349 = vld [vmem:[%s10291 + $0x1c8] sm:$0xff]
    %v10350 = vld [vmem:[%s10291 + $0x1d0] sm:$0xff]
    %v10351 = vld [vmem:[%s10291 + $0x1d8] sm:$0xff]
    %v10352 = vld [vmem:[%s10291 + $0x1e0] sm:$0xff]
    %v10353 = vld [vmem:[%s10291 + $0x1e8] sm:$0xff]
    %v10354 = vld [vmem:[%s10291 + $0x1f0] sm:$0xff]
    %v10355 = vld [vmem:[%s10291 + $0x1f8] sm:$0xff]
    %v10356 = vld [vmem:[%s10291 + $0x200] sm:$0xff]
    %v10357 = vld [vmem:[%s10291 + $0x208] sm:$0xff]
    %v10358 = vld [vmem:[%s10291 + $0x210] sm:$0xff]
    %v10359 = vld [vmem:[%s10291 + $0x218] sm:$0xff]
    %v10360 = vld [vmem:[%s10291 + $0x220] sm:$0xff]
    %v10361 = vld [vmem:[%s10291 + $0x228] sm:$0xff]
    %v10432 = vunpack.c.l.b16 %v10292
    %v10433 = vunpack.c.h.b16 %v10292
    %v10434 = vunpack.c.l.b16 %v10293
    %v10435 = vunpack.c.h.b16 %v10293
    %v10436 = vunpack.c.l.b16 %v10294
    %v10437 = vunpack.c.h.b16 %v10294
    %v10438 = vunpack.c.l.b16 %v10295
    %v10439 = vunpack.c.h.b16 %v10295
    %v10440 = vunpack.c.l.b16 %v10296
    %v10441 = vunpack.c.h.b16 %v10296
    %v10442 = vunpack.c.l.b16 %v10297
    %v10443 = vunpack.c.h.b16 %v10297
    %v10444 = vunpack.c.l.b16 %v10298
    %v10445 = vunpack.c.h.b16 %v10298
    %v10446 = vunpack.c.l.b16 %v10299
    %v10447 = vunpack.c.h.b16 %v10299
    %v10448 = vunpack.c.l.b16 %v10300
    %v10449 = vunpack.c.h.b16 %v10300
    %v10450 = vunpack.c.l.b16 %v10301
    %v10451 = vunpack.c.h.b16 %v10301
    %v10452 = vunpack.c.l.b16 %v10302
    %v10453 = vunpack.c.h.b16 %v10302
    %v10454 = vunpack.c.l.b16 %v10303
    %v10455 = vunpack.c.h.b16 %v10303
    %v10456 = vunpack.c.l.b16 %v10304
    %v10457 = vunpack.c.h.b16 %v10304
    %v10458 = vunpack.c.l.b16 %v10305
    %v10459 = vunpack.c.h.b16 %v10305
    %v10460 = vunpack.c.l.b16 %v10306
    %v10461 = vunpack.c.h.b16 %v10306
    %v10462 = vunpack.c.l.b16 %v10307
    %v10463 = vunpack.c.h.b16 %v10307
    %v10464 = vunpack.c.l.b16 %v10308
    %v10465 = vunpack.c.h.b16 %v10308
    %v10466 = vunpack.c.l.b16 %v10309
    %v10467 = vunpack.c.h.b16 %v10309
    %v10468 = vunpack.c.l.b16 %v10310
    %v10469 = vunpack.c.h.b16 %v10310
    %v10470 = vunpack.c.l.b16 %v10311
    %v10471 = vunpack.c.h.b16 %v10311
    %v10472 = vunpack.c.l.b16 %v10312
    %v10473 = vunpack.c.h.b16 %v10312
    %v10474 = vunpack.c.l.b16 %v10313
    %v10475 = vunpack.c.h.b16 %v10313
    %v10476 = vunpack.c.l.b16 %v10314
    %v10477 = vunpack.c.h.b16 %v10314
    %v10478 = vunpack.c.l.b16 %v10315
    %v10479 = vunpack.c.h.b16 %v10315
    %v10480 = vunpack.c.l.b16 %v10316
    %v10481 = vunpack.c.h.b16 %v10316
    %v10482 = vunpack.c.l.b16 %v10317
    %v10483 = vunpack.c.h.b16 %v10317
    %v10484 = vunpack.c.l.b16 %v10318
    %v10485 = vunpack.c.h.b16 %v10318
    %v10486 = vunpack.c.l.b16 %v10319
    %v10487 = vunpack.c.h.b16 %v10319
    %v10488 = vunpack.c.l.b16 %v10320
    %v10489 = vunpack.c.h.b16 %v10320
    %v10490 = vunpack.c.l.b16 %v10321
    %v10491 = vunpack.c.h.b16 %v10321
    %v10492 = vunpack.c.l.b16 %v10322
    %v10493 = vunpack.c.h.b16 %v10322
    %v10494 = vunpack.c.l.b16 %v10323
    %v10495 = vunpack.c.h.b16 %v10323
    %v10496 = vunpack.c.l.b16 %v10324
    %v10497 = vunpack.c.h.b16 %v10324
    %v10498 = vunpack.c.l.b16 %v10325
    %v10499 = vunpack.c.h.b16 %v10325
    %v10500 = vunpack.c.l.b16 %v10326
    %v10501 = vunpack.c.h.b16 %v10326
    %v10502 = vunpack.c.l.b16 %v10327
    %v10503 = vunpack.c.h.b16 %v10327
    %v10504 = vunpack.c.l.b16 %v10328
    %v10505 = vunpack.c.h.b16 %v10328
    %v10506 = vunpack.c.l.b16 %v10329
    %v10507 = vunpack.c.h.b16 %v10329
    %v10508 = vunpack.c.l.b16 %v10330
    %v10509 = vunpack.c.h.b16 %v10330
    %v10510 = vunpack.c.l.b16 %v10331
    %v10511 = vunpack.c.h.b16 %v10331
    %v10512 = vunpack.c.l.b16 %v10332
    %v10513 = vunpack.c.h.b16 %v10332
    %v10514 = vunpack.c.l.b16 %v10333
    %v10515 = vunpack.c.h.b16 %v10333
    %v10516 = vunpack.c.l.b16 %v10334
    %v10517 = vunpack.c.h.b16 %v10334
    %v10518 = vunpack.c.l.b16 %v10335
    %v10519 = vunpack.c.h.b16 %v10335
    %v10520 = vunpack.c.l.b16 %v10336
    %v10521 = vunpack.c.h.b16 %v10336
    %v10522 = vunpack.c.l.b16 %v10337
    %v10523 = vunpack.c.h.b16 %v10337
    %v10524 = vunpack.c.l.b16 %v10338
    %v10525 = vunpack.c.h.b16 %v10338
    %v10526 = vunpack.c.l.b16 %v10339
    %v10527 = vunpack.c.h.b16 %v10339
    %v10528 = vunpack.c.l.b16 %v10340
    %v10529 = vunpack.c.h.b16 %v10340
    %v10530 = vunpack.c.l.b16 %v10341
    %v10531 = vunpack.c.h.b16 %v10341
    %v10532 = vunpack.c.l.b16 %v10342
    %v10533 = vunpack.c.h.b16 %v10342
    %v10534 = vunpack.c.l.b16 %v10343
    %v10535 = vunpack.c.h.b16 %v10343
    %v10536 = vunpack.c.l.b16 %v10344
    %v10537 = vunpack.c.h.b16 %v10344
    %v10538 = vunpack.c.l.b16 %v10345
    %v10539 = vunpack.c.h.b16 %v10345
    %v10540 = vunpack.c.l.b16 %v10346
    %v10541 = vunpack.c.h.b16 %v10346
    %v10542 = vunpack.c.l.b16 %v10347
    %v10543 = vunpack.c.h.b16 %v10347
    %v10544 = vunpack.c.l.b16 %v10348
    %v10545 = vunpack.c.h.b16 %v10348
    %v10546 = vunpack.c.l.b16 %v10349
    %v10547 = vunpack.c.h.b16 %v10349
    %v10548 = vunpack.c.l.b16 %v10350
    %v10549 = vunpack.c.h.b16 %v10350
    %v10550 = vunpack.c.l.b16 %v10351
    %v10551 = vunpack.c.h.b16 %v10351
    %v10552 = vunpack.c.l.b16 %v10352
    %v10553 = vunpack.c.h.b16 %v10352
    %v10554 = vunpack.c.l.b16 %v10353
    %v10555 = vunpack.c.h.b16 %v10353
    %v10556 = vunpack.c.l.b16 %v10354
    %v10557 = vunpack.c.h.b16 %v10354
    %v10558 = vunpack.c.l.b16 %v10355
    %v10559 = vunpack.c.h.b16 %v10355
    %v10560 = vunpack.c.l.b16 %v10356
    %v10561 = vunpack.c.h.b16 %v10356
    %v10562 = vunpack.c.l.b16 %v10357
    %v10563 = vunpack.c.h.b16 %v10357
    %v10564 = vunpack.c.l.b16 %v10358
    %v10565 = vunpack.c.h.b16 %v10358
    %v10566 = vunpack.c.l.b16 %v10359
    %v10567 = vunpack.c.h.b16 %v10359
    %v10568 = vunpack.c.l.b16 %v10360
    %v10569 = vunpack.c.h.b16 %v10360
    %v10570 = vunpack.c.l.b16 %v10361
    %v10571 = vunpack.c.h.b16 %v10361
    %v10572 = vpack.c.b16 %v10436, %v10432
    %v10573 = vpack.c.b16 %v10437, %v10433
    %v10574 = vpack.c.b16 %v10438, %v10434
    %v10575 = vpack.c.b16 %v10439, %v10435
    %v10576 = vpack.c.b16 %v10444, %v10440
    %v10577 = vpack.c.b16 %v10445, %v10441
    %v10578 = vpack.c.b16 %v10446, %v10442
    %v10579 = vpack.c.b16 %v10447, %v10443
    %v10580 = vpack.c.b16 %v10452, %v10448
    %v10581 = vpack.c.b16 %v10453, %v10449
    %v10582 = vpack.c.b16 %v10454, %v10450
    %v10583 = vpack.c.b16 %v10455, %v10451
    %v10584 = vpack.c.b16 %v10460, %v10456
    %v10585 = vpack.c.b16 %v10461, %v10457
    %v10586 = vpack.c.b16 %v10462, %v10458
    %v10587 = vpack.c.b16 %v10463, %v10459
    %v10588 = vpack.c.b16 %v10468, %v10464
    %v10589 = vpack.c.b16 %v10469, %v10465
    %v10590 = vpack.c.b16 %v10470, %v10466
    %v10591 = vpack.c.b16 %v10471, %v10467
    %v10592 = vpack.c.b16 %v10476, %v10472
    %v10593 = vpack.c.b16 %v10477, %v10473
    %v10594 = vpack.c.b16 %v10478, %v10474
    %v10595 = vpack.c.b16 %v10479, %v10475
    %v10596 = vpack.c.b16 %v10484, %v10480
    %v10597 = vpack.c.b16 %v10485, %v10481
    %v10598 = vpack.c.b16 %v10486, %v10482
    %v10599 = vpack.c.b16 %v10487, %v10483
    %v10600 = vpack.c.b16 %v10492, %v10488
    %v10601 = vpack.c.b16 %v10493, %v10489
    %v10602 = vpack.c.b16 %v10494, %v10490
    %v10603 = vpack.c.b16 %v10495, %v10491
    %v10604 = vpack.c.b16 %v10500, %v10496
    %v10605 = vpack.c.b16 %v10501, %v10497
    %v10606 = vpack.c.b16 %v10502, %v10498
    %v10607 = vpack.c.b16 %v10503, %v10499
    %v10608 = vpack.c.b16 %v10508, %v10504
    %v10609 = vpack.c.b16 %v10509, %v10505
    %v10610 = vpack.c.b16 %v10510, %v10506
    %v10611 = vpack.c.b16 %v10511, %v10507
    %v10612 = vpack.c.b16 %v10516, %v10512
    %v10613 = vpack.c.b16 %v10517, %v10513
    %v10614 = vpack.c.b16 %v10518, %v10514
    %v10615 = vpack.c.b16 %v10519, %v10515
    %v10616 = vpack.c.b16 %v10524, %v10520
    %v10617 = vpack.c.b16 %v10525, %v10521
    %v10618 = vpack.c.b16 %v10526, %v10522
    %v10619 = vpack.c.b16 %v10527, %v10523
    %v10620 = vpack.c.b16 %v10532, %v10528
    %v10621 = vpack.c.b16 %v10533, %v10529
    %v10622 = vpack.c.b16 %v10534, %v10530
    %v10623 = vpack.c.b16 %v10535, %v10531
    %v10624 = vpack.c.b16 %v10540, %v10536
    %v10625 = vpack.c.b16 %v10541, %v10537
    %v10626 = vpack.c.b16 %v10542, %v10538
    %v10627 = vpack.c.b16 %v10543, %v10539
    %v10628 = vpack.c.b16 %v10548, %v10544
    %v10629 = vpack.c.b16 %v10549, %v10545
    %v10630 = vpack.c.b16 %v10550, %v10546
    %v10631 = vpack.c.b16 %v10551, %v10547
    %v10632 = vpack.c.b16 %v10556, %v10552
    %v10633 = vpack.c.b16 %v10557, %v10553
    %v10634 = vpack.c.b16 %v10558, %v10554
    %v10635 = vpack.c.b16 %v10559, %v10555
    %v10636 = vpack.c.b16 %v10564, %v10560
    %v10637 = vpack.c.b16 %v10565, %v10561
    %v10638 = vpack.c.b16 %v10566, %v10562
    %v10639 = vpack.c.b16 %v10567, %v10563
    %v10640 = vpack.c.b16 %v10568, %v10568
    %v10641 = vpack.c.b16 %v10569, %v10569
    %v10642 = vpack.c.b16 %v10570, %v10570
    %v10643 = vpack.c.b16 %v10571, %v10571
    %v10713 = vsel %vm2080, %v4751, 0
    %v10716 = vsel %vm2123, %v10640, 0
    %v10719 = vsel %vm2123, %v10641, 0
    %v10722 = vsel %vm2123, %v10642, 0
    %v10725 = vsel %vm2123, %v10643, 0
    %10727 = vmatprep.subr.bf16.mxu0 %v10573
    %10728 = vmatpush1.bf16.msra.mxu0 %v10572
    %10729 = vmatprep.subr.bf16.mxu0 %v10577
    %10730 = vmatpush1.bf16.msra.mxu0 %v10576
    %10731 = vmatprep.subr.bf16.mxu0 %v10581
    %10732 = vmatpush1.bf16.msra.mxu0 %v10580
    %10733 = vmatprep.subr.bf16.mxu0 %v10585
    %10734 = vmatpush1.bf16.msra.mxu0 %v10584
    %10735 = vmatprep.subr.bf16.mxu0 %v10589
    %10736 = vmatpush1.bf16.msra.mxu0 %v10588
    %10737 = vmatprep.subr.bf16.mxu0 %v10593
    %10738 = vmatpush1.bf16.msra.mxu0 %v10592
    %10739 = vmatprep.subr.bf16.mxu0 %v10597
    %10740 = vmatpush1.bf16.msra.mxu0 %v10596
    %10741 = vmatprep.subr.bf16.mxu0 %v10601
    %10742 = vmatpush1.bf16.msra.mxu0 %v10600
    %10743 = vmatprep.subr.bf16.mxu0 %v10605
    %10744 = vmatpush1.bf16.msra.mxu0 %v10604
    %10745 = vmatprep.subr.bf16.mxu0 %v10609
    %10746 = vmatpush1.bf16.msra.mxu0 %v10608
    %10747 = vmatprep.subr.bf16.mxu0 %v10613
    %10748 = vmatpush1.bf16.msra.mxu0 %v10612
    %10749 = vmatprep.subr.bf16.mxu0 %v10617
    %10750 = vmatpush1.bf16.msra.mxu0 %v10616
    %10751 = vmatprep.subr.bf16.mxu0 %v10621
    %10752 = vmatpush1.bf16.msra.mxu0 %v10620
    %10753 = vmatprep.subr.bf16.mxu0 %v10625
    %10754 = vmatpush1.bf16.msra.mxu0 %v10624
    %10755 = vmatprep.subr.bf16.mxu0 %v10629
    %10756 = vmatpush1.bf16.msra.mxu0 %v10628
    %10757 = vmatprep.subr.bf16.mxu0 %v10633
    %10758 = vmatpush1.bf16.msra.mxu0 %v10632
    %10759 = vmatprep.mubr.bf16.mxu0 %v4750
    %10760 = vmatmul.mubr.bf16.gmra.mrb[0].mxu0 %v4749
    %v10761 = vpop.f32.mrb[0].mxu0
    %v10762 = vadd.f32 0.0, %v10761
    %v10763 = vpop.f32.mrb[0].mxu0
    %v10764 = vadd.f32 0.0, %v10763
    %v10765 = vpop.f32.mrb[0].mxu0
    %v10766 = vadd.f32 0.0, %v10765
    %v10767 = vpop.f32.mrb[0].mxu0
    %v10768 = vadd.f32 0.0, %v10767
    %10769 = vdwg.mxu0
    %10770 = vmatprep.subr.bf16.mxu0 %v10637
    %10771 = vmatpush1.bf16.msra.mxu0 %v10636
    %10772 = vmatprep.subr.bf16.mxu0 %v10719
    %10773 = vmatpush1.bf16.msra.mxu0 %v10716
    %10774 = vmatprep.subr.bf16.mxu0 0
    %10775 = vmatpush1.bf16.msra.mxu0 0
    %10776 = vmatprep.subr.bf16.mxu0 0
    %10777 = vmatpush1.bf16.msra.mxu0 0
    %10778 = vmatprep.subr.bf16.mxu0 0
    %10779 = vmatpush1.bf16.msra.mxu0 0
    %10780 = vmatprep.subr.bf16.mxu0 0
    %10781 = vmatpush1.bf16.msra.mxu0 0
    %10782 = vmatprep.subr.bf16.mxu0 0
    %10783 = vmatpush1.bf16.msra.mxu0 0
    %10784 = vmatprep.subr.bf16.mxu0 0
    %10785 = vmatpush1.bf16.msra.mxu0 0
    %10786 = vmatprep.subr.bf16.mxu0 0
    %10787 = vmatpush1.bf16.msra.mxu0 0
    %10788 = vmatprep.subr.bf16.mxu0 0
    %10789 = vmatpush1.bf16.msra.mxu0 0
    %10790 = vmatprep.subr.bf16.mxu0 0
    %10791 = vmatpush1.bf16.msra.mxu0 0
    %10792 = vmatprep.subr.bf16.mxu0 0
    %10793 = vmatpush1.bf16.msra.mxu0 0
    %10794 = vmatprep.subr.bf16.mxu0 0
    %10795 = vmatpush1.bf16.msra.mxu0 0
    %10796 = vmatprep.subr.bf16.mxu0 0
    %10797 = vmatpush1.bf16.msra.mxu0 0
    %10798 = vmatprep.subr.bf16.mxu0 0
    %10799 = vmatpush1.bf16.msra.mxu0 0
    %10800 = vmatprep.subr.bf16.mxu0 0
    %10801 = vmatpush1.bf16.msra.mxu0 0
    %10802 = vmatprep.mubr.bf16.mxu0 0
    %10803 = vmatmul.mubr.bf16.gmra.mrb[0].mxu0 %v10713
    %v10804 = vpop.f32.mrb[0].mxu0
    %v10805 = vadd.f32 %v10762, %v10804
    %v10806 = vpop.f32.mrb[0].mxu0
    %v10807 = vadd.f32 %v10764, %v10806
    %v10808 = vpop.f32.mrb[0].mxu0
    %v10809 = vadd.f32 %v10766, %v10808
    %v10810 = vpop.f32.mrb[0].mxu0
    %v10811 = vadd.f32 %v10768, %v10810
    %10812 = vdwg.mxu0
    %10813 = vmatprep.subr.bf16.mxu0 %v10575
    %10814 = vmatpush1.bf16.msra.mxu0 %v10574
    %10815 = vmatprep.subr.bf16.mxu0 %v10579
    %10816 = vmatpush1.bf16.msra.mxu0 %v10578
    %10817 = vmatprep.subr.bf16.mxu0 %v10583
    %10818 = vmatpush1.bf16.msra.mxu0 %v10582
    %10819 = vmatprep.subr.bf16.mxu0 %v10587
    %10820 = vmatpush1.bf16.msra.mxu0 %v10586
    %10821 = vmatprep.subr.bf16.mxu0 %v10591
    %10822 = vmatpush1.bf16.msra.mxu0 %v10590
    %10823 = vmatprep.subr.bf16.mxu0 %v10595
    %10824 = vmatpush1.bf16.msra.mxu0 %v10594
    %10825 = vmatprep.subr.bf16.mxu0 %v10599
    %10826 = vmatpush1.bf16.msra.mxu0 %v10598
    %10827 = vmatprep.subr.bf16.mxu0 %v10603
    %10828 = vmatpush1.bf16.msra.mxu0 %v10602
    %10829 = vmatprep.subr.bf16.mxu0 %v10607
    %10830 = vmatpush1.bf16.msra.mxu0 %v10606
    %10831 = vmatprep.subr.bf16.mxu0 %v10611
    %10832 = vmatpush1.bf16.msra.mxu0 %v10610
    %10833 = vmatprep.subr.bf16.mxu0 %v10615
    %10834 = vmatpush1.bf16.msra.mxu0 %v10614
    %10835 = vmatprep.subr.bf16.mxu0 %v10619
    %10836 = vmatpush1.bf16.msra.mxu0 %v10618
    %10837 = vmatprep.subr.bf16.mxu0 %v10623
    %10838 = vmatpush1.bf16.msra.mxu0 %v10622
    %10839 = vmatprep.subr.bf16.mxu0 %v10627
    %10840 = vmatpush1.bf16.msra.mxu0 %v10626
    %10841 = vmatprep.subr.bf16.mxu0 %v10631
    %10842 = vmatpush1.bf16.msra.mxu0 %v10630
    %10843 = vmatprep.subr.bf16.mxu0 %v10635
    %10844 = vmatpush1.bf16.msra.mxu0 %v10634
    %10845 = vmatprep.mubr.bf16.mxu0 %v4750
    %10846 = vmatmul.mubr.bf16.gmra.mrb[0].mxu0 %v4749
    %v10847 = vpop.f32.mrb[0].mxu0
    %v10848 = vadd.f32 0.0, %v10847
    %v10849 = vpop.f32.mrb[0].mxu0
    %v10850 = vadd.f32 0.0, %v10849
    %v10851 = vpop.f32.mrb[0].mxu0
    %v10852 = vadd.f32 0.0, %v10851
    %v10853 = vpop.f32.mrb[0].mxu0
    %v10854 = vadd.f32 0.0, %v10853
    %10855 = vdwg.mxu0
    %10856 = vmatprep.subr.bf16.mxu0 %v10639
    %10857 = vmatpush1.bf16.msra.mxu0 %v10638
    %10858 = vmatprep.subr.bf16.mxu0 %v10725
    %10859 = vmatpush1.bf16.msra.mxu0 %v10722
    %10860 = vmatprep.subr.bf16.mxu0 0
    %10861 = vmatpush1.bf16.msra.mxu0 0
    %10862 = vmatprep.subr.bf16.mxu0 0
    %10863 = vmatpush1.bf16.msra.mxu0 0
    %10864 = vmatprep.subr.bf16.mxu0 0
    %10865 = vmatpush1.bf16.msra.mxu0 0
    %10866 = vmatprep.subr.bf16.mxu0 0
    %10867 = vmatpush1.bf16.msra.mxu0 0
    %10868 = vmatprep.subr.bf16.mxu0 0
    %10869 = vmatpush1.bf16.msra.mxu0 0
    %10870 = vmatprep.subr.bf16.mxu0 0
    %10871 = vmatpush1.bf16.msra.mxu0 0
    %10872 = vmatprep.subr.bf16.mxu0 0
    %10873 = vmatpush1.bf16.msra.mxu0 0
    %10874 = vmatprep.subr.bf16.mxu0 0
    %10875 = vmatpush1.bf16.msra.mxu0 0
    %10876 = vmatprep.subr.bf16.mxu0 0
    %10877 = vmatpush1.bf16.msra.mxu0 0
    %10878 = vmatprep.subr.bf16.mxu0 0
    %10879 = vmatpush1.bf16.msra.mxu0 0
    %10880 = vmatprep.subr.bf16.mxu0 0
    %10881 = vmatpush1.bf16.msra.mxu0 0
    %10882 = vmatprep.subr.bf16.mxu0 0
    %10883 = vmatpush1.bf16.msra.mxu0 0
    %10884 = vmatprep.subr.bf16.mxu0 0
    %10885 = vmatpush1.bf16.msra.mxu0 0
    %10886 = vmatprep.subr.bf16.mxu0 0
    %10887 = vmatpush1.bf16.msra.mxu0 0
    %10888 = vmatprep.mubr.bf16.mxu0 0
    %10889 = vmatmul.mubr.bf16.gmra.mrb[0].mxu0 %v10713
    %v10890 = vpop.f32.mrb[0].mxu0
    %v10891 = vadd.f32 %v10848, %v10890
    %v10892 = vpop.f32.mrb[0].mxu0
    %v10893 = vadd.f32 %v10850, %v10892
    %v10894 = vpop.f32.mrb[0].mxu0
    %v10895 = vadd.f32 %v10852, %v10894
    %v10896 = vpop.f32.mrb[0].mxu0
    %v10897 = vadd.f32 %v10854, %v10896
    %10898 = vdwg.mxu0
    %v10899 = vadd.f32 %v10283, %v10805
    %v10900 = vadd.f32 %v10284, %v10807
    %v10901 = vadd.f32 %v10285, %v10891
    %v10902 = vadd.f32 %v10286, %v10893
    %v10903 = vadd.f32 %v10287, %v10809
    %v10904 = vadd.f32 %v10288, %v10811
    %v10905 = vadd.f32 %v10289, %v10895
    %v10906 = vadd.f32 %v10290, %v10897
    %s10907 = scalar_lea.vmem [#allocation7], 5600
    %v10908 = vld [vmem:[%s10907] sm:$0xff]
    %v10909 = vld [vmem:[%s10907 + $0x8] sm:$0xff]
    %v10910 = vld [vmem:[%s10907 + $0x10] sm:$0xff]
    %v10911 = vld [vmem:[%s10907 + $0x18] sm:$0xff]
    %v10912 = vld [vmem:[%s10907 + $0x20] sm:$0xff]
    %v10913 = vld [vmem:[%s10907 + $0x28] sm:$0xff]
    %v10914 = vld [vmem:[%s10907 + $0x30] sm:$0xff]
    %v10915 = vld [vmem:[%s10907 + $0x38] sm:$0xff]
    %v10916 = vld [vmem:[%s10907 + $0x40] sm:$0xff]
    %v10917 = vld [vmem:[%s10907 + $0x48] sm:$0xff]
    %v10918 = vld [vmem:[%s10907 + $0x50] sm:$0xff]
    %v10919 = vld [vmem:[%s10907 + $0x58] sm:$0xff]
    %v10920 = vld [vmem:[%s10907 + $0x60] sm:$0xff]
    %v10921 = vld [vmem:[%s10907 + $0x68] sm:$0xff]
    %v10922 = vld [vmem:[%s10907 + $0x70] sm:$0xff]
    %v10923 = vld [vmem:[%s10907 + $0x78] sm:$0xff]
    %v10924 = vld [vmem:[%s10907 + $0x80] sm:$0xff]
    %v10925 = vld [vmem:[%s10907 + $0x88] sm:$0xff]
    %v10926 = vld [vmem:[%s10907 + $0x90] sm:$0xff]
    %v10927 = vld [vmem:[%s10907 + $0x98] sm:$0xff]
    %v10928 = vld [vmem:[%s10907 + $0xa0] sm:$0xff]
    %v10929 = vld [vmem:[%s10907 + $0xa8] sm:$0xff]
    %v10930 = vld [vmem:[%s10907 + $0xb0] sm:$0xff]
    %v10931 = vld [vmem:[%s10907 + $0xb8] sm:$0xff]
    %v10932 = vld [vmem:[%s10907 + $0xc0] sm:$0xff]
    %v10933 = vld [vmem:[%s10907 + $0xc8] sm:$0xff]
    %v10934 = vld [vmem:[%s10907 + $0xd0] sm:$0xff]
    %v10935 = vld [vmem:[%s10907 + $0xd8] sm:$0xff]
    %v10936 = vld [vmem:[%s10907 + $0xe0] sm:$0xff]
    %v10937 = vld [vmem:[%s10907 + $0xe8] sm:$0xff]
    %v10938 = vld [vmem:[%s10907 + $0xf0] sm:$0xff]
    %v10939 = vld [vmem:[%s10907 + $0xf8] sm:$0xff]
    %v10940 = vld [vmem:[%s10907 + $0x100] sm:$0xff]
    %v10941 = vld [vmem:[%s10907 + $0x108] sm:$0xff]
    %v10942 = vld [vmem:[%s10907 + $0x110] sm:$0xff]
    %v10943 = vld [vmem:[%s10907 + $0x118] sm:$0xff]
    %v10944 = vld [vmem:[%s10907 + $0x120] sm:$0xff]
    %v10945 = vld [vmem:[%s10907 + $0x128] sm:$0xff]
    %v10946 = vld [vmem:[%s10907 + $0x130] sm:$0xff]
    %v10947 = vld [vmem:[%s10907 + $0x138] sm:$0xff]
    %v10948 = vld [vmem:[%s10907 + $0x140] sm:$0xff]
    %v10949 = vld [vmem:[%s10907 + $0x148] sm:$0xff]
    %v10950 = vld [vmem:[%s10907 + $0x150] sm:$0xff]
    %v10951 = vld [vmem:[%s10907 + $0x158] sm:$0xff]
    %v10952 = vld [vmem:[%s10907 + $0x160] sm:$0xff]
    %v10953 = vld [vmem:[%s10907 + $0x168] sm:$0xff]
    %v10954 = vld [vmem:[%s10907 + $0x170] sm:$0xff]
    %v10955 = vld [vmem:[%s10907 + $0x178] sm:$0xff]
    %v10956 = vld [vmem:[%s10907 + $0x180] sm:$0xff]
    %v10957 = vld [vmem:[%s10907 + $0x188] sm:$0xff]
    %v10958 = vld [vmem:[%s10907 + $0x190] sm:$0xff]
    %v10959 = vld [vmem:[%s10907 + $0x198] sm:$0xff]
    %v10960 = vld [vmem:[%s10907 + $0x1a0] sm:$0xff]
    %v10961 = vld [vmem:[%s10907 + $0x1a8] sm:$0xff]
    %v10962 = vld [vmem:[%s10907 + $0x1b0] sm:$0xff]
    %v10963 = vld [vmem:[%s10907 + $0x1b8] sm:$0xff]
    %v10964 = vld [vmem:[%s10907 + $0x1c0] sm:$0xff]
    %v10965 = vld [vmem:[%s10907 + $0x1c8] sm:$0xff]
    %v10966 = vld [vmem:[%s10907 + $0x1d0] sm:$0xff]
    %v10967 = vld [vmem:[%s10907 + $0x1d8] sm:$0xff]
    %v10968 = vld [vmem:[%s10907 + $0x1e0] sm:$0xff]
    %v10969 = vld [vmem:[%s10907 + $0x1e8] sm:$0xff]
    %v10970 = vld [vmem:[%s10907 + $0x1f0] sm:$0xff]
    %v10971 = vld [vmem:[%s10907 + $0x1f8] sm:$0xff]
    %v10972 = vld [vmem:[%s10907 + $0x200] sm:$0xff]
    %v10973 = vld [vmem:[%s10907 + $0x208] sm:$0xff]
    %v10974 = vld [vmem:[%s10907 + $0x210] sm:$0xff]
    %v10975 = vld [vmem:[%s10907 + $0x218] sm:$0xff]
    %v10976 = vld [vmem:[%s10907 + $0x220] sm:$0xff]
    %v10977 = vld [vmem:[%s10907 + $0x228] sm:$0xff]
    %v11048 = vunpack.c.l.b16 %v10908
    %v11049 = vunpack.c.h.b16 %v10908
    %v11050 = vunpack.c.l.b16 %v10909
    %v11051 = vunpack.c.h.b16 %v10909
    %v11052 = vunpack.c.l.b16 %v10910
    %v11053 = vunpack.c.h.b16 %v10910
    %v11054 = vunpack.c.l.b16 %v10911
    %v11055 = vunpack.c.h.b16 %v10911
    %v11056 = vunpack.c.l.b16 %v10912
    %v11057 = vunpack.c.h.b16 %v10912
    %v11058 = vunpack.c.l.b16 %v10913
    %v11059 = vunpack.c.h.b16 %v10913
    %v11060 = vunpack.c.l.b16 %v10914
    %v11061 = vunpack.c.h.b16 %v10914
    %v11062 = vunpack.c.l.b16 %v10915
    %v11063 = vunpack.c.h.b16 %v10915
    %v11064 = vunpack.c.l.b16 %v10916
    %v11065 = vunpack.c.h.b16 %v10916
    %v11066 = vunpack.c.l.b16 %v10917
    %v11067 = vunpack.c.h.b16 %v10917
    %v11068 = vunpack.c.l.b16 %v10918
    %v11069 = vunpack.c.h.b16 %v10918
    %v11070 = vunpack.c.l.b16 %v10919
    %v11071 = vunpack.c.h.b16 %v10919
    %v11072 = vunpack.c.l.b16 %v10920
    %v11073 = vunpack.c.h.b16 %v10920
    %v11074 = vunpack.c.l.b16 %v10921
    %v11075 = vunpack.c.h.b16 %v10921
    %v11076 = vunpack.c.l.b16 %v10922
    %v11077 = vunpack.c.h.b16 %v10922
    %v11078 = vunpack.c.l.b16 %v10923
    %v11079 = vunpack.c.h.b16 %v10923
    %v11080 = vunpack.c.l.b16 %v10924
    %v11081 = vunpack.c.h.b16 %v10924
    %v11082 = vunpack.c.l.b16 %v10925
    %v11083 = vunpack.c.h.b16 %v10925
    %v11084 = vunpack.c.l.b16 %v10926
    %v11085 = vunpack.c.h.b16 %v10926
    %v11086 = vunpack.c.l.b16 %v10927
    %v11087 = vunpack.c.h.b16 %v10927
    %v11088 = vunpack.c.l.b16 %v10928
    %v11089 = vunpack.c.h.b16 %v10928
    %v11090 = vunpack.c.l.b16 %v10929
    %v11091 = vunpack.c.h.b16 %v10929
    %v11092 = vunpack.c.l.b16 %v10930
    %v11093 = vunpack.c.h.b16 %v10930
    %v11094 = vunpack.c.l.b16 %v10931
    %v11095 = vunpack.c.h.b16 %v10931
    %v11096 = vunpack.c.l.b16 %v10932
    %v11097 = vunpack.c.h.b16 %v10932
    %v11098 = vunpack.c.l.b16 %v10933
    %v11099 = vunpack.c.h.b16 %v10933
    %v11100 = vunpack.c.l.b16 %v10934
    %v11101 = vunpack.c.h.b16 %v10934
    %v11102 = vunpack.c.l.b16 %v10935
    %v11103 = vunpack.c.h.b16 %v10935
    %v11104 = vunpack.c.l.b16 %v10936
    %v11105 = vunpack.c.h.b16 %v10936
    %v11106 = vunpack.c.l.b16 %v10937
    %v11107 = vunpack.c.h.b16 %v10937
    %v11108 = vunpack.c.l.b16 %v10938
    %v11109 = vunpack.c.h.b16 %v10938
    %v11110 = vunpack.c.l.b16 %v10939
    %v11111 = vunpack.c.h.b16 %v10939
    %v11112 = vunpack.c.l.b16 %v10940
    %v11113 = vunpack.c.h.b16 %v10940
    %v11114 = vunpack.c.l.b16 %v10941
    %v11115 = vunpack.c.h.b16 %v10941
    %v11116 = vunpack.c.l.b16 %v10942
    %v11117 = vunpack.c.h.b16 %v10942
    %v11118 = vunpack.c.l.b16 %v10943
    %v11119 = vunpack.c.h.b16 %v10943
    %v11120 = vunpack.c.l.b16 %v10944
    %v11121 = vunpack.c.h.b16 %v10944
    %v11122 = vunpack.c.l.b16 %v10945
    %v11123 = vunpack.c.h.b16 %v10945
    %v11124 = vunpack.c.l.b16 %v10946
    %v11125 = vunpack.c.h.b16 %v10946
    %v11126 = vunpack.c.l.b16 %v10947
    %v11127 = vunpack.c.h.b16 %v10947
    %v11128 = vunpack.c.l.b16 %v10948
    %v11129 = vunpack.c.h.b16 %v10948
    %v11130 = vunpack.c.l.b16 %v10949
    %v11131 = vunpack.c.h.b16 %v10949
    %v11132 = vunpack.c.l.b16 %v10950
    %v11133 = vunpack.c.h.b16 %v10950
    %v11134 = vunpack.c.l.b16 %v10951
    %v11135 = vunpack.c.h.b16 %v10951
    %v11136 = vunpack.c.l.b16 %v10952
    %v11137 = vunpack.c.h.b16 %v10952
    %v11138 = vunpack.c.l.b16 %v10953
    %v11139 = vunpack.c.h.b16 %v10953
    %v11140 = vunpack.c.l.b16 %v10954
    %v11141 = vunpack.c.h.b16 %v10954
    %v11142 = vunpack.c.l.b16 %v10955
    %v11143 = vunpack.c.h.b16 %v10955
    %v11144 = vunpack.c.l.b16 %v10956
    %v11145 = vunpack.c.h.b16 %v10956
    %v11146 = vunpack.c.l.b16 %v10957
    %v11147 = vunpack.c.h.b16 %v10957
    %v11148 = vunpack.c.l.b16 %v10958
    %v11149 = vunpack.c.h.b16 %v10958
    %v11150 = vunpack.c.l.b16 %v10959
    %v11151 = vunpack.c.h.b16 %v10959
    %v11152 = vunpack.c.l.b16 %v10960
    %v11153 = vunpack.c.h.b16 %v10960
    %v11154 = vunpack.c.l.b16 %v10961
    %v11155 = vunpack.c.h.b16 %v10961
    %v11156 = vunpack.c.l.b16 %v10962
    %v11157 = vunpack.c.h.b16 %v10962
    %v11158 = vunpack.c.l.b16 %v10963
    %v11159 = vunpack.c.h.b16 %v10963
    %v11160 = vunpack.c.l.b16 %v10964
    %v11161 = vunpack.c.h.b16 %v10964
    %v11162 = vunpack.c.l.b16 %v10965
    %v11163 = vunpack.c.h.b16 %v10965
    %v11164 = vunpack.c.l.b16 %v10966
    %v11165 = vunpack.c.h.b16 %v10966
    %v11166 = vunpack.c.l.b16 %v10967
    %v11167 = vunpack.c.h.b16 %v10967
    %v11168 = vunpack.c.l.b16 %v10968
    %v11169 = vunpack.c.h.b16 %v10968
    %v11170 = vunpack.c.l.b16 %v10969
    %v11171 = vunpack.c.h.b16 %v10969
    %v11172 = vunpack.c.l.b16 %v10970
    %v11173 = vunpack.c.h.b16 %v10970
    %v11174 = vunpack.c.l.b16 %v10971
    %v11175 = vunpack.c.h.b16 %v10971
    %v11176 = vunpack.c.l.b16 %v10972
    %v11177 = vunpack.c.h.b16 %v10972
    %v11178 = vunpack.c.l.b16 %v10973
    %v11179 = vunpack.c.h.b16 %v10973
    %v11180 = vunpack.c.l.b16 %v10974
    %v11181 = vunpack.c.h.b16 %v10974
    %v11182 = vunpack.c.l.b16 %v10975
    %v11183 = vunpack.c.h.b16 %v10975
    %v11184 = vunpack.c.l.b16 %v10976
    %v11185 = vunpack.c.h.b16 %v10976
    %v11186 = vunpack.c.l.b16 %v10977
    %v11187 = vunpack.c.h.b16 %v10977
    %v11188 = vpack.c.b16 %v11052, %v11048
    %v11189 = vpack.c.b16 %v11053, %v11049
    %v11190 = vpack.c.b16 %v11054, %v11050
    %v11191 = vpack.c.b16 %v11055, %v11051
    %v11192 = vpack.c.b16 %v11060, %v11056
    %v11193 = vpack.c.b16 %v11061, %v11057
    %v11194 = vpack.c.b16 %v11062, %v11058
    %v11195 = vpack.c.b16 %v11063, %v11059
    %v11196 = vpack.c.b16 %v11068, %v11064
    %v11197 = vpack.c.b16 %v11069, %v11065
    %v11198 = vpack.c.b16 %v11070, %v11066
    %v11199 = vpack.c.b16 %v11071, %v11067
    %v11200 = vpack.c.b16 %v11076, %v11072
    %v11201 = vpack.c.b16 %v11077, %v11073
    %v11202 = vpack.c.b16 %v11078, %v11074
    %v11203 = vpack.c.b16 %v11079, %v11075
    %v11204 = vpack.c.b16 %v11084, %v11080
    %v11205 = vpack.c.b16 %v11085, %v11081
    %v11206 = vpack.c.b16 %v11086, %v11082
    %v11207 = vpack.c.b16 %v11087, %v11083
    %v11208 = vpack.c.b16 %v11092, %v11088
    %v11209 = vpack.c.b16 %v11093, %v11089
    %v11210 = vpack.c.b16 %v11094, %v11090
    %v11211 = vpack.c.b16 %v11095, %v11091
    %v11212 = vpack.c.b16 %v11100, %v11096
    %v11213 = vpack.c.b16 %v11101, %v11097
    %v11214 = vpack.c.b16 %v11102, %v11098
    %v11215 = vpack.c.b16 %v11103, %v11099
    %v11216 = vpack.c.b16 %v11108, %v11104
    %v11217 = vpack.c.b16 %v11109, %v11105
    %v11218 = vpack.c.b16 %v11110, %v11106
    %v11219 = vpack.c.b16 %v11111, %v11107
    %v11220 = vpack.c.b16 %v11116, %v11112
    %v11221 = vpack.c.b16 %v11117, %v11113
    %v11222 = vpack.c.b16 %v11118, %v11114
    %v11223 = vpack.c.b16 %v11119, %v11115
    %v11224 = vpack.c.b16 %v11124, %v11120
    %v11225 = vpack.c.b16 %v11125, %v11121
    %v11226 = vpack.c.b16 %v11126, %v11122
    %v11227 = vpack.c.b16 %v11127, %v11123
    %v11228 = vpack.c.b16 %v11132, %v11128
    %v11229 = vpack.c.b16 %v11133, %v11129
    %v11230 = vpack.c.b16 %v11134, %v11130
    %v11231 = vpack.c.b16 %v11135, %v11131
    %v11232 = vpack.c.b16 %v11140, %v11136
    %v11233 = vpack.c.b16 %v11141, %v11137
    %v11234 = vpack.c.b16 %v11142, %v11138
    %v11235 = vpack.c.b16 %v11143, %v11139
    %v11236 = vpack.c.b16 %v11148, %v11144
    %v11237 = vpack.c.b16 %v11149, %v11145
    %v11238 = vpack.c.b16 %v11150, %v11146
    %v11239 = vpack.c.b16 %v11151, %v11147
    %v11240 = vpack.c.b16 %v11156, %v11152
    %v11241 = vpack.c.b16 %v11157, %v11153
    %v11242 = vpack.c.b16 %v11158, %v11154
    %v11243 = vpack.c.b16 %v11159, %v11155
    %v11244 = vpack.c.b16 %v11164, %v11160
    %v11245 = vpack.c.b16 %v11165, %v11161
    %v11246 = vpack.c.b16 %v11166, %v11162
    %v11247 = vpack.c.b16 %v11167, %v11163
    %v11248 = vpack.c.b16 %v11172, %v11168
    %v11249 = vpack.c.b16 %v11173, %v11169
    %v11250 = vpack.c.b16 %v11174, %v11170
    %v11251 = vpack.c.b16 %v11175, %v11171
    %v11252 = vpack.c.b16 %v11180, %v11176
    %v11253 = vpack.c.b16 %v11181, %v11177
    %v11254 = vpack.c.b16 %v11182, %v11178
    %v11255 = vpack.c.b16 %v11183, %v11179
    %v11256 = vpack.c.b16 %v11184, %v11184
    %v11257 = vpack.c.b16 %v11185, %v11185
    %v11258 = vpack.c.b16 %v11186, %v11186
    %v11259 = vpack.c.b16 %v11187, %v11187
    %v11329 = vsel %vm2080, %v4754, 0
    %v11332 = vsel %vm2123, %v11256, 0
    %v11335 = vsel %vm2123, %v11257, 0
    %v11338 = vsel %vm2123, %v11258, 0
    %v11341 = vsel %vm2123, %v11259, 0
    %11343 = vmatprep.subr.bf16.mxu0 %v11189
    %11344 = vmatpush1.bf16.msra.mxu0 %v11188
    %11345 = vmatprep.subr.bf16.mxu0 %v11193
    %11346 = vmatpush1.bf16.msra.mxu0 %v11192
    %11347 = vmatprep.subr.bf16.mxu0 %v11197
    %11348 = vmatpush1.bf16.msra.mxu0 %v11196
    %11349 = vmatprep.subr.bf16.mxu0 %v11201
    %11350 = vmatpush1.bf16.msra.mxu0 %v11200
    %11351 = vmatprep.subr.bf16.mxu0 %v11205
    %11352 = vmatpush1.bf16.msra.mxu0 %v11204
    %11353 = vmatprep.subr.bf16.mxu0 %v11209
    %11354 = vmatpush1.bf16.msra.mxu0 %v11208
    %11355 = vmatprep.subr.bf16.mxu0 %v11213
    %11356 = vmatpush1.bf16.msra.mxu0 %v11212
    %11357 = vmatprep.subr.bf16.mxu0 %v11217
    %11358 = vmatpush1.bf16.msra.mxu0 %v11216
    %11359 = vmatprep.subr.bf16.mxu0 %v11221
    %11360 = vmatpush1.bf16.msra.mxu0 %v11220
    %11361 = vmatprep.subr.bf16.mxu0 %v11225
    %11362 = vmatpush1.bf16.msra.mxu0 %v11224
    %11363 = vmatprep.subr.bf16.mxu0 %v11229
    %11364 = vmatpush1.bf16.msra.mxu0 %v11228
    %11365 = vmatprep.subr.bf16.mxu0 %v11233
    %11366 = vmatpush1.bf16.msra.mxu0 %v11232
    %11367 = vmatprep.subr.bf16.mxu0 %v11237
    %11368 = vmatpush1.bf16.msra.mxu0 %v11236
    %11369 = vmatprep.subr.bf16.mxu0 %v11241
    %11370 = vmatpush1.bf16.msra.mxu0 %v11240
    %11371 = vmatprep.subr.bf16.mxu0 %v11245
    %11372 = vmatpush1.bf16.msra.mxu0 %v11244
    %11373 = vmatprep.subr.bf16.mxu0 %v11249
    %11374 = vmatpush1.bf16.msra.mxu0 %v11248
    %11375 = vmatprep.mubr.bf16.mxu0 %v4753
    %11376 = vmatmul.mubr.bf16.gmra.mrb[0].mxu0 %v4752
    %v11377 = vpop.f32.mrb[0].mxu0
    %v11378 = vadd.f32 0.0, %v11377
    %v11379 = vpop.f32.mrb[0].mxu0
    %v11380 = vadd.f32 0.0, %v11379
    %v11381 = vpop.f32.mrb[0].mxu0
    %v11382 = vadd.f32 0.0, %v11381
    %v11383 = vpop.f32.mrb[0].mxu0
    %v11384 = vadd.f32 0.0, %v11383
    %11385 = vdwg.mxu0
    %11386 = vmatprep.subr.bf16.mxu0 %v11253
    %11387 = vmatpush1.bf16.msra.mxu0 %v11252
    %11388 = vmatprep.subr.bf16.mxu0 %v11335
    %11389 = vmatpush1.bf16.msra.mxu0 %v11332
    %11390 = vmatprep.subr.bf16.mxu0 0
    %11391 = vmatpush1.bf16.msra.mxu0 0
    %11392 = vmatprep.subr.bf16.mxu0 0
    %11393 = vmatpush1.bf16.msra.mxu0 0
    %11394 = vmatprep.subr.bf16.mxu0 0
    %11395 = vmatpush1.bf16.msra.mxu0 0
    %11396 = vmatprep.subr.bf16.mxu0 0
    %11397 = vmatpush1.bf16.msra.mxu0 0
    %11398 = vmatprep.subr.bf16.mxu0 0
    %11399 = vmatpush1.bf16.msra.mxu0 0
    %11400 = vmatprep.subr.bf16.mxu0 0
    %11401 = vmatpush1.bf16.msra.mxu0 0
    %11402 = vmatprep.subr.bf16.mxu0 0
    %11403 = vmatpush1.bf16.msra.mxu0 0
    %11404 = vmatprep.subr.bf16.mxu0 0
    %11405 = vmatpush1.bf16.msra.mxu0 0
    %11406 = vmatprep.subr.bf16.mxu0 0
    %11407 = vmatpush1.bf16.msra.mxu0 0
    %11408 = vmatprep.subr.bf16.mxu0 0
    %11409 = vmatpush1.bf16.msra.mxu0 0
    %11410 = vmatprep.subr.bf16.mxu0 0
    %11411 = vmatpush1.bf16.msra.mxu0 0
    %11412 = vmatprep.subr.bf16.mxu0 0
    %11413 = vmatpush1.bf16.msra.mxu0 0
    %11414 = vmatprep.subr.bf16.mxu0 0
    %11415 = vmatpush1.bf16.msra.mxu0 0
    %11416 = vmatprep.subr.bf16.mxu0 0
    %11417 = vmatpush1.bf16.msra.mxu0 0
    %11418 = vmatprep.mubr.bf16.mxu0 0
    %11419 = vmatmul.mubr.bf16.gmra.mrb[0].mxu0 %v11329
    %v11420 = vpop.f32.mrb[0].mxu0
    %v11421 = vadd.f32 %v11378, %v11420
    %v11422 = vpop.f32.mrb[0].mxu0
    %v11423 = vadd.f32 %v11380, %v11422
    %v11424 = vpop.f32.mrb[0].mxu0
    %v11425 = vadd.f32 %v11382, %v11424
    %v11426 = vpop.f32.mrb[0].mxu0
    %v11427 = vadd.f32 %v11384, %v11426
    %11428 = vdwg.mxu0
    %11429 = vmatprep.subr.bf16.mxu0 %v11191
    %11430 = vmatpush1.bf16.msra.mxu0 %v11190
    %11431 = vmatprep.subr.bf16.mxu0 %v11195
    %11432 = vmatpush1.bf16.msra.mxu0 %v11194
    %11433 = vmatprep.subr.bf16.mxu0 %v11199
    %11434 = vmatpush1.bf16.msra.mxu0 %v11198
    %11435 = vmatprep.subr.bf16.mxu0 %v11203
    %11436 = vmatpush1.bf16.msra.mxu0 %v11202
    %11437 = vmatprep.subr.bf16.mxu0 %v11207
    %11438 = vmatpush1.bf16.msra.mxu0 %v11206
    %11439 = vmatprep.subr.bf16.mxu0 %v11211
    %11440 = vmatpush1.bf16.msra.mxu0 %v11210
    %11441 = vmatprep.subr.bf16.mxu0 %v11215
    %11442 = vmatpush1.bf16.msra.mxu0 %v11214
    %11443 = vmatprep.subr.bf16.mxu0 %v11219
    %11444 = vmatpush1.bf16.msra.mxu0 %v11218
    %11445 = vmatprep.subr.bf16.mxu0 %v11223
    %11446 = vmatpush1.bf16.msra.mxu0 %v11222
    %11447 = vmatprep.subr.bf16.mxu0 %v11227
    %11448 = vmatpush1.bf16.msra.mxu0 %v11226
    %11449 = vmatprep.subr.bf16.mxu0 %v11231
    %11450 = vmatpush1.bf16.msra.mxu0 %v11230
    %11451 = vmatprep.subr.bf16.mxu0 %v11235
    %11452 = vmatpush1.bf16.msra.mxu0 %v11234
    %11453 = vmatprep.subr.bf16.mxu0 %v11239
    %11454 = vmatpush1.bf16.msra.mxu0 %v11238
    %11455 = vmatprep.subr.bf16.mxu0 %v11243
    %11456 = vmatpush1.bf16.msra.mxu0 %v11242
    %11457 = vmatprep.subr.bf16.mxu0 %v11247
    %11458 = vmatpush1.bf16.msra.mxu0 %v11246
    %11459 = vmatprep.subr.bf16.mxu0 %v11251
    %11460 = vmatpush1.bf16.msra.mxu0 %v11250
    %11461 = vmatprep.mubr.bf16.mxu0 %v4753
    %11462 = vmatmul.mubr.bf16.gmra.mrb[0].mxu0 %v4752
    %v11463 = vpop.f32.mrb[0].mxu0
    %v11464 = vadd.f32 0.0, %v11463
    %v11465 = vpop.f32.mrb[0].mxu0
    %v11466 = vadd.f32 0.0, %v11465
    %v11467 = vpop.f32.mrb[0].mxu0
    %v11468 = vadd.f32 0.0, %v11467
    %v11469 = vpop.f32.mrb[0].mxu0
    %v11470 = vadd.f32 0.0, %v11469
    %11471 = vdwg.mxu0
    %11472 = vmatprep.subr.bf16.mxu0 %v11255
    %11473 = vmatpush1.bf16.msra.mxu0 %v11254
    %11474 = vmatprep.subr.bf16.mxu0 %v11341
    %11475 = vmatpush1.bf16.msra.mxu0 %v11338
    %11476 = vmatprep.subr.bf16.mxu0 0
    %11477 = vmatpush1.bf16.msra.mxu0 0
    %11478 = vmatprep.subr.bf16.mxu0 0
    %11479 = vmatpush1.bf16.msra.mxu0 0
    %11480 = vmatprep.subr.bf16.mxu0 0
    %11481 = vmatpush1.bf16.msra.mxu0 0
    %11482 = vmatprep.subr.bf16.mxu0 0
    %11483 = vmatpush1.bf16.msra.mxu0 0
    %11484 = vmatprep.subr.bf16.mxu0 0
    %11485 = vmatpush1.bf16.msra.mxu0 0
    %11486 = vmatprep.subr.bf16.mxu0 0
    %11487 = vmatpush1.bf16.msra.mxu0 0
    %11488 = vmatprep.subr.bf16.mxu0 0
    %11489 = vmatpush1.bf16.msra.mxu0 0
    %11490 = vmatprep.subr.bf16.mxu0 0
    %11491 = vmatpush1.bf16.msra.mxu0 0
    %11492 = vmatprep.subr.bf16.mxu0 0
    %11493 = vmatpush1.bf16.msra.mxu0 0
    %11494 = vmatprep.subr.bf16.mxu0 0
    %11495 = vmatpush1.bf16.msra.mxu0 0
    %11496 = vmatprep.subr.bf16.mxu0 0
    %11497 = vmatpush1.bf16.msra.mxu0 0
    %11498 = vmatprep.subr.bf16.mxu0 0
    %11499 = vmatpush1.bf16.msra.mxu0 0
    %11500 = vmatprep.subr.bf16.mxu0 0
    %11501 = vmatpush1.bf16.msra.mxu0 0
    %11502 = vmatprep.subr.bf16.mxu0 0
    %11503 = vmatpush1.bf16.msra.mxu0 0
    %11504 = vmatprep.mubr.bf16.mxu0 0
    %11505 = vmatmul.mubr.bf16.gmra.mrb[0].mxu0 %v11329
    %v11506 = vpop.f32.mrb[0].mxu0
    %v11507 = vadd.f32 %v11464, %v11506
    %v11508 = vpop.f32.mrb[0].mxu0
    %v11509 = vadd.f32 %v11466, %v11508
    %v11510 = vpop.f32.mrb[0].mxu0
    %v11511 = vadd.f32 %v11468, %v11510
    %v11512 = vpop.f32.mrb[0].mxu0
    %v11513 = vadd.f32 %v11470, %v11512
    %11514 = vdwg.mxu0
    %v11515 = vadd.f32 %v10899, %v11421
    %v11516 = vadd.f32 %v10900, %v11423
    %v11517 = vadd.f32 %v10901, %v11507
    %v11518 = vadd.f32 %v10902, %v11509
    %v11519 = vadd.f32 %v10903, %v11425
    %v11520 = vadd.f32 %v10904, %v11427
    %v11521 = vadd.f32 %v10905, %v11511
    %v11522 = vadd.f32 %v10906, %v11513
    %s11523 = scalar_lea.vmem [#allocation7], 6160
    %v11524 = vld [vmem:[%s11523] sm:$0xff]
    %v11525 = vld [vmem:[%s11523 + $0x8] sm:$0xff]
    %v11526 = vld [vmem:[%s11523 + $0x10] sm:$0xff]
    %v11527 = vld [vmem:[%s11523 + $0x18] sm:$0xff]
    %v11528 = vld [vmem:[%s11523 + $0x20] sm:$0xff]
    %v11529 = vld [vmem:[%s11523 + $0x28] sm:$0xff]
    %v11530 = vld [vmem:[%s11523 + $0x30] sm:$0xff]
    %v11531 = vld [vmem:[%s11523 + $0x38] sm:$0xff]
    %v11532 = vld [vmem:[%s11523 + $0x40] sm:$0xff]
    %v11533 = vld [vmem:[%s11523 + $0x48] sm:$0xff]
    %v11534 = vld [vmem:[%s11523 + $0x50] sm:$0xff]
    %v11535 = vld [vmem:[%s11523 + $0x58] sm:$0xff]
    %v11536 = vld [vmem:[%s11523 + $0x60] sm:$0xff]
    %v11537 = vld [vmem:[%s11523 + $0x68] sm:$0xff]
    %v11538 = vld [vmem:[%s11523 + $0x70] sm:$0xff]
    %v11539 = vld [vmem:[%s11523 + $0x78] sm:$0xff]
    %v11540 = vld [vmem:[%s11523 + $0x80] sm:$0xff]
    %v11541 = vld [vmem:[%s11523 + $0x88] sm:$0xff]
    %v11542 = vld [vmem:[%s11523 + $0x90] sm:$0xff]
    %v11543 = vld [vmem:[%s11523 + $0x98] sm:$0xff]
    %v11544 = vld [vmem:[%s11523 + $0xa0] sm:$0xff]
    %v11545 = vld [vmem:[%s11523 + $0xa8] sm:$0xff]
    %v11546 = vld [vmem:[%s11523 + $0xb0] sm:$0xff]
    %v11547 = vld [vmem:[%s11523 + $0xb8] sm:$0xff]
    %v11548 = vld [vmem:[%s11523 + $0xc0] sm:$0xff]
    %v11549 = vld [vmem:[%s11523 + $0xc8] sm:$0xff]
    %v11550 = vld [vmem:[%s11523 + $0xd0] sm:$0xff]
    %v11551 = vld [vmem:[%s11523 + $0xd8] sm:$0xff]
    %v11552 = vld [vmem:[%s11523 + $0xe0] sm:$0xff]
    %v11553 = vld [vmem:[%s11523 + $0xe8] sm:$0xff]
    %v11554 = vld [vmem:[%s11523 + $0xf0] sm:$0xff]
    %v11555 = vld [vmem:[%s11523 + $0xf8] sm:$0xff]
    %v11556 = vld [vmem:[%s11523 + $0x100] sm:$0xff]
    %v11557 = vld [vmem:[%s11523 + $0x108] sm:$0xff]
    %v11558 = vld [vmem:[%s11523 + $0x110] sm:$0xff]
    %v11559 = vld [vmem:[%s11523 + $0x118] sm:$0xff]
    %v11560 = vld [vmem:[%s11523 + $0x120] sm:$0xff]
    %v11561 = vld [vmem:[%s11523 + $0x128] sm:$0xff]
    %v11562 = vld [vmem:[%s11523 + $0x130] sm:$0xff]
    %v11563 = vld [vmem:[%s11523 + $0x138] sm:$0xff]
    %v11564 = vld [vmem:[%s11523 + $0x140] sm:$0xff]
    %v11565 = vld [vmem:[%s11523 + $0x148] sm:$0xff]
    %v11566 = vld [vmem:[%s11523 + $0x150] sm:$0xff]
    %v11567 = vld [vmem:[%s11523 + $0x158] sm:$0xff]
    %v11568 = vld [vmem:[%s11523 + $0x160] sm:$0xff]
    %v11569 = vld [vmem:[%s11523 + $0x168] sm:$0xff]
    %v11570 = vld [vmem:[%s11523 + $0x170] sm:$0xff]
    %v11571 = vld [vmem:[%s11523 + $0x178] sm:$0xff]
    %v11572 = vld [vmem:[%s11523 + $0x180] sm:$0xff]
    %v11573 = vld [vmem:[%s11523 + $0x188] sm:$0xff]
    %v11574 = vld [vmem:[%s11523 + $0x190] sm:$0xff]
    %v11575 = vld [vmem:[%s11523 + $0x198] sm:$0xff]
    %v11576 = vld [vmem:[%s11523 + $0x1a0] sm:$0xff]
    %v11577 = vld [vmem:[%s11523 + $0x1a8] sm:$0xff]
    %v11578 = vld [vmem:[%s11523 + $0x1b0] sm:$0xff]
    %v11579 = vld [vmem:[%s11523 + $0x1b8] sm:$0xff]
    %v11580 = vld [vmem:[%s11523 + $0x1c0] sm:$0xff]
    %v11581 = vld [vmem:[%s11523 + $0x1c8] sm:$0xff]
    %v11582 = vld [vmem:[%s11523 + $0x1d0] sm:$0xff]
    %v11583 = vld [vmem:[%s11523 + $0x1d8] sm:$0xff]
    %v11584 = vld [vmem:[%s11523 + $0x1e0] sm:$0xff]
    %v11585 = vld [vmem:[%s11523 + $0x1e8] sm:$0xff]
    %v11586 = vld [vmem:[%s11523 + $0x1f0] sm:$0xff]
    %v11587 = vld [vmem:[%s11523 + $0x1f8] sm:$0xff]
    %v11588 = vld [vmem:[%s11523 + $0x200] sm:$0xff]
    %v11589 = vld [vmem:[%s11523 + $0x208] sm:$0xff]
    %v11590 = vld [vmem:[%s11523 + $0x210] sm:$0xff]
    %v11591 = vld [vmem:[%s11523 + $0x218] sm:$0xff]
    %v11592 = vld [vmem:[%s11523 + $0x220] sm:$0xff]
    %v11593 = vld [vmem:[%s11523 + $0x228] sm:$0xff]
    %v11664 = vunpack.c.l.b16 %v11524
    %v11665 = vunpack.c.h.b16 %v11524
    %v11666 = vunpack.c.l.b16 %v11525
    %v11667 = vunpack.c.h.b16 %v11525
    %v11668 = vunpack.c.l.b16 %v11526
    %v11669 = vunpack.c.h.b16 %v11526
    %v11670 = vunpack.c.l.b16 %v11527
    %v11671 = vunpack.c.h.b16 %v11527
    %v11672 = vunpack.c.l.b16 %v11528
    %v11673 = vunpack.c.h.b16 %v11528
    %v11674 = vunpack.c.l.b16 %v11529
    %v11675 = vunpack.c.h.b16 %v11529
    %v11676 = vunpack.c.l.b16 %v11530
    %v11677 = vunpack.c.h.b16 %v11530
    %v11678 = vunpack.c.l.b16 %v11531
    %v11679 = vunpack.c.h.b16 %v11531
    %v11680 = vunpack.c.l.b16 %v11532
    %v11681 = vunpack.c.h.b16 %v11532
    %v11682 = vunpack.c.l.b16 %v11533
    %v11683 = vunpack.c.h.b16 %v11533
    %v11684 = vunpack.c.l.b16 %v11534
    %v11685 = vunpack.c.h.b16 %v11534
    %v11686 = vunpack.c.l.b16 %v11535
    %v11687 = vunpack.c.h.b16 %v11535
    %v11688 = vunpack.c.l.b16 %v11536
    %v11689 = vunpack.c.h.b16 %v11536
    %v11690 = vunpack.c.l.b16 %v11537
    %v11691 = vunpack.c.h.b16 %v11537
    %v11692 = vunpack.c.l.b16 %v11538
    %v11693 = vunpack.c.h.b16 %v11538
    %v11694 = vunpack.c.l.b16 %v11539
    %v11695 = vunpack.c.h.b16 %v11539
    %v11696 = vunpack.c.l.b16 %v11540
    %v11697 = vunpack.c.h.b16 %v11540
    %v11698 = vunpack.c.l.b16 %v11541
    %v11699 = vunpack.c.h.b16 %v11541
    %v11700 = vunpack.c.l.b16 %v11542
    %v11701 = vunpack.c.h.b16 %v11542
    %v11702 = vunpack.c.l.b16 %v11543
    %v11703 = vunpack.c.h.b16 %v11543
    %v11704 = vunpack.c.l.b16 %v11544
    %v11705 = vunpack.c.h.b16 %v11544
    %v11706 = vunpack.c.l.b16 %v11545
    %v11707 = vunpack.c.h.b16 %v11545
    %v11708 = vunpack.c.l.b16 %v11546
    %v11709 = vunpack.c.h.b16 %v11546
    %v11710 = vunpack.c.l.b16 %v11547
    %v11711 = vunpack.c.h.b16 %v11547
    %v11712 = vunpack.c.l.b16 %v11548
    %v11713 = vunpack.c.h.b16 %v11548
    %v11714 = vunpack.c.l.b16 %v11549
    %v11715 = vunpack.c.h.b16 %v11549
    %v11716 = vunpack.c.l.b16 %v11550
    %v11717 = vunpack.c.h.b16 %v11550
    %v11718 = vunpack.c.l.b16 %v11551
    %v11719 = vunpack.c.h.b16 %v11551
    %v11720 = vunpack.c.l.b16 %v11552
    %v11721 = vunpack.c.h.b16 %v11552
    %v11722 = vunpack.c.l.b16 %v11553
    %v11723 = vunpack.c.h.b16 %v11553
    %v11724 = vunpack.c.l.b16 %v11554
    %v11725 = vunpack.c.h.b16 %v11554
    %v11726 = vunpack.c.l.b16 %v11555
    %v11727 = vunpack.c.h.b16 %v11555
    %v11728 = vunpack.c.l.b16 %v11556
    %v11729 = vunpack.c.h.b16 %v11556
    %v11730 = vunpack.c.l.b16 %v11557
    %v11731 = vunpack.c.h.b16 %v11557
    %v11732 = vunpack.c.l.b16 %v11558
    %v11733 = vunpack.c.h.b16 %v11558
    %v11734 = vunpack.c.l.b16 %v11559
    %v11735 = vunpack.c.h.b16 %v11559
    %v11736 = vunpack.c.l.b16 %v11560
    %v11737 = vunpack.c.h.b16 %v11560
    %v11738 = vunpack.c.l.b16 %v11561
    %v11739 = vunpack.c.h.b16 %v11561
    %v11740 = vunpack.c.l.b16 %v11562
    %v11741 = vunpack.c.h.b16 %v11562
    %v11742 = vunpack.c.l.b16 %v11563
    %v11743 = vunpack.c.h.b16 %v11563
    %v11744 = vunpack.c.l.b16 %v11564
    %v11745 = vunpack.c.h.b16 %v11564
    %v11746 = vunpack.c.l.b16 %v11565
    %v11747 = vunpack.c.h.b16 %v11565
    %v11748 = vunpack.c.l.b16 %v11566
    %v11749 = vunpack.c.h.b16 %v11566
    %v11750 = vunpack.c.l.b16 %v11567
    %v11751 = vunpack.c.h.b16 %v11567
    %v11752 = vunpack.c.l.b16 %v11568
    %v11753 = vunpack.c.h.b16 %v11568
    %v11754 = vunpack.c.l.b16 %v11569
    %v11755 = vunpack.c.h.b16 %v11569
    %v11756 = vunpack.c.l.b16 %v11570
    %v11757 = vunpack.c.h.b16 %v11570
    %v11758 = vunpack.c.l.b16 %v11571
    %v11759 = vunpack.c.h.b16 %v11571
    %v11760 = vunpack.c.l.b16 %v11572
    %v11761 = vunpack.c.h.b16 %v11572
    %v11762 = vunpack.c.l.b16 %v11573
    %v11763 = vunpack.c.h.b16 %v11573
    %v11764 = vunpack.c.l.b16 %v11574
    %v11765 = vunpack.c.h.b16 %v11574
    %v11766 = vunpack.c.l.b16 %v11575
    %v11767 = vunpack.c.h.b16 %v11575
    %v11768 = vunpack.c.l.b16 %v11576
    %v11769 = vunpack.c.h.b16 %v11576
    %v11770 = vunpack.c.l.b16 %v11577
    %v11771 = vunpack.c.h.b16 %v11577
    %v11772 = vunpack.c.l.b16 %v11578
    %v11773 = vunpack.c.h.b16 %v11578
    %v11774 = vunpack.c.l.b16 %v11579
    %v11775 = vunpack.c.h.b16 %v11579
    %v11776 = vunpack.c.l.b16 %v11580
    %v11777 = vunpack.c.h.b16 %v11580
    %v11778 = vunpack.c.l.b16 %v11581
    %v11779 = vunpack.c.h.b16 %v11581
    %v11780 = vunpack.c.l.b16 %v11582
    %v11781 = vunpack.c.h.b16 %v11582
    %v11782 = vunpack.c.l.b16 %v11583
    %v11783 = vunpack.c.h.b16 %v11583
    %v11784 = vunpack.c.l.b16 %v11584
    %v11785 = vunpack.c.h.b16 %v11584
    %v11786 = vunpack.c.l.b16 %v11585
    %v11787 = vunpack.c.h.b16 %v11585
    %v11788 = vunpack.c.l.b16 %v11586
    %v11789 = vunpack.c.h.b16 %v11586
    %v11790 = vunpack.c.l.b16 %v11587
    %v11791 = vunpack.c.h.b16 %v11587
    %v11792 = vunpack.c.l.b16 %v11588
    %v11793 = vunpack.c.h.b16 %v11588
    %v11794 = vunpack.c.l.b16 %v11589
    %v11795 = vunpack.c.h.b16 %v11589
    %v11796 = vunpack.c.l.b16 %v11590
    %v11797 = vunpack.c.h.b16 %v11590
    %v11798 = vunpack.c.l.b16 %v11591
    %v11799 = vunpack.c.h.b16 %v11591
    %v11800 = vunpack.c.l.b16 %v11592
    %v11801 = vunpack.c.h.b16 %v11592
    %v11802 = vunpack.c.l.b16 %v11593
    %v11803 = vunpack.c.h.b16 %v11593
    %v11804 = vpack.c.b16 %v11668, %v11664
    %v11805 = vpack.c.b16 %v11669, %v11665
    %v11806 = vpack.c.b16 %v11670, %v11666
    %v11807 = vpack.c.b16 %v11671, %v11667
    %v11808 = vpack.c.b16 %v11676, %v11672
    %v11809 = vpack.c.b16 %v11677, %v11673
    %v11810 = vpack.c.b16 %v11678, %v11674
    %v11811 = vpack.c.b16 %v11679, %v11675
    %v11812 = vpack.c.b16 %v11684, %v11680
    %v11813 = vpack.c.b16 %v11685, %v11681
    %v11814 = vpack.c.b16 %v11686, %v11682
    %v11815 = vpack.c.b16 %v11687, %v11683
    %v11816 = vpack.c.b16 %v11692, %v11688
    %v11817 = vpack.c.b16 %v11693, %v11689
    %v11818 = vpack.c.b16 %v11694, %v11690
    %v11819 = vpack.c.b16 %v11695, %v11691
    %v11820 = vpack.c.b16 %v11700, %v11696
    %v11821 = vpack.c.b16 %v11701, %v11697
    %v11822 = vpack.c.b16 %v11702, %v11698
    %v11823 = vpack.c.b16 %v11703, %v11699
    %v11824 = vpack.c.b16 %v11708, %v11704
    %v11825 = vpack.c.b16 %v11709, %v11705
    %v11826 = vpack.c.b16 %v11710, %v11706
    %v11827 = vpack.c.b16 %v11711, %v11707
    %v11828 = vpack.c.b16 %v11716, %v11712
    %v11829 = vpack.c.b16 %v11717, %v11713
    %v11830 = vpack.c.b16 %v11718, %v11714
    %v11831 = vpack.c.b16 %v11719, %v11715
    %v11832 = vpack.c.b16 %v11724, %v11720
    %v11833 = vpack.c.b16 %v11725, %v11721
    %v11834 = vpack.c.b16 %v11726, %v11722
    %v11835 = vpack.c.b16 %v11727, %v11723
    %v11836 = vpack.c.b16 %v11732, %v11728
    %v11837 = vpack.c.b16 %v11733, %v11729
    %v11838 = vpack.c.b16 %v11734, %v11730
    %v11839 = vpack.c.b16 %v11735, %v11731
    %v11840 = vpack.c.b16 %v11740, %v11736
    %v11841 = vpack.c.b16 %v11741, %v11737
    %v11842 = vpack.c.b16 %v11742, %v11738
    %v11843 = vpack.c.b16 %v11743, %v11739
    %v11844 = vpack.c.b16 %v11748, %v11744
    %v11845 = vpack.c.b16 %v11749, %v11745
    %v11846 = vpack.c.b16 %v11750, %v11746
    %v11847 = vpack.c.b16 %v11751, %v11747
    %v11848 = vpack.c.b16 %v11756, %v11752
    %v11849 = vpack.c.b16 %v11757, %v11753
    %v11850 = vpack.c.b16 %v11758, %v11754
    %v11851 = vpack.c.b16 %v11759, %v11755
    %v11852 = vpack.c.b16 %v11764, %v11760
    %v11853 = vpack.c.b16 %v11765, %v11761
    %v11854 = vpack.c.b16 %v11766, %v11762
    %v11855 = vpack.c.b16 %v11767, %v11763
    %v11856 = vpack.c.b16 %v11772, %v11768
    %v11857 = vpack.c.b16 %v11773, %v11769
    %v11858 = vpack.c.b16 %v11774, %v11770
    %v11859 = vpack.c.b16 %v11775, %v11771
    %v11860 = vpack.c.b16 %v11780, %v11776
    %v11861 = vpack.c.b16 %v11781, %v11777
    %v11862 = vpack.c.b16 %v11782, %v11778
    %v11863 = vpack.c.b16 %v11783, %v11779
    %v11864 = vpack.c.b16 %v11788, %v11784
    %v11865 = vpack.c.b16 %v11789, %v11785
    %v11866 = vpack.c.b16 %v11790, %v11786
    %v11867 = vpack.c.b16 %v11791, %v11787
    %v11868 = vpack.c.b16 %v11796, %v11792
    %v11869 = vpack.c.b16 %v11797, %v11793
    %v11870 = vpack.c.b16 %v11798, %v11794
    %v11871 = vpack.c.b16 %v11799, %v11795
    %v11872 = vpack.c.b16 %v11800, %v11800
    %v11873 = vpack.c.b16 %v11801, %v11801
    %v11874 = vpack.c.b16 %v11802, %v11802
    %v11875 = vpack.c.b16 %v11803, %v11803
    %v11945 = vsel %vm2080, %v4757, 0
    %v11948 = vsel %vm2123, %v11872, 0
    %v11951 = vsel %vm2123, %v11873, 0
    %v11954 = vsel %vm2123, %v11874, 0
    %v11957 = vsel %vm2123, %v11875, 0
    %11959 = vmatprep.subr.bf16.mxu0 %v11805
    %11960 = vmatpush1.bf16.msra.mxu0 %v11804
    %11961 = vmatprep.subr.bf16.mxu0 %v11809
    %11962 = vmatpush1.bf16.msra.mxu0 %v11808
    %11963 = vmatprep.subr.bf16.mxu0 %v11813
    %11964 = vmatpush1.bf16.msra.mxu0 %v11812
    %11965 = vmatprep.subr.bf16.mxu0 %v11817
    %11966 = vmatpush1.bf16.msra.mxu0 %v11816
    %11967 = vmatprep.subr.bf16.mxu0 %v11821
    %11968 = vmatpush1.bf16.msra.mxu0 %v11820
    %11969 = vmatprep.subr.bf16.mxu0 %v11825
    %11970 = vmatpush1.bf16.msra.mxu0 %v11824
    %11971 = vmatprep.subr.bf16.mxu0 %v11829
    %11972 = vmatpush1.bf16.msra.mxu0 %v11828
    %11973 = vmatprep.subr.bf16.mxu0 %v11833
    %11974 = vmatpush1.bf16.msra.mxu0 %v11832
    %11975 = vmatprep.subr.bf16.mxu0 %v11837
    %11976 = vmatpush1.bf16.msra.mxu0 %v11836
    %11977 = vmatprep.subr.bf16.mxu0 %v11841
    %11978 = vmatpush1.bf16.msra.mxu0 %v11840
    %11979 = vmatprep.subr.bf16.mxu0 %v11845
    %11980 = vmatpush1.bf16.msra.mxu0 %v11844
    %11981 = vmatprep.subr.bf16.mxu0 %v11849
    %11982 = vmatpush1.bf16.msra.mxu0 %v11848
    %11983 = vmatprep.subr.bf16.mxu0 %v11853
    %11984 = vmatpush1.bf16.msra.mxu0 %v11852
    %11985 = vmatprep.subr.bf16.mxu0 %v11857
    %11986 = vmatpush1.bf16.msra.mxu0 %v11856
    %11987 = vmatprep.subr.bf16.mxu0 %v11861
    %11988 = vmatpush1.bf16.msra.mxu0 %v11860
    %11989 = vmatprep.subr.bf16.mxu0 %v11865
    %11990 = vmatpush1.bf16.msra.mxu0 %v11864
    %11991 = vmatprep.mubr.bf16.mxu0 %v4756
    %11992 = vmatmul.mubr.bf16.gmra.mrb[0].mxu0 %v4755
    %v11993 = vpop.f32.mrb[0].mxu0
    %v11994 = vadd.f32 0.0, %v11993
    %v11995 = vpop.f32.mrb[0].mxu0
    %v11996 = vadd.f32 0.0, %v11995
    %v11997 = vpop.f32.mrb[0].mxu0
    %v11998 = vadd.f32 0.0, %v11997
    %v11999 = vpop.f32.mrb[0].mxu0
    %v12000 = vadd.f32 0.0, %v11999
    %12001 = vdwg.mxu0
    %12002 = vmatprep.subr.bf16.mxu0 %v11869
    %12003 = vmatpush1.bf16.msra.mxu0 %v11868
    %12004 = vmatprep.subr.bf16.mxu0 %v11951
    %12005 = vmatpush1.bf16.msra.mxu0 %v11948
    %12006 = vmatprep.subr.bf16.mxu0 0
    %12007 = vmatpush1.bf16.msra.mxu0 0
    %12008 = vmatprep.subr.bf16.mxu0 0
    %12009 = vmatpush1.bf16.msra.mxu0 0
    %12010 = vmatprep.subr.bf16.mxu0 0
    %12011 = vmatpush1.bf16.msra.mxu0 0
    %12012 = vmatprep.subr.bf16.mxu0 0
    %12013 = vmatpush1.bf16.msra.mxu0 0
    %12014 = vmatprep.subr.bf16.mxu0 0
    %12015 = vmatpush1.bf16.msra.mxu0 0
    %12016 = vmatprep.subr.bf16.mxu0 0
    %12017 = vmatpush1.bf16.msra.mxu0 0
    %12018 = vmatprep.subr.bf16.mxu0 0
    %12019 = vmatpush1.bf16.msra.mxu0 0
    %12020 = vmatprep.subr.bf16.mxu0 0
    %12021 = vmatpush1.bf16.msra.mxu0 0
    %12022 = vmatprep.subr.bf16.mxu0 0
    %12023 = vmatpush1.bf16.msra.mxu0 0
    %12024 = vmatprep.subr.bf16.mxu0 0
    %12025 = vmatpush1.bf16.msra.mxu0 0
    %12026 = vmatprep.subr.bf16.mxu0 0
    %12027 = vmatpush1.bf16.msra.mxu0 0
    %12028 = vmatprep.subr.bf16.mxu0 0
    %12029 = vmatpush1.bf16.msra.mxu0 0
    %12030 = vmatprep.subr.bf16.mxu0 0
    %12031 = vmatpush1.bf16.msra.mxu0 0
    %12032 = vmatprep.subr.bf16.mxu0 0
    %12033 = vmatpush1.bf16.msra.mxu0 0
    %12034 = vmatprep.mubr.bf16.mxu0 0
    %12035 = vmatmul.mubr.bf16.gmra.mrb[0].mxu0 %v11945
    %v12036 = vpop.f32.mrb[0].mxu0
    %v12037 = vadd.f32 %v11994, %v12036
    %v12038 = vpop.f32.mrb[0].mxu0
    %v12039 = vadd.f32 %v11996, %v12038
    %v12040 = vpop.f32.mrb[0].mxu0
    %v12041 = vadd.f32 %v11998, %v12040
    %v12042 = vpop.f32.mrb[0].mxu0
    %v12043 = vadd.f32 %v12000, %v12042
    %12044 = vdwg.mxu0
    %12045 = vmatprep.subr.bf16.mxu0 %v11807
    %12046 = vmatpush1.bf16.msra.mxu0 %v11806
    %12047 = vmatprep.subr.bf16.mxu0 %v11811
    %12048 = vmatpush1.bf16.msra.mxu0 %v11810
    %12049 = vmatprep.subr.bf16.mxu0 %v11815
    %12050 = vmatpush1.bf16.msra.mxu0 %v11814
    %12051 = vmatprep.subr.bf16.mxu0 %v11819
    %12052 = vmatpush1.bf16.msra.mxu0 %v11818
    %12053 = vmatprep.subr.bf16.mxu0 %v11823
    %12054 = vmatpush1.bf16.msra.mxu0 %v11822
    %12055 = vmatprep.subr.bf16.mxu0 %v11827
    %12056 = vmatpush1.bf16.msra.mxu0 %v11826
    %12057 = vmatprep.subr.bf16.mxu0 %v11831
    %12058 = vmatpush1.bf16.msra.mxu0 %v11830
    %12059 = vmatprep.subr.bf16.mxu0 %v11835
    %12060 = vmatpush1.bf16.msra.mxu0 %v11834
    %12061 = vmatprep.subr.bf16.mxu0 %v11839
    %12062 = vmatpush1.bf16.msra.mxu0 %v11838
    %12063 = vmatprep.subr.bf16.mxu0 %v11843
    %12064 = vmatpush1.bf16.msra.mxu0 %v11842
    %12065 = vmatprep.subr.bf16.mxu0 %v11847
    %12066 = vmatpush1.bf16.msra.mxu0 %v11846
    %12067 = vmatprep.subr.bf16.mxu0 %v11851
    %12068 = vmatpush1.bf16.msra.mxu0 %v11850
    %12069 = vmatprep.subr.bf16.mxu0 %v11855
    %12070 = vmatpush1.bf16.msra.mxu0 %v11854
    %12071 = vmatprep.subr.bf16.mxu0 %v11859
    %12072 = vmatpush1.bf16.msra.mxu0 %v11858
    %12073 = vmatprep.subr.bf16.mxu0 %v11863
    %12074 = vmatpush1.bf16.msra.mxu0 %v11862
    %12075 = vmatprep.subr.bf16.mxu0 %v11867
    %12076 = vmatpush1.bf16.msra.mxu0 %v11866
    %12077 = vmatprep.mubr.bf16.mxu0 %v4756
    %12078 = vmatmul.mubr.bf16.gmra.mrb[0].mxu0 %v4755
    %v12079 = vpop.f32.mrb[0].mxu0
    %v12080 = vadd.f32 0.0, %v12079
    %v12081 = vpop.f32.mrb[0].mxu0
    %v12082 = vadd.f32 0.0, %v12081
    %v12083 = vpop.f32.mrb[0].mxu0
    %v12084 = vadd.f32 0.0, %v12083
    %v12085 = vpop.f32.mrb[0].mxu0
    %v12086 = vadd.f32 0.0, %v12085
    %12087 = vdwg.mxu0
    %12088 = vmatprep.subr.bf16.mxu0 %v11871
    %12089 = vmatpush1.bf16.msra.mxu0 %v11870
    %12090 = vmatprep.subr.bf16.mxu0 %v11957
    %12091 = vmatpush1.bf16.msra.mxu0 %v11954
    %12092 = vmatprep.subr.bf16.mxu0 0
    %12093 = vmatpush1.bf16.msra.mxu0 0
    %12094 = vmatprep.subr.bf16.mxu0 0
    %12095 = vmatpush1.bf16.msra.mxu0 0
    %12096 = vmatprep.subr.bf16.mxu0 0
    %12097 = vmatpush1.bf16.msra.mxu0 0
    %12098 = vmatprep.subr.bf16.mxu0 0
    %12099 = vmatpush1.bf16.msra.mxu0 0
    %12100 = vmatprep.subr.bf16.mxu0 0
    %12101 = vmatpush1.bf16.msra.mxu0 0
    %12102 = vmatprep.subr.bf16.mxu0 0
    %12103 = vmatpush1.bf16.msra.mxu0 0
    %12104 = vmatprep.subr.bf16.mxu0 0
    %12105 = vmatpush1.bf16.msra.mxu0 0
    %12106 = vmatprep.subr.bf16.mxu0 0
    %12107 = vmatpush1.bf16.msra.mxu0 0
    %12108 = vmatprep.subr.bf16.mxu0 0
    %12109 = vmatpush1.bf16.msra.mxu0 0
    %12110 = vmatprep.subr.bf16.mxu0 0
    %12111 = vmatpush1.bf16.msra.mxu0 0
    %12112 = vmatprep.subr.bf16.mxu0 0
    %12113 = vmatpush1.bf16.msra.mxu0 0
    %12114 = vmatprep.subr.bf16.mxu0 0
    %12115 = vmatpush1.bf16.msra.mxu0 0
    %12116 = vmatprep.subr.bf16.mxu0 0
    %12117 = vmatpush1.bf16.msra.mxu0 0
    %12118 = vmatprep.subr.bf16.mxu0 0
    %12119 = vmatpush1.bf16.msra.mxu0 0
    %12120 = vmatprep.mubr.bf16.mxu0 0
    %12121 = vmatmul.mubr.bf16.gmra.mrb[0].mxu0 %v11945
    %v12122 = vpop.f32.mrb[0].mxu0
    %v12123 = vadd.f32 %v12080, %v12122
    %v12124 = vpop.f32.mrb[0].mxu0
    %v12125 = vadd.f32 %v12082, %v12124
    %v12126 = vpop.f32.mrb[0].mxu0
    %v12127 = vadd.f32 %v12084, %v12126
    %v12128 = vpop.f32.mrb[0].mxu0
    %v12129 = vadd.f32 %v12086, %v12128
    %12130 = vdwg.mxu0
    %v12131 = vadd.f32 %v11515, %v12037
    %v12132 = vadd.f32 %v11516, %v12039
    %v12133 = vadd.f32 %v11517, %v12123
    %v12134 = vadd.f32 %v11518, %v12125
    %v12135 = vadd.f32 %v11519, %v12041
    %v12136 = vadd.f32 %v11520, %v12043
    %v12137 = vadd.f32 %v11521, %v12127
    %v12138 = vadd.f32 %v11522, %v12129
    %s12139 = scalar_lea.vmem [#allocation7], 6720
    %v12140 = vld [vmem:[%s12139] sm:$0xff]
    %v12141 = vld [vmem:[%s12139 + $0x8] sm:$0xff]
    %v12142 = vld [vmem:[%s12139 + $0x10] sm:$0xff]
    %v12143 = vld [vmem:[%s12139 + $0x18] sm:$0xff]
    %v12144 = vld [vmem:[%s12139 + $0x20] sm:$0xff]
    %v12145 = vld [vmem:[%s12139 + $0x28] sm:$0xff]
    %v12146 = vld [vmem:[%s12139 + $0x30] sm:$0xff]
    %v12147 = vld [vmem:[%s12139 + $0x38] sm:$0xff]
    %v12148 = vld [vmem:[%s12139 + $0x40] sm:$0xff]
    %v12149 = vld [vmem:[%s12139 + $0x48] sm:$0xff]
    %v12150 = vld [vmem:[%s12139 + $0x50] sm:$0xff]
    %v12151 = vld [vmem:[%s12139 + $0x58] sm:$0xff]
    %v12152 = vld [vmem:[%s12139 + $0x60] sm:$0xff]
    %v12153 = vld [vmem:[%s12139 + $0x68] sm:$0xff]
    %v12154 = vld [vmem:[%s12139 + $0x70] sm:$0xff]
    %v12155 = vld [vmem:[%s12139 + $0x78] sm:$0xff]
    %v12156 = vld [vmem:[%s12139 + $0x80] sm:$0xff]
    %v12157 = vld [vmem:[%s12139 + $0x88] sm:$0xff]
    %v12158 = vld [vmem:[%s12139 + $0x90] sm:$0xff]
    %v12159 = vld [vmem:[%s12139 + $0x98] sm:$0xff]
    %v12160 = vld [vmem:[%s12139 + $0xa0] sm:$0xff]
    %v12161 = vld [vmem:[%s12139 + $0xa8] sm:$0xff]
    %v12162 = vld [vmem:[%s12139 + $0xb0] sm:$0xff]
    %v12163 = vld [vmem:[%s12139 + $0xb8] sm:$0xff]
    %v12164 = vld [vmem:[%s12139 + $0xc0] sm:$0xff]
    %v12165 = vld [vmem:[%s12139 + $0xc8] sm:$0xff]
    %v12166 = vld [vmem:[%s12139 + $0xd0] sm:$0xff]
    %v12167 = vld [vmem:[%s12139 + $0xd8] sm:$0xff]
    %v12168 = vld [vmem:[%s12139 + $0xe0] sm:$0xff]
    %v12169 = vld [vmem:[%s12139 + $0xe8] sm:$0xff]
    %v12170 = vld [vmem:[%s12139 + $0xf0] sm:$0xff]
    %v12171 = vld [vmem:[%s12139 + $0xf8] sm:$0xff]
    %v12172 = vld [vmem:[%s12139 + $0x100] sm:$0xff]
    %v12173 = vld [vmem:[%s12139 + $0x108] sm:$0xff]
    %v12174 = vld [vmem:[%s12139 + $0x110] sm:$0xff]
    %v12175 = vld [vmem:[%s12139 + $0x118] sm:$0xff]
    %v12176 = vld [vmem:[%s12139 + $0x120] sm:$0xff]
    %v12177 = vld [vmem:[%s12139 + $0x128] sm:$0xff]
    %v12178 = vld [vmem:[%s12139 + $0x130] sm:$0xff]
    %v12179 = vld [vmem:[%s12139 + $0x138] sm:$0xff]
    %v12180 = vld [vmem:[%s12139 + $0x140] sm:$0xff]
    %v12181 = vld [vmem:[%s12139 + $0x148] sm:$0xff]
    %v12182 = vld [vmem:[%s12139 + $0x150] sm:$0xff]
    %v12183 = vld [vmem:[%s12139 + $0x158] sm:$0xff]
    %v12184 = vld [vmem:[%s12139 + $0x160] sm:$0xff]
    %v12185 = vld [vmem:[%s12139 + $0x168] sm:$0xff]
    %v12186 = vld [vmem:[%s12139 + $0x170] sm:$0xff]
    %v12187 = vld [vmem:[%s12139 + $0x178] sm:$0xff]
    %v12188 = vld [vmem:[%s12139 + $0x180] sm:$0xff]
    %v12189 = vld [vmem:[%s12139 + $0x188] sm:$0xff]
    %v12190 = vld [vmem:[%s12139 + $0x190] sm:$0xff]
    %v12191 = vld [vmem:[%s12139 + $0x198] sm:$0xff]
    %v12192 = vld [vmem:[%s12139 + $0x1a0] sm:$0xff]
    %v12193 = vld [vmem:[%s12139 + $0x1a8] sm:$0xff]
    %v12194 = vld [vmem:[%s12139 + $0x1b0] sm:$0xff]
    %v12195 = vld [vmem:[%s12139 + $0x1b8] sm:$0xff]
    %v12196 = vld [vmem:[%s12139 + $0x1c0] sm:$0xff]
    %v12197 = vld [vmem:[%s12139 + $0x1c8] sm:$0xff]
    %v12198 = vld [vmem:[%s12139 + $0x1d0] sm:$0xff]
    %v12199 = vld [vmem:[%s12139 + $0x1d8] sm:$0xff]
    %v12200 = vld [vmem:[%s12139 + $0x1e0] sm:$0xff]
    %v12201 = vld [vmem:[%s12139 + $0x1e8] sm:$0xff]
    %v12202 = vld [vmem:[%s12139 + $0x1f0] sm:$0xff]
    %v12203 = vld [vmem:[%s12139 + $0x1f8] sm:$0xff]
    %v12204 = vld [vmem:[%s12139 + $0x200] sm:$0xff]
    %v12205 = vld [vmem:[%s12139 + $0x208] sm:$0xff]
    %v12206 = vld [vmem:[%s12139 + $0x210] sm:$0xff]
    %v12207 = vld [vmem:[%s12139 + $0x218] sm:$0xff]
    %v12208 = vld [vmem:[%s12139 + $0x220] sm:$0xff]
    %v12209 = vld [vmem:[%s12139 + $0x228] sm:$0xff]
    %v12280 = vunpack.c.l.b16 %v12140
    %v12281 = vunpack.c.h.b16 %v12140
    %v12282 = vunpack.c.l.b16 %v12141
    %v12283 = vunpack.c.h.b16 %v12141
    %v12284 = vunpack.c.l.b16 %v12142
    %v12285 = vunpack.c.h.b16 %v12142
    %v12286 = vunpack.c.l.b16 %v12143
    %v12287 = vunpack.c.h.b16 %v12143
    %v12288 = vunpack.c.l.b16 %v12144
    %v12289 = vunpack.c.h.b16 %v12144
    %v12290 = vunpack.c.l.b16 %v12145
    %v12291 = vunpack.c.h.b16 %v12145
    %v12292 = vunpack.c.l.b16 %v12146
    %v12293 = vunpack.c.h.b16 %v12146
    %v12294 = vunpack.c.l.b16 %v12147
    %v12295 = vunpack.c.h.b16 %v12147
    %v12296 = vunpack.c.l.b16 %v12148
    %v12297 = vunpack.c.h.b16 %v12148
    %v12298 = vunpack.c.l.b16 %v12149
    %v12299 = vunpack.c.h.b16 %v12149
    %v12300 = vunpack.c.l.b16 %v12150
    %v12301 = vunpack.c.h.b16 %v12150
    %v12302 = vunpack.c.l.b16 %v12151
    %v12303 = vunpack.c.h.b16 %v12151
    %v12304 = vunpack.c.l.b16 %v12152
    %v12305 = vunpack.c.h.b16 %v12152
    %v12306 = vunpack.c.l.b16 %v12153
    %v12307 = vunpack.c.h.b16 %v12153
    %v12308 = vunpack.c.l.b16 %v12154
    %v12309 = vunpack.c.h.b16 %v12154
    %v12310 = vunpack.c.l.b16 %v12155
    %v12311 = vunpack.c.h.b16 %v12155
    %v12312 = vunpack.c.l.b16 %v12156
    %v12313 = vunpack.c.h.b16 %v12156
    %v12314 = vunpack.c.l.b16 %v12157
    %v12315 = vunpack.c.h.b16 %v12157
    %v12316 = vunpack.c.l.b16 %v12158
    %v12317 = vunpack.c.h.b16 %v12158
    %v12318 = vunpack.c.l.b16 %v12159
    %v12319 = vunpack.c.h.b16 %v12159
    %v12320 = vunpack.c.l.b16 %v12160
    %v12321 = vunpack.c.h.b16 %v12160
    %v12322 = vunpack.c.l.b16 %v12161
    %v12323 = vunpack.c.h.b16 %v12161
    %v12324 = vunpack.c.l.b16 %v12162
    %v12325 = vunpack.c.h.b16 %v12162
    %v12326 = vunpack.c.l.b16 %v12163
    %v12327 = vunpack.c.h.b16 %v12163
    %v12328 = vunpack.c.l.b16 %v12164
    %v12329 = vunpack.c.h.b16 %v12164
    %v12330 = vunpack.c.l.b16 %v12165
    %v12331 = vunpack.c.h.b16 %v12165
    %v12332 = vunpack.c.l.b16 %v12166
    %v12333 = vunpack.c.h.b16 %v12166
    %v12334 = vunpack.c.l.b16 %v12167
    %v12335 = vunpack.c.h.b16 %v12167
    %v12336 = vunpack.c.l.b16 %v12168
    %v12337 = vunpack.c.h.b16 %v12168
    %v12338 = vunpack.c.l.b16 %v12169
    %v12339 = vunpack.c.h.b16 %v12169
    %v12340 = vunpack.c.l.b16 %v12170
    %v12341 = vunpack.c.h.b16 %v12170
    %v12342 = vunpack.c.l.b16 %v12171
    %v12343 = vunpack.c.h.b16 %v12171
    %v12344 = vunpack.c.l.b16 %v12172
    %v12345 = vunpack.c.h.b16 %v12172
    %v12346 = vunpack.c.l.b16 %v12173
    %v12347 = vunpack.c.h.b16 %v12173
    %v12348 = vunpack.c.l.b16 %v12174
    %v12349 = vunpack.c.h.b16 %v12174
    %v12350 = vunpack.c.l.b16 %v12175
    %v12351 = vunpack.c.h.b16 %v12175
    %v12352 = vunpack.c.l.b16 %v12176
    %v12353 = vunpack.c.h.b16 %v12176
    %v12354 = vunpack.c.l.b16 %v12177
    %v12355 = vunpack.c.h.b16 %v12177
    %v12356 = vunpack.c.l.b16 %v12178
    %v12357 = vunpack.c.h.b16 %v12178
    %v12358 = vunpack.c.l.b16 %v12179
    %v12359 = vunpack.c.h.b16 %v12179
    %v12360 = vunpack.c.l.b16 %v12180
    %v12361 = vunpack.c.h.b16 %v12180
    %v12362 = vunpack.c.l.b16 %v12181
    %v12363 = vunpack.c.h.b16 %v12181
    %v12364 = vunpack.c.l.b16 %v12182
    %v12365 = vunpack.c.h.b16 %v12182
    %v12366 = vunpack.c.l.b16 %v12183
    %v12367 = vunpack.c.h.b16 %v12183
    %v12368 = vunpack.c.l.b16 %v12184
    %v12369 = vunpack.c.h.b16 %v12184
    %v12370 = vunpack.c.l.b16 %v12185
    %v12371 = vunpack.c.h.b16 %v12185
    %v12372 = vunpack.c.l.b16 %v12186
    %v12373 = vunpack.c.h.b16 %v12186
    %v12374 = vunpack.c.l.b16 %v12187
    %v12375 = vunpack.c.h.b16 %v12187
    %v12376 = vunpack.c.l.b16 %v12188
    %v12377 = vunpack.c.h.b16 %v12188
    %v12378 = vunpack.c.l.b16 %v12189
    %v12379 = vunpack.c.h.b16 %v12189
    %v12380 = vunpack.c.l.b16 %v12190
    %v12381 = vunpack.c.h.b16 %v12190
    %v12382 = vunpack.c.l.b16 %v12191
    %v12383 = vunpack.c.h.b16 %v12191
    %v12384 = vunpack.c.l.b16 %v12192
    %v12385 = vunpack.c.h.b16 %v12192
    %v12386 = vunpack.c.l.b16 %v12193
    %v12387 = vunpack.c.h.b16 %v12193
    %v12388 = vunpack.c.l.b16 %v12194
    %v12389 = vunpack.c.h.b16 %v12194
    %v12390 = vunpack.c.l.b16 %v12195
    %v12391 = vunpack.c.h.b16 %v12195
    %v12392 = vunpack.c.l.b16 %v12196
    %v12393 = vunpack.c.h.b16 %v12196
    %v12394 = vunpack.c.l.b16 %v12197
    %v12395 = vunpack.c.h.b16 %v12197
    %v12396 = vunpack.c.l.b16 %v12198
    %v12397 = vunpack.c.h.b16 %v12198
    %v12398 = vunpack.c.l.b16 %v12199
    %v12399 = vunpack.c.h.b16 %v12199
    %v12400 = vunpack.c.l.b16 %v12200
    %v12401 = vunpack.c.h.b16 %v12200
    %v12402 = vunpack.c.l.b16 %v12201
    %v12403 = vunpack.c.h.b16 %v12201
    %v12404 = vunpack.c.l.b16 %v12202
    %v12405 = vunpack.c.h.b16 %v12202
    %v12406 = vunpack.c.l.b16 %v12203
    %v12407 = vunpack.c.h.b16 %v12203
    %v12408 = vunpack.c.l.b16 %v12204
    %v12409 = vunpack.c.h.b16 %v12204
    %v12410 = vunpack.c.l.b16 %v12205
    %v12411 = vunpack.c.h.b16 %v12205
    %v12412 = vunpack.c.l.b16 %v12206
    %v12413 = vunpack.c.h.b16 %v12206
    %v12414 = vunpack.c.l.b16 %v12207
    %v12415 = vunpack.c.h.b16 %v12207
    %v12416 = vunpack.c.l.b16 %v12208
    %v12417 = vunpack.c.h.b16 %v12208
    %v12418 = vunpack.c.l.b16 %v12209
    %v12419 = vunpack.c.h.b16 %v12209
    %v12420 = vpack.c.b16 %v12284, %v12280
    %v12421 = vpack.c.b16 %v12285, %v12281
    %v12422 = vpack.c.b16 %v12286, %v12282
    %v12423 = vpack.c.b16 %v12287, %v12283
    %v12424 = vpack.c.b16 %v12292, %v12288
    %v12425 = vpack.c.b16 %v12293, %v12289
    %v12426 = vpack.c.b16 %v12294, %v12290
    %v12427 = vpack.c.b16 %v12295, %v12291
    %v12428 = vpack.c.b16 %v12300, %v12296
    %v12429 = vpack.c.b16 %v12301, %v12297
    %v12430 = vpack.c.b16 %v12302, %v12298
    %v12431 = vpack.c.b16 %v12303, %v12299
    %v12432 = vpack.c.b16 %v12308, %v12304
    %v12433 = vpack.c.b16 %v12309, %v12305
    %v12434 = vpack.c.b16 %v12310, %v12306
    %v12435 = vpack.c.b16 %v12311, %v12307
    %v12436 = vpack.c.b16 %v12316, %v12312
    %v12437 = vpack.c.b16 %v12317, %v12313
    %v12438 = vpack.c.b16 %v12318, %v12314
    %v12439 = vpack.c.b16 %v12319, %v12315
    %v12440 = vpack.c.b16 %v12324, %v12320
    %v12441 = vpack.c.b16 %v12325, %v12321
    %v12442 = vpack.c.b16 %v12326, %v12322
    %v12443 = vpack.c.b16 %v12327, %v12323
    %v12444 = vpack.c.b16 %v12332, %v12328
    %v12445 = vpack.c.b16 %v12333, %v12329
    %v12446 = vpack.c.b16 %v12334, %v12330
    %v12447 = vpack.c.b16 %v12335, %v12331
    %v12448 = vpack.c.b16 %v12340, %v12336
    %v12449 = vpack.c.b16 %v12341, %v12337
    %v12450 = vpack.c.b16 %v12342, %v12338
    %v12451 = vpack.c.b16 %v12343, %v12339
    %v12452 = vpack.c.b16 %v12348, %v12344
    %v12453 = vpack.c.b16 %v12349, %v12345
    %v12454 = vpack.c.b16 %v12350, %v12346
    %v12455 = vpack.c.b16 %v12351, %v12347
    %v12456 = vpack.c.b16 %v12356, %v12352
    %v12457 = vpack.c.b16 %v12357, %v12353
    %v12458 = vpack.c.b16 %v12358, %v12354
    %v12459 = vpack.c.b16 %v12359, %v12355
    %v12460 = vpack.c.b16 %v12364, %v12360
    %v12461 = vpack.c.b16 %v12365, %v12361
    %v12462 = vpack.c.b16 %v12366, %v12362
    %v12463 = vpack.c.b16 %v12367, %v12363
    %v12464 = vpack.c.b16 %v12372, %v12368
    %v12465 = vpack.c.b16 %v12373, %v12369
    %v12466 = vpack.c.b16 %v12374, %v12370
    %v12467 = vpack.c.b16 %v12375, %v12371
    %v12468 = vpack.c.b16 %v12380, %v12376
    %v12469 = vpack.c.b16 %v12381, %v12377
    %v12470 = vpack.c.b16 %v12382, %v12378
    %v12471 = vpack.c.b16 %v12383, %v12379
    %v12472 = vpack.c.b16 %v12388, %v12384
    %v12473 = vpack.c.b16 %v12389, %v12385
    %v12474 = vpack.c.b16 %v12390, %v12386
    %v12475 = vpack.c.b16 %v12391, %v12387
    %v12476 = vpack.c.b16 %v12396, %v12392
    %v12477 = vpack.c.b16 %v12397, %v12393
    %v12478 = vpack.c.b16 %v12398, %v12394
    %v12479 = vpack.c.b16 %v12399, %v12395
    %v12480 = vpack.c.b16 %v12404, %v12400
    %v12481 = vpack.c.b16 %v12405, %v12401
    %v12482 = vpack.c.b16 %v12406, %v12402
    %v12483 = vpack.c.b16 %v12407, %v12403
    %v12484 = vpack.c.b16 %v12412, %v12408
    %v12485 = vpack.c.b16 %v12413, %v12409
    %v12486 = vpack.c.b16 %v12414, %v12410
    %v12487 = vpack.c.b16 %v12415, %v12411
    %v12488 = vpack.c.b16 %v12416, %v12416
    %v12489 = vpack.c.b16 %v12417, %v12417
    %v12490 = vpack.c.b16 %v12418, %v12418
    %v12491 = vpack.c.b16 %v12419, %v12419
    %v12561 = vsel %vm2080, %v4760, 0
    %v12564 = vsel %vm2123, %v12488, 0
    %v12567 = vsel %vm2123, %v12489, 0
    %v12570 = vsel %vm2123, %v12490, 0
    %v12573 = vsel %vm2123, %v12491, 0
    %12575 = vmatprep.subr.bf16.mxu0 %v12421
    %12576 = vmatpush1.bf16.msra.mxu0 %v12420
    %12577 = vmatprep.subr.bf16.mxu0 %v12425
    %12578 = vmatpush1.bf16.msra.mxu0 %v12424
    %12579 = vmatprep.subr.bf16.mxu0 %v12429
    %12580 = vmatpush1.bf16.msra.mxu0 %v12428
    %12581 = vmatprep.subr.bf16.mxu0 %v12433
    %12582 = vmatpush1.bf16.msra.mxu0 %v12432
    %12583 = vmatprep.subr.bf16.mxu0 %v12437
    %12584 = vmatpush1.bf16.msra.mxu0 %v12436
    %12585 = vmatprep.subr.bf16.mxu0 %v12441
    %12586 = vmatpush1.bf16.msra.mxu0 %v12440
    %12587 = vmatprep.subr.bf16.mxu0 %v12445
    %12588 = vmatpush1.bf16.msra.mxu0 %v12444
    %12589 = vmatprep.subr.bf16.mxu0 %v12449
    %12590 = vmatpush1.bf16.msra.mxu0 %v12448
    %12591 = vmatprep.subr.bf16.mxu0 %v12453
    %12592 = vmatpush1.bf16.msra.mxu0 %v12452
    %12593 = vmatprep.subr.bf16.mxu0 %v12457
    %12594 = vmatpush1.bf16.msra.mxu0 %v12456
    %12595 = vmatprep.subr.bf16.mxu0 %v12461
    %12596 = vmatpush1.bf16.msra.mxu0 %v12460
    %12597 = vmatprep.subr.bf16.mxu0 %v12465
    %12598 = vmatpush1.bf16.msra.mxu0 %v12464
    %12599 = vmatprep.subr.bf16.mxu0 %v12469
    %12600 = vmatpush1.bf16.msra.mxu0 %v12468
    %12601 = vmatprep.subr.bf16.mxu0 %v12473
    %12602 = vmatpush1.bf16.msra.mxu0 %v12472
    %12603 = vmatprep.subr.bf16.mxu0 %v12477
    %12604 = vmatpush1.bf16.msra.mxu0 %v12476
    %12605 = vmatprep.subr.bf16.mxu0 %v12481
    %12606 = vmatpush1.bf16.msra.mxu0 %v12480
    %12607 = vmatprep.mubr.bf16.mxu0 %v4759
    %12608 = vmatmul.mubr.bf16.gmra.mrb[0].mxu0 %v4758
    %v12609 = vpop.f32.mrb[0].mxu0
    %v12610 = vadd.f32 0.0, %v12609
    %v12611 = vpop.f32.mrb[0].mxu0
    %v12612 = vadd.f32 0.0, %v12611
    %v12613 = vpop.f32.mrb[0].mxu0
    %v12614 = vadd.f32 0.0, %v12613
    %v12615 = vpop.f32.mrb[0].mxu0
    %v12616 = vadd.f32 0.0, %v12615
    %12617 = vdwg.mxu0
    %12618 = vmatprep.subr.bf16.mxu0 %v12485
    %12619 = vmatpush1.bf16.msra.mxu0 %v12484
    %12620 = vmatprep.subr.bf16.mxu0 %v12567
    %12621 = vmatpush1.bf16.msra.mxu0 %v12564
    %12622 = vmatprep.subr.bf16.mxu0 0
    %12623 = vmatpush1.bf16.msra.mxu0 0
    %12624 = vmatprep.subr.bf16.mxu0 0
    %12625 = vmatpush1.bf16.msra.mxu0 0
    %12626 = vmatprep.subr.bf16.mxu0 0
    %12627 = vmatpush1.bf16.msra.mxu0 0
    %12628 = vmatprep.subr.bf16.mxu0 0
    %12629 = vmatpush1.bf16.msra.mxu0 0
    %12630 = vmatprep.subr.bf16.mxu0 0
    %12631 = vmatpush1.bf16.msra.mxu0 0
    %12632 = vmatprep.subr.bf16.mxu0 0
    %12633 = vmatpush1.bf16.msra.mxu0 0
    %12634 = vmatprep.subr.bf16.mxu0 0
    %12635 = vmatpush1.bf16.msra.mxu0 0
    %12636 = vmatprep.subr.bf16.mxu0 0
    %12637 = vmatpush1.bf16.msra.mxu0 0
    %12638 = vmatprep.subr.bf16.mxu0 0
    %12639 = vmatpush1.bf16.msra.mxu0 0
    %12640 = vmatprep.subr.bf16.mxu0 0
    %12641 = vmatpush1.bf16.msra.mxu0 0
    %12642 = vmatprep.subr.bf16.mxu0 0
    %12643 = vmatpush1.bf16.msra.mxu0 0
    %12644 = vmatprep.subr.bf16.mxu0 0
    %12645 = vmatpush1.bf16.msra.mxu0 0
    %12646 = vmatprep.subr.bf16.mxu0 0
    %12647 = vmatpush1.bf16.msra.mxu0 0
    %12648 = vmatprep.subr.bf16.mxu0 0
    %12649 = vmatpush1.bf16.msra.mxu0 0
    %12650 = vmatprep.mubr.bf16.mxu0 0
    %12651 = vmatmul.mubr.bf16.gmra.mrb[0].mxu0 %v12561
    %v12652 = vpop.f32.mrb[0].mxu0
    %v12653 = vadd.f32 %v12610, %v12652
    %v12654 = vpop.f32.mrb[0].mxu0
    %v12655 = vadd.f32 %v12612, %v12654
    %v12656 = vpop.f32.mrb[0].mxu0
    %v12657 = vadd.f32 %v12614, %v12656
    %v12658 = vpop.f32.mrb[0].mxu0
    %v12659 = vadd.f32 %v12616, %v12658
    %12660 = vdwg.mxu0
    %12661 = vmatprep.subr.bf16.mxu0 %v12423
    %12662 = vmatpush1.bf16.msra.mxu0 %v12422
    %12663 = vmatprep.subr.bf16.mxu0 %v12427
    %12664 = vmatpush1.bf16.msra.mxu0 %v12426
    %12665 = vmatprep.subr.bf16.mxu0 %v12431
    %12666 = vmatpush1.bf16.msra.mxu0 %v12430
    %12667 = vmatprep.subr.bf16.mxu0 %v12435
    %12668 = vmatpush1.bf16.msra.mxu0 %v12434
    %12669 = vmatprep.subr.bf16.mxu0 %v12439
    %12670 = vmatpush1.bf16.msra.mxu0 %v12438
    %12671 = vmatprep.subr.bf16.mxu0 %v12443
    %12672 = vmatpush1.bf16.msra.mxu0 %v12442
    %12673 = vmatprep.subr.bf16.mxu0 %v12447
    %12674 = vmatpush1.bf16.msra.mxu0 %v12446
    %12675 = vmatprep.subr.bf16.mxu0 %v12451
    %12676 = vmatpush1.bf16.msra.mxu0 %v12450
    %12677 = vmatprep.subr.bf16.mxu0 %v12455
    %12678 = vmatpush1.bf16.msra.mxu0 %v12454
    %12679 = vmatprep.subr.bf16.mxu0 %v12459
    %12680 = vmatpush1.bf16.msra.mxu0 %v12458
    %12681 = vmatprep.subr.bf16.mxu0 %v12463
    %12682 = vmatpush1.bf16.msra.mxu0 %v12462
    %12683 = vmatprep.subr.bf16.mxu0 %v12467
    %12684 = vmatpush1.bf16.msra.mxu0 %v12466
    %12685 = vmatprep.subr.bf16.mxu0 %v12471
    %12686 = vmatpush1.bf16.msra.mxu0 %v12470
    %12687 = vmatprep.subr.bf16.mxu0 %v12475
    %12688 = vmatpush1.bf16.msra.mxu0 %v12474
    %12689 = vmatprep.subr.bf16.mxu0 %v12479
    %12690 = vmatpush1.bf16.msra.mxu0 %v12478
    %12691 = vmatprep.subr.bf16.mxu0 %v12483
    %12692 = vmatpush1.bf16.msra.mxu0 %v12482
    %12693 = vmatprep.mubr.bf16.mxu0 %v4759
    %12694 = vmatmul.mubr.bf16.gmra.mrb[0].mxu0 %v4758
    %v12695 = vpop.f32.mrb[0].mxu0
    %v12696 = vadd.f32 0.0, %v12695
    %v12697 = vpop.f32.mrb[0].mxu0
    %v12698 = vadd.f32 0.0, %v12697
    %v12699 = vpop.f32.mrb[0].mxu0
    %v12700 = vadd.f32 0.0, %v12699
    %v12701 = vpop.f32.mrb[0].mxu0
    %v12702 = vadd.f32 0.0, %v12701
    %12703 = vdwg.mxu0
    %12704 = vmatprep.subr.bf16.mxu0 %v12487
    %12705 = vmatpush1.bf16.msra.mxu0 %v12486
    %12706 = vmatprep.subr.bf16.mxu0 %v12573
    %12707 = vmatpush1.bf16.msra.mxu0 %v12570
    %12708 = vmatprep.subr.bf16.mxu0 0
    %12709 = vmatpush1.bf16.msra.mxu0 0
    %12710 = vmatprep.subr.bf16.mxu0 0
    %12711 = vmatpush1.bf16.msra.mxu0 0
    %12712 = vmatprep.subr.bf16.mxu0 0
    %12713 = vmatpush1.bf16.msra.mxu0 0
    %12714 = vmatprep.subr.bf16.mxu0 0
    %12715 = vmatpush1.bf16.msra.mxu0 0
    %12716 = vmatprep.subr.bf16.mxu0 0
    %12717 = vmatpush1.bf16.msra.mxu0 0
    %12718 = vmatprep.subr.bf16.mxu0 0
    %12719 = vmatpush1.bf16.msra.mxu0 0
    %12720 = vmatprep.subr.bf16.mxu0 0
    %12721 = vmatpush1.bf16.msra.mxu0 0
    %12722 = vmatprep.subr.bf16.mxu0 0
    %12723 = vmatpush1.bf16.msra.mxu0 0
    %12724 = vmatprep.subr.bf16.mxu0 0
    %12725 = vmatpush1.bf16.msra.mxu0 0
    %12726 = vmatprep.subr.bf16.mxu0 0
    %12727 = vmatpush1.bf16.msra.mxu0 0
    %12728 = vmatprep.subr.bf16.mxu0 0
    %12729 = vmatpush1.bf16.msra.mxu0 0
    %12730 = vmatprep.subr.bf16.mxu0 0
    %12731 = vmatpush1.bf16.msra.mxu0 0
    %12732 = vmatprep.subr.bf16.mxu0 0
    %12733 = vmatpush1.bf16.msra.mxu0 0
    %12734 = vmatprep.subr.bf16.mxu0 0
    %12735 = vmatpush1.bf16.msra.mxu0 0
    %12736 = vmatprep.mubr.bf16.mxu0 0
    %12737 = vmatmul.mubr.bf16.gmra.mrb[0].mxu0 %v12561
    %v12738 = vpop.f32.mrb[0].mxu0
    %v12739 = vadd.f32 %v12696, %v12738
    %v12740 = vpop.f32.mrb[0].mxu0
    %v12741 = vadd.f32 %v12698, %v12740
    %v12742 = vpop.f32.mrb[0].mxu0
    %v12743 = vadd.f32 %v12700, %v12742
    %v12744 = vpop.f32.mrb[0].mxu0
    %v12745 = vadd.f32 %v12702, %v12744
    %12746 = vdwg.mxu0
    %v12747 = vadd.f32 %v12131, %v12653
    %v12748 = vadd.f32 %v12132, %v12655
    %v12749 = vadd.f32 %v12133, %v12739
    %v12750 = vadd.f32 %v12134, %v12741
    %v12751 = vadd.f32 %v12135, %v12657
    %v12752 = vadd.f32 %v12136, %v12659
    %v12753 = vadd.f32 %v12137, %v12743
    %v12754 = vadd.f32 %v12138, %v12745
    %s12755 = scalar_lea.vmem [#allocation7], 7280
    %v12756 = vld [vmem:[%s12755] sm:$0xff]
    %v12757 = vld [vmem:[%s12755 + $0x8] sm:$0xff]
    %v12758 = vld [vmem:[%s12755 + $0x10] sm:$0xff]
    %v12759 = vld [vmem:[%s12755 + $0x18] sm:$0xff]
    %v12760 = vld [vmem:[%s12755 + $0x20] sm:$0xff]
    %v12761 = vld [vmem:[%s12755 + $0x28] sm:$0xff]
    %v12762 = vld [vmem:[%s12755 + $0x30] sm:$0xff]
    %v12763 = vld [vmem:[%s12755 + $0x38] sm:$0xff]
    %v12764 = vld [vmem:[%s12755 + $0x40] sm:$0xff]
    %v12765 = vld [vmem:[%s12755 + $0x48] sm:$0xff]
    %v12766 = vld [vmem:[%s12755 + $0x50] sm:$0xff]
    %v12767 = vld [vmem:[%s12755 + $0x58] sm:$0xff]
    %v12768 = vld [vmem:[%s12755 + $0x60] sm:$0xff]
    %v12769 = vld [vmem:[%s12755 + $0x68] sm:$0xff]
    %v12770 = vld [vmem:[%s12755 + $0x70] sm:$0xff]
    %v12771 = vld [vmem:[%s12755 + $0x78] sm:$0xff]
    %v12772 = vld [vmem:[%s12755 + $0x80] sm:$0xff]
    %v12773 = vld [vmem:[%s12755 + $0x88] sm:$0xff]
    %v12774 = vld [vmem:[%s12755 + $0x90] sm:$0xff]
    %v12775 = vld [vmem:[%s12755 + $0x98] sm:$0xff]
    %v12776 = vld [vmem:[%s12755 + $0xa0] sm:$0xff]
    %v12777 = vld [vmem:[%s12755 + $0xa8] sm:$0xff]
    %v12778 = vld [vmem:[%s12755 + $0xb0] sm:$0xff]
    %v12779 = vld [vmem:[%s12755 + $0xb8] sm:$0xff]
    %v12780 = vld [vmem:[%s12755 + $0xc0] sm:$0xff]
    %v12781 = vld [vmem:[%s12755 + $0xc8] sm:$0xff]
    %v12782 = vld [vmem:[%s12755 + $0xd0] sm:$0xff]
    %v12783 = vld [vmem:[%s12755 + $0xd8] sm:$0xff]
    %v12784 = vld [vmem:[%s12755 + $0xe0] sm:$0xff]
    %v12785 = vld [vmem:[%s12755 + $0xe8] sm:$0xff]
    %v12786 = vld [vmem:[%s12755 + $0xf0] sm:$0xff]
    %v12787 = vld [vmem:[%s12755 + $0xf8] sm:$0xff]
    %v12788 = vld [vmem:[%s12755 + $0x100] sm:$0xff]
    %v12789 = vld [vmem:[%s12755 + $0x108] sm:$0xff]
    %v12790 = vld [vmem:[%s12755 + $0x110] sm:$0xff]
    %v12791 = vld [vmem:[%s12755 + $0x118] sm:$0xff]
    %v12792 = vld [vmem:[%s12755 + $0x120] sm:$0xff]
    %v12793 = vld [vmem:[%s12755 + $0x128] sm:$0xff]
    %v12794 = vld [vmem:[%s12755 + $0x130] sm:$0xff]
    %v12795 = vld [vmem:[%s12755 + $0x138] sm:$0xff]
    %v12796 = vld [vmem:[%s12755 + $0x140] sm:$0xff]
    %v12797 = vld [vmem:[%s12755 + $0x148] sm:$0xff]
    %v12798 = vld [vmem:[%s12755 + $0x150] sm:$0xff]
    %v12799 = vld [vmem:[%s12755 + $0x158] sm:$0xff]
    %v12800 = vld [vmem:[%s12755 + $0x160] sm:$0xff]
    %v12801 = vld [vmem:[%s12755 + $0x168] sm:$0xff]
    %v12802 = vld [vmem:[%s12755 + $0x170] sm:$0xff]
    %v12803 = vld [vmem:[%s12755 + $0x178] sm:$0xff]
    %v12804 = vld [vmem:[%s12755 + $0x180] sm:$0xff]
    %v12805 = vld [vmem:[%s12755 + $0x188] sm:$0xff]
    %v12806 = vld [vmem:[%s12755 + $0x190] sm:$0xff]
    %v12807 = vld [vmem:[%s12755 + $0x198] sm:$0xff]
    %v12808 = vld [vmem:[%s12755 + $0x1a0] sm:$0xff]
    %v12809 = vld [vmem:[%s12755 + $0x1a8] sm:$0xff]
    %v12810 = vld [vmem:[%s12755 + $0x1b0] sm:$0xff]
    %v12811 = vld [vmem:[%s12755 + $0x1b8] sm:$0xff]
    %v12812 = vld [vmem:[%s12755 + $0x1c0] sm:$0xff]
    %v12813 = vld [vmem:[%s12755 + $0x1c8] sm:$0xff]
    %v12814 = vld [vmem:[%s12755 + $0x1d0] sm:$0xff]
    %v12815 = vld [vmem:[%s12755 + $0x1d8] sm:$0xff]
    %v12816 = vld [vmem:[%s12755 + $0x1e0] sm:$0xff]
    %v12817 = vld [vmem:[%s12755 + $0x1e8] sm:$0xff]
    %v12818 = vld [vmem:[%s12755 + $0x1f0] sm:$0xff]
    %v12819 = vld [vmem:[%s12755 + $0x1f8] sm:$0xff]
    %v12820 = vld [vmem:[%s12755 + $0x200] sm:$0xff]
    %v12821 = vld [vmem:[%s12755 + $0x208] sm:$0xff]
    %v12822 = vld [vmem:[%s12755 + $0x210] sm:$0xff]
    %v12823 = vld [vmem:[%s12755 + $0x218] sm:$0xff]
    %v12824 = vld [vmem:[%s12755 + $0x220] sm:$0xff]
    %v12825 = vld [vmem:[%s12755 + $0x228] sm:$0xff]
    %v12896 = vunpack.c.l.b16 %v12756
    %v12897 = vunpack.c.h.b16 %v12756
    %v12898 = vunpack.c.l.b16 %v12757
    %v12899 = vunpack.c.h.b16 %v12757
    %v12900 = vunpack.c.l.b16 %v12758
    %v12901 = vunpack.c.h.b16 %v12758
    %v12902 = vunpack.c.l.b16 %v12759
    %v12903 = vunpack.c.h.b16 %v12759
    %v12904 = vunpack.c.l.b16 %v12760
    %v12905 = vunpack.c.h.b16 %v12760
    %v12906 = vunpack.c.l.b16 %v12761
    %v12907 = vunpack.c.h.b16 %v12761
    %v12908 = vunpack.c.l.b16 %v12762
    %v12909 = vunpack.c.h.b16 %v12762
    %v12910 = vunpack.c.l.b16 %v12763
    %v12911 = vunpack.c.h.b16 %v12763
    %v12912 = vunpack.c.l.b16 %v12764
    %v12913 = vunpack.c.h.b16 %v12764
    %v12914 = vunpack.c.l.b16 %v12765
    %v12915 = vunpack.c.h.b16 %v12765
    %v12916 = vunpack.c.l.b16 %v12766
    %v12917 = vunpack.c.h.b16 %v12766
    %v12918 = vunpack.c.l.b16 %v12767
    %v12919 = vunpack.c.h.b16 %v12767
    %v12920 = vunpack.c.l.b16 %v12768
    %v12921 = vunpack.c.h.b16 %v12768
    %v12922 = vunpack.c.l.b16 %v12769
    %v12923 = vunpack.c.h.b16 %v12769
    %v12924 = vunpack.c.l.b16 %v12770
    %v12925 = vunpack.c.h.b16 %v12770
    %v12926 = vunpack.c.l.b16 %v12771
    %v12927 = vunpack.c.h.b16 %v12771
    %v12928 = vunpack.c.l.b16 %v12772
    %v12929 = vunpack.c.h.b16 %v12772
    %v12930 = vunpack.c.l.b16 %v12773
    %v12931 = vunpack.c.h.b16 %v12773
    %v12932 = vunpack.c.l.b16 %v12774
    %v12933 = vunpack.c.h.b16 %v12774
    %v12934 = vunpack.c.l.b16 %v12775
    %v12935 = vunpack.c.h.b16 %v12775
    %v12936 = vunpack.c.l.b16 %v12776
    %v12937 = vunpack.c.h.b16 %v12776
    %v12938 = vunpack.c.l.b16 %v12777
    %v12939 = vunpack.c.h.b16 %v12777
    %v12940 = vunpack.c.l.b16 %v12778
    %v12941 = vunpack.c.h.b16 %v12778
    %v12942 = vunpack.c.l.b16 %v12779
    %v12943 = vunpack.c.h.b16 %v12779
    %v12944 = vunpack.c.l.b16 %v12780
    %v12945 = vunpack.c.h.b16 %v12780
    %v12946 = vunpack.c.l.b16 %v12781
    %v12947 = vunpack.c.h.b16 %v12781
    %v12948 = vunpack.c.l.b16 %v12782
    %v12949 = vunpack.c.h.b16 %v12782
    %v12950 = vunpack.c.l.b16 %v12783
    %v12951 = vunpack.c.h.b16 %v12783
    %v12952 = vunpack.c.l.b16 %v12784
    %v12953 = vunpack.c.h.b16 %v12784
    %v12954 = vunpack.c.l.b16 %v12785
    %v12955 = vunpack.c.h.b16 %v12785
    %v12956 = vunpack.c.l.b16 %v12786
    %v12957 = vunpack.c.h.b16 %v12786
    %v12958 = vunpack.c.l.b16 %v12787
    %v12959 = vunpack.c.h.b16 %v12787
    %v12960 = vunpack.c.l.b16 %v12788
    %v12961 = vunpack.c.h.b16 %v12788
    %v12962 = vunpack.c.l.b16 %v12789
    %v12963 = vunpack.c.h.b16 %v12789
    %v12964 = vunpack.c.l.b16 %v12790
    %v12965 = vunpack.c.h.b16 %v12790
    %v12966 = vunpack.c.l.b16 %v12791
    %v12967 = vunpack.c.h.b16 %v12791
    %v12968 = vunpack.c.l.b16 %v12792
    %v12969 = vunpack.c.h.b16 %v12792
    %v12970 = vunpack.c.l.b16 %v12793
    %v12971 = vunpack.c.h.b16 %v12793
    %v12972 = vunpack.c.l.b16 %v12794
    %v12973 = vunpack.c.h.b16 %v12794
    %v12974 = vunpack.c.l.b16 %v12795
    %v12975 = vunpack.c.h.b16 %v12795
    %v12976 = vunpack.c.l.b16 %v12796
    %v12977 = vunpack.c.h.b16 %v12796
    %v12978 = vunpack.c.l.b16 %v12797
    %v12979 = vunpack.c.h.b16 %v12797
    %v12980 = vunpack.c.l.b16 %v12798
    %v12981 = vunpack.c.h.b16 %v12798
    %v12982 = vunpack.c.l.b16 %v12799
    %v12983 = vunpack.c.h.b16 %v12799
    %v12984 = vunpack.c.l.b16 %v12800
    %v12985 = vunpack.c.h.b16 %v12800
    %v12986 = vunpack.c.l.b16 %v12801
    %v12987 = vunpack.c.h.b16 %v12801
    %v12988 = vunpack.c.l.b16 %v12802
    %v12989 = vunpack.c.h.b16 %v12802
    %v12990 = vunpack.c.l.b16 %v12803
    %v12991 = vunpack.c.h.b16 %v12803
    %v12992 = vunpack.c.l.b16 %v12804
    %v12993 = vunpack.c.h.b16 %v12804
    %v12994 = vunpack.c.l.b16 %v12805
    %v12995 = vunpack.c.h.b16 %v12805
    %v12996 = vunpack.c.l.b16 %v12806
    %v12997 = vunpack.c.h.b16 %v12806
    %v12998 = vunpack.c.l.b16 %v12807
    %v12999 = vunpack.c.h.b16 %v12807
    %v13000 = vunpack.c.l.b16 %v12808
    %v13001 = vunpack.c.h.b16 %v12808
    %v13002 = vunpack.c.l.b16 %v12809
    %v13003 = vunpack.c.h.b16 %v12809
    %v13004 = vunpack.c.l.b16 %v12810
    %v13005 = vunpack.c.h.b16 %v12810
    %v13006 = vunpack.c.l.b16 %v12811
    %v13007 = vunpack.c.h.b16 %v12811
    %v13008 = vunpack.c.l.b16 %v12812
    %v13009 = vunpack.c.h.b16 %v12812
    %v13010 = vunpack.c.l.b16 %v12813
    %v13011 = vunpack.c.h.b16 %v12813
    %v13012 = vunpack.c.l.b16 %v12814
    %v13013 = vunpack.c.h.b16 %v12814
    %v13014 = vunpack.c.l.b16 %v12815
    %v13015 = vunpack.c.h.b16 %v12815
    %v13016 = vunpack.c.l.b16 %v12816
    %v13017 = vunpack.c.h.b16 %v12816
    %v13018 = vunpack.c.l.b16 %v12817
    %v13019 = vunpack.c.h.b16 %v12817
    %v13020 = vunpack.c.l.b16 %v12818
    %v13021 = vunpack.c.h.b16 %v12818
    %v13022 = vunpack.c.l.b16 %v12819
    %v13023 = vunpack.c.h.b16 %v12819
    %v13024 = vunpack.c.l.b16 %v12820
    %v13025 = vunpack.c.h.b16 %v12820
    %v13026 = vunpack.c.l.b16 %v12821
    %v13027 = vunpack.c.h.b16 %v12821
    %v13028 = vunpack.c.l.b16 %v12822
    %v13029 = vunpack.c.h.b16 %v12822
    %v13030 = vunpack.c.l.b16 %v12823
    %v13031 = vunpack.c.h.b16 %v12823
    %v13032 = vunpack.c.l.b16 %v12824
    %v13033 = vunpack.c.h.b16 %v12824
    %v13034 = vunpack.c.l.b16 %v12825
    %v13035 = vunpack.c.h.b16 %v12825
    %v13036 = vpack.c.b16 %v12900, %v12896
    %v13037 = vpack.c.b16 %v12901, %v12897
    %v13038 = vpack.c.b16 %v12902, %v12898
    %v13039 = vpack.c.b16 %v12903, %v12899
    %v13040 = vpack.c.b16 %v12908, %v12904
    %v13041 = vpack.c.b16 %v12909, %v12905
    %v13042 = vpack.c.b16 %v12910, %v12906
    %v13043 = vpack.c.b16 %v12911, %v12907
    %v13044 = vpack.c.b16 %v12916, %v12912
    %v13045 = vpack.c.b16 %v12917, %v12913
    %v13046 = vpack.c.b16 %v12918, %v12914
    %v13047 = vpack.c.b16 %v12919, %v12915
    %v13048 = vpack.c.b16 %v12924, %v12920
    %v13049 = vpack.c.b16 %v12925, %v12921
    %v13050 = vpack.c.b16 %v12926, %v12922
    %v13051 = vpack.c.b16 %v12927, %v12923
    %v13052 = vpack.c.b16 %v12932, %v12928
    %v13053 = vpack.c.b16 %v12933, %v12929
    %v13054 = vpack.c.b16 %v12934, %v12930
    %v13055 = vpack.c.b16 %v12935, %v12931
    %v13056 = vpack.c.b16 %v12940, %v12936
    %v13057 = vpack.c.b16 %v12941, %v12937
    %v13058 = vpack.c.b16 %v12942, %v12938
    %v13059 = vpack.c.b16 %v12943, %v12939
    %v13060 = vpack.c.b16 %v12948, %v12944
    %v13061 = vpack.c.b16 %v12949, %v12945
    %v13062 = vpack.c.b16 %v12950, %v12946
    %v13063 = vpack.c.b16 %v12951, %v12947
    %v13064 = vpack.c.b16 %v12956, %v12952
    %v13065 = vpack.c.b16 %v12957, %v12953
    %v13066 = vpack.c.b16 %v12958, %v12954
    %v13067 = vpack.c.b16 %v12959, %v12955
    %v13068 = vpack.c.b16 %v12964, %v12960
    %v13069 = vpack.c.b16 %v12965, %v12961
    %v13070 = vpack.c.b16 %v12966, %v12962
    %v13071 = vpack.c.b16 %v12967, %v12963
    %v13072 = vpack.c.b16 %v12972, %v12968
    %v13073 = vpack.c.b16 %v12973, %v12969
    %v13074 = vpack.c.b16 %v12974, %v12970
    %v13075 = vpack.c.b16 %v12975, %v12971
    %v13076 = vpack.c.b16 %v12980, %v12976
    %v13077 = vpack.c.b16 %v12981, %v12977
    %v13078 = vpack.c.b16 %v12982, %v12978
    %v13079 = vpack.c.b16 %v12983, %v12979
    %v13080 = vpack.c.b16 %v12988, %v12984
    %v13081 = vpack.c.b16 %v12989, %v12985
    %v13082 = vpack.c.b16 %v12990, %v12986
    %v13083 = vpack.c.b16 %v12991, %v12987
    %v13084 = vpack.c.b16 %v12996, %v12992
    %v13085 = vpack.c.b16 %v12997, %v12993
    %v13086 = vpack.c.b16 %v12998, %v12994
    %v13087 = vpack.c.b16 %v12999, %v12995
    %v13088 = vpack.c.b16 %v13004, %v13000
    %v13089 = vpack.c.b16 %v13005, %v13001
    %v13090 = vpack.c.b16 %v13006, %v13002
    %v13091 = vpack.c.b16 %v13007, %v13003
    %v13092 = vpack.c.b16 %v13012, %v13008
    %v13093 = vpack.c.b16 %v13013, %v13009
    %v13094 = vpack.c.b16 %v13014, %v13010
    %v13095 = vpack.c.b16 %v13015, %v13011
    %v13096 = vpack.c.b16 %v13020, %v13016
    %v13097 = vpack.c.b16 %v13021, %v13017
    %v13098 = vpack.c.b16 %v13022, %v13018
    %v13099 = vpack.c.b16 %v13023, %v13019
    %v13100 = vpack.c.b16 %v13028, %v13024
    %v13101 = vpack.c.b16 %v13029, %v13025
    %v13102 = vpack.c.b16 %v13030, %v13026
    %v13103 = vpack.c.b16 %v13031, %v13027
    %v13104 = vpack.c.b16 %v13032, %v13032
    %v13105 = vpack.c.b16 %v13033, %v13033
    %v13106 = vpack.c.b16 %v13034, %v13034
    %v13107 = vpack.c.b16 %v13035, %v13035
    %v13177 = vsel %vm2080, %v4763, 0
    %v13180 = vsel %vm2123, %v13104, 0
    %v13183 = vsel %vm2123, %v13105, 0
    %v13186 = vsel %vm2123, %v13106, 0
    %v13189 = vsel %vm2123, %v13107, 0
    %13191 = vmatprep.subr.bf16.mxu0 %v13037
    %13192 = vmatpush1.bf16.msra.mxu0 %v13036
    %13193 = vmatprep.subr.bf16.mxu0 %v13041
    %13194 = vmatpush1.bf16.msra.mxu0 %v13040
    %13195 = vmatprep.subr.bf16.mxu0 %v13045
    %13196 = vmatpush1.bf16.msra.mxu0 %v13044
    %13197 = vmatprep.subr.bf16.mxu0 %v13049
    %13198 = vmatpush1.bf16.msra.mxu0 %v13048
    %13199 = vmatprep.subr.bf16.mxu0 %v13053
    %13200 = vmatpush1.bf16.msra.mxu0 %v13052
    %13201 = vmatprep.subr.bf16.mxu0 %v13057
    %13202 = vmatpush1.bf16.msra.mxu0 %v13056
    %13203 = vmatprep.subr.bf16.mxu0 %v13061
    %13204 = vmatpush1.bf16.msra.mxu0 %v13060
    %13205 = vmatprep.subr.bf16.mxu0 %v13065
    %13206 = vmatpush1.bf16.msra.mxu0 %v13064
    %13207 = vmatprep.subr.bf16.mxu0 %v13069
    %13208 = vmatpush1.bf16.msra.mxu0 %v13068
    %13209 = vmatprep.subr.bf16.mxu0 %v13073
    %13210 = vmatpush1.bf16.msra.mxu0 %v13072
    %13211 = vmatprep.subr.bf16.mxu0 %v13077
    %13212 = vmatpush1.bf16.msra.mxu0 %v13076
    %13213 = vmatprep.subr.bf16.mxu0 %v13081
    %13214 = vmatpush1.bf16.msra.mxu0 %v13080
    %13215 = vmatprep.subr.bf16.mxu0 %v13085
    %13216 = vmatpush1.bf16.msra.mxu0 %v13084
    %13217 = vmatprep.subr.bf16.mxu0 %v13089
    %13218 = vmatpush1.bf16.msra.mxu0 %v13088
    %13219 = vmatprep.subr.bf16.mxu0 %v13093
    %13220 = vmatpush1.bf16.msra.mxu0 %v13092
    %13221 = vmatprep.subr.bf16.mxu0 %v13097
    %13222 = vmatpush1.bf16.msra.mxu0 %v13096
    %13223 = vmatprep.mubr.bf16.mxu0 %v4762
    %13224 = vmatmul.mubr.bf16.gmra.mrb[0].mxu0 %v4761
    %v13225 = vpop.f32.mrb[0].mxu0
    %v13226 = vadd.f32 0.0, %v13225
    %v13227 = vpop.f32.mrb[0].mxu0
    %v13228 = vadd.f32 0.0, %v13227
    %v13229 = vpop.f32.mrb[0].mxu0
    %v13230 = vadd.f32 0.0, %v13229
    %v13231 = vpop.f32.mrb[0].mxu0
    %v13232 = vadd.f32 0.0, %v13231
    %13233 = vdwg.mxu0
    %13234 = vmatprep.subr.bf16.mxu0 %v13101
    %13235 = vmatpush1.bf16.msra.mxu0 %v13100
    %13236 = vmatprep.subr.bf16.mxu0 %v13183
    %13237 = vmatpush1.bf16.msra.mxu0 %v13180
    %13238 = vmatprep.subr.bf16.mxu0 0
    %13239 = vmatpush1.bf16.msra.mxu0 0
    %13240 = vmatprep.subr.bf16.mxu0 0
    %13241 = vmatpush1.bf16.msra.mxu0 0
    %13242 = vmatprep.subr.bf16.mxu0 0
    %13243 = vmatpush1.bf16.msra.mxu0 0
    %13244 = vmatprep.subr.bf16.mxu0 0
    %13245 = vmatpush1.bf16.msra.mxu0 0
    %13246 = vmatprep.subr.bf16.mxu0 0
    %13247 = vmatpush1.bf16.msra.mxu0 0
    %13248 = vmatprep.subr.bf16.mxu0 0
    %13249 = vmatpush1.bf16.msra.mxu0 0
    %13250 = vmatprep.subr.bf16.mxu0 0
    %13251 = vmatpush1.bf16.msra.mxu0 0
    %13252 = vmatprep.subr.bf16.mxu0 0
    %13253 = vmatpush1.bf16.msra.mxu0 0
    %13254 = vmatprep.subr.bf16.mxu0 0
    %13255 = vmatpush1.bf16.msra.mxu0 0
    %13256 = vmatprep.subr.bf16.mxu0 0
    %13257 = vmatpush1.bf16.msra.mxu0 0
    %13258 = vmatprep.subr.bf16.mxu0 0
    %13259 = vmatpush1.bf16.msra.mxu0 0
    %13260 = vmatprep.subr.bf16.mxu0 0
    %13261 = vmatpush1.bf16.msra.mxu0 0
    %13262 = vmatprep.subr.bf16.mxu0 0
    %13263 = vmatpush1.bf16.msra.mxu0 0
    %13264 = vmatprep.subr.bf16.mxu0 0
    %13265 = vmatpush1.bf16.msra.mxu0 0
    %13266 = vmatprep.mubr.bf16.mxu0 0
    %13267 = vmatmul.mubr.bf16.gmra.mrb[0].mxu0 %v13177
    %v13268 = vpop.f32.mrb[0].mxu0
    %v13269 = vadd.f32 %v13226, %v13268
    %v13270 = vpop.f32.mrb[0].mxu0
    %v13271 = vadd.f32 %v13228, %v13270
    %v13272 = vpop.f32.mrb[0].mxu0
    %v13273 = vadd.f32 %v13230, %v13272
    %v13274 = vpop.f32.mrb[0].mxu0
    %v13275 = vadd.f32 %v13232, %v13274
    %13276 = vdwg.mxu0
    %13277 = vmatprep.subr.bf16.mxu0 %v13039
    %13278 = vmatpush1.bf16.msra.mxu0 %v13038
    %13279 = vmatprep.subr.bf16.mxu0 %v13043
    %13280 = vmatpush1.bf16.msra.mxu0 %v13042
    %13281 = vmatprep.subr.bf16.mxu0 %v13047
    %13282 = vmatpush1.bf16.msra.mxu0 %v13046
    %13283 = vmatprep.subr.bf16.mxu0 %v13051
    %13284 = vmatpush1.bf16.msra.mxu0 %v13050
    %13285 = vmatprep.subr.bf16.mxu0 %v13055
    %13286 = vmatpush1.bf16.msra.mxu0 %v13054
    %13287 = vmatprep.subr.bf16.mxu0 %v13059
    %13288 = vmatpush1.bf16.msra.mxu0 %v13058
    %13289 = vmatprep.subr.bf16.mxu0 %v13063
    %13290 = vmatpush1.bf16.msra.mxu0 %v13062
    %13291 = vmatprep.subr.bf16.mxu0 %v13067
    %13292 = vmatpush1.bf16.msra.mxu0 %v13066
    %13293 = vmatprep.subr.bf16.mxu0 %v13071
    %13294 = vmatpush1.bf16.msra.mxu0 %v13070
    %13295 = vmatprep.subr.bf16.mxu0 %v13075
    %13296 = vmatpush1.bf16.msra.mxu0 %v13074
    %13297 = vmatprep.subr.bf16.mxu0 %v13079
    %13298 = vmatpush1.bf16.msra.mxu0 %v13078
    %13299 = vmatprep.subr.bf16.mxu0 %v13083
    %13300 = vmatpush1.bf16.msra.mxu0 %v13082
    %13301 = vmatprep.subr.bf16.mxu0 %v13087
    %13302 = vmatpush1.bf16.msra.mxu0 %v13086
    %13303 = vmatprep.subr.bf16.mxu0 %v13091
    %13304 = vmatpush1.bf16.msra.mxu0 %v13090
    %13305 = vmatprep.subr.bf16.mxu0 %v13095
    %13306 = vmatpush1.bf16.msra.mxu0 %v13094
    %13307 = vmatprep.subr.bf16.mxu0 %v13099
    %13308 = vmatpush1.bf16.msra.mxu0 %v13098
    %13309 = vmatprep.mubr.bf16.mxu0 %v4762
    %13310 = vmatmul.mubr.bf16.gmra.mrb[0].mxu0 %v4761
    %v13311 = vpop.f32.mrb[0].mxu0
    %v13312 = vadd.f32 0.0, %v13311
    %v13313 = vpop.f32.mrb[0].mxu0
    %v13314 = vadd.f32 0.0, %v13313
    %v13315 = vpop.f32.mrb[0].mxu0
    %v13316 = vadd.f32 0.0, %v13315
    %v13317 = vpop.f32.mrb[0].mxu0
    %v13318 = vadd.f32 0.0, %v13317
    %13319 = vdwg.mxu0
    %13320 = vmatprep.subr.bf16.mxu0 %v13103
    %13321 = vmatpush1.bf16.msra.mxu0 %v13102
    %13322 = vmatprep.subr.bf16.mxu0 %v13189
    %13323 = vmatpush1.bf16.msra.mxu0 %v13186
    %13324 = vmatprep.subr.bf16.mxu0 0
    %13325 = vmatpush1.bf16.msra.mxu0 0
    %13326 = vmatprep.subr.bf16.mxu0 0
    %13327 = vmatpush1.bf16.msra.mxu0 0
    %13328 = vmatprep.subr.bf16.mxu0 0
    %13329 = vmatpush1.bf16.msra.mxu0 0
    %13330 = vmatprep.subr.bf16.mxu0 0
    %13331 = vmatpush1.bf16.msra.mxu0 0
    %13332 = vmatprep.subr.bf16.mxu0 0
    %13333 = vmatpush1.bf16.msra.mxu0 0
    %13334 = vmatprep.subr.bf16.mxu0 0
    %13335 = vmatpush1.bf16.msra.mxu0 0
    %13336 = vmatprep.subr.bf16.mxu0 0
    %13337 = vmatpush1.bf16.msra.mxu0 0
    %13338 = vmatprep.subr.bf16.mxu0 0
    %13339 = vmatpush1.bf16.msra.mxu0 0
    %13340 = vmatprep.subr.bf16.mxu0 0
    %13341 = vmatpush1.bf16.msra.mxu0 0
    %13342 = vmatprep.subr.bf16.mxu0 0
    %13343 = vmatpush1.bf16.msra.mxu0 0
    %13344 = vmatprep.subr.bf16.mxu0 0
    %13345 = vmatpush1.bf16.msra.mxu0 0
    %13346 = vmatprep.subr.bf16.mxu0 0
    %13347 = vmatpush1.bf16.msra.mxu0 0
    %13348 = vmatprep.subr.bf16.mxu0 0
    %13349 = vmatpush1.bf16.msra.mxu0 0
    %13350 = vmatprep.subr.bf16.mxu0 0
    %13351 = vmatpush1.bf16.msra.mxu0 0
    %13352 = vmatprep.mubr.bf16.mxu0 0
    %13353 = vmatmul.mubr.bf16.gmra.mrb[0].mxu0 %v13177
    %v13354 = vpop.f32.mrb[0].mxu0
    %v13355 = vadd.f32 %v13312, %v13354
    %v13356 = vpop.f32.mrb[0].mxu0
    %v13357 = vadd.f32 %v13314, %v13356
    %v13358 = vpop.f32.mrb[0].mxu0
    %v13359 = vadd.f32 %v13316, %v13358
    %v13360 = vpop.f32.mrb[0].mxu0
    %v13361 = vadd.f32 %v13318, %v13360
    %13362 = vdwg.mxu0
    %v13363 = vadd.f32 %v12747, %v13269
    %v13364 = vadd.f32 %v12748, %v13271
    %v13365 = vadd.f32 %v12749, %v13355
    %v13366 = vadd.f32 %v12750, %v13357
    %v13367 = vadd.f32 %v12751, %v13273
    %v13368 = vadd.f32 %v12752, %v13275
    %v13369 = vadd.f32 %v12753, %v13359
    %v13370 = vadd.f32 %v12754, %v13361
    %v13371 = vld [vmem:[#allocation9] sm:$0xf]
    %v13373 = vlaneseq
    %v13374 = vshrl.u32 %v13373, 7
    %v13375 = vsub.s32 0, %v13374
    %v13376 = vrot.slane %v13371, %v13375
    %v13377 = vlaneseq
    %v13378 = vshrl.u32 %v13377, 7
    %v13379 = vsub.s32 1, %v13378
    %v13380 = vrot.slane %v13371, %v13379
    %v13381 = vlaneseq
    %v13382 = vshrl.u32 %v13381, 7
    %v13383 = vsub.s32 2, %v13382
    %v13384 = vrot.slane %v13371, %v13383
    %v13385 = vlaneseq
    %v13386 = vshrl.u32 %v13385, 7
    %v13387 = vsub.s32 3, %v13386
    %v13388 = vrot.slane %v13371, %v13387
    %v13393 = vadd.f32 %v13363, %v13376
    %v13394 = vadd.f32 %v13364, %v13380
    %v13395 = vadd.f32 %v13365, %v13384
    %v13396 = vadd.f32 %v13366, %v13388
    %v13397 = vadd.f32 %v13367, %v13376
    %v13398 = vadd.f32 %v13368, %v13380
    %v13399 = vadd.f32 %v13369, %v13384
    %v13400 = vadd.f32 %v13370, %v13388
    %v13401 = vmax.f32 %v13393, 0.0
    %v13402 = vmax.f32 %v13394, 0.0
    %v13403 = vmax.f32 %v13395, 0.0
    %v13404 = vmax.f32 %v13396, 0.0
    %v13405 = vmax.f32 %v13397, 0.0
    %v13406 = vmax.f32 %v13398, 0.0
    %v13407 = vmax.f32 %v13399, 0.0
    %v13408 = vmax.f32 %v13400, 0.0
    %v13409 = vpack.c.bf16 %v13405, %v13401
    %v13410 = vpack.c.bf16 %v13406, %v13402
    %v13411 = vpack.c.bf16 %v13407, %v13403
    %v13412 = vpack.c.bf16 %v13408, %v13404
    %v13413 = vld [vmem:[%s8] sm:$0xf]
    %v13414 = vld [vmem:[%s8 + $0x4] sm:$0xf]
    %v13415 = vld [vmem:[%s8 + $0x8] sm:$0xf]
    %v13416 = vld [vmem:[%s8 + $0xc] sm:$0xf]
    %v13417 = vld [vmem:[%s8 + $0x10] sm:$0xf]
    %v13418 = vld [vmem:[%s8 + $0x14] sm:$0xf]
    %v13419 = vld [vmem:[%s8 + $0x18] sm:$0xf]
    %v13420 = vld [vmem:[%s8 + $0x1c] sm:$0xf]
    %v13421 = vld [vmem:[%s8 + $0x20] sm:$0xf]
    %v13422 = vld [vmem:[%s8 + $0x24] sm:$0xf]
    %v13423 = vld [vmem:[%s8 + $0x28] sm:$0xf]
    %v13424 = vld [vmem:[%s8 + $0x2c] sm:$0xf]
    %v13425 = vld [vmem:[%s8 + $0x30] sm:$0xf]
    %v13426 = vld [vmem:[%s8 + $0x34] sm:$0xf]
    %v13427 = vld [vmem:[%s8 + $0x38] sm:$0xf]
    %v13428 = vld [vmem:[%s8 + $0x3c] sm:$0xf]
    %v13429 = vld [vmem:[%s8 + $0x40] sm:$0xf]
    %v13430 = vld [vmem:[%s8 + $0x44] sm:$0xf]
    %v13431 = vld [vmem:[%s8 + $0x48] sm:$0xf]
    %v13432 = vld [vmem:[%s8 + $0x4c] sm:$0xf]
    %v13433 = vld [vmem:[%s8 + $0x50] sm:$0xf]
    %v13434 = vld [vmem:[%s8 + $0x54] sm:$0xf]
    %v13435 = vld [vmem:[%s8 + $0x58] sm:$0xf]
    %v13436 = vld [vmem:[%s8 + $0x5c] sm:$0xf]
    %v13437 = vld [vmem:[%s8 + $0x60] sm:$0xf]
    %v13438 = vld [vmem:[%s8 + $0x64] sm:$0xf]
    %v13439 = vld [vmem:[%s8 + $0x68] sm:$0xf]
    %v13440 = vld [vmem:[%s8 + $0x6c] sm:$0xf]
    %v13441 = vld [vmem:[%s8 + $0x70] sm:$0xf]
    %v13442 = vld [vmem:[%s8 + $0x74] sm:$0xf]
    %v13443 = vld [vmem:[%s8 + $0x78] sm:$0xf]
    %v13444 = vld [vmem:[%s8 + $0x7c] sm:$0xf]
    %v13445 = vld [vmem:[%s8 + $0x80] sm:$0xf]
    %v13446 = vld [vmem:[%s8 + $0x84] sm:$0xf]
    %v13447 = vld [vmem:[%s8 + $0x88] sm:$0xf]
    %v13448 = vld [vmem:[%s8 + $0x8c] sm:$0xf]
    %v13449 = vld [vmem:[%s8 + $0x90] sm:$0xf]
    %v13450 = vld [vmem:[%s8 + $0x94] sm:$0xf]
    %v13451 = vld [vmem:[%s8 + $0x98] sm:$0xf]
    %v13452 = vld [vmem:[%s8 + $0x9c] sm:$0xf]
    %v13453 = vld [vmem:[%s8 + $0xa0] sm:$0xf]
    %v13454 = vld [vmem:[%s8 + $0xa4] sm:$0xf]
    %v13455 = vld [vmem:[%s8 + $0xa8] sm:$0xf]
    %v13456 = vld [vmem:[%s8 + $0xac] sm:$0xf]
    %v13457 = vld [vmem:[%s8 + $0xb0] sm:$0xf]
    %v13458 = vld [vmem:[%s8 + $0xb4] sm:$0xf]
    %v13459 = vld [vmem:[%s8 + $0xb8] sm:$0xf]
    %v13460 = vld [vmem:[%s8 + $0xbc] sm:$0xf]
    %v13461 = vld [vmem:[%s8 + $0xc0] sm:$0xf]
    %v13462 = vld [vmem:[%s8 + $0xc4] sm:$0xf]
    %v13463 = vld [vmem:[%s8 + $0xc8] sm:$0xf]
    %v13464 = vld [vmem:[%s8 + $0xcc] sm:$0xf]
    %v13465 = vld [vmem:[%s8 + $0xd0] sm:$0xf]
    %v13466 = vld [vmem:[%s8 + $0xd4] sm:$0xf]
    %v13467 = vld [vmem:[%s8 + $0xd8] sm:$0xf]
    %v13468 = vld [vmem:[%s8 + $0xdc] sm:$0xf]
    %v13469 = vld [vmem:[%s8 + $0xe0] sm:$0xf]
    %v13470 = vld [vmem:[%s8 + $0xe4] sm:$0xf]
    %v13471 = vld [vmem:[%s8 + $0xe8] sm:$0xf]
    %v13472 = vld [vmem:[%s8 + $0xec] sm:$0xf]
    %v13473 = vld [vmem:[%s8 + $0xf0] sm:$0xf]
    %v13474 = vld [vmem:[%s8 + $0xf4] sm:$0xf]
    %v13475 = vld [vmem:[%s8 + $0xf8] sm:$0x3]
    %v13476 = vld [vmem:[#allocation10] sm:$0x1]
    %v13478 = vlaneseq
    %v13479 = vshrl.u32 %v13478, 7
    %v13480 = vsub.s32 0, %v13479
    %v13481 = vrot.slane %v13476, %v13480
    %v13546 = vunpack.c.l.b16 %v13413
    %v13547 = vunpack.c.l.b16 %v13414
    %v13548 = vunpack.c.l.b16 %v13415
    %v13549 = vunpack.c.l.b16 %v13416
    %v13550 = vunpack.c.l.b16 %v13417
    %v13551 = vunpack.c.l.b16 %v13418
    %v13552 = vunpack.c.l.b16 %v13419
    %v13553 = vunpack.c.l.b16 %v13420
    %v13554 = vunpack.c.l.b16 %v13421
    %v13555 = vunpack.c.l.b16 %v13422
    %v13556 = vunpack.c.l.b16 %v13423
    %v13557 = vunpack.c.l.b16 %v13424
    %v13558 = vunpack.c.l.b16 %v13425
    %v13559 = vunpack.c.l.b16 %v13426
    %v13560 = vunpack.c.l.b16 %v13427
    %v13561 = vunpack.c.l.b16 %v13428
    %v13562 = vunpack.c.l.b16 %v13429
    %v13563 = vunpack.c.l.b16 %v13430
    %v13564 = vunpack.c.l.b16 %v13431
    %v13565 = vunpack.c.l.b16 %v13432
    %v13566 = vunpack.c.l.b16 %v13433
    %v13567 = vunpack.c.l.b16 %v13434
    %v13568 = vunpack.c.l.b16 %v13435
    %v13569 = vunpack.c.l.b16 %v13436
    %v13570 = vunpack.c.l.b16 %v13437
    %v13571 = vunpack.c.l.b16 %v13438
    %v13572 = vunpack.c.l.b16 %v13439
    %v13573 = vunpack.c.l.b16 %v13440
    %v13574 = vunpack.c.l.b16 %v13441
    %v13575 = vunpack.c.l.b16 %v13442
    %v13576 = vunpack.c.l.b16 %v13443
    %v13577 = vunpack.c.l.b16 %v13444
    %v13578 = vunpack.c.l.b16 %v13445
    %v13579 = vunpack.c.l.b16 %v13446
    %v13580 = vunpack.c.l.b16 %v13447
    %v13581 = vunpack.c.l.b16 %v13448
    %v13582 = vunpack.c.l.b16 %v13449
    %v13583 = vunpack.c.l.b16 %v13450
    %v13584 = vunpack.c.l.b16 %v13451
    %v13585 = vunpack.c.l.b16 %v13452
    %v13586 = vunpack.c.l.b16 %v13453
    %v13587 = vunpack.c.l.b16 %v13454
    %v13588 = vunpack.c.l.b16 %v13455
    %v13589 = vunpack.c.l.b16 %v13456
    %v13590 = vunpack.c.l.b16 %v13457
    %v13591 = vunpack.c.l.b16 %v13458
    %v13592 = vunpack.c.l.b16 %v13459
    %v13593 = vunpack.c.l.b16 %v13460
    %v13594 = vunpack.c.l.b16 %v13461
    %v13595 = vunpack.c.l.b16 %v13462
    %v13596 = vunpack.c.l.b16 %v13463
    %v13597 = vunpack.c.l.b16 %v13464
    %v13598 = vunpack.c.l.b16 %v13465
    %v13599 = vunpack.c.l.b16 %v13466
    %v13600 = vunpack.c.l.b16 %v13467
    %v13601 = vunpack.c.l.b16 %v13468
    %v13602 = vunpack.c.l.b16 %v13469
    %v13603 = vunpack.c.l.b16 %v13470
    %v13604 = vunpack.c.l.b16 %v13471
    %v13605 = vunpack.c.l.b16 %v13472
    %v13606 = vunpack.c.l.b16 %v13473
    %v13607 = vunpack.c.l.b16 %v13474
    %v13608 = vunpack.c.l.b16 %v13475
    %v13609 = vpack.c.b16 %v13547, %v13546
    %v13610 = vpack.c.b16 %v13549, %v13548
    %v13611 = vpack.c.b16 %v13551, %v13550
    %v13612 = vpack.c.b16 %v13553, %v13552
    %v13613 = vpack.c.b16 %v13555, %v13554
    %v13614 = vpack.c.b16 %v13557, %v13556
    %v13615 = vpack.c.b16 %v13559, %v13558
    %v13616 = vpack.c.b16 %v13561, %v13560
    %v13617 = vpack.c.b16 %v13563, %v13562
    %v13618 = vpack.c.b16 %v13565, %v13564
    %v13619 = vpack.c.b16 %v13567, %v13566
    %v13620 = vpack.c.b16 %v13569, %v13568
    %v13621 = vpack.c.b16 %v13571, %v13570
    %v13622 = vpack.c.b16 %v13573, %v13572
    %v13623 = vpack.c.b16 %v13575, %v13574
    %v13624 = vpack.c.b16 %v13577, %v13576
    %v13625 = vpack.c.b16 %v13579, %v13578
    %v13626 = vpack.c.b16 %v13581, %v13580
    %v13627 = vpack.c.b16 %v13583, %v13582
    %v13628 = vpack.c.b16 %v13585, %v13584
    %v13629 = vpack.c.b16 %v13587, %v13586
    %v13630 = vpack.c.b16 %v13589, %v13588
    %v13631 = vpack.c.b16 %v13591, %v13590
    %v13632 = vpack.c.b16 %v13593, %v13592
    %v13633 = vpack.c.b16 %v13595, %v13594
    %v13634 = vpack.c.b16 %v13597, %v13596
    %v13635 = vpack.c.b16 %v13599, %v13598
    %v13636 = vpack.c.b16 %v13601, %v13600
    %v13637 = vpack.c.b16 %v13603, %v13602
    %v13638 = vpack.c.b16 %v13605, %v13604
    %v13639 = vpack.c.b16 %v13607, %v13606
    %v13640 = vpack.c.b16 %v13608, %v13608
    %vm13672 = vcmask 949248
    %v13674 = vsel %vm13672, %v13412, 0
    %v13677 = vsel %vm3992, %v13640, 0
    %13679 = vmatprep.subr.bf16.mxu0 0
    %13680 = vmatpush1.bf16.msra.mxu0 %v13609
    %13681 = vmatprep.subr.bf16.mxu0 0
    %13682 = vmatpush1.bf16.msra.mxu0 %v13610
    %13683 = vmatprep.subr.bf16.mxu0 0
    %13684 = vmatpush1.bf16.msra.mxu0 %v13611
    %13685 = vmatprep.subr.bf16.mxu0 0
    %13686 = vmatpush1.bf16.msra.mxu0 %v13612
    %13687 = vmatprep.subr.bf16.mxu0 0
    %13688 = vmatpush1.bf16.msra.mxu0 %v13613
    %13689 = vmatprep.subr.bf16.mxu0 0
    %13690 = vmatpush1.bf16.msra.mxu0 %v13614
    %13691 = vmatprep.subr.bf16.mxu0 0
    %13692 = vmatpush1.bf16.msra.mxu0 %v13615
    %13693 = vmatprep.subr.bf16.mxu0 0
    %13694 = vmatpush1.bf16.msra.mxu0 %v13616
    %13695 = vmatprep.subr.bf16.mxu0 0
    %13696 = vmatpush1.bf16.msra.mxu0 %v13617
    %13697 = vmatprep.subr.bf16.mxu0 0
    %13698 = vmatpush1.bf16.msra.mxu0 %v13618
    %13699 = vmatprep.subr.bf16.mxu0 0
    %13700 = vmatpush1.bf16.msra.mxu0 %v13619
    %13701 = vmatprep.subr.bf16.mxu0 0
    %13702 = vmatpush1.bf16.msra.mxu0 %v13620
    %13703 = vmatprep.subr.bf16.mxu0 0
    %13704 = vmatpush1.bf16.msra.mxu0 %v13621
    %13705 = vmatprep.subr.bf16.mxu0 0
    %13706 = vmatpush1.bf16.msra.mxu0 %v13622
    %13707 = vmatprep.subr.bf16.mxu0 0
    %13708 = vmatpush1.bf16.msra.mxu0 %v13623
    %13709 = vmatprep.subr.bf16.mxu0 0
    %13710 = vmatpush1.bf16.msra.mxu0 %v13624
    %13711 = vmatprep.mubr.bf16.mxu0 %v13410
    %13712 = vmatmul.mubr.bf16.gmra.mrb[0].mxu0 %v13409
    %v13713 = vpop.f32.mrb[0].mxu0
    %v13714 = vadd.f32 %v13481, %v13713
    %v13715 = vpop.f32.mrb[0].mxu0
    %v13716 = vpop.f32.mrb[0].mxu0
    %v13717 = vadd.f32 %v13481, %v13716
    %v13718 = vpop.f32.mrb[0].mxu0
    %13719 = vdwg.mxu0
    %13720 = vmatprep.subr.bf16.mxu0 0
    %13721 = vmatpush1.bf16.msra.mxu0 %v13625
    %13722 = vmatprep.subr.bf16.mxu0 0
    %13723 = vmatpush1.bf16.msra.mxu0 %v13626
    %13724 = vmatprep.subr.bf16.mxu0 0
    %13725 = vmatpush1.bf16.msra.mxu0 %v13627
    %13726 = vmatprep.subr.bf16.mxu0 0
    %13727 = vmatpush1.bf16.msra.mxu0 %v13628
    %13728 = vmatprep.subr.bf16.mxu0 0
    %13729 = vmatpush1.bf16.msra.mxu0 %v13629
    %13730 = vmatprep.subr.bf16.mxu0 0
    %13731 = vmatpush1.bf16.msra.mxu0 %v13630
    %13732 = vmatprep.subr.bf16.mxu0 0
    %13733 = vmatpush1.bf16.msra.mxu0 %v13631
    %13734 = vmatprep.subr.bf16.mxu0 0
    %13735 = vmatpush1.bf16.msra.mxu0 %v13632
    %13736 = vmatprep.subr.bf16.mxu0 0
    %13737 = vmatpush1.bf16.msra.mxu0 %v13633
    %13738 = vmatprep.subr.bf16.mxu0 0
    %13739 = vmatpush1.bf16.msra.mxu0 %v13634
    %13740 = vmatprep.subr.bf16.mxu0 0
    %13741 = vmatpush1.bf16.msra.mxu0 %v13635
    %13742 = vmatprep.subr.bf16.mxu0 0
    %13743 = vmatpush1.bf16.msra.mxu0 %v13636
    %13744 = vmatprep.subr.bf16.mxu0 0
    %13745 = vmatpush1.bf16.msra.mxu0 %v13637
    %13746 = vmatprep.subr.bf16.mxu0 0
    %13747 = vmatpush1.bf16.msra.mxu0 %v13638
    %13748 = vmatprep.subr.bf16.mxu0 0
    %13749 = vmatpush1.bf16.msra.mxu0 %v13639
    %13750 = vmatprep.subr.bf16.mxu0 0
    %13751 = vmatpush1.bf16.msra.mxu0 %v13677
    %13752 = vmatprep.mubr.bf16.mxu0 %v13674
    %13753 = vmatmul.mubr.bf16.gmra.mrb[0].mxu0 %v13411
    %v13754 = vpop.f32.mrb[0].mxu0
    %v13755 = vadd.f32 %v13714, %v13754
    %v13756 = vpop.f32.mrb[0].mxu0
    %v13757 = vpop.f32.mrb[0].mxu0
    %v13758 = vadd.f32 %v13717, %v13757
    %v13759 = vpop.f32.mrb[0].mxu0
    %13760 = vdwg.mxu0
    %vm13761 = vcmask 80896
    %v13762 = vsel %vm13761, %v13755, -inf
    %13763 = vmax.xlane.f32.xlu0 %v13762
    %v13764 = vpop.xlane.xlu0 %13763
    %v13765 = vsel %vm13761, %v13758, -inf
    %13766 = vmax.xlane.f32.xlu0 %v13765
    %v13767 = vpop.xlane.xlu0 %13766
    %v13768 = vsub.f32 %v13755, %v13764
    %v13769 = vsub.f32 %v13758, %v13767
    %v13770 = vmul.f32 %v13768, 1.442695
    %v13771 = vpow.pop %v13770
    %v13772 = vmul.f32 %v13769, 1.442695
    %v13773 = vpow.pop %v13772
    %v13774 = vsel %vm13761, %v13771, 0.0
    %13775 = vadd.xlane.f32.xlu0 %v13774
    %v13776 = vpop.xlane.xlu0 %13775
    %v13777 = vsel %vm13761, %v13773, 0.0
    %13778 = vadd.xlane.f32.xlu0 %v13777
    %v13779 = vpop.xlane.xlu0 %13778
    %v13780 = vlog2.pop %v13776
    %v13781 = vmul.f32 %v13780, 0.6931472
    %v13782 = vlog2.pop %v13779
    %v13783 = vmul.f32 %v13782, 0.6931472
    %v13784 = vsub.f32 %v13768, %v13781
    %v13785 = vsub.f32 %v13769, %v13783
    %13786 = vst.msk [vmem:[%s10] sm:$0xff] %vm13761, %v13784
    %13787 = vst.msk [vmem:[%s10 + $0x8] sm:$0xff] %vm13761, %v13785
    // Predicated region
    $region66: #{digit_forward.1} parent=1 // pred_check
      _
    $region67: #{digit_forward.1} parent=1 // pred_check_branch
      %13789 = sbr.rel (0) target = $region69
    $region68: #{digit_forward.1} parent=1 // pred_region
      _
    $region69: #{digit_forward.1} parent=1 // pred_fallthru
      _
    // Predicated region
    $region70: #{digit_forward.1} parent=1 // pred_check
      _
    $region71: #{digit_forward.1} parent=1 // pred_check_branch
      %13791 = sbr.rel (0) target = $region73
    $region72: #{digit_forward.1} parent=1 // pred_region
      _
    $region73: #{digit_forward.1} parent=1 // pred_fallthru
      _
    %13792 = vsyncpa [#allocation3], 1
    %13793 = vsyncpa [#allocation5], 1
    %13794 = vsyncpa [#allocation8], 1
    %13795 = vsyncpa [#allocation11], 1

</llo_original>
